<compile_context>
chip_gen: v7x
topology: tpu7x:2x2x1
jax: 0.10.0
libtpu: 0.0.40
codegen_flags: <defaults>
</compile_context>

<pallas_src>
import functools

import numpy as np

import jax
import jax.numpy as jnp
from jax.experimental import pallas as pl
from jax.experimental.pallas import tpu as pltpu


# ----------------------------------------------------------------------------
# Fused stage kernel
# ----------------------------------------------------------------------------

def _stage_kernel(x_ref, shift_ref, cpar_ref, bcdt_w_ref, kwm_ref, a_ref,
                  wh_ref, wz_ref, wout_ref, fc1_w_ref, hpar_ref, fc2_w_ref,
                  d_ref, xo_ref, ho_ref, *, depth, L, S, ln_eps):
    f32 = jnp.float32
    x = x_ref[0].astype(f32)                               # (L, C)
    shift = shift_ref[...].astype(f32)                     # (9L, L)

    def dwconv(v, kw_row):
        # Depthwise 3x3 conv (stride 1, zero pad 1) on the (L, C) sequence layout:
        # one MXU matmul against the shared shift/gather matrix, then 9 per-channel FMAs.
        taps = jnp.dot(shift, v, preferred_element_type=f32)          # (9L, Cc)
        acc = taps[0:L] * kw_row(0)
        for t in range(1, 9):
            acc = acc + taps[t * L:(t + 1) * L] * kw_row(t)
        return acc

    h_last = None
    for blk in range(depth):                               # statically unrolled (small depth)
        cp = cpar_ref[blk].astype(f32)                     # (30, C) packed per-channel params
        a0 = jax.nn.sigmoid(cp[0:1])
        a1 = jax.nn.sigmoid(cp[1:2])
        a2 = jax.nn.sigmoid(cp[2:3])
        a3 = jax.nn.sigmoid(cp[3:4])

        # ---- dwconv1 (+ folded BN) + alpha0 residual blend (fused epilogue)
        c1 = dwconv(x, lambda t: cp[4 + t:5 + t]) * cp[13:14] + cp[14:15]
        x = (1.0 - a0) * x + a0 * c1
        x_prev = x

        # ---- LayerNorm1D over channels
        mu = jnp.mean(x, axis=-1, keepdims=True)
        xc = x - mu
        var = jnp.mean(xc * xc, axis=-1, keepdims=True)
        xn = xc * jax.lax.rsqrt(var + ln_eps) * cp[15:16] + cp[16:17]

        # ---- HSMSSD mixer
        kwm = kwm_ref[blk].astype(f32)                     # (9, 3S) mixer dw tap weights
        proj = jnp.dot(xn, bcdt_w_ref[blk].astype(f32),
                       preferred_element_type=f32)         # (L, 3S)  (no bias/BN)
        bcdt = dwconv(proj, lambda t: kwm[t:t + 1])        # (L, 3S)

        B_m = bcdt[:, 0:S]                                 # (L, S)
        C_m = bcdt[:, S:2 * S]                             # (L, S)
        dt = bcdt[:, 2 * S:3 * S]                          # (L, S)

        logits = dt + a_ref[blk].astype(f32)               # (L, S); softmax over L
        m = jnp.max(logits, axis=0, keepdims=True)
        e = jnp.exp(logits - m)
        A_soft = e / jnp.sum(e, axis=0, keepdims=True)
        AB = A_soft * B_m                                  # (L, S)

        # transpose AB once -> standard minor-dim MXU contraction
        h_sc = jnp.dot(AB.T, xn, preferred_element_type=f32)            # (S, C)

        h1 = jnp.dot(h_sc, wh_ref[blk].astype(f32), preferred_element_type=f32)  # (S, Di)
        z = jnp.dot(h_sc, wz_ref[blk].astype(f32), preferred_element_type=f32)   # (S, Di)
        d = d_ref[blk]                                     # scalar from SMEM
        hmix = h1 * (z * jax.nn.sigmoid(z) + d)            # h*silu(z) + h*D
        h_out = jnp.dot(hmix, wout_ref[blk].astype(f32),
                        preferred_element_type=f32)        # (S, C)
        y = jnp.dot(C_m, h_out, preferred_element_type=f32)              # (L, C)
        x = (1.0 - a1) * x_prev + a1 * y

        # ---- dwconv2 (+ folded BN) + alpha2 blend
        c2 = dwconv(x, lambda t: cp[17 + t:18 + t]) * cp[26:27] + cp[27:28]
        x = (1.0 - a2) * x + a2 * c2

        # ---- FFN (fc1 + BN + ReLU -> fc2 + BN), fused, + alpha3 blend
        hp = hpar_ref[blk].astype(f32)                     # (2, hidden)
        f = jnp.dot(x, fc1_w_ref[blk].astype(f32), preferred_element_type=f32)
        f = jnp.maximum(f * hp[0:1] + hp[1:2], 0.0)
        f = jnp.dot(f, fc2_w_ref[blk].astype(f32), preferred_element_type=f32)
        f = f * cp[28:29] + cp[29:30]
        x = (1.0 - a3) * x + a3 * f

        h_last = h_out

    xo_ref[0] = x.astype(xo_ref.dtype)
    ho_ref[0] = h_last.astype(ho_ref.dtype)


# ----------------------------------------------------------------------------
# Wrapper (stage forward, downsample=None path)
# ----------------------------------------------------------------------------

def make_shift_matrix(H, W):
    """(9L, L) gather matrix encoding the 9 taps of a zero-padded 3x3 window.

    Row block t = (dh+1)*3 + (dw+1) maps l_out = h*W+w -> l_in = (h+dh)*W + (w+dw)
    (zero row when out of bounds), matching a (3,3,C) tap weight reshaped to (9, C).
    """
    L = H * W
    mat = np.zeros((9 * L, L), np.float32)
    t = 0
    for dh in (-1, 0, 1):
        for dw in (-1, 0, 1):
            for h in range(H):
                h2 = h + dh
                if 0 <= h2 < H:
                    for w in range(W):
                        w2 = w + dw
                        if 0 <= w2 < W:
                            mat[t * L + h * W + w, h2 * W + w2] = 1.0
            t += 1
    return jnp.asarray(mat)


def efficientvim_stage(x_nchw, params):
    """Matches EfficientViMStage.forward with downsample=None.

    x_nchw: (B, C, H, W).  Returns (x, x_out, h): (B,C,H,W), (B,C,H,W), (B,C,state_dim).
    """
    B, C, H, W = x_nchw.shape
    L = H * W
    depth = params["cpar"].shape[0]
    S = params["A"].shape[-1]
    Di = params["wout"].shape[1]
    hidden = params["fc1_w"].shape[2]

    x_seq = jnp.transpose(x_nchw, (0, 2, 3, 1)).reshape(B, L, C)   # NCHW -> (B, L, C)
    shift = make_shift_matrix(H, W)                                # (9L, L) constant

    kernel = functools.partial(_stage_kernel, depth=depth, L=L, S=S, ln_eps=1e-5)
    x_out_seq, h = pl.pallas_call(
        kernel,
        out_shape=(jax.ShapeDtypeStruct((B, L, C), x_seq.dtype),
                   jax.ShapeDtypeStruct((B, S, C), x_seq.dtype)),
        grid=(B,),
        in_specs=[
            pl.BlockSpec((1, L, C), lambda b: (b, 0, 0)),               # x
            pl.BlockSpec((9 * L, L), lambda b: (0, 0)),                 # shift matrix
            pl.BlockSpec((depth, 30, C), lambda b: (0, 0, 0)),          # packed per-C params
            pl.BlockSpec((depth, C, 3 * S), lambda b: (0, 0, 0)),       # BCdt proj
            pl.BlockSpec((depth, 9, 3 * S), lambda b: (0, 0, 0)),       # mixer dw taps
            pl.BlockSpec((depth, 1, S), lambda b: (0, 0, 0)),           # A
            pl.BlockSpec((depth, C, Di), lambda b: (0, 0, 0)),          # hz_proj (h half)
            pl.BlockSpec((depth, C, Di), lambda b: (0, 0, 0)),          # hz_proj (z half)
            pl.BlockSpec((depth, Di, C), lambda b: (0, 0, 0)),          # out_proj
            pl.BlockSpec((depth, C, hidden), lambda b: (0, 0, 0)),      # fc1
            pl.BlockSpec((depth, 2, hidden), lambda b: (0, 0, 0)),      # fc1 scale/bias
            pl.BlockSpec((depth, hidden, C), lambda b: (0, 0, 0)),      # fc2
            pl.BlockSpec(memory_space=pltpu.MemorySpace.SMEM),          # D scalars
        ],
        out_specs=(pl.BlockSpec((1, L, C), lambda b: (b, 0, 0)),
                   pl.BlockSpec((1, S, C), lambda b: (b, 0, 0))),
        compiler_params=pltpu.CompilerParams(dimension_semantics=("parallel",)),
    )(x_seq, shift, params["cpar"], params["bcdt_w"], params["kwm"], params["A"],
      params["wh"], params["wz"], params["wout"], params["fc1_w"], params["hpar"],
      params["fc2_w"], params["D"])

    x_out = jnp.transpose(x_out_seq.reshape(B, H, W, C), (0, 3, 1, 2))   # -> NCHW
    h_out = jnp.transpose(h, (0, 2, 1))                                  # -> (B, C, S)
    # TODO(synk): downsample module was not provided (downsample=None path only).
    return x_out, x_out, h_out


# ----------------------------------------------------------------------------
# Deterministic parameter initialization (packed / stacked over depth)
# ----------------------------------------------------------------------------

def init_stage_params(key, depth, dim, state_dim, mlp_ratio, ssd_expand=1):
    d_inner = int(ssd_expand * dim)
    hidden = int(dim * mlp_ratio)
    S3 = 3 * state_dim

    def nrm(k, shape, scale=0.1):
        return (scale * jax.random.normal(k, shape)).astype(jnp.float32)

    cpar, hpar, bcdt_w, kwm, A, wh, wz, wout, fc1_w, fc2_w, D = ([] for _ in range(11))
    for kb in jax.random.split(key, depth):
        ks = jax.random.split(kb, 16)
        alpha = 1e-4 * jnp.ones((4, dim), jnp.float32) + nrm(ks[0], (4, dim), 0.5)
        dw1_w = nrm(ks[1], (3, 3, dim)).reshape(9, dim)
        dw1_s = 1.0 + nrm(ks[2], (1, dim), 0.05)
        dw1_b = nrm(ks[3], (1, dim), 0.05)
        ln_g = jnp.ones((1, dim), jnp.float32)
        ln_b = jnp.zeros((1, dim), jnp.float32)
        dw2_w = nrm(ks[9], (3, 3, dim)).reshape(9, dim)
        dw2_s = 1.0 + nrm(ks[10], (1, dim), 0.05)
        dw2_b = nrm(ks[11], (1, dim), 0.05)
        fc2_s = jnp.ones((1, dim), jnp.float32)
        fc2_b = jnp.zeros((1, dim), jnp.float32)
        # rows: 0-3 alpha | 4-12 dw1 taps | 13 dw1 s | 14 dw1 b | 15 ln_g | 16 ln_b
        #       17-25 dw2 taps | 26 dw2 s | 27 dw2 b | 28 fc2 s | 29 fc2 b
        cpar.append(jnp.concatenate(
            [alpha, dw1_w, dw1_s, dw1_b, ln_g, ln_b, dw2_w, dw2_s, dw2_b, fc2_s, fc2_b],
            axis=0))
        hpar.append(jnp.concatenate(
            [1.0 + nrm(ks[13], (1, hidden), 0.05), jnp.zeros((1, hidden), jnp.float32)],
            axis=0))
        bcdt_w.append(nrm(ks[4], (dim, S3)))
        kwm.append(nrm(ks[5], (3, 3, S3)).reshape(9, S3))
        A.append(jax.random.uniform(ks[6], (1, state_dim), jnp.float32, 1.0, 16.0))
        whz = nrm(ks[7], (dim, 2 * d_inner))
        wh.append(whz[:, :d_inner])
        wz.append(whz[:, d_inner:])
        wout.append(nrm(ks[8], (d_inner, dim)))
        fc1_w.append(nrm(ks[12], (dim, hidden)))
        fc2_w.append(nrm(ks[14], (hidden, dim)))
        D.append(jnp.ones((), jnp.float32))

    stack = lambda xs: jnp.stack(xs, axis=0)
    return dict(cpar=stack(cpar), hpar=stack(hpar), bcdt_w=stack(bcdt_w), kwm=stack(kwm),
                A=stack(A), wh=stack(wh), wz=stack(wz), wout=stack(wout),
                fc1_w=stack(fc1_w), fc2_w=stack(fc2_w), D=stack(D))


# ----------------------------------------------------------------------------
# Main
# ----------------------------------------------------------------------------

if __name__ == "__main__":
    B, dim, H, W = 2, 32, 8, 8
    state_dim = 16
    mlp_ratio = 4.0
    depth = 2

    key = jax.random.PRNGKey(0)
    kx, kp = jax.random.split(key)
    x = jax.random.normal(kx, (B, dim, H, W), dtype=jnp.float32)   # PyTorch NCHW input
    params = init_stage_params(kp, depth, dim, state_dim, mlp_ratio)

    stage_fn = jax.jit(efficientvim_stage)
    x_ds, x_out, h = stage_fn(x, params)
    jax.block_until_ready((x_ds, x_out, h))

    assert x_ds.shape == (B, dim, H, W)
    assert x_out.shape == (B, dim, H, W)
    assert h.shape == (B, dim, state_dim)
    assert bool(jnp.all(jnp.isfinite(x_ds))) and bool(jnp.all(jnp.isfinite(h)))
    print("KERNEL_OK")
</pallas_src>

<mosaic_0001>
module attributes {stable_mosaic.version = 11 : i64} {
  func.func @_stage_kernel(%arg0: i32, %arg1: memref<1x64x32xf32, #tpu.memory_space<vmem>>, %arg2: memref<576x64xf32, #tpu.memory_space<vmem>>, %arg3: memref<2x30x32xf32, #tpu.memory_space<vmem>>, %arg4: memref<2x32x48xf32, #tpu.memory_space<vmem>>, %arg5: memref<2x9x48xf32, #tpu.memory_space<vmem>>, %arg6: memref<2x1x16xf32, #tpu.memory_space<vmem>>, %arg7: memref<2x32x32xf32, #tpu.memory_space<vmem>>, %arg8: memref<2x32x32xf32, #tpu.memory_space<vmem>>, %arg9: memref<2x32x32xf32, #tpu.memory_space<vmem>>, %arg10: memref<2x32x128xf32, #tpu.memory_space<vmem>>, %arg11: memref<2x2x128xf32, #tpu.memory_space<vmem>>, %arg12: memref<2x128x32xf32, #tpu.memory_space<vmem>>, %arg13: memref<2xf32, #tpu.memory_space<smem>>, %arg14: memref<1x64x32xf32, #tpu.memory_space<vmem>>, %arg15: memref<1x16x32xf32, #tpu.memory_space<vmem>>) attributes {dimension_semantics = [#tpu.dimension_semantics<parallel>], iteration_bounds = array<i64: 2>, scalar_prefetch = 0 : i64, scratch_operands = 0 : i64, tpu.core_type = #tpu.core_type<tc>, window_params = [{transform_indices = @transform_0, window_bounds = array<i64: 1, 64, 32>}, {pipeline_mode = #tpu.pipeline_mode<synchronous>, transform_indices = @transform_1, window_bounds = array<i64: 576, 64>}, {pipeline_mode = #tpu.pipeline_mode<synchronous>, transform_indices = @transform_2, window_bounds = array<i64: 2, 30, 32>}, {pipeline_mode = #tpu.pipeline_mode<synchronous>, transform_indices = @transform_3, window_bounds = array<i64: 2, 32, 48>}, {pipeline_mode = #tpu.pipeline_mode<synchronous>, transform_indices = @transform_4, window_bounds = array<i64: 2, 9, 48>}, {pipeline_mode = #tpu.pipeline_mode<synchronous>, transform_indices = @transform_5, window_bounds = array<i64: 2, 1, 16>}, {pipeline_mode = #tpu.pipeline_mode<synchronous>, transform_indices = @transform_6, window_bounds = array<i64: 2, 32, 32>}, {pipeline_mode = #tpu.pipeline_mode<synchronous>, transform_indices = @transform_7, window_bounds = array<i64: 2, 32, 32>}, {pipeline_mode = #tpu.pipeline_mode<synchronous>, transform_indices = @transform_8, window_bounds = array<i64: 2, 32, 32>}, {pipeline_mode = #tpu.pipeline_mode<synchronous>, transform_indices = @transform_9, window_bounds = array<i64: 2, 32, 128>}, {pipeline_mode = #tpu.pipeline_mode<synchronous>, transform_indices = @transform_10, window_bounds = array<i64: 2, 2, 128>}, {pipeline_mode = #tpu.pipeline_mode<synchronous>, transform_indices = @transform_11, window_bounds = array<i64: 2, 128, 32>}, {transform_indices = @transform_12, window_bounds = array<i64: 2>}, {transform_indices = @transform_13, window_bounds = array<i64: 1, 64, 32>}, {transform_indices = @transform_14, window_bounds = array<i64: 1, 16, 32>}]} {
    %c0 = arith.constant 0 : index
    %c0_0 = arith.constant 0 : index
    %c0_1 = arith.constant 0 : index
    %0 = vector.load %arg1[%c0, %c0_0, %c0_1] : memref<1x64x32xf32, #tpu.memory_space<vmem>>, vector<1x64x32xf32>
    %1 = vector.shape_cast %0 : vector<1x64x32xf32> to vector<64x32xf32>
    %c0_2 = arith.constant 0 : index
    %c0_3 = arith.constant 0 : index
    %2 = vector.load %arg2[%c0_2, %c0_3] : memref<576x64xf32, #tpu.memory_space<vmem>>, vector<576x64xf32>
    %c0_4 = arith.constant 0 : index
    %c0_5 = arith.constant 0 : index
    %c0_6 = arith.constant 0 : index
    %3 = vector.load %arg3[%c0_4, %c0_5, %c0_6] : memref<2x30x32xf32, #tpu.memory_space<vmem>>, vector<1x30x32xf32>
    %4 = vector.shape_cast %3 : vector<1x30x32xf32> to vector<30x32xf32>
    %5 = vector.extract_strided_slice %4 {offsets = [0, 0], sizes = [1, 32], strides = [1, 1]} : vector<30x32xf32> to vector<1x32xf32>
    %6 = arith.negf %5 : vector<1x32xf32>
    %7 = math.exp %6 : vector<1x32xf32>
    %cst = arith.constant 1.000000e+00 : f32
    %8 = vector.broadcast %cst : f32 to vector<1x32xf32>
    %9 = arith.addf %8, %7 : vector<1x32xf32>
    %10 = arith.divf %8, %9 : vector<1x32xf32>
    %11 = vector.extract_strided_slice %4 {offsets = [1, 0], sizes = [1, 32], strides = [1, 1]} : vector<30x32xf32> to vector<1x32xf32>
    %12 = arith.negf %11 : vector<1x32xf32>
    %13 = math.exp %12 : vector<1x32xf32>
    %cst_7 = arith.constant 1.000000e+00 : f32
    %14 = vector.broadcast %cst_7 : f32 to vector<1x32xf32>
    %15 = arith.addf %14, %13 : vector<1x32xf32>
    %16 = arith.divf %14, %15 : vector<1x32xf32>
    %17 = vector.extract_strided_slice %4 {offsets = [2, 0], sizes = [1, 32], strides = [1, 1]} : vector<30x32xf32> to vector<1x32xf32>
    %18 = arith.negf %17 : vector<1x32xf32>
    %19 = math.exp %18 : vector<1x32xf32>
    %cst_8 = arith.constant 1.000000e+00 : f32
    %20 = vector.broadcast %cst_8 : f32 to vector<1x32xf32>
    %21 = arith.addf %20, %19 : vector<1x32xf32>
    %22 = arith.divf %20, %21 : vector<1x32xf32>
    %23 = vector.extract_strided_slice %4 {offsets = [3, 0], sizes = [1, 32], strides = [1, 1]} : vector<30x32xf32> to vector<1x32xf32>
    %24 = arith.negf %23 : vector<1x32xf32>
    %25 = math.exp %24 : vector<1x32xf32>
    %cst_9 = arith.constant 1.000000e+00 : f32
    %26 = vector.broadcast %cst_9 : f32 to vector<1x32xf32>
    %27 = arith.addf %26, %25 : vector<1x32xf32>
    %28 = arith.divf %26, %27 : vector<1x32xf32>
    %cst_10 = arith.constant dense<0.000000e+00> : vector<576x32xf32>
    %29 = tpu.matmul %2, %1, %cst_10 {dimension_numbers = #tpu.dot_dimension_numbers<[1], [0], [0], [1], [0, 0, 1, 1], [], []>} : vector<576x64xf32>, vector<64x32xf32>, vector<576x32xf32> -> vector<576x32xf32>
    %30 = vector.extract_strided_slice %29 {offsets = [0, 0], sizes = [64, 32], strides = [1, 1]} : vector<576x32xf32> to vector<64x32xf32>
    %31 = vector.extract_strided_slice %4 {offsets = [4, 0], sizes = [1, 32], strides = [1, 1]} : vector<30x32xf32> to vector<1x32xf32>
    %32 = vector.broadcast %31 : vector<1x32xf32> to vector<64x32xf32>
    %33 = arith.mulf %30, %32 : vector<64x32xf32>
    %34 = vector.extract_strided_slice %29 {offsets = [64, 0], sizes = [64, 32], strides = [1, 1]} : vector<576x32xf32> to vector<64x32xf32>
    %35 = vector.extract_strided_slice %4 {offsets = [5, 0], sizes = [1, 32], strides = [1, 1]} : vector<30x32xf32> to vector<1x32xf32>
    %36 = vector.broadcast %35 : vector<1x32xf32> to vector<64x32xf32>
    %37 = arith.mulf %34, %36 : vector<64x32xf32>
    %38 = arith.addf %33, %37 : vector<64x32xf32>
    %39 = vector.extract_strided_slice %29 {offsets = [128, 0], sizes = [64, 32], strides = [1, 1]} : vector<576x32xf32> to vector<64x32xf32>
    %40 = vector.extract_strided_slice %4 {offsets = [6, 0], sizes = [1, 32], strides = [1, 1]} : vector<30x32xf32> to vector<1x32xf32>
    %41 = vector.broadcast %40 : vector<1x32xf32> to vector<64x32xf32>
    %42 = arith.mulf %39, %41 : vector<64x32xf32>
    %43 = arith.addf %38, %42 : vector<64x32xf32>
    %44 = vector.extract_strided_slice %29 {offsets = [192, 0], sizes = [64, 32], strides = [1, 1]} : vector<576x32xf32> to vector<64x32xf32>
    %45 = vector.extract_strided_slice %4 {offsets = [7, 0], sizes = [1, 32], strides = [1, 1]} : vector<30x32xf32> to vector<1x32xf32>
    %46 = vector.broadcast %45 : vector<1x32xf32> to vector<64x32xf32>
    %47 = arith.mulf %44, %46 : vector<64x32xf32>
    %48 = arith.addf %43, %47 : vector<64x32xf32>
    %49 = vector.extract_strided_slice %29 {offsets = [256, 0], sizes = [64, 32], strides = [1, 1]} : vector<576x32xf32> to vector<64x32xf32>
    %50 = vector.extract_strided_slice %4 {offsets = [8, 0], sizes = [1, 32], strides = [1, 1]} : vector<30x32xf32> to vector<1x32xf32>
    %51 = vector.broadcast %50 : vector<1x32xf32> to vector<64x32xf32>
    %52 = arith.mulf %49, %51 : vector<64x32xf32>
    %53 = arith.addf %48, %52 : vector<64x32xf32>
    %54 = vector.extract_strided_slice %29 {offsets = [320, 0], sizes = [64, 32], strides = [1, 1]} : vector<576x32xf32> to vector<64x32xf32>
    %55 = vector.extract_strided_slice %4 {offsets = [9, 0], sizes = [1, 32], strides = [1, 1]} : vector<30x32xf32> to vector<1x32xf32>
    %56 = vector.broadcast %55 : vector<1x32xf32> to vector<64x32xf32>
    %57 = arith.mulf %54, %56 : vector<64x32xf32>
    %58 = arith.addf %53, %57 : vector<64x32xf32>
    %59 = vector.extract_strided_slice %29 {offsets = [384, 0], sizes = [64, 32], strides = [1, 1]} : vector<576x32xf32> to vector<64x32xf32>
    %60 = vector.extract_strided_slice %4 {offsets = [10, 0], sizes = [1, 32], strides = [1, 1]} : vector<30x32xf32> to vector<1x32xf32>
    %61 = vector.broadcast %60 : vector<1x32xf32> to vector<64x32xf32>
    %62 = arith.mulf %59, %61 : vector<64x32xf32>
    %63 = arith.addf %58, %62 : vector<64x32xf32>
    %64 = vector.extract_strided_slice %29 {offsets = [448, 0], sizes = [64, 32], strides = [1, 1]} : vector<576x32xf32> to vector<64x32xf32>
    %65 = vector.extract_strided_slice %4 {offsets = [11, 0], sizes = [1, 32], strides = [1, 1]} : vector<30x32xf32> to vector<1x32xf32>
    %66 = vector.broadcast %65 : vector<1x32xf32> to vector<64x32xf32>
    %67 = arith.mulf %64, %66 : vector<64x32xf32>
    %68 = arith.addf %63, %67 : vector<64x32xf32>
    %69 = vector.extract_strided_slice %29 {offsets = [512, 0], sizes = [64, 32], strides = [1, 1]} : vector<576x32xf32> to vector<64x32xf32>
    %70 = vector.extract_strided_slice %4 {offsets = [12, 0], sizes = [1, 32], strides = [1, 1]} : vector<30x32xf32> to vector<1x32xf32>
    %71 = vector.broadcast %70 : vector<1x32xf32> to vector<64x32xf32>
    %72 = arith.mulf %69, %71 : vector<64x32xf32>
    %73 = arith.addf %68, %72 : vector<64x32xf32>
    %74 = vector.extract_strided_slice %4 {offsets = [13, 0], sizes = [1, 32], strides = [1, 1]} : vector<30x32xf32> to vector<1x32xf32>
    %75 = vector.broadcast %74 : vector<1x32xf32> to vector<64x32xf32>
    %76 = arith.mulf %73, %75 : vector<64x32xf32>
    %77 = vector.extract_strided_slice %4 {offsets = [14, 0], sizes = [1, 32], strides = [1, 1]} : vector<30x32xf32> to vector<1x32xf32>
    %78 = vector.broadcast %77 : vector<1x32xf32> to vector<64x32xf32>
    %79 = arith.addf %76, %78 : vector<64x32xf32>
    %cst_11 = arith.constant 1.000000e+00 : f32
    %80 = vector.broadcast %cst_11 : f32 to vector<1x32xf32>
    %81 = arith.subf %80, %10 : vector<1x32xf32>
    %82 = vector.broadcast %81 : vector<1x32xf32> to vector<64x32xf32>
    %83 = arith.mulf %82, %1 : vector<64x32xf32>
    %84 = vector.broadcast %10 : vector<1x32xf32> to vector<64x32xf32>
    %85 = arith.mulf %84, %79 : vector<64x32xf32>
    %86 = arith.addf %83, %85 : vector<64x32xf32>
    %cst_12 = arith.constant dense<0.000000e+00> : vector<64xf32>
    %87 = vector.multi_reduction <add>, %86, %cst_12 [1] : vector<64x32xf32> to vector<64xf32>
    %88 = vector.shape_cast %87 : vector<64xf32> to vector<64x1xf32>
    %cst_13 = arith.constant 3.200000e+01 : f32
    %89 = vector.broadcast %cst_13 : f32 to vector<64x1xf32>
    %90 = arith.divf %88, %89 : vector<64x1xf32>
    %91 = vector.broadcast %90 : vector<64x1xf32> to vector<64x32xf32>
    %92 = arith.subf %86, %91 : vector<64x32xf32>
    %93 = arith.mulf %92, %92 : vector<64x32xf32>
    %cst_14 = arith.constant dense<0.000000e+00> : vector<64xf32>
    %94 = vector.multi_reduction <add>, %93, %cst_14 [1] : vector<64x32xf32> to vector<64xf32>
    %95 = vector.shape_cast %94 : vector<64xf32> to vector<64x1xf32>
    %cst_15 = arith.constant 3.200000e+01 : f32
    %96 = vector.broadcast %cst_15 : f32 to vector<64x1xf32>
    %97 = arith.divf %95, %96 : vector<64x1xf32>
    %cst_16 = arith.constant 9.99999974E-6 : f32
    %98 = vector.broadcast %cst_16 : f32 to vector<64x1xf32>
    %99 = arith.addf %97, %98 : vector<64x1xf32>
    %100 = math.rsqrt %99 : vector<64x1xf32>
    %101 = vector.broadcast %100 : vector<64x1xf32> to vector<64x32xf32>
    %102 = arith.mulf %92, %101 : vector<64x32xf32>
    %103 = vector.extract_strided_slice %4 {offsets = [15, 0], sizes = [1, 32], strides = [1, 1]} : vector<30x32xf32> to vector<1x32xf32>
    %104 = vector.broadcast %103 : vector<1x32xf32> to vector<64x32xf32>
    %105 = arith.mulf %102, %104 : vector<64x32xf32>
    %106 = vector.extract_strided_slice %4 {offsets = [16, 0], sizes = [1, 32], strides = [1, 1]} : vector<30x32xf32> to vector<1x32xf32>
    %107 = vector.broadcast %106 : vector<1x32xf32> to vector<64x32xf32>
    %108 = arith.addf %105, %107 : vector<64x32xf32>
    %c0_17 = arith.constant 0 : index
    %c0_18 = arith.constant 0 : index
    %c0_19 = arith.constant 0 : index
    %109 = vector.load %arg5[%c0_17, %c0_18, %c0_19] : memref<2x9x48xf32, #tpu.memory_space<vmem>>, vector<1x9x48xf32>
    %110 = vector.shape_cast %109 : vector<1x9x48xf32> to vector<9x48xf32>
    %c0_20 = arith.constant 0 : index
    %c0_21 = arith.constant 0 : index
    %c0_22 = arith.constant 0 : index
    %111 = vector.load %arg4[%c0_20, %c0_21, %c0_22] : memref<2x32x48xf32, #tpu.memory_space<vmem>>, vector<1x32x48xf32>
    %112 = vector.shape_cast %111 : vector<1x32x48xf32> to vector<32x48xf32>
    %cst_23 = arith.constant dense<0.000000e+00> : vector<64x48xf32>
    %113 = tpu.matmul %108, %112, %cst_23 {dimension_numbers = #tpu.dot_dimension_numbers<[1], [0], [0], [1], [0, 0, 1, 1], [], []>} : vector<64x32xf32>, vector<32x48xf32>, vector<64x48xf32> -> vector<64x48xf32>
    %cst_24 = arith.constant dense<0.000000e+00> : vector<576x48xf32>
    %114 = tpu.matmul %2, %113, %cst_24 {dimension_numbers = #tpu.dot_dimension_numbers<[1], [0], [0], [1], [0, 0, 1, 1], [], []>} : vector<576x64xf32>, vector<64x48xf32>, vector<576x48xf32> -> vector<576x48xf32>
    %115 = vector.extract_strided_slice %114 {offsets = [0, 0], sizes = [64, 48], strides = [1, 1]} : vector<576x48xf32> to vector<64x48xf32>
    %116 = vector.extract_strided_slice %110 {offsets = [0, 0], sizes = [1, 48], strides = [1, 1]} : vector<9x48xf32> to vector<1x48xf32>
    %117 = vector.broadcast %116 : vector<1x48xf32> to vector<64x48xf32>
    %118 = arith.mulf %115, %117 : vector<64x48xf32>
    %119 = vector.extract_strided_slice %114 {offsets = [64, 0], sizes = [64, 48], strides = [1, 1]} : vector<576x48xf32> to vector<64x48xf32>
    %120 = vector.extract_strided_slice %110 {offsets = [1, 0], sizes = [1, 48], strides = [1, 1]} : vector<9x48xf32> to vector<1x48xf32>
    %121 = vector.broadcast %120 : vector<1x48xf32> to vector<64x48xf32>
    %122 = arith.mulf %119, %121 : vector<64x48xf32>
    %123 = arith.addf %118, %122 : vector<64x48xf32>
    %124 = vector.extract_strided_slice %114 {offsets = [128, 0], sizes = [64, 48], strides = [1, 1]} : vector<576x48xf32> to vector<64x48xf32>
    %125 = vector.extract_strided_slice %110 {offsets = [2, 0], sizes = [1, 48], strides = [1, 1]} : vector<9x48xf32> to vector<1x48xf32>
    %126 = vector.broadcast %125 : vector<1x48xf32> to vector<64x48xf32>
    %127 = arith.mulf %124, %126 : vector<64x48xf32>
    %128 = arith.addf %123, %127 : vector<64x48xf32>
    %129 = vector.extract_strided_slice %114 {offsets = [192, 0], sizes = [64, 48], strides = [1, 1]} : vector<576x48xf32> to vector<64x48xf32>
    %130 = vector.extract_strided_slice %110 {offsets = [3, 0], sizes = [1, 48], strides = [1, 1]} : vector<9x48xf32> to vector<1x48xf32>
    %131 = vector.broadcast %130 : vector<1x48xf32> to vector<64x48xf32>
    %132 = arith.mulf %129, %131 : vector<64x48xf32>
    %133 = arith.addf %128, %132 : vector<64x48xf32>
    %134 = vector.extract_strided_slice %114 {offsets = [256, 0], sizes = [64, 48], strides = [1, 1]} : vector<576x48xf32> to vector<64x48xf32>
    %135 = vector.extract_strided_slice %110 {offsets = [4, 0], sizes = [1, 48], strides = [1, 1]} : vector<9x48xf32> to vector<1x48xf32>
    %136 = vector.broadcast %135 : vector<1x48xf32> to vector<64x48xf32>
    %137 = arith.mulf %134, %136 : vector<64x48xf32>
    %138 = arith.addf %133, %137 : vector<64x48xf32>
    %139 = vector.extract_strided_slice %114 {offsets = [320, 0], sizes = [64, 48], strides = [1, 1]} : vector<576x48xf32> to vector<64x48xf32>
    %140 = vector.extract_strided_slice %110 {offsets = [5, 0], sizes = [1, 48], strides = [1, 1]} : vector<9x48xf32> to vector<1x48xf32>
    %141 = vector.broadcast %140 : vector<1x48xf32> to vector<64x48xf32>
    %142 = arith.mulf %139, %141 : vector<64x48xf32>
    %143 = arith.addf %138, %142 : vector<64x48xf32>
    %144 = vector.extract_strided_slice %114 {offsets = [384, 0], sizes = [64, 48], strides = [1, 1]} : vector<576x48xf32> to vector<64x48xf32>
    %145 = vector.extract_strided_slice %110 {offsets = [6, 0], sizes = [1, 48], strides = [1, 1]} : vector<9x48xf32> to vector<1x48xf32>
    %146 = vector.broadcast %145 : vector<1x48xf32> to vector<64x48xf32>
    %147 = arith.mulf %144, %146 : vector<64x48xf32>
    %148 = arith.addf %143, %147 : vector<64x48xf32>
    %149 = vector.extract_strided_slice %114 {offsets = [448, 0], sizes = [64, 48], strides = [1, 1]} : vector<576x48xf32> to vector<64x48xf32>
    %150 = vector.extract_strided_slice %110 {offsets = [7, 0], sizes = [1, 48], strides = [1, 1]} : vector<9x48xf32> to vector<1x48xf32>
    %151 = vector.broadcast %150 : vector<1x48xf32> to vector<64x48xf32>
    %152 = arith.mulf %149, %151 : vector<64x48xf32>
    %153 = arith.addf %148, %152 : vector<64x48xf32>
    %154 = vector.extract_strided_slice %114 {offsets = [512, 0], sizes = [64, 48], strides = [1, 1]} : vector<576x48xf32> to vector<64x48xf32>
    %155 = vector.extract_strided_slice %110 {offsets = [8, 0], sizes = [1, 48], strides = [1, 1]} : vector<9x48xf32> to vector<1x48xf32>
    %156 = vector.broadcast %155 : vector<1x48xf32> to vector<64x48xf32>
    %157 = arith.mulf %154, %156 : vector<64x48xf32>
    %158 = arith.addf %153, %157 : vector<64x48xf32>
    %159 = vector.extract_strided_slice %158 {offsets = [0, 0], sizes = [64, 16], strides = [1, 1]} : vector<64x48xf32> to vector<64x16xf32>
    %160 = vector.extract_strided_slice %158 {offsets = [0, 16], sizes = [64, 16], strides = [1, 1]} : vector<64x48xf32> to vector<64x16xf32>
    %161 = vector.extract_strided_slice %158 {offsets = [0, 32], sizes = [64, 16], strides = [1, 1]} : vector<64x48xf32> to vector<64x16xf32>
    %c0_25 = arith.constant 0 : index
    %c0_26 = arith.constant 0 : index
    %c0_27 = arith.constant 0 : index
    %162 = vector.load %arg6[%c0_25, %c0_26, %c0_27] : memref<2x1x16xf32, #tpu.memory_space<vmem>>, vector<1x1x16xf32>
    %163 = vector.shape_cast %162 : vector<1x1x16xf32> to vector<1x16xf32>
    %164 = vector.broadcast %163 : vector<1x16xf32> to vector<64x16xf32>
    %165 = arith.addf %161, %164 : vector<64x16xf32>
    %cst_28 = arith.constant dense<0xFF800000> : vector<16xf32>
    %166 = vector.multi_reduction <maximumf>, %165, %cst_28 [0] : vector<64x16xf32> to vector<16xf32>
    %167 = vector.shape_cast %166 : vector<16xf32> to vector<1x16xf32>
    %168 = vector.broadcast %167 : vector<1x16xf32> to vector<64x16xf32>
    %169 = arith.subf %165, %168 : vector<64x16xf32>
    %170 = math.exp %169 : vector<64x16xf32>
    %cst_29 = arith.constant dense<0.000000e+00> : vector<16xf32>
    %171 = vector.multi_reduction <add>, %170, %cst_29 [0] : vector<64x16xf32> to vector<16xf32>
    %172 = vector.shape_cast %171 : vector<16xf32> to vector<1x16xf32>
    %173 = vector.broadcast %172 : vector<1x16xf32> to vector<64x16xf32>
    %174 = arith.divf %170, %173 : vector<64x16xf32>
    %175 = arith.mulf %174, %159 : vector<64x16xf32>
    %176 = tpu.transpose %175, [1, 0] : vector<64x16xf32> -> vector<16x64xf32>
    %cst_30 = arith.constant dense<0.000000e+00> : vector<16x32xf32>
    %177 = tpu.matmul %176, %108, %cst_30 {dimension_numbers = #tpu.dot_dimension_numbers<[1], [0], [0], [1], [0, 0, 1, 1], [], []>} : vector<16x64xf32>, vector<64x32xf32>, vector<16x32xf32> -> vector<16x32xf32>
    %c0_31 = arith.constant 0 : index
    %c0_32 = arith.constant 0 : index
    %c0_33 = arith.constant 0 : index
    %178 = vector.load %arg7[%c0_31, %c0_32, %c0_33] : memref<2x32x32xf32, #tpu.memory_space<vmem>>, vector<1x32x32xf32>
    %179 = vector.shape_cast %178 : vector<1x32x32xf32> to vector<32x32xf32>
    %cst_34 = arith.constant dense<0.000000e+00> : vector<16x32xf32>
    %180 = tpu.matmul %177, %179, %cst_34 {dimension_numbers = #tpu.dot_dimension_numbers<[1], [0], [0], [1], [0, 0, 1, 1], [], []>} : vector<16x32xf32>, vector<32x32xf32>, vector<16x32xf32> -> vector<16x32xf32>
    %c0_35 = arith.constant 0 : index
    %c0_36 = arith.constant 0 : index
    %c0_37 = arith.constant 0 : index
    %181 = vector.load %arg8[%c0_35, %c0_36, %c0_37] : memref<2x32x32xf32, #tpu.memory_space<vmem>>, vector<1x32x32xf32>
    %182 = vector.shape_cast %181 : vector<1x32x32xf32> to vector<32x32xf32>
    %cst_38 = arith.constant dense<0.000000e+00> : vector<16x32xf32>
    %183 = tpu.matmul %177, %182, %cst_38 {dimension_numbers = #tpu.dot_dimension_numbers<[1], [0], [0], [1], [0, 0, 1, 1], [], []>} : vector<16x32xf32>, vector<32x32xf32>, vector<16x32xf32> -> vector<16x32xf32>
    %c0_39 = arith.constant 0 : index
    %184 = memref.load %arg13[%c0_39] : memref<2xf32, #tpu.memory_space<smem>>
    %185 = arith.negf %183 : vector<16x32xf32>
    %186 = math.exp %185 : vector<16x32xf32>
    %cst_40 = arith.constant 1.000000e+00 : f32
    %187 = vector.broadcast %cst_40 : f32 to vector<16x32xf32>
    %188 = arith.addf %187, %186 : vector<16x32xf32>
    %189 = arith.divf %187, %188 : vector<16x32xf32>
    %190 = arith.mulf %183, %189 : vector<16x32xf32>
    %191 = vector.broadcast %184 : f32 to vector<16x32xf32>
    %192 = arith.addf %190, %191 : vector<16x32xf32>
    %193 = arith.mulf %180, %192 : vector<16x32xf32>
    %c0_41 = arith.constant 0 : index
    %c0_42 = arith.constant 0 : index
    %c0_43 = arith.constant 0 : index
    %194 = vector.load %arg9[%c0_41, %c0_42, %c0_43] : memref<2x32x32xf32, #tpu.memory_space<vmem>>, vector<1x32x32xf32>
    %195 = vector.shape_cast %194 : vector<1x32x32xf32> to vector<32x32xf32>
    %cst_44 = arith.constant dense<0.000000e+00> : vector<16x32xf32>
    %196 = tpu.matmul %193, %195, %cst_44 {dimension_numbers = #tpu.dot_dimension_numbers<[1], [0], [0], [1], [0, 0, 1, 1], [], []>} : vector<16x32xf32>, vector<32x32xf32>, vector<16x32xf32> -> vector<16x32xf32>
    %cst_45 = arith.constant dense<0.000000e+00> : vector<64x32xf32>
    %197 = tpu.matmul %160, %196, %cst_45 {dimension_numbers = #tpu.dot_dimension_numbers<[1], [0], [0], [1], [0, 0, 1, 1], [], []>} : vector<64x16xf32>, vector<16x32xf32>, vector<64x32xf32> -> vector<64x32xf32>
    %cst_46 = arith.constant 1.000000e+00 : f32
    %198 = vector.broadcast %cst_46 : f32 to vector<1x32xf32>
    %199 = arith.subf %198, %16 : vector<1x32xf32>
    %200 = vector.broadcast %199 : vector<1x32xf32> to vector<64x32xf32>
    %201 = arith.mulf %200, %86 : vector<64x32xf32>
    %202 = vector.broadcast %16 : vector<1x32xf32> to vector<64x32xf32>
    %203 = arith.mulf %202, %197 : vector<64x32xf32>
    %204 = arith.addf %201, %203 : vector<64x32xf32>
    %cst_47 = arith.constant dense<0.000000e+00> : vector<576x32xf32>
    %205 = tpu.matmul %2, %204, %cst_47 {dimension_numbers = #tpu.dot_dimension_numbers<[1], [0], [0], [1], [0, 0, 1, 1], [], []>} : vector<576x64xf32>, vector<64x32xf32>, vector<576x32xf32> -> vector<576x32xf32>
    %206 = vector.extract_strided_slice %205 {offsets = [0, 0], sizes = [64, 32], strides = [1, 1]} : vector<576x32xf32> to vector<64x32xf32>
    %207 = vector.extract_strided_slice %4 {offsets = [17, 0], sizes = [1, 32], strides = [1, 1]} : vector<30x32xf32> to vector<1x32xf32>
    %208 = vector.broadcast %207 : vector<1x32xf32> to vector<64x32xf32>
    %209 = arith.mulf %206, %208 : vector<64x32xf32>
    %210 = vector.extract_strided_slice %205 {offsets = [64, 0], sizes = [64, 32], strides = [1, 1]} : vector<576x32xf32> to vector<64x32xf32>
    %211 = vector.extract_strided_slice %4 {offsets = [18, 0], sizes = [1, 32], strides = [1, 1]} : vector<30x32xf32> to vector<1x32xf32>
    %212 = vector.broadcast %211 : vector<1x32xf32> to vector<64x32xf32>
    %213 = arith.mulf %210, %212 : vector<64x32xf32>
    %214 = arith.addf %209, %213 : vector<64x32xf32>
    %215 = vector.extract_strided_slice %205 {offsets = [128, 0], sizes = [64, 32], strides = [1, 1]} : vector<576x32xf32> to vector<64x32xf32>
    %216 = vector.extract_strided_slice %4 {offsets = [19, 0], sizes = [1, 32], strides = [1, 1]} : vector<30x32xf32> to vector<1x32xf32>
    %217 = vector.broadcast %216 : vector<1x32xf32> to vector<64x32xf32>
    %218 = arith.mulf %215, %217 : vector<64x32xf32>
    %219 = arith.addf %214, %218 : vector<64x32xf32>
    %220 = vector.extract_strided_slice %205 {offsets = [192, 0], sizes = [64, 32], strides = [1, 1]} : vector<576x32xf32> to vector<64x32xf32>
    %221 = vector.extract_strided_slice %4 {offsets = [20, 0], sizes = [1, 32], strides = [1, 1]} : vector<30x32xf32> to vector<1x32xf32>
    %222 = vector.broadcast %221 : vector<1x32xf32> to vector<64x32xf32>
    %223 = arith.mulf %220, %222 : vector<64x32xf32>
    %224 = arith.addf %219, %223 : vector<64x32xf32>
    %225 = vector.extract_strided_slice %205 {offsets = [256, 0], sizes = [64, 32], strides = [1, 1]} : vector<576x32xf32> to vector<64x32xf32>
    %226 = vector.extract_strided_slice %4 {offsets = [21, 0], sizes = [1, 32], strides = [1, 1]} : vector<30x32xf32> to vector<1x32xf32>
    %227 = vector.broadcast %226 : vector<1x32xf32> to vector<64x32xf32>
    %228 = arith.mulf %225, %227 : vector<64x32xf32>
    %229 = arith.addf %224, %228 : vector<64x32xf32>
    %230 = vector.extract_strided_slice %205 {offsets = [320, 0], sizes = [64, 32], strides = [1, 1]} : vector<576x32xf32> to vector<64x32xf32>
    %231 = vector.extract_strided_slice %4 {offsets = [22, 0], sizes = [1, 32], strides = [1, 1]} : vector<30x32xf32> to vector<1x32xf32>
    %232 = vector.broadcast %231 : vector<1x32xf32> to vector<64x32xf32>
    %233 = arith.mulf %230, %232 : vector<64x32xf32>
    %234 = arith.addf %229, %233 : vector<64x32xf32>
    %235 = vector.extract_strided_slice %205 {offsets = [384, 0], sizes = [64, 32], strides = [1, 1]} : vector<576x32xf32> to vector<64x32xf32>
    %236 = vector.extract_strided_slice %4 {offsets = [23, 0], sizes = [1, 32], strides = [1, 1]} : vector<30x32xf32> to vector<1x32xf32>
    %237 = vector.broadcast %236 : vector<1x32xf32> to vector<64x32xf32>
    %238 = arith.mulf %235, %237 : vector<64x32xf32>
    %239 = arith.addf %234, %238 : vector<64x32xf32>
    %240 = vector.extract_strided_slice %205 {offsets = [448, 0], sizes = [64, 32], strides = [1, 1]} : vector<576x32xf32> to vector<64x32xf32>
    %241 = vector.extract_strided_slice %4 {offsets = [24, 0], sizes = [1, 32], strides = [1, 1]} : vector<30x32xf32> to vector<1x32xf32>
    %242 = vector.broadcast %241 : vector<1x32xf32> to vector<64x32xf32>
    %243 = arith.mulf %240, %242 : vector<64x32xf32>
    %244 = arith.addf %239, %243 : vector<64x32xf32>
    %245 = vector.extract_strided_slice %205 {offsets = [512, 0], sizes = [64, 32], strides = [1, 1]} : vector<576x32xf32> to vector<64x32xf32>
    %246 = vector.extract_strided_slice %4 {offsets = [25, 0], sizes = [1, 32], strides = [1, 1]} : vector<30x32xf32> to vector<1x32xf32>
    %247 = vector.broadcast %246 : vector<1x32xf32> to vector<64x32xf32>
    %248 = arith.mulf %245, %247 : vector<64x32xf32>
    %249 = arith.addf %244, %248 : vector<64x32xf32>
    %250 = vector.extract_strided_slice %4 {offsets = [26, 0], sizes = [1, 32], strides = [1, 1]} : vector<30x32xf32> to vector<1x32xf32>
    %251 = vector.broadcast %250 : vector<1x32xf32> to vector<64x32xf32>
    %252 = arith.mulf %249, %251 : vector<64x32xf32>
    %253 = vector.extract_strided_slice %4 {offsets = [27, 0], sizes = [1, 32], strides = [1, 1]} : vector<30x32xf32> to vector<1x32xf32>
    %254 = vector.broadcast %253 : vector<1x32xf32> to vector<64x32xf32>
    %255 = arith.addf %252, %254 : vector<64x32xf32>
    %cst_48 = arith.constant 1.000000e+00 : f32
    %256 = vector.broadcast %cst_48 : f32 to vector<1x32xf32>
    %257 = arith.subf %256, %22 : vector<1x32xf32>
    %258 = vector.broadcast %257 : vector<1x32xf32> to vector<64x32xf32>
    %259 = arith.mulf %258, %204 : vector<64x32xf32>
    %260 = vector.broadcast %22 : vector<1x32xf32> to vector<64x32xf32>
    %261 = arith.mulf %260, %255 : vector<64x32xf32>
    %262 = arith.addf %259, %261 : vector<64x32xf32>
    %c0_49 = arith.constant 0 : index
    %c0_50 = arith.constant 0 : index
    %c0_51 = arith.constant 0 : index
    %263 = vector.load %arg11[%c0_49, %c0_50, %c0_51] : memref<2x2x128xf32, #tpu.memory_space<vmem>>, vector<1x2x128xf32>
    %264 = vector.shape_cast %263 : vector<1x2x128xf32> to vector<2x128xf32>
    %c0_52 = arith.constant 0 : index
    %c0_53 = arith.constant 0 : index
    %c0_54 = arith.constant 0 : index
    %265 = vector.load %arg10[%c0_52, %c0_53, %c0_54] : memref<2x32x128xf32, #tpu.memory_space<vmem>>, vector<1x32x128xf32>
    %266 = vector.shape_cast %265 : vector<1x32x128xf32> to vector<32x128xf32>
    %cst_55 = arith.constant dense<0.000000e+00> : vector<64x128xf32>
    %267 = tpu.matmul %262, %266, %cst_55 {dimension_numbers = #tpu.dot_dimension_numbers<[1], [0], [0], [1], [0, 0, 1, 1], [], []>} : vector<64x32xf32>, vector<32x128xf32>, vector<64x128xf32> -> vector<64x128xf32>
    %268 = vector.extract_strided_slice %264 {offsets = [0, 0], sizes = [1, 128], strides = [1, 1]} : vector<2x128xf32> to vector<1x128xf32>
    %269 = vector.broadcast %268 : vector<1x128xf32> to vector<64x128xf32>
    %270 = arith.mulf %267, %269 : vector<64x128xf32>
    %271 = vector.extract_strided_slice %264 {offsets = [1, 0], sizes = [1, 128], strides = [1, 1]} : vector<2x128xf32> to vector<1x128xf32>
    %272 = vector.broadcast %271 : vector<1x128xf32> to vector<64x128xf32>
    %273 = arith.addf %270, %272 : vector<64x128xf32>
    %cst_56 = arith.constant 0.000000e+00 : f32
    %274 = vector.broadcast %cst_56 : f32 to vector<64x128xf32>
    %275 = arith.maximumf %273, %274 : vector<64x128xf32>
    %c0_57 = arith.constant 0 : index
    %c0_58 = arith.constant 0 : index
    %c0_59 = arith.constant 0 : index
    %276 = vector.load %arg12[%c0_57, %c0_58, %c0_59] : memref<2x128x32xf32, #tpu.memory_space<vmem>>, vector<1x128x32xf32>
    %277 = vector.shape_cast %276 : vector<1x128x32xf32> to vector<128x32xf32>
    %cst_60 = arith.constant dense<0.000000e+00> : vector<64x32xf32>
    %278 = tpu.matmul %275, %277, %cst_60 {dimension_numbers = #tpu.dot_dimension_numbers<[1], [0], [0], [1], [0, 0, 1, 1], [], []>} : vector<64x128xf32>, vector<128x32xf32>, vector<64x32xf32> -> vector<64x32xf32>
    %279 = vector.extract_strided_slice %4 {offsets = [28, 0], sizes = [1, 32], strides = [1, 1]} : vector<30x32xf32> to vector<1x32xf32>
    %280 = vector.broadcast %279 : vector<1x32xf32> to vector<64x32xf32>
    %281 = arith.mulf %278, %280 : vector<64x32xf32>
    %282 = vector.extract_strided_slice %4 {offsets = [29, 0], sizes = [1, 32], strides = [1, 1]} : vector<30x32xf32> to vector<1x32xf32>
    %283 = vector.broadcast %282 : vector<1x32xf32> to vector<64x32xf32>
    %284 = arith.addf %281, %283 : vector<64x32xf32>
    %cst_61 = arith.constant 1.000000e+00 : f32
    %285 = vector.broadcast %cst_61 : f32 to vector<1x32xf32>
    %286 = arith.subf %285, %28 : vector<1x32xf32>
    %287 = vector.broadcast %286 : vector<1x32xf32> to vector<64x32xf32>
    %288 = arith.mulf %287, %262 : vector<64x32xf32>
    %289 = vector.broadcast %28 : vector<1x32xf32> to vector<64x32xf32>
    %290 = arith.mulf %289, %284 : vector<64x32xf32>
    %291 = arith.addf %288, %290 : vector<64x32xf32>
    %c1 = arith.constant 1 : index
    %c0_62 = arith.constant 0 : index
    %c0_63 = arith.constant 0 : index
    %292 = vector.load %arg3[%c1, %c0_62, %c0_63] : memref<2x30x32xf32, #tpu.memory_space<vmem>>, vector<1x30x32xf32>
    %293 = vector.shape_cast %292 : vector<1x30x32xf32> to vector<30x32xf32>
    %294 = vector.extract_strided_slice %293 {offsets = [0, 0], sizes = [1, 32], strides = [1, 1]} : vector<30x32xf32> to vector<1x32xf32>
    %295 = arith.negf %294 : vector<1x32xf32>
    %296 = math.exp %295 : vector<1x32xf32>
    %cst_64 = arith.constant 1.000000e+00 : f32
    %297 = vector.broadcast %cst_64 : f32 to vector<1x32xf32>
    %298 = arith.addf %297, %296 : vector<1x32xf32>
    %299 = arith.divf %297, %298 : vector<1x32xf32>
    %300 = vector.extract_strided_slice %293 {offsets = [1, 0], sizes = [1, 32], strides = [1, 1]} : vector<30x32xf32> to vector<1x32xf32>
    %301 = arith.negf %300 : vector<1x32xf32>
    %302 = math.exp %301 : vector<1x32xf32>
    %cst_65 = arith.constant 1.000000e+00 : f32
    %303 = vector.broadcast %cst_65 : f32 to vector<1x32xf32>
    %304 = arith.addf %303, %302 : vector<1x32xf32>
    %305 = arith.divf %303, %304 : vector<1x32xf32>
    %306 = vector.extract_strided_slice %293 {offsets = [2, 0], sizes = [1, 32], strides = [1, 1]} : vector<30x32xf32> to vector<1x32xf32>
    %307 = arith.negf %306 : vector<1x32xf32>
    %308 = math.exp %307 : vector<1x32xf32>
    %cst_66 = arith.constant 1.000000e+00 : f32
    %309 = vector.broadcast %cst_66 : f32 to vector<1x32xf32>
    %310 = arith.addf %309, %308 : vector<1x32xf32>
    %311 = arith.divf %309, %310 : vector<1x32xf32>
    %312 = vector.extract_strided_slice %293 {offsets = [3, 0], sizes = [1, 32], strides = [1, 1]} : vector<30x32xf32> to vector<1x32xf32>
    %313 = arith.negf %312 : vector<1x32xf32>
    %314 = math.exp %313 : vector<1x32xf32>
    %cst_67 = arith.constant 1.000000e+00 : f32
    %315 = vector.broadcast %cst_67 : f32 to vector<1x32xf32>
    %316 = arith.addf %315, %314 : vector<1x32xf32>
    %317 = arith.divf %315, %316 : vector<1x32xf32>
    %cst_68 = arith.constant dense<0.000000e+00> : vector<576x32xf32>
    %318 = tpu.matmul %2, %291, %cst_68 {dimension_numbers = #tpu.dot_dimension_numbers<[1], [0], [0], [1], [0, 0, 1, 1], [], []>} : vector<576x64xf32>, vector<64x32xf32>, vector<576x32xf32> -> vector<576x32xf32>
    %319 = vector.extract_strided_slice %318 {offsets = [0, 0], sizes = [64, 32], strides = [1, 1]} : vector<576x32xf32> to vector<64x32xf32>
    %320 = vector.extract_strided_slice %293 {offsets = [4, 0], sizes = [1, 32], strides = [1, 1]} : vector<30x32xf32> to vector<1x32xf32>
    %321 = vector.broadcast %320 : vector<1x32xf32> to vector<64x32xf32>
    %322 = arith.mulf %319, %321 : vector<64x32xf32>
    %323 = vector.extract_strided_slice %318 {offsets = [64, 0], sizes = [64, 32], strides = [1, 1]} : vector<576x32xf32> to vector<64x32xf32>
    %324 = vector.extract_strided_slice %293 {offsets = [5, 0], sizes = [1, 32], strides = [1, 1]} : vector<30x32xf32> to vector<1x32xf32>
    %325 = vector.broadcast %324 : vector<1x32xf32> to vector<64x32xf32>
    %326 = arith.mulf %323, %325 : vector<64x32xf32>
    %327 = arith.addf %322, %326 : vector<64x32xf32>
    %328 = vector.extract_strided_slice %318 {offsets = [128, 0], sizes = [64, 32], strides = [1, 1]} : vector<576x32xf32> to vector<64x32xf32>
    %329 = vector.extract_strided_slice %293 {offsets = [6, 0], sizes = [1, 32], strides = [1, 1]} : vector<30x32xf32> to vector<1x32xf32>
    %330 = vector.broadcast %329 : vector<1x32xf32> to vector<64x32xf32>
    %331 = arith.mulf %328, %330 : vector<64x32xf32>
    %332 = arith.addf %327, %331 : vector<64x32xf32>
    %333 = vector.extract_strided_slice %318 {offsets = [192, 0], sizes = [64, 32], strides = [1, 1]} : vector<576x32xf32> to vector<64x32xf32>
    %334 = vector.extract_strided_slice %293 {offsets = [7, 0], sizes = [1, 32], strides = [1, 1]} : vector<30x32xf32> to vector<1x32xf32>
    %335 = vector.broadcast %334 : vector<1x32xf32> to vector<64x32xf32>
    %336 = arith.mulf %333, %335 : vector<64x32xf32>
    %337 = arith.addf %332, %336 : vector<64x32xf32>
    %338 = vector.extract_strided_slice %318 {offsets = [256, 0], sizes = [64, 32], strides = [1, 1]} : vector<576x32xf32> to vector<64x32xf32>
    %339 = vector.extract_strided_slice %293 {offsets = [8, 0], sizes = [1, 32], strides = [1, 1]} : vector<30x32xf32> to vector<1x32xf32>
    %340 = vector.broadcast %339 : vector<1x32xf32> to vector<64x32xf32>
    %341 = arith.mulf %338, %340 : vector<64x32xf32>
    %342 = arith.addf %337, %341 : vector<64x32xf32>
    %343 = vector.extract_strided_slice %318 {offsets = [320, 0], sizes = [64, 32], strides = [1, 1]} : vector<576x32xf32> to vector<64x32xf32>
    %344 = vector.extract_strided_slice %293 {offsets = [9, 0], sizes = [1, 32], strides = [1, 1]} : vector<30x32xf32> to vector<1x32xf32>
    %345 = vector.broadcast %344 : vector<1x32xf32> to vector<64x32xf32>
    %346 = arith.mulf %343, %345 : vector<64x32xf32>
    %347 = arith.addf %342, %346 : vector<64x32xf32>
    %348 = vector.extract_strided_slice %318 {offsets = [384, 0], sizes = [64, 32], strides = [1, 1]} : vector<576x32xf32> to vector<64x32xf32>
    %349 = vector.extract_strided_slice %293 {offsets = [10, 0], sizes = [1, 32], strides = [1, 1]} : vector<30x32xf32> to vector<1x32xf32>
    %350 = vector.broadcast %349 : vector<1x32xf32> to vector<64x32xf32>
    %351 = arith.mulf %348, %350 : vector<64x32xf32>
    %352 = arith.addf %347, %351 : vector<64x32xf32>
    %353 = vector.extract_strided_slice %318 {offsets = [448, 0], sizes = [64, 32], strides = [1, 1]} : vector<576x32xf32> to vector<64x32xf32>
    %354 = vector.extract_strided_slice %293 {offsets = [11, 0], sizes = [1, 32], strides = [1, 1]} : vector<30x32xf32> to vector<1x32xf32>
    %355 = vector.broadcast %354 : vector<1x32xf32> to vector<64x32xf32>
    %356 = arith.mulf %353, %355 : vector<64x32xf32>
    %357 = arith.addf %352, %356 : vector<64x32xf32>
    %358 = vector.extract_strided_slice %318 {offsets = [512, 0], sizes = [64, 32], strides = [1, 1]} : vector<576x32xf32> to vector<64x32xf32>
    %359 = vector.extract_strided_slice %293 {offsets = [12, 0], sizes = [1, 32], strides = [1, 1]} : vector<30x32xf32> to vector<1x32xf32>
    %360 = vector.broadcast %359 : vector<1x32xf32> to vector<64x32xf32>
    %361 = arith.mulf %358, %360 : vector<64x32xf32>
    %362 = arith.addf %357, %361 : vector<64x32xf32>
    %363 = vector.extract_strided_slice %293 {offsets = [13, 0], sizes = [1, 32], strides = [1, 1]} : vector<30x32xf32> to vector<1x32xf32>
    %364 = vector.broadcast %363 : vector<1x32xf32> to vector<64x32xf32>
    %365 = arith.mulf %362, %364 : vector<64x32xf32>
    %366 = vector.extract_strided_slice %293 {offsets = [14, 0], sizes = [1, 32], strides = [1, 1]} : vector<30x32xf32> to vector<1x32xf32>
    %367 = vector.broadcast %366 : vector<1x32xf32> to vector<64x32xf32>
    %368 = arith.addf %365, %367 : vector<64x32xf32>
    %cst_69 = arith.constant 1.000000e+00 : f32
    %369 = vector.broadcast %cst_69 : f32 to vector<1x32xf32>
    %370 = arith.subf %369, %299 : vector<1x32xf32>
    %371 = vector.broadcast %370 : vector<1x32xf32> to vector<64x32xf32>
    %372 = arith.mulf %371, %291 : vector<64x32xf32>
    %373 = vector.broadcast %299 : vector<1x32xf32> to vector<64x32xf32>
    %374 = arith.mulf %373, %368 : vector<64x32xf32>
    %375 = arith.addf %372, %374 : vector<64x32xf32>
    %cst_70 = arith.constant dense<0.000000e+00> : vector<64xf32>
    %376 = vector.multi_reduction <add>, %375, %cst_70 [1] : vector<64x32xf32> to vector<64xf32>
    %377 = vector.shape_cast %376 : vector<64xf32> to vector<64x1xf32>
    %cst_71 = arith.constant 3.200000e+01 : f32
    %378 = vector.broadcast %cst_71 : f32 to vector<64x1xf32>
    %379 = arith.divf %377, %378 : vector<64x1xf32>
    %380 = vector.broadcast %379 : vector<64x1xf32> to vector<64x32xf32>
    %381 = arith.subf %375, %380 : vector<64x32xf32>
    %382 = arith.mulf %381, %381 : vector<64x32xf32>
    %cst_72 = arith.constant dense<0.000000e+00> : vector<64xf32>
    %383 = vector.multi_reduction <add>, %382, %cst_72 [1] : vector<64x32xf32> to vector<64xf32>
    %384 = vector.shape_cast %383 : vector<64xf32> to vector<64x1xf32>
    %cst_73 = arith.constant 3.200000e+01 : f32
    %385 = vector.broadcast %cst_73 : f32 to vector<64x1xf32>
    %386 = arith.divf %384, %385 : vector<64x1xf32>
    %cst_74 = arith.constant 9.99999974E-6 : f32
    %387 = vector.broadcast %cst_74 : f32 to vector<64x1xf32>
    %388 = arith.addf %386, %387 : vector<64x1xf32>
    %389 = math.rsqrt %388 : vector<64x1xf32>
    %390 = vector.broadcast %389 : vector<64x1xf32> to vector<64x32xf32>
    %391 = arith.mulf %381, %390 : vector<64x32xf32>
    %392 = vector.extract_strided_slice %293 {offsets = [15, 0], sizes = [1, 32], strides = [1, 1]} : vector<30x32xf32> to vector<1x32xf32>
    %393 = vector.broadcast %392 : vector<1x32xf32> to vector<64x32xf32>
    %394 = arith.mulf %391, %393 : vector<64x32xf32>
    %395 = vector.extract_strided_slice %293 {offsets = [16, 0], sizes = [1, 32], strides = [1, 1]} : vector<30x32xf32> to vector<1x32xf32>
    %396 = vector.broadcast %395 : vector<1x32xf32> to vector<64x32xf32>
    %397 = arith.addf %394, %396 : vector<64x32xf32>
    %c1_75 = arith.constant 1 : index
    %c0_76 = arith.constant 0 : index
    %c0_77 = arith.constant 0 : index
    %398 = vector.load %arg5[%c1_75, %c0_76, %c0_77] : memref<2x9x48xf32, #tpu.memory_space<vmem>>, vector<1x9x48xf32>
    %399 = vector.shape_cast %398 : vector<1x9x48xf32> to vector<9x48xf32>
    %c1_78 = arith.constant 1 : index
    %c0_79 = arith.constant 0 : index
    %c0_80 = arith.constant 0 : index
    %400 = vector.load %arg4[%c1_78, %c0_79, %c0_80] : memref<2x32x48xf32, #tpu.memory_space<vmem>>, vector<1x32x48xf32>
    %401 = vector.shape_cast %400 : vector<1x32x48xf32> to vector<32x48xf32>
    %cst_81 = arith.constant dense<0.000000e+00> : vector<64x48xf32>
    %402 = tpu.matmul %397, %401, %cst_81 {dimension_numbers = #tpu.dot_dimension_numbers<[1], [0], [0], [1], [0, 0, 1, 1], [], []>} : vector<64x32xf32>, vector<32x48xf32>, vector<64x48xf32> -> vector<64x48xf32>
    %cst_82 = arith.constant dense<0.000000e+00> : vector<576x48xf32>
    %403 = tpu.matmul %2, %402, %cst_82 {dimension_numbers = #tpu.dot_dimension_numbers<[1], [0], [0], [1], [0, 0, 1, 1], [], []>} : vector<576x64xf32>, vector<64x48xf32>, vector<576x48xf32> -> vector<576x48xf32>
    %404 = vector.extract_strided_slice %403 {offsets = [0, 0], sizes = [64, 48], strides = [1, 1]} : vector<576x48xf32> to vector<64x48xf32>
    %405 = vector.extract_strided_slice %399 {offsets = [0, 0], sizes = [1, 48], strides = [1, 1]} : vector<9x48xf32> to vector<1x48xf32>
    %406 = vector.broadcast %405 : vector<1x48xf32> to vector<64x48xf32>
    %407 = arith.mulf %404, %406 : vector<64x48xf32>
    %408 = vector.extract_strided_slice %403 {offsets = [64, 0], sizes = [64, 48], strides = [1, 1]} : vector<576x48xf32> to vector<64x48xf32>
    %409 = vector.extract_strided_slice %399 {offsets = [1, 0], sizes = [1, 48], strides = [1, 1]} : vector<9x48xf32> to vector<1x48xf32>
    %410 = vector.broadcast %409 : vector<1x48xf32> to vector<64x48xf32>
    %411 = arith.mulf %408, %410 : vector<64x48xf32>
    %412 = arith.addf %407, %411 : vector<64x48xf32>
    %413 = vector.extract_strided_slice %403 {offsets = [128, 0], sizes = [64, 48], strides = [1, 1]} : vector<576x48xf32> to vector<64x48xf32>
    %414 = vector.extract_strided_slice %399 {offsets = [2, 0], sizes = [1, 48], strides = [1, 1]} : vector<9x48xf32> to vector<1x48xf32>
    %415 = vector.broadcast %414 : vector<1x48xf32> to vector<64x48xf32>
    %416 = arith.mulf %413, %415 : vector<64x48xf32>
    %417 = arith.addf %412, %416 : vector<64x48xf32>
    %418 = vector.extract_strided_slice %403 {offsets = [192, 0], sizes = [64, 48], strides = [1, 1]} : vector<576x48xf32> to vector<64x48xf32>
    %419 = vector.extract_strided_slice %399 {offsets = [3, 0], sizes = [1, 48], strides = [1, 1]} : vector<9x48xf32> to vector<1x48xf32>
    %420 = vector.broadcast %419 : vector<1x48xf32> to vector<64x48xf32>
    %421 = arith.mulf %418, %420 : vector<64x48xf32>
    %422 = arith.addf %417, %421 : vector<64x48xf32>
    %423 = vector.extract_strided_slice %403 {offsets = [256, 0], sizes = [64, 48], strides = [1, 1]} : vector<576x48xf32> to vector<64x48xf32>
    %424 = vector.extract_strided_slice %399 {offsets = [4, 0], sizes = [1, 48], strides = [1, 1]} : vector<9x48xf32> to vector<1x48xf32>
    %425 = vector.broadcast %424 : vector<1x48xf32> to vector<64x48xf32>
    %426 = arith.mulf %423, %425 : vector<64x48xf32>
    %427 = arith.addf %422, %426 : vector<64x48xf32>
    %428 = vector.extract_strided_slice %403 {offsets = [320, 0], sizes = [64, 48], strides = [1, 1]} : vector<576x48xf32> to vector<64x48xf32>
    %429 = vector.extract_strided_slice %399 {offsets = [5, 0], sizes = [1, 48], strides = [1, 1]} : vector<9x48xf32> to vector<1x48xf32>
    %430 = vector.broadcast %429 : vector<1x48xf32> to vector<64x48xf32>
    %431 = arith.mulf %428, %430 : vector<64x48xf32>
    %432 = arith.addf %427, %431 : vector<64x48xf32>
    %433 = vector.extract_strided_slice %403 {offsets = [384, 0], sizes = [64, 48], strides = [1, 1]} : vector<576x48xf32> to vector<64x48xf32>
    %434 = vector.extract_strided_slice %399 {offsets = [6, 0], sizes = [1, 48], strides = [1, 1]} : vector<9x48xf32> to vector<1x48xf32>
    %435 = vector.broadcast %434 : vector<1x48xf32> to vector<64x48xf32>
    %436 = arith.mulf %433, %435 : vector<64x48xf32>
    %437 = arith.addf %432, %436 : vector<64x48xf32>
    %438 = vector.extract_strided_slice %403 {offsets = [448, 0], sizes = [64, 48], strides = [1, 1]} : vector<576x48xf32> to vector<64x48xf32>
    %439 = vector.extract_strided_slice %399 {offsets = [7, 0], sizes = [1, 48], strides = [1, 1]} : vector<9x48xf32> to vector<1x48xf32>
    %440 = vector.broadcast %439 : vector<1x48xf32> to vector<64x48xf32>
    %441 = arith.mulf %438, %440 : vector<64x48xf32>
    %442 = arith.addf %437, %441 : vector<64x48xf32>
    %443 = vector.extract_strided_slice %403 {offsets = [512, 0], sizes = [64, 48], strides = [1, 1]} : vector<576x48xf32> to vector<64x48xf32>
    %444 = vector.extract_strided_slice %399 {offsets = [8, 0], sizes = [1, 48], strides = [1, 1]} : vector<9x48xf32> to vector<1x48xf32>
    %445 = vector.broadcast %444 : vector<1x48xf32> to vector<64x48xf32>
    %446 = arith.mulf %443, %445 : vector<64x48xf32>
    %447 = arith.addf %442, %446 : vector<64x48xf32>
    %448 = vector.extract_strided_slice %447 {offsets = [0, 0], sizes = [64, 16], strides = [1, 1]} : vector<64x48xf32> to vector<64x16xf32>
    %449 = vector.extract_strided_slice %447 {offsets = [0, 16], sizes = [64, 16], strides = [1, 1]} : vector<64x48xf32> to vector<64x16xf32>
    %450 = vector.extract_strided_slice %447 {offsets = [0, 32], sizes = [64, 16], strides = [1, 1]} : vector<64x48xf32> to vector<64x16xf32>
    %c1_83 = arith.constant 1 : index
    %c0_84 = arith.constant 0 : index
    %c0_85 = arith.constant 0 : index
    %451 = vector.load %arg6[%c1_83, %c0_84, %c0_85] : memref<2x1x16xf32, #tpu.memory_space<vmem>>, vector<1x1x16xf32>
    %452 = vector.shape_cast %451 : vector<1x1x16xf32> to vector<1x16xf32>
    %453 = vector.broadcast %452 : vector<1x16xf32> to vector<64x16xf32>
    %454 = arith.addf %450, %453 : vector<64x16xf32>
    %cst_86 = arith.constant dense<0xFF800000> : vector<16xf32>
    %455 = vector.multi_reduction <maximumf>, %454, %cst_86 [0] : vector<64x16xf32> to vector<16xf32>
    %456 = vector.shape_cast %455 : vector<16xf32> to vector<1x16xf32>
    %457 = vector.broadcast %456 : vector<1x16xf32> to vector<64x16xf32>
    %458 = arith.subf %454, %457 : vector<64x16xf32>
    %459 = math.exp %458 : vector<64x16xf32>
    %cst_87 = arith.constant dense<0.000000e+00> : vector<16xf32>
    %460 = vector.multi_reduction <add>, %459, %cst_87 [0] : vector<64x16xf32> to vector<16xf32>
    %461 = vector.shape_cast %460 : vector<16xf32> to vector<1x16xf32>
    %462 = vector.broadcast %461 : vector<1x16xf32> to vector<64x16xf32>
    %463 = arith.divf %459, %462 : vector<64x16xf32>
    %464 = arith.mulf %463, %448 : vector<64x16xf32>
    %465 = tpu.transpose %464, [1, 0] : vector<64x16xf32> -> vector<16x64xf32>
    %cst_88 = arith.constant dense<0.000000e+00> : vector<16x32xf32>
    %466 = tpu.matmul %465, %397, %cst_88 {dimension_numbers = #tpu.dot_dimension_numbers<[1], [0], [0], [1], [0, 0, 1, 1], [], []>} : vector<16x64xf32>, vector<64x32xf32>, vector<16x32xf32> -> vector<16x32xf32>
    %c1_89 = arith.constant 1 : index
    %c0_90 = arith.constant 0 : index
    %c0_91 = arith.constant 0 : index
    %467 = vector.load %arg7[%c1_89, %c0_90, %c0_91] : memref<2x32x32xf32, #tpu.memory_space<vmem>>, vector<1x32x32xf32>
    %468 = vector.shape_cast %467 : vector<1x32x32xf32> to vector<32x32xf32>
    %cst_92 = arith.constant dense<0.000000e+00> : vector<16x32xf32>
    %469 = tpu.matmul %466, %468, %cst_92 {dimension_numbers = #tpu.dot_dimension_numbers<[1], [0], [0], [1], [0, 0, 1, 1], [], []>} : vector<16x32xf32>, vector<32x32xf32>, vector<16x32xf32> -> vector<16x32xf32>
    %c1_93 = arith.constant 1 : index
    %c0_94 = arith.constant 0 : index
    %c0_95 = arith.constant 0 : index
    %470 = vector.load %arg8[%c1_93, %c0_94, %c0_95] : memref<2x32x32xf32, #tpu.memory_space<vmem>>, vector<1x32x32xf32>
    %471 = vector.shape_cast %470 : vector<1x32x32xf32> to vector<32x32xf32>
    %cst_96 = arith.constant dense<0.000000e+00> : vector<16x32xf32>
    %472 = tpu.matmul %466, %471, %cst_96 {dimension_numbers = #tpu.dot_dimension_numbers<[1], [0], [0], [1], [0, 0, 1, 1], [], []>} : vector<16x32xf32>, vector<32x32xf32>, vector<16x32xf32> -> vector<16x32xf32>
    %c1_97 = arith.constant 1 : index
    %473 = memref.load %arg13[%c1_97] : memref<2xf32, #tpu.memory_space<smem>>
    %474 = arith.negf %472 : vector<16x32xf32>
    %475 = math.exp %474 : vector<16x32xf32>
    %cst_98 = arith.constant 1.000000e+00 : f32
    %476 = vector.broadcast %cst_98 : f32 to vector<16x32xf32>
    %477 = arith.addf %476, %475 : vector<16x32xf32>
    %478 = arith.divf %476, %477 : vector<16x32xf32>
    %479 = arith.mulf %472, %478 : vector<16x32xf32>
    %480 = vector.broadcast %473 : f32 to vector<16x32xf32>
    %481 = arith.addf %479, %480 : vector<16x32xf32>
    %482 = arith.mulf %469, %481 : vector<16x32xf32>
    %c1_99 = arith.constant 1 : index
    %c0_100 = arith.constant 0 : index
    %c0_101 = arith.constant 0 : index
    %483 = vector.load %arg9[%c1_99, %c0_100, %c0_101] : memref<2x32x32xf32, #tpu.memory_space<vmem>>, vector<1x32x32xf32>
    %484 = vector.shape_cast %483 : vector<1x32x32xf32> to vector<32x32xf32>
    %cst_102 = arith.constant dense<0.000000e+00> : vector<16x32xf32>
    %485 = tpu.matmul %482, %484, %cst_102 {dimension_numbers = #tpu.dot_dimension_numbers<[1], [0], [0], [1], [0, 0, 1, 1], [], []>} : vector<16x32xf32>, vector<32x32xf32>, vector<16x32xf32> -> vector<16x32xf32>
    %cst_103 = arith.constant dense<0.000000e+00> : vector<64x32xf32>
    %486 = tpu.matmul %449, %485, %cst_103 {dimension_numbers = #tpu.dot_dimension_numbers<[1], [0], [0], [1], [0, 0, 1, 1], [], []>} : vector<64x16xf32>, vector<16x32xf32>, vector<64x32xf32> -> vector<64x32xf32>
    %cst_104 = arith.constant 1.000000e+00 : f32
    %487 = vector.broadcast %cst_104 : f32 to vector<1x32xf32>
    %488 = arith.subf %487, %305 : vector<1x32xf32>
    %489 = vector.broadcast %488 : vector<1x32xf32> to vector<64x32xf32>
    %490 = arith.mulf %489, %375 : vector<64x32xf32>
    %491 = vector.broadcast %305 : vector<1x32xf32> to vector<64x32xf32>
    %492 = arith.mulf %491, %486 : vector<64x32xf32>
    %493 = arith.addf %490, %492 : vector<64x32xf32>
    %cst_105 = arith.constant dense<0.000000e+00> : vector<576x32xf32>
    %494 = tpu.matmul %2, %493, %cst_105 {dimension_numbers = #tpu.dot_dimension_numbers<[1], [0], [0], [1], [0, 0, 1, 1], [], []>} : vector<576x64xf32>, vector<64x32xf32>, vector<576x32xf32> -> vector<576x32xf32>
    %495 = vector.extract_strided_slice %494 {offsets = [0, 0], sizes = [64, 32], strides = [1, 1]} : vector<576x32xf32> to vector<64x32xf32>
    %496 = vector.extract_strided_slice %293 {offsets = [17, 0], sizes = [1, 32], strides = [1, 1]} : vector<30x32xf32> to vector<1x32xf32>
    %497 = vector.broadcast %496 : vector<1x32xf32> to vector<64x32xf32>
    %498 = arith.mulf %495, %497 : vector<64x32xf32>
    %499 = vector.extract_strided_slice %494 {offsets = [64, 0], sizes = [64, 32], strides = [1, 1]} : vector<576x32xf32> to vector<64x32xf32>
    %500 = vector.extract_strided_slice %293 {offsets = [18, 0], sizes = [1, 32], strides = [1, 1]} : vector<30x32xf32> to vector<1x32xf32>
    %501 = vector.broadcast %500 : vector<1x32xf32> to vector<64x32xf32>
    %502 = arith.mulf %499, %501 : vector<64x32xf32>
    %503 = arith.addf %498, %502 : vector<64x32xf32>
    %504 = vector.extract_strided_slice %494 {offsets = [128, 0], sizes = [64, 32], strides = [1, 1]} : vector<576x32xf32> to vector<64x32xf32>
    %505 = vector.extract_strided_slice %293 {offsets = [19, 0], sizes = [1, 32], strides = [1, 1]} : vector<30x32xf32> to vector<1x32xf32>
    %506 = vector.broadcast %505 : vector<1x32xf32> to vector<64x32xf32>
    %507 = arith.mulf %504, %506 : vector<64x32xf32>
    %508 = arith.addf %503, %507 : vector<64x32xf32>
    %509 = vector.extract_strided_slice %494 {offsets = [192, 0], sizes = [64, 32], strides = [1, 1]} : vector<576x32xf32> to vector<64x32xf32>
    %510 = vector.extract_strided_slice %293 {offsets = [20, 0], sizes = [1, 32], strides = [1, 1]} : vector<30x32xf32> to vector<1x32xf32>
    %511 = vector.broadcast %510 : vector<1x32xf32> to vector<64x32xf32>
    %512 = arith.mulf %509, %511 : vector<64x32xf32>
    %513 = arith.addf %508, %512 : vector<64x32xf32>
    %514 = vector.extract_strided_slice %494 {offsets = [256, 0], sizes = [64, 32], strides = [1, 1]} : vector<576x32xf32> to vector<64x32xf32>
    %515 = vector.extract_strided_slice %293 {offsets = [21, 0], sizes = [1, 32], strides = [1, 1]} : vector<30x32xf32> to vector<1x32xf32>
    %516 = vector.broadcast %515 : vector<1x32xf32> to vector<64x32xf32>
    %517 = arith.mulf %514, %516 : vector<64x32xf32>
    %518 = arith.addf %513, %517 : vector<64x32xf32>
    %519 = vector.extract_strided_slice %494 {offsets = [320, 0], sizes = [64, 32], strides = [1, 1]} : vector<576x32xf32> to vector<64x32xf32>
    %520 = vector.extract_strided_slice %293 {offsets = [22, 0], sizes = [1, 32], strides = [1, 1]} : vector<30x32xf32> to vector<1x32xf32>
    %521 = vector.broadcast %520 : vector<1x32xf32> to vector<64x32xf32>
    %522 = arith.mulf %519, %521 : vector<64x32xf32>
    %523 = arith.addf %518, %522 : vector<64x32xf32>
    %524 = vector.extract_strided_slice %494 {offsets = [384, 0], sizes = [64, 32], strides = [1, 1]} : vector<576x32xf32> to vector<64x32xf32>
    %525 = vector.extract_strided_slice %293 {offsets = [23, 0], sizes = [1, 32], strides = [1, 1]} : vector<30x32xf32> to vector<1x32xf32>
    %526 = vector.broadcast %525 : vector<1x32xf32> to vector<64x32xf32>
    %527 = arith.mulf %524, %526 : vector<64x32xf32>
    %528 = arith.addf %523, %527 : vector<64x32xf32>
    %529 = vector.extract_strided_slice %494 {offsets = [448, 0], sizes = [64, 32], strides = [1, 1]} : vector<576x32xf32> to vector<64x32xf32>
    %530 = vector.extract_strided_slice %293 {offsets = [24, 0], sizes = [1, 32], strides = [1, 1]} : vector<30x32xf32> to vector<1x32xf32>
    %531 = vector.broadcast %530 : vector<1x32xf32> to vector<64x32xf32>
    %532 = arith.mulf %529, %531 : vector<64x32xf32>
    %533 = arith.addf %528, %532 : vector<64x32xf32>
    %534 = vector.extract_strided_slice %494 {offsets = [512, 0], sizes = [64, 32], strides = [1, 1]} : vector<576x32xf32> to vector<64x32xf32>
    %535 = vector.extract_strided_slice %293 {offsets = [25, 0], sizes = [1, 32], strides = [1, 1]} : vector<30x32xf32> to vector<1x32xf32>
    %536 = vector.broadcast %535 : vector<1x32xf32> to vector<64x32xf32>
    %537 = arith.mulf %534, %536 : vector<64x32xf32>
    %538 = arith.addf %533, %537 : vector<64x32xf32>
    %539 = vector.extract_strided_slice %293 {offsets = [26, 0], sizes = [1, 32], strides = [1, 1]} : vector<30x32xf32> to vector<1x32xf32>
    %540 = vector.broadcast %539 : vector<1x32xf32> to vector<64x32xf32>
    %541 = arith.mulf %538, %540 : vector<64x32xf32>
    %542 = vector.extract_strided_slice %293 {offsets = [27, 0], sizes = [1, 32], strides = [1, 1]} : vector<30x32xf32> to vector<1x32xf32>
    %543 = vector.broadcast %542 : vector<1x32xf32> to vector<64x32xf32>
    %544 = arith.addf %541, %543 : vector<64x32xf32>
    %cst_106 = arith.constant 1.000000e+00 : f32
    %545 = vector.broadcast %cst_106 : f32 to vector<1x32xf32>
    %546 = arith.subf %545, %311 : vector<1x32xf32>
    %547 = vector.broadcast %546 : vector<1x32xf32> to vector<64x32xf32>
    %548 = arith.mulf %547, %493 : vector<64x32xf32>
    %549 = vector.broadcast %311 : vector<1x32xf32> to vector<64x32xf32>
    %550 = arith.mulf %549, %544 : vector<64x32xf32>
    %551 = arith.addf %548, %550 : vector<64x32xf32>
    %c1_107 = arith.constant 1 : index
    %c0_108 = arith.constant 0 : index
    %c0_109 = arith.constant 0 : index
    %552 = vector.load %arg11[%c1_107, %c0_108, %c0_109] : memref<2x2x128xf32, #tpu.memory_space<vmem>>, vector<1x2x128xf32>
    %553 = vector.shape_cast %552 : vector<1x2x128xf32> to vector<2x128xf32>
    %c1_110 = arith.constant 1 : index
    %c0_111 = arith.constant 0 : index
    %c0_112 = arith.constant 0 : index
    %554 = vector.load %arg10[%c1_110, %c0_111, %c0_112] : memref<2x32x128xf32, #tpu.memory_space<vmem>>, vector<1x32x128xf32>
    %555 = vector.shape_cast %554 : vector<1x32x128xf32> to vector<32x128xf32>
    %cst_113 = arith.constant dense<0.000000e+00> : vector<64x128xf32>
    %556 = tpu.matmul %551, %555, %cst_113 {dimension_numbers = #tpu.dot_dimension_numbers<[1], [0], [0], [1], [0, 0, 1, 1], [], []>} : vector<64x32xf32>, vector<32x128xf32>, vector<64x128xf32> -> vector<64x128xf32>
    %557 = vector.extract_strided_slice %553 {offsets = [0, 0], sizes = [1, 128], strides = [1, 1]} : vector<2x128xf32> to vector<1x128xf32>
    %558 = vector.broadcast %557 : vector<1x128xf32> to vector<64x128xf32>
    %559 = arith.mulf %556, %558 : vector<64x128xf32>
    %560 = vector.extract_strided_slice %553 {offsets = [1, 0], sizes = [1, 128], strides = [1, 1]} : vector<2x128xf32> to vector<1x128xf32>
    %561 = vector.broadcast %560 : vector<1x128xf32> to vector<64x128xf32>
    %562 = arith.addf %559, %561 : vector<64x128xf32>
    %cst_114 = arith.constant 0.000000e+00 : f32
    %563 = vector.broadcast %cst_114 : f32 to vector<64x128xf32>
    %564 = arith.maximumf %562, %563 : vector<64x128xf32>
    %c1_115 = arith.constant 1 : index
    %c0_116 = arith.constant 0 : index
    %c0_117 = arith.constant 0 : index
    %565 = vector.load %arg12[%c1_115, %c0_116, %c0_117] : memref<2x128x32xf32, #tpu.memory_space<vmem>>, vector<1x128x32xf32>
    %566 = vector.shape_cast %565 : vector<1x128x32xf32> to vector<128x32xf32>
    %cst_118 = arith.constant dense<0.000000e+00> : vector<64x32xf32>
    %567 = tpu.matmul %564, %566, %cst_118 {dimension_numbers = #tpu.dot_dimension_numbers<[1], [0], [0], [1], [0, 0, 1, 1], [], []>} : vector<64x128xf32>, vector<128x32xf32>, vector<64x32xf32> -> vector<64x32xf32>
    %568 = vector.extract_strided_slice %293 {offsets = [28, 0], sizes = [1, 32], strides = [1, 1]} : vector<30x32xf32> to vector<1x32xf32>
    %569 = vector.broadcast %568 : vector<1x32xf32> to vector<64x32xf32>
    %570 = arith.mulf %567, %569 : vector<64x32xf32>
    %571 = vector.extract_strided_slice %293 {offsets = [29, 0], sizes = [1, 32], strides = [1, 1]} : vector<30x32xf32> to vector<1x32xf32>
    %572 = vector.broadcast %571 : vector<1x32xf32> to vector<64x32xf32>
    %573 = arith.addf %570, %572 : vector<64x32xf32>
    %cst_119 = arith.constant 1.000000e+00 : f32
    %574 = vector.broadcast %cst_119 : f32 to vector<1x32xf32>
    %575 = arith.subf %574, %317 : vector<1x32xf32>
    %576 = vector.broadcast %575 : vector<1x32xf32> to vector<64x32xf32>
    %577 = arith.mulf %576, %551 : vector<64x32xf32>
    %578 = vector.broadcast %317 : vector<1x32xf32> to vector<64x32xf32>
    %579 = arith.mulf %578, %573 : vector<64x32xf32>
    %580 = arith.addf %577, %579 : vector<64x32xf32>
    %c0_120 = arith.constant 0 : index
    %c0_121 = arith.constant 0 : index
    %c0_122 = arith.constant 0 : index
    %581 = vector.load %arg14[%c0_120, %c0_121, %c0_122] : memref<1x64x32xf32, #tpu.memory_space<vmem>>, vector<1x64x32xf32>
    %582 = vector.shape_cast %581 : vector<1x64x32xf32> to vector<64x32xf32>
    %583 = vector.shape_cast %580 : vector<64x32xf32> to vector<1x64x32xf32>
    tpu.vector_store %arg14[%c0_120, %c0_121, %c0_122], %583 {strides = array<i32>} : memref<1x64x32xf32, #tpu.memory_space<vmem>>, vector<1x64x32xf32>,
    %c0_123 = arith.constant 0 : index
    %c0_124 = arith.constant 0 : index
    %c0_125 = arith.constant 0 : index
    %584 = vector.load %arg15[%c0_123, %c0_124, %c0_125] : memref<1x16x32xf32, #tpu.memory_space<vmem>>, vector<1x16x32xf32>
    %585 = vector.shape_cast %584 : vector<1x16x32xf32> to vector<16x32xf32>
    %586 = vector.shape_cast %485 : vector<16x32xf32> to vector<1x16x32xf32>
    tpu.vector_store %arg15[%c0_123, %c0_124, %c0_125], %586 {strides = array<i32>} : memref<1x16x32xf32, #tpu.memory_space<vmem>>, vector<1x16x32xf32>,
    return
  }
  func.func @transform_0(%arg0: i32) -> (i32, i32, i32) {
    %c0_i32 = arith.constant 0 : i32
    %c0_i32_0 = arith.constant 0 : i32
    %c0_i32_1 = arith.constant 0 : i32
    return %arg0, %c0_i32, %c0_i32_0 : i32, i32, i32
  }
  func.func @transform_1(%arg0: i32) -> (i32, i32) {
    %c0_i32 = arith.constant 0 : i32
    %c0_i32_0 = arith.constant 0 : i32
    %c0_i32_1 = arith.constant 0 : i32
    return %c0_i32, %c0_i32_0 : i32, i32
  }
  func.func @transform_2(%arg0: i32) -> (i32, i32, i32) {
    %c0_i32 = arith.constant 0 : i32
    %c0_i32_0 = arith.constant 0 : i32
    %c0_i32_1 = arith.constant 0 : i32
    %c0_i32_2 = arith.constant 0 : i32
    return %c0_i32, %c0_i32_0, %c0_i32_1 : i32, i32, i32
  }
  func.func @transform_3(%arg0: i32) -> (i32, i32, i32) {
    %c0_i32 = arith.constant 0 : i32
    %c0_i32_0 = arith.constant 0 : i32
    %c0_i32_1 = arith.constant 0 : i32
    %c0_i32_2 = arith.constant 0 : i32
    return %c0_i32, %c0_i32_0, %c0_i32_1 : i32, i32, i32
  }
  func.func @transform_4(%arg0: i32) -> (i32, i32, i32) {
    %c0_i32 = arith.constant 0 : i32
    %c0_i32_0 = arith.constant 0 : i32
    %c0_i32_1 = arith.constant 0 : i32
    %c0_i32_2 = arith.constant 0 : i32
    return %c0_i32, %c0_i32_0, %c0_i32_1 : i32, i32, i32
  }
  func.func @transform_5(%arg0: i32) -> (i32, i32, i32) {
    %c0_i32 = arith.constant 0 : i32
    %c0_i32_0 = arith.constant 0 : i32
    %c0_i32_1 = arith.constant 0 : i32
    %c0_i32_2 = arith.constant 0 : i32
    return %c0_i32, %c0_i32_0, %c0_i32_1 : i32, i32, i32
  }
  func.func @transform_6(%arg0: i32) -> (i32, i32, i32) {
    %c0_i32 = arith.constant 0 : i32
    %c0_i32_0 = arith.constant 0 : i32
    %c0_i32_1 = arith.constant 0 : i32
    %c0_i32_2 = arith.constant 0 : i32
    return %c0_i32, %c0_i32_0, %c0_i32_1 : i32, i32, i32
  }
  func.func @transform_7(%arg0: i32) -> (i32, i32, i32) {
    %c0_i32 = arith.constant 0 : i32
    %c0_i32_0 = arith.constant 0 : i32
    %c0_i32_1 = arith.constant 0 : i32
    %c0_i32_2 = arith.constant 0 : i32
    return %c0_i32, %c0_i32_0, %c0_i32_1 : i32, i32, i32
  }
  func.func @transform_8(%arg0: i32) -> (i32, i32, i32) {
    %c0_i32 = arith.constant 0 : i32
    %c0_i32_0 = arith.constant 0 : i32
    %c0_i32_1 = arith.constant 0 : i32
    %c0_i32_2 = arith.constant 0 : i32
    return %c0_i32, %c0_i32_0, %c0_i32_1 : i32, i32, i32
  }
  func.func @transform_9(%arg0: i32) -> (i32, i32, i32) {
    %c0_i32 = arith.constant 0 : i32
    %c0_i32_0 = arith.constant 0 : i32
    %c0_i32_1 = arith.constant 0 : i32
    %c0_i32_2 = arith.constant 0 : i32
    return %c0_i32, %c0_i32_0, %c0_i32_1 : i32, i32, i32
  }
  func.func @transform_10(%arg0: i32) -> (i32, i32, i32) {
    %c0_i32 = arith.constant 0 : i32
    %c0_i32_0 = arith.constant 0 : i32
    %c0_i32_1 = arith.constant 0 : i32
    %c0_i32_2 = arith.constant 0 : i32
    return %c0_i32, %c0_i32_0, %c0_i32_1 : i32, i32, i32
  }
  func.func @transform_11(%arg0: i32) -> (i32, i32, i32) {
    %c0_i32 = arith.constant 0 : i32
    %c0_i32_0 = arith.constant 0 : i32
    %c0_i32_1 = arith.constant 0 : i32
    %c0_i32_2 = arith.constant 0 : i32
    return %c0_i32, %c0_i32_0, %c0_i32_1 : i32, i32, i32
  }
  func.func @transform_12(%arg0: i32) -> i32 {
    %c0_i32 = arith.constant 0 : i32
    %c0_i32_0 = arith.constant 0 : i32
    return %c0_i32 : i32
  }
  func.func @transform_13(%arg0: i32) -> (i32, i32, i32) {
    %c0_i32 = arith.constant 0 : i32
    %c0_i32_0 = arith.constant 0 : i32
    %c0_i32_1 = arith.constant 0 : i32
    return %arg0, %c0_i32, %c0_i32_0 : i32, i32, i32
  }
  func.func @transform_14(%arg0: i32) -> (i32, i32, i32) {
    %c0_i32 = arith.constant 0 : i32
    %c0_i32_0 = arith.constant 0 : i32
    %c0_i32_1 = arith.constant 0 : i32
    return %arg0, %c0_i32, %c0_i32_0 : i32, i32, i32
  }
}

</mosaic_0001>

<llo_original>
// kernel: efficientvim_stage.1
$region0: #{efficientvim_stage.1}
  #allocation0 [shape = 'u32[]', space=smem, size = 0x4, offset = 0x4, fixed_abs, tag = 'smem constant byte address 0x4 - core index']
  #allocation1 [shape = 'u32[144,128]{1,0:T(1,128)}', space=vmem, size = 0x12000, scoped, tag = 'internal scratch']
  %s0 = inlined_call_operand.vmem [shape: f32[2,64,32], index: 0, kind: input, shape index: {}]
  %s1 = inlined_call_operand.hbm [shape: f32[576,64], index: 1, kind: input, shape index: {}]
  %s2 = inlined_call_operand.vmem [shape: f32[2,30,32], index: 2, kind: input, shape index: {}]
  %s3 = inlined_call_operand.vmem [shape: f32[2,32,48], index: 3, kind: input, shape index: {}]
  %s4 = inlined_call_operand.vmem [shape: f32[2,9,48], index: 4, kind: input, shape index: {}]
  %s5 = inlined_call_operand.hbm [shape: f32[2,1,16], index: 5, kind: input, shape index: {}]
  %s6 = inlined_call_operand.vmem [shape: f32[2,32,32], index: 6, kind: input, shape index: {}]
  %s7 = inlined_call_operand.vmem [shape: f32[2,32,32], index: 7, kind: input, shape index: {}]
  %s8 = inlined_call_operand.vmem [shape: f32[2,32,32], index: 8, kind: input, shape index: {}]
  %s9 = inlined_call_operand.vmem [shape: f32[2,32,128], index: 9, kind: input, shape index: {}]
  %s10 = inlined_call_operand.vmem [shape: f32[2,2,128], index: 10, kind: input, shape index: {}]
  %s11 = inlined_call_operand.vmem [shape: f32[2,128,32], index: 11, kind: input, shape index: {}]
  %s12 = inlined_call_operand.hbm [shape: f32[2], index: 12, kind: input, shape index: {}]
  %s13 = inlined_call_operand.vmem [shape: f32[2,64,32], index: 13, kind: output, shape index: {0}]
  %s14 = inlined_call_operand.hbm [shape: f32[2,16,32], index: 14, kind: output, shape index: {1}]
  %15 = xla_tuple %s13, %s14
  %s16 = sld [smem:[#allocation0]]
  $region105: #{efficientvim_stage.1} parent=0
    _
  %s18 = ssub.s32 1, %s16
  %s19 = scalar_select 0, %s18, %s16
  $region1: #{efficientvim_stage.1} parent=0
    #allocation2 [shape = 'u8[294912]{0}', space=vmem, size = 0x48000, scoped, tag = 'input window, operand 1, single buffered']
    #allocation3 [shape = 's32[2]{0}', space=sflag, size = 0x8, scoped, tag = 'scoped memory for efficientvim_stage.1']
    #allocation4 [shape = 's32[2]{0}', space=sflag, size = 0x8, scoped, tag = 'scoped memory for efficientvim_stage.1']
    #allocation5 [shape = 's32[2]{0}', space=sflag, size = 0x8, scoped, tag = 'scoped memory for efficientvim_stage.1']
    #allocation6 [shape = 'u8[1024]{0}', space=vmem, size = 0x400, scoped, tag = 'input window, operand 5, single buffered']
    #allocation7 [shape = 's32[1]{0}', space=sflag, size = 0x4, scoped, tag = 'scoped memory for efficientvim_stage.1']
    #allocation8 [shape = 'u8[512]{0}', space=smem, size = 0x200, scoped, tag = 'input window, operand 12, single buffered']
    #allocation9 [shape = 'u8[16384]{0}', space=vmem, size = 0x4000, scoped, tag = 'output window, operand 1']
    %20 = vsyncpa [#allocation3], 0
    %21 = vsyncpa [#allocation7], 0
    %22 = vsyncpa [#allocation5], 0
    %23 = vsyncpa [#allocation4], 0
    %s24 = scalar_lea.sflag [#allocation4], 1
    %25 = vsyncpa %s24, 0
    loop: start=0, step=1, limit=4
    $region2: #{efficientvim_stage.1} parent=1 // loop_pre_header
      _
    $region3: #{efficientvim_stage.1} parent=1 // loop_header
      %s27 = sphi 0, %s31
      %p28 = scmp.ge.s32.totalorder %s27, 4
      %s37 = sphi 0, %s39
      %s40 = sphi 0, %s37
      %s41 = sphi 0, %s40
      %s57 = sphi 0, %s41
      %s61 = sphi 0, %s61
      %s63 = sphi 0, %s61
      %s64 = sphi 0, %s63
      %s78 = sphi 0, %s64
      %s82 = sphi 0, %s82
      %s84 = sphi 0, %s82
      %s85 = sphi 0, %s84
      %s99 = sphi 0, %s85
      %s103 = sphi 0, %s103
      %s105 = sphi 0, %s103
      %s106 = sphi 0, %s105
      %s120 = sphi 0, %s106
      %s124 = sphi 0, %s124
      %s126 = sphi 0, %s124
      %s127 = sphi 0, %s126
      %s141 = sphi 0, %s127
      %s145 = sphi 0, %s145
      %s147 = sphi 0, %s145
      %s148 = sphi 0, %s147
      %s162 = sphi 0, %s148
      %s166 = sphi 0, %s166
      %s168 = sphi 0, %s166
      %s169 = sphi 0, %s168
      %s183 = sphi 0, %s169
      %s187 = sphi 0, %s187
      %s189 = sphi 0, %s187
      %s190 = sphi 0, %s189
      %s204 = sphi 0, %s190
      %s208 = sphi 0, %s208
      %s210 = sphi 0, %s208
      %s211 = sphi 0, %s210
      %s225 = sphi 0, %s211
      %s229 = sphi 0, %s229
      %s231 = sphi 0, %s229
      %s232 = sphi 0, %s231
      %s246 = sphi 0, %s232
      %s250 = sphi 0, %s250
      %s252 = sphi 0, %s250
      %s253 = sphi 0, %s252
      %s267 = sphi 0, %s253
      %s271 = sphi 0, %s271
      %s273 = sphi 0, %s271
      %s274 = sphi 0, %s273
      %s288 = sphi 0, %s274
      %s292 = sphi 0, %s292
      %s294 = sphi 0, %s292
      %s295 = sphi 0, %s294
      %s309 = sphi 0, %s295
      %s315 = sphi 0, %s317
      %s318 = sphi 0, %s315
      %s319 = sphi 0, %s318
      %s335 = sphi 0, %s319
      %s341 = sphi 0, %s343
      %s344 = sphi 0, %s341
      %s345 = sphi 0, %s344
      %s361 = sphi 0, %s345
    $region4: #{efficientvim_stage.1} parent=1 // loop_header_branch
      %30 = sbr.rel (%p28) target = $region8
    $region5: #{efficientvim_stage.1} parent=1 // loop_body
      %s32 = ssub.s32 %s27, 1
      %s33 = ssub.s32 %s27, 2
      %s34 = sadd.s32 %s27, 1
      %s35 = ssub.s32 %s27, %s34
      %p36 = scmp.eq.s32.totalorder %s35, 0
      %s38 = sadd.s32 %s37, 1
      %s39 = scalar_select %p36, %s37, %s38
      %p42 = pneg %p36
      %p43 = scmp.eq.s32.totalorder %s27, 1
      %p44 = por %p42, %p43
      %p45 = scmp.ne.s32.totalorder %s37, %s40
      %p46 = scmp.eq.s32.totalorder %s27, 0
      %p47 = por %p45, %p46
      %p48 = scmp.ne.s32.totalorder %s37, %s40
      %p49 = scmp.eq.s32.totalorder %s32, 1
      %p50 = por %p48, %p49
      %p51 = scmp.ne.s32.totalorder %s40, %s41
      %p52 = scmp.eq.s32.totalorder %s32, 0
      %p53 = por %p51, %p52
      %p54 = scmp.ne.s32.totalorder %s40, %s41
      %p55 = scmp.eq.s32.totalorder %s33, 1
      %p56 = por %p54, %p55
      %p58 = scmp.ne.s32.totalorder %s41, %s57
      %p59 = scmp.eq.s32.totalorder %s33, 0
      %p60 = por %p58, %p59
      %s62 = sadd.s32 %s61, 1
      %p65 = scmp.eq.s32.totalorder %s27, 1
      %p66 = scmp.ne.s32.totalorder %s61, %s63
      %p67 = scmp.eq.s32.totalorder %s27, 0
      %p68 = por %p66, %p67
      %p69 = scmp.ne.s32.totalorder %s61, %s63
      %p70 = scmp.eq.s32.totalorder %s32, 1
      %p71 = por %p69, %p70
      %p72 = scmp.ne.s32.totalorder %s63, %s64
      %p73 = scmp.eq.s32.totalorder %s32, 0
      %p74 = por %p72, %p73
      %p75 = scmp.ne.s32.totalorder %s63, %s64
      %p76 = scmp.eq.s32.totalorder %s33, 1
      %p77 = por %p75, %p76
      %p79 = scmp.ne.s32.totalorder %s64, %s78
      %p80 = scmp.eq.s32.totalorder %s33, 0
      %p81 = por %p79, %p80
      %s83 = sadd.s32 %s82, 1
      %p86 = scmp.eq.s32.totalorder %s27, 1
      %p87 = scmp.ne.s32.totalorder %s82, %s84
      %p88 = scmp.eq.s32.totalorder %s27, 0
      %p89 = por %p87, %p88
      %p90 = scmp.ne.s32.totalorder %s82, %s84
      %p91 = scmp.eq.s32.totalorder %s32, 1
      %p92 = por %p90, %p91
      %p93 = scmp.ne.s32.totalorder %s84, %s85
      %p94 = scmp.eq.s32.totalorder %s32, 0
      %p95 = por %p93, %p94
      %p96 = scmp.ne.s32.totalorder %s84, %s85
      %p97 = scmp.eq.s32.totalorder %s33, 1
      %p98 = por %p96, %p97
      %p100 = scmp.ne.s32.totalorder %s85, %s99
      %p101 = scmp.eq.s32.totalorder %s33, 0
      %p102 = por %p100, %p101
      %s104 = sadd.s32 %s103, 1
      %p107 = scmp.eq.s32.totalorder %s27, 1
      %p108 = scmp.ne.s32.totalorder %s103, %s105
      %p109 = scmp.eq.s32.totalorder %s27, 0
      %p110 = por %p108, %p109
      %p111 = scmp.ne.s32.totalorder %s103, %s105
      %p112 = scmp.eq.s32.totalorder %s32, 1
      %p113 = por %p111, %p112
      %p114 = scmp.ne.s32.totalorder %s105, %s106
      %p115 = scmp.eq.s32.totalorder %s32, 0
      %p116 = por %p114, %p115
      %p117 = scmp.ne.s32.totalorder %s105, %s106
      %p118 = scmp.eq.s32.totalorder %s33, 1
      %p119 = por %p117, %p118
      %p121 = scmp.ne.s32.totalorder %s106, %s120
      %p122 = scmp.eq.s32.totalorder %s33, 0
      %p123 = por %p121, %p122
      %s125 = sadd.s32 %s124, 1
      %p128 = scmp.eq.s32.totalorder %s27, 1
      %p129 = scmp.ne.s32.totalorder %s124, %s126
      %p130 = scmp.eq.s32.totalorder %s27, 0
      %p131 = por %p129, %p130
      %p132 = scmp.ne.s32.totalorder %s124, %s126
      %p133 = scmp.eq.s32.totalorder %s32, 1
      %p134 = por %p132, %p133
      %p135 = scmp.ne.s32.totalorder %s126, %s127
      %p136 = scmp.eq.s32.totalorder %s32, 0
      %p137 = por %p135, %p136
      %p138 = scmp.ne.s32.totalorder %s126, %s127
      %p139 = scmp.eq.s32.totalorder %s33, 1
      %p140 = por %p138, %p139
      %p142 = scmp.ne.s32.totalorder %s127, %s141
      %p143 = scmp.eq.s32.totalorder %s33, 0
      %p144 = por %p142, %p143
      %s146 = sadd.s32 %s145, 1
      %p149 = scmp.eq.s32.totalorder %s27, 1
      %p150 = scmp.ne.s32.totalorder %s145, %s147
      %p151 = scmp.eq.s32.totalorder %s27, 0
      %p152 = por %p150, %p151
      %p153 = scmp.ne.s32.totalorder %s145, %s147
      %p154 = scmp.eq.s32.totalorder %s32, 1
      %p155 = por %p153, %p154
      %p156 = scmp.ne.s32.totalorder %s147, %s148
      %p157 = scmp.eq.s32.totalorder %s32, 0
      %p158 = por %p156, %p157
      %p159 = scmp.ne.s32.totalorder %s147, %s148
      %p160 = scmp.eq.s32.totalorder %s33, 1
      %p161 = por %p159, %p160
      %p163 = scmp.ne.s32.totalorder %s148, %s162
      %p164 = scmp.eq.s32.totalorder %s33, 0
      %p165 = por %p163, %p164
      %s167 = sadd.s32 %s166, 1
      %p170 = scmp.eq.s32.totalorder %s27, 1
      %p171 = scmp.ne.s32.totalorder %s166, %s168
      %p172 = scmp.eq.s32.totalorder %s27, 0
      %p173 = por %p171, %p172
      %p174 = scmp.ne.s32.totalorder %s166, %s168
      %p175 = scmp.eq.s32.totalorder %s32, 1
      %p176 = por %p174, %p175
      %p177 = scmp.ne.s32.totalorder %s168, %s169
      %p178 = scmp.eq.s32.totalorder %s32, 0
      %p179 = por %p177, %p178
      %p180 = scmp.ne.s32.totalorder %s168, %s169
      %p181 = scmp.eq.s32.totalorder %s33, 1
      %p182 = por %p180, %p181
      %p184 = scmp.ne.s32.totalorder %s169, %s183
      %p185 = scmp.eq.s32.totalorder %s33, 0
      %p186 = por %p184, %p185
      %s188 = sadd.s32 %s187, 1
      %p191 = scmp.eq.s32.totalorder %s27, 1
      %p192 = scmp.ne.s32.totalorder %s187, %s189
      %p193 = scmp.eq.s32.totalorder %s27, 0
      %p194 = por %p192, %p193
      %p195 = scmp.ne.s32.totalorder %s187, %s189
      %p196 = scmp.eq.s32.totalorder %s32, 1
      %p197 = por %p195, %p196
      %p198 = scmp.ne.s32.totalorder %s189, %s190
      %p199 = scmp.eq.s32.totalorder %s32, 0
      %p200 = por %p198, %p199
      %p201 = scmp.ne.s32.totalorder %s189, %s190
      %p202 = scmp.eq.s32.totalorder %s33, 1
      %p203 = por %p201, %p202
      %p205 = scmp.ne.s32.totalorder %s190, %s204
      %p206 = scmp.eq.s32.totalorder %s33, 0
      %p207 = por %p205, %p206
      %s209 = sadd.s32 %s208, 1
      %p212 = scmp.eq.s32.totalorder %s27, 1
      %p213 = scmp.ne.s32.totalorder %s208, %s210
      %p214 = scmp.eq.s32.totalorder %s27, 0
      %p215 = por %p213, %p214
      %p216 = scmp.ne.s32.totalorder %s208, %s210
      %p217 = scmp.eq.s32.totalorder %s32, 1
      %p218 = por %p216, %p217
      %p219 = scmp.ne.s32.totalorder %s210, %s211
      %p220 = scmp.eq.s32.totalorder %s32, 0
      %p221 = por %p219, %p220
      %p222 = scmp.ne.s32.totalorder %s210, %s211
      %p223 = scmp.eq.s32.totalorder %s33, 1
      %p224 = por %p222, %p223
      %p226 = scmp.ne.s32.totalorder %s211, %s225
      %p227 = scmp.eq.s32.totalorder %s33, 0
      %p228 = por %p226, %p227
      %s230 = sadd.s32 %s229, 1
      %p233 = scmp.eq.s32.totalorder %s27, 1
      %p234 = scmp.ne.s32.totalorder %s229, %s231
      %p235 = scmp.eq.s32.totalorder %s27, 0
      %p236 = por %p234, %p235
      %p237 = scmp.ne.s32.totalorder %s229, %s231
      %p238 = scmp.eq.s32.totalorder %s32, 1
      %p239 = por %p237, %p238
      %p240 = scmp.ne.s32.totalorder %s231, %s232
      %p241 = scmp.eq.s32.totalorder %s32, 0
      %p242 = por %p240, %p241
      %p243 = scmp.ne.s32.totalorder %s231, %s232
      %p244 = scmp.eq.s32.totalorder %s33, 1
      %p245 = por %p243, %p244
      %p247 = scmp.ne.s32.totalorder %s232, %s246
      %p248 = scmp.eq.s32.totalorder %s33, 0
      %p249 = por %p247, %p248
      %s251 = sadd.s32 %s250, 1
      %p254 = scmp.eq.s32.totalorder %s27, 1
      %p255 = scmp.ne.s32.totalorder %s250, %s252
      %p256 = scmp.eq.s32.totalorder %s27, 0
      %p257 = por %p255, %p256
      %p258 = scmp.ne.s32.totalorder %s250, %s252
      %p259 = scmp.eq.s32.totalorder %s32, 1
      %p260 = por %p258, %p259
      %p261 = scmp.ne.s32.totalorder %s252, %s253
      %p262 = scmp.eq.s32.totalorder %s32, 0
      %p263 = por %p261, %p262
      %p264 = scmp.ne.s32.totalorder %s252, %s253
      %p265 = scmp.eq.s32.totalorder %s33, 1
      %p266 = por %p264, %p265
      %p268 = scmp.ne.s32.totalorder %s253, %s267
      %p269 = scmp.eq.s32.totalorder %s33, 0
      %p270 = por %p268, %p269
      %s272 = sadd.s32 %s271, 1
      %p275 = scmp.eq.s32.totalorder %s27, 1
      %p276 = scmp.ne.s32.totalorder %s271, %s273
      %p277 = scmp.eq.s32.totalorder %s27, 0
      %p278 = por %p276, %p277
      %p279 = scmp.ne.s32.totalorder %s271, %s273
      %p280 = scmp.eq.s32.totalorder %s32, 1
      %p281 = por %p279, %p280
      %p282 = scmp.ne.s32.totalorder %s273, %s274
      %p283 = scmp.eq.s32.totalorder %s32, 0
      %p284 = por %p282, %p283
      %p285 = scmp.ne.s32.totalorder %s273, %s274
      %p286 = scmp.eq.s32.totalorder %s33, 1
      %p287 = por %p285, %p286
      %p289 = scmp.ne.s32.totalorder %s274, %s288
      %p290 = scmp.eq.s32.totalorder %s33, 0
      %p291 = por %p289, %p290
      %s293 = sadd.s32 %s292, 1
      %p296 = scmp.eq.s32.totalorder %s27, 1
      %p297 = scmp.ne.s32.totalorder %s292, %s294
      %p298 = scmp.eq.s32.totalorder %s27, 0
      %p299 = por %p297, %p298
      %p300 = scmp.ne.s32.totalorder %s292, %s294
      %p301 = scmp.eq.s32.totalorder %s32, 1
      %p302 = por %p300, %p301
      %p303 = scmp.ne.s32.totalorder %s294, %s295
      %p304 = scmp.eq.s32.totalorder %s32, 0
      %p305 = por %p303, %p304
      %p306 = scmp.ne.s32.totalorder %s294, %s295
      %p307 = scmp.eq.s32.totalorder %s33, 1
      %p308 = por %p306, %p307
      %p310 = scmp.ne.s32.totalorder %s295, %s309
      %p311 = scmp.eq.s32.totalorder %s33, 0
      %p312 = por %p310, %p311
      %s313 = ssub.s32 %s27, %s34
      %p314 = scmp.eq.s32.totalorder %s313, 0
      %s316 = sadd.s32 %s315, 1
      %s317 = scalar_select %p314, %s315, %s316
      %p320 = pneg %p314
      %p321 = scmp.eq.s32.totalorder %s27, 1
      %p322 = por %p320, %p321
      %p323 = scmp.ne.s32.totalorder %s315, %s318
      %p324 = scmp.eq.s32.totalorder %s27, 0
      %p325 = por %p323, %p324
      %p326 = scmp.ne.s32.totalorder %s315, %s318
      %p327 = scmp.eq.s32.totalorder %s32, 1
      %p328 = por %p326, %p327
      %p329 = scmp.ne.s32.totalorder %s318, %s319
      %p330 = scmp.eq.s32.totalorder %s32, 0
      %p331 = por %p329, %p330
      %p332 = scmp.ne.s32.totalorder %s318, %s319
      %p333 = scmp.eq.s32.totalorder %s33, 1
      %p334 = por %p332, %p333
      %p336 = scmp.ne.s32.totalorder %s319, %s335
      %p337 = scmp.eq.s32.totalorder %s33, 0
      %p338 = por %p336, %p337
      %s339 = ssub.s32 %s27, %s34
      %p340 = scmp.eq.s32.totalorder %s339, 0
      %s342 = sadd.s32 %s341, 1
      %s343 = scalar_select %p340, %s341, %s342
      %p346 = pneg %p340
      %p347 = scmp.eq.s32.totalorder %s27, 1
      %p348 = por %p346, %p347
      %p349 = scmp.ne.s32.totalorder %s341, %s344
      %p350 = scmp.eq.s32.totalorder %s27, 0
      %p351 = por %p349, %p350
      %p352 = scmp.ne.s32.totalorder %s341, %s344
      %p353 = scmp.eq.s32.totalorder %s32, 1
      %p354 = por %p352, %p353
      %p355 = scmp.ne.s32.totalorder %s344, %s345
      %p356 = scmp.eq.s32.totalorder %s32, 0
      %p357 = por %p355, %p356
      %p358 = scmp.ne.s32.totalorder %s344, %s345
      %p359 = scmp.eq.s32.totalorder %s33, 1
      %p360 = por %p358, %p359
      %p362 = scmp.ne.s32.totalorder %s345, %s361
      %p363 = scmp.eq.s32.totalorder %s33, 0
      %p364 = por %p362, %p363
      %p365 = scmp.le.s32.totalorder 1, %s27
      %p366 = scmp.lt.s32.totalorder %s27, 3
      %p367 = pnand %p365, %p366
      %p368 = pneg %p367
      // Predicated region
      $region9: #{efficientvim_stage.1} parent=5 // pred_check
        _
      $region10: #{efficientvim_stage.1} parent=5 // pred_check_branch
        %370 = sbr.rel (%p367) target = $region12
      $region11: #{efficientvim_stage.1} parent=5 // pred_region
        %s371 = ssub.s32 %s27, 1
        // Predicated region
        $region13: #{efficientvim_stage.1} parent=11 // pred_check
          %p372 = pneg %p74
        $region14: #{efficientvim_stage.1} parent=11 // pred_check_branch
          %374 = sbr.rel (%p372) target = $region16
        $region15: #{efficientvim_stage.1} parent=11 // pred_region
          %s376 = ssub.s32 9216, 9216
          %377 = vsyncadd [#allocation3], %s376
          %s378 = sshll.u32 [#allocation2], 4
          %s379 = int_to_ptr.vmem [resolvable:$true] %s378
          %384 = dma.hbm_to_vmem [thread:$0]  %s1, 9216, %s379, [#allocation3], 128, 128, 8
        $region16: #{efficientvim_stage.1} parent=11 // pred_fallthru
          _
        // Predicated region
        $region17: #{efficientvim_stage.1} parent=11 // pred_check
          %p385 = pneg %p95
        $region18: #{efficientvim_stage.1} parent=11 // pred_check_branch
          %387 = sbr.rel (%p385) target = $region20
        $region19: #{efficientvim_stage.1} parent=11 // pred_region
          _
        $region20: #{efficientvim_stage.1} parent=11 // pred_fallthru
          _
        // Predicated region
        $region21: #{efficientvim_stage.1} parent=11 // pred_check
          %p388 = pneg %p116
        $region22: #{efficientvim_stage.1} parent=11 // pred_check_branch
          %390 = sbr.rel (%p388) target = $region24
        $region23: #{efficientvim_stage.1} parent=11 // pred_region
          _
        $region24: #{efficientvim_stage.1} parent=11 // pred_fallthru
          _
        // Predicated region
        $region25: #{efficientvim_stage.1} parent=11 // pred_check
          %p391 = pneg %p137
        $region26: #{efficientvim_stage.1} parent=11 // pred_check_branch
          %393 = sbr.rel (%p391) target = $region28
        $region27: #{efficientvim_stage.1} parent=11 // pred_region
          _
        $region28: #{efficientvim_stage.1} parent=11 // pred_fallthru
          _
        // Predicated region
        $region29: #{efficientvim_stage.1} parent=11 // pred_check
          %p394 = pneg %p158
        $region30: #{efficientvim_stage.1} parent=11 // pred_check_branch
          %396 = sbr.rel (%p394) target = $region32
        $region31: #{efficientvim_stage.1} parent=11 // pred_region
          %s398 = ssub.s32 32, 32
          %399 = vsyncadd [#allocation7], %s398
          %s400 = sshll.u32 [#allocation6], 4
          %s401 = int_to_ptr.vmem [resolvable:$true] %s400
          %406 = dma.hbm_to_vmem [thread:$0]  %s5, 32, %s401, [#allocation7], 16, 16, 1
        $region32: #{efficientvim_stage.1} parent=11 // pred_fallthru
          _
        // Predicated region
        $region33: #{efficientvim_stage.1} parent=11 // pred_check
          %p407 = pneg %p179
        $region34: #{efficientvim_stage.1} parent=11 // pred_check_branch
          %409 = sbr.rel (%p407) target = $region36
        $region35: #{efficientvim_stage.1} parent=11 // pred_region
          _
        $region36: #{efficientvim_stage.1} parent=11 // pred_fallthru
          _
        // Predicated region
        $region37: #{efficientvim_stage.1} parent=11 // pred_check
          %p410 = pneg %p200
        $region38: #{efficientvim_stage.1} parent=11 // pred_check_branch
          %412 = sbr.rel (%p410) target = $region40
        $region39: #{efficientvim_stage.1} parent=11 // pred_region
          _
        $region40: #{efficientvim_stage.1} parent=11 // pred_fallthru
          _
        // Predicated region
        $region41: #{efficientvim_stage.1} parent=11 // pred_check
          %p413 = pneg %p221
        $region42: #{efficientvim_stage.1} parent=11 // pred_check_branch
          %415 = sbr.rel (%p413) target = $region44
        $region43: #{efficientvim_stage.1} parent=11 // pred_region
          _
        $region44: #{efficientvim_stage.1} parent=11 // pred_fallthru
          _
        // Predicated region
        $region45: #{efficientvim_stage.1} parent=11 // pred_check
          %p416 = pneg %p242
        $region46: #{efficientvim_stage.1} parent=11 // pred_check_branch
          %418 = sbr.rel (%p416) target = $region48
        $region47: #{efficientvim_stage.1} parent=11 // pred_region
          _
        $region48: #{efficientvim_stage.1} parent=11 // pred_fallthru
          _
        // Predicated region
        $region49: #{efficientvim_stage.1} parent=11 // pred_check
          %p419 = pneg %p263
        $region50: #{efficientvim_stage.1} parent=11 // pred_check_branch
          %421 = sbr.rel (%p419) target = $region52
        $region51: #{efficientvim_stage.1} parent=11 // pred_region
          _
        $region52: #{efficientvim_stage.1} parent=11 // pred_fallthru
          _
        // Predicated region
        $region53: #{efficientvim_stage.1} parent=11 // pred_check
          %p422 = pneg %p284
        $region54: #{efficientvim_stage.1} parent=11 // pred_check_branch
          %424 = sbr.rel (%p422) target = $region56
        $region55: #{efficientvim_stage.1} parent=11 // pred_region
          _
        $region56: #{efficientvim_stage.1} parent=11 // pred_fallthru
          _
        // Predicated region
        $region57: #{efficientvim_stage.1} parent=11 // pred_check
          %p425 = pneg %p305
        $region58: #{efficientvim_stage.1} parent=11 // pred_check_branch
          %427 = sbr.rel (%p425) target = $region60
        $region59: #{efficientvim_stage.1} parent=11 // pred_region
          %s429 = ssub.s32 16, 16
          %430 = vsyncadd [#allocation5], %s429
          %433 = dma.hbm_to_smem %s12, 16, [#allocation8], [#allocation5]
        $region60: #{efficientvim_stage.1} parent=11 // pred_fallthru
          _
      $region12: #{efficientvim_stage.1} parent=5 // pred_fallthru
        _
      %p434 = scmp.lt.s32.totalorder %s27, 2
      // Predicated region
      $region61: #{efficientvim_stage.1} parent=5 // pred_check
        %p435 = pneg %p434
      $region62: #{efficientvim_stage.1} parent=5 // pred_check_branch
        %437 = sbr.rel (%p435) target = $region64
      $region63: #{efficientvim_stage.1} parent=5 // pred_region
        // Predicated region
        $region65: #{efficientvim_stage.1} parent=63 // pred_check
          %p438 = pneg %p47
        $region66: #{efficientvim_stage.1} parent=63 // pred_check_branch
          %440 = sbr.rel (%p438) target = $region68
        $region67: #{efficientvim_stage.1} parent=63 // pred_region
          %p441 = scmp.lt.s32.totalorder %s27, 1
          %s442 = scalar_select %p441, %s27, 1
          %s443 = smul.addr %s442, 8
          %s444 = smul.addr %s443, 8
          %s445 = scalar_lea.vmem %s0, %s444
        $region68: #{efficientvim_stage.1} parent=63 // pred_fallthru
          _
      $region64: #{efficientvim_stage.1} parent=5 // pred_fallthru
        _
      %p446 = scmp.le.s32.totalorder 1, %s27
      %p447 = scmp.lt.s32.totalorder %s27, 3
      %p448 = pnand %p446, %p447
      %p449 = pneg %p448
      // Predicated region
      $region69: #{efficientvim_stage.1} parent=5 // pred_check
        _
      $region70: #{efficientvim_stage.1} parent=5 // pred_check_branch
        %451 = sbr.rel (%p448) target = $region72
      $region71: #{efficientvim_stage.1} parent=5 // pred_region
        %s452 = ssub.s32 %s27, 1
        // Predicated region
        $region73: #{efficientvim_stage.1} parent=71 // pred_check
          %p453 = pneg %p74
        $region74: #{efficientvim_stage.1} parent=71 // pred_check_branch
          %455 = sbr.rel (%p453) target = $region76
        $region75: #{efficientvim_stage.1} parent=71 // pred_region
          %456 = dma.done [#allocation3], 9216
        $region76: #{efficientvim_stage.1} parent=71 // pred_fallthru
          _
        // Predicated region
        $region77: #{efficientvim_stage.1} parent=71 // pred_check
          %p457 = pneg %p158
        $region78: #{efficientvim_stage.1} parent=71 // pred_check_branch
          %459 = sbr.rel (%p457) target = $region80
        $region79: #{efficientvim_stage.1} parent=71 // pred_region
          %460 = dma.done [#allocation7], 32
        $region80: #{efficientvim_stage.1} parent=71 // pred_fallthru
          _
        // Predicated region
        $region81: #{efficientvim_stage.1} parent=71 // pred_check
          %p461 = pneg %p305
        $region82: #{efficientvim_stage.1} parent=71 // pred_check_branch
          %463 = sbr.rel (%p461) target = $region84
        $region83: #{efficientvim_stage.1} parent=71 // pred_region
          %464 = dma.done [#allocation5], 16
        $region84: #{efficientvim_stage.1} parent=71 // pred_fallthru
          _
        %465 = sfence
        %p466 = scmp.lt.s32.totalorder %s32, 1
        %s467 = scalar_select %p466, %s32, 1
        %s468 = smul.addr %s467, 8
        %s469 = smul.addr %s468, 8
        %s470 = scalar_lea.vmem %s0, %s469
        %p471 = pneg %p53
        %p472 = pneg %p50
        %p473 = pneg %p74
        %p474 = pneg %p71
        %p475 = pneg %p95
        %p476 = pneg %p92
        %p477 = pneg %p116
        %p478 = pneg %p113
        %p479 = pneg %p137
        %p480 = pneg %p134
        %p481 = pneg %p158
        %p482 = pneg %p155
        %p483 = pneg %p179
        %p484 = pneg %p176
        %p485 = pneg %p200
        %p486 = pneg %p197
        %p487 = pneg %p221
        %p488 = pneg %p218
        %p489 = pneg %p242
        %p490 = pneg %p239
        %p491 = pneg %p263
        %p492 = pneg %p260
        %p493 = pneg %p284
        %p494 = pneg %p281
        %p495 = pneg %p305
        %p496 = pneg %p302
        %p497 = pneg %p331
        %p498 = pneg %p328
        %p499 = scmp.lt.s32.totalorder %s32, 1
        %s500 = scalar_select %p499, %s32, 1
        %s501 = smul.addr %s500, 8
        %s502 = smul.addr %s501, 8
        %s503 = scalar_lea.vmem %s13, %s502
        %p504 = pneg %p357
        %p505 = pneg %p354
        %s506 = sand.u32 %s344, 1
        %s507 = scalar_lea.sflag [#allocation4], %s506
        %s508 = sand.u32 %s344, 1
        %s509 = smul.addr %s508, 16
        %s510 = scalar_lea.vmem [#allocation9], %s509
        %p511 = scmp.lt.s32.totalorder %s32, 1
        %s512 = scalar_select %p511, %s32, 1
        %s513 = smul.addr %s512, 8
        %s514 = smul.addr %s513, 8
        %s515 = scalar_lea.vmem %s0, %s514
        %p516 = scmp.lt.s32.totalorder %s32, 1
        %s517 = scalar_select %p516, %s32, 1
        %s518 = smul.addr %s517, 8
        %s519 = smul.addr %s518, 8
        %s520 = scalar_lea.vmem %s13, %s519
        %v521 = vld [vmem:[%s515] sm:$0xff]
        %v522 = vld [vmem:[%s515 + $0x8] sm:$0xff]
        %v523 = vld [vmem:[%s515 + $0x10] sm:$0xff]
        %v524 = vld [vmem:[%s515 + $0x18] sm:$0xff]
        %v525 = vld [vmem:[%s515 + $0x20] sm:$0xff]
        %v526 = vld [vmem:[%s515 + $0x28] sm:$0xff]
        %v527 = vld [vmem:[%s515 + $0x30] sm:$0xff]
        %v528 = vld [vmem:[%s515 + $0x38] sm:$0xff]
        %v529 = vld [vmem:[#allocation2] sm:$0xff]
        %v530 = vld [vmem:[#allocation2 + $0x8] sm:$0xff]
        %v531 = vld [vmem:[#allocation2 + $0x10] sm:$0xff]
        %v532 = vld [vmem:[#allocation2 + $0x18] sm:$0xff]
        %v533 = vld [vmem:[#allocation2 + $0x20] sm:$0xff]
        %v534 = vld [vmem:[#allocation2 + $0x28] sm:$0xff]
        %v535 = vld [vmem:[#allocation2 + $0x30] sm:$0xff]
        %v536 = vld [vmem:[#allocation2 + $0x38] sm:$0xff]
        %v537 = vld [vmem:[#allocation2 + $0x40] sm:$0xff]
        %v538 = vld [vmem:[#allocation2 + $0x48] sm:$0xff]
        %v539 = vld [vmem:[#allocation2 + $0x50] sm:$0xff]
        %v540 = vld [vmem:[#allocation2 + $0x58] sm:$0xff]
        %v541 = vld [vmem:[#allocation2 + $0x60] sm:$0xff]
        %v542 = vld [vmem:[#allocation2 + $0x68] sm:$0xff]
        %v543 = vld [vmem:[#allocation2 + $0x70] sm:$0xff]
        %v544 = vld [vmem:[#allocation2 + $0x78] sm:$0xff]
        %v545 = vld [vmem:[#allocation2 + $0x80] sm:$0xff]
        %v546 = vld [vmem:[#allocation2 + $0x88] sm:$0xff]
        %v547 = vld [vmem:[#allocation2 + $0x90] sm:$0xff]
        %v548 = vld [vmem:[#allocation2 + $0x98] sm:$0xff]
        %v549 = vld [vmem:[#allocation2 + $0xa0] sm:$0xff]
        %v550 = vld [vmem:[#allocation2 + $0xa8] sm:$0xff]
        %v551 = vld [vmem:[#allocation2 + $0xb0] sm:$0xff]
        %v552 = vld [vmem:[#allocation2 + $0xb8] sm:$0xff]
        %v553 = vld [vmem:[#allocation2 + $0xc0] sm:$0xff]
        %v554 = vld [vmem:[#allocation2 + $0xc8] sm:$0xff]
        %v555 = vld [vmem:[#allocation2 + $0xd0] sm:$0xff]
        %v556 = vld [vmem:[#allocation2 + $0xd8] sm:$0xff]
        %v557 = vld [vmem:[#allocation2 + $0xe0] sm:$0xff]
        %v558 = vld [vmem:[#allocation2 + $0xe8] sm:$0xff]
        %v559 = vld [vmem:[#allocation2 + $0xf0] sm:$0xff]
        %v560 = vld [vmem:[#allocation2 + $0xf8] sm:$0xff]
        %v561 = vld [vmem:[#allocation2 + $0x100] sm:$0xff]
        %v562 = vld [vmem:[#allocation2 + $0x108] sm:$0xff]
        %v563 = vld [vmem:[#allocation2 + $0x110] sm:$0xff]
        %v564 = vld [vmem:[#allocation2 + $0x118] sm:$0xff]
        %v565 = vld [vmem:[#allocation2 + $0x120] sm:$0xff]
        %v566 = vld [vmem:[#allocation2 + $0x128] sm:$0xff]
        %v567 = vld [vmem:[#allocation2 + $0x130] sm:$0xff]
        %v568 = vld [vmem:[#allocation2 + $0x138] sm:$0xff]
        %v569 = vld [vmem:[#allocation2 + $0x140] sm:$0xff]
        %v570 = vld [vmem:[#allocation2 + $0x148] sm:$0xff]
        %v571 = vld [vmem:[#allocation2 + $0x150] sm:$0xff]
        %v572 = vld [vmem:[#allocation2 + $0x158] sm:$0xff]
        %v573 = vld [vmem:[#allocation2 + $0x160] sm:$0xff]
        %v574 = vld [vmem:[#allocation2 + $0x168] sm:$0xff]
        %v575 = vld [vmem:[#allocation2 + $0x170] sm:$0xff]
        %v576 = vld [vmem:[#allocation2 + $0x178] sm:$0xff]
        %v577 = vld [vmem:[#allocation2 + $0x180] sm:$0xff]
        %v578 = vld [vmem:[#allocation2 + $0x188] sm:$0xff]
        %v579 = vld [vmem:[#allocation2 + $0x190] sm:$0xff]
        %v580 = vld [vmem:[#allocation2 + $0x198] sm:$0xff]
        %v581 = vld [vmem:[#allocation2 + $0x1a0] sm:$0xff]
        %v582 = vld [vmem:[#allocation2 + $0x1a8] sm:$0xff]
        %v583 = vld [vmem:[#allocation2 + $0x1b0] sm:$0xff]
        %v584 = vld [vmem:[#allocation2 + $0x1b8] sm:$0xff]
        %v585 = vld [vmem:[#allocation2 + $0x1c0] sm:$0xff]
        %v586 = vld [vmem:[#allocation2 + $0x1c8] sm:$0xff]
        %v587 = vld [vmem:[#allocation2 + $0x1d0] sm:$0xff]
        %v588 = vld [vmem:[#allocation2 + $0x1d8] sm:$0xff]
        %v589 = vld [vmem:[#allocation2 + $0x1e0] sm:$0xff]
        %v590 = vld [vmem:[#allocation2 + $0x1e8] sm:$0xff]
        %v591 = vld [vmem:[#allocation2 + $0x1f0] sm:$0xff]
        %v592 = vld [vmem:[#allocation2 + $0x1f8] sm:$0xff]
        %v593 = vld [vmem:[#allocation2 + $0x200] sm:$0xff]
        %v594 = vld [vmem:[#allocation2 + $0x208] sm:$0xff]
        %v595 = vld [vmem:[#allocation2 + $0x210] sm:$0xff]
        %v596 = vld [vmem:[#allocation2 + $0x218] sm:$0xff]
        %v597 = vld [vmem:[#allocation2 + $0x220] sm:$0xff]
        %v598 = vld [vmem:[#allocation2 + $0x228] sm:$0xff]
        %v599 = vld [vmem:[#allocation2 + $0x230] sm:$0xff]
        %v600 = vld [vmem:[#allocation2 + $0x238] sm:$0xff]
        %v601 = vld [vmem:[%s2] sm:$0xff]
        %v602 = vld [vmem:[%s2 + $0x8] sm:$0xff]
        %v603 = vld [vmem:[%s2 + $0x10] sm:$0xff]
        %v604 = vld [vmem:[%s2 + $0x18] sm:$0x3f]
        %v605 = vxor.u32 %v601, 2147483648
        %v606 = vmul.f32 %v605, 1.442695
        %v607 = vpow.pop %v606
        %v608 = vadd.f32 %v607, 1.0
        %v609 = vrcp.pop %v608
        %v610 = vmul.f32 1.0, %v609
        %vm611 = vcmask 523264
        %v613 = vsel %vm611, %v529, 0
        %v616 = vsel %vm611, %v530, 0
        %v619 = vsel %vm611, %v531, 0
        %v622 = vsel %vm611, %v532, 0
        %v625 = vsel %vm611, %v533, 0
        %v628 = vsel %vm611, %v534, 0
        %v631 = vsel %vm611, %v535, 0
        %v634 = vsel %vm611, %v536, 0
        %v637 = vsel %vm611, %v537, 0
        %v640 = vsel %vm611, %v538, 0
        %v643 = vsel %vm611, %v539, 0
        %v646 = vsel %vm611, %v540, 0
        %v649 = vsel %vm611, %v541, 0
        %v652 = vsel %vm611, %v542, 0
        %v655 = vsel %vm611, %v543, 0
        %v658 = vsel %vm611, %v544, 0
        %v661 = vsel %vm611, %v545, 0
        %v664 = vsel %vm611, %v546, 0
        %v667 = vsel %vm611, %v547, 0
        %v670 = vsel %vm611, %v548, 0
        %v673 = vsel %vm611, %v549, 0
        %v676 = vsel %vm611, %v550, 0
        %v679 = vsel %vm611, %v551, 0
        %v682 = vsel %vm611, %v552, 0
        %v685 = vsel %vm611, %v553, 0
        %v688 = vsel %vm611, %v554, 0
        %v691 = vsel %vm611, %v555, 0
        %v694 = vsel %vm611, %v556, 0
        %v697 = vsel %vm611, %v557, 0
        %v700 = vsel %vm611, %v558, 0
        %v703 = vsel %vm611, %v559, 0
        %v706 = vsel %vm611, %v560, 0
        %v709 = vsel %vm611, %v561, 0
        %v712 = vsel %vm611, %v562, 0
        %v715 = vsel %vm611, %v563, 0
        %v718 = vsel %vm611, %v564, 0
        %v721 = vsel %vm611, %v565, 0
        %v724 = vsel %vm611, %v566, 0
        %v727 = vsel %vm611, %v567, 0
        %v730 = vsel %vm611, %v568, 0
        %v733 = vsel %vm611, %v569, 0
        %v736 = vsel %vm611, %v570, 0
        %v739 = vsel %vm611, %v571, 0
        %v742 = vsel %vm611, %v572, 0
        %v745 = vsel %vm611, %v573, 0
        %v748 = vsel %vm611, %v574, 0
        %v751 = vsel %vm611, %v575, 0
        %v754 = vsel %vm611, %v576, 0
        %v757 = vsel %vm611, %v577, 0
        %v760 = vsel %vm611, %v578, 0
        %v763 = vsel %vm611, %v579, 0
        %v766 = vsel %vm611, %v580, 0
        %v769 = vsel %vm611, %v581, 0
        %v772 = vsel %vm611, %v582, 0
        %v775 = vsel %vm611, %v583, 0
        %v778 = vsel %vm611, %v584, 0
        %v781 = vsel %vm611, %v585, 0
        %v784 = vsel %vm611, %v586, 0
        %v787 = vsel %vm611, %v587, 0
        %v790 = vsel %vm611, %v588, 0
        %v793 = vsel %vm611, %v589, 0
        %v796 = vsel %vm611, %v590, 0
        %v799 = vsel %vm611, %v591, 0
        %v802 = vsel %vm611, %v592, 0
        %v805 = vsel %vm611, %v593, 0
        %v808 = vsel %vm611, %v594, 0
        %v811 = vsel %vm611, %v595, 0
        %v814 = vsel %vm611, %v596, 0
        %v817 = vsel %vm611, %v597, 0
        %v820 = vsel %vm611, %v598, 0
        %v823 = vsel %vm611, %v599, 0
        %v826 = vsel %vm611, %v600, 0
        %828 = vmatprep.subr.mxu0 0.0
        %829 = vmatpush1.msra.mxu0 %v521
        %830 = vmatprep.subr.mxu0 0.0
        %831 = vmatpush1.msra.mxu0 %v522
        %832 = vmatprep.subr.mxu0 0.0
        %833 = vmatpush1.msra.mxu0 %v523
        %834 = vmatprep.subr.mxu0 0.0
        %835 = vmatpush1.msra.mxu0 %v524
        %836 = vmatprep.subr.mxu0 0.0
        %837 = vmatpush1.msra.mxu0 %v525
        %838 = vmatprep.subr.mxu0 0.0
        %839 = vmatpush1.msra.mxu0 %v526
        %840 = vmatprep.subr.mxu0 0.0
        %841 = vmatpush1.msra.mxu0 %v527
        %842 = vmatprep.subr.mxu0 0.0
        %843 = vmatpush1.msra.mxu0 %v528
        %844 = vmatprep.subr.mxu0 0.0
        %845 = vmatpush1.msra.mxu0 0.0
        %846 = vmatprep.subr.mxu0 0.0
        %847 = vmatpush1.msra.mxu0 0.0
        %848 = vmatprep.subr.mxu0 0.0
        %849 = vmatpush1.msra.mxu0 0.0
        %850 = vmatprep.subr.mxu0 0.0
        %851 = vmatpush1.msra.mxu0 0.0
        %852 = vmatprep.subr.mxu0 0.0
        %853 = vmatpush1.msra.mxu0 0.0
        %854 = vmatprep.subr.mxu0 0.0
        %855 = vmatpush1.msra.mxu0 0.0
        %856 = vmatprep.subr.mxu0 0.0
        %857 = vmatpush1.msra.mxu0 0.0
        %858 = vmatprep.subr.mxu0 0.0
        %859 = vmatpush1.msra.mxu0 0.0
        %860 = vmatprep.subr.mxu0 0.0
        %861 = vmatpush1.msra.mxu0 0.0
        %862 = vmatprep.subr.mxu0 0.0
        %863 = vmatpush1.msra.mxu0 0.0
        %864 = vmatprep.subr.mxu0 0.0
        %865 = vmatpush1.msra.mxu0 0.0
        %866 = vmatprep.subr.mxu0 0.0
        %867 = vmatpush1.msra.mxu0 0.0
        %868 = vmatprep.subr.mxu0 0.0
        %869 = vmatpush1.msra.mxu0 0.0
        %870 = vmatprep.subr.mxu0 0.0
        %871 = vmatpush1.msra.mxu0 0.0
        %872 = vmatprep.subr.mxu0 0.0
        %873 = vmatpush1.msra.mxu0 0.0
        %874 = vmatprep.subr.mxu0 0.0
        %875 = vmatpush1.msra.mxu0 0.0
        %876 = vmatprep.subr.mxu0 0.0
        %877 = vmatpush1.msra.mxu0 0.0
        %878 = vmatprep.subr.mxu0 0.0
        %879 = vmatpush1.msra.mxu0 0.0
        %880 = vmatprep.subr.mxu0 0.0
        %881 = vmatpush1.msra.mxu0 0.0
        %882 = vmatprep.subr.mxu0 0.0
        %883 = vmatpush1.msra.mxu0 0.0
        %884 = vmatprep.subr.mxu0 0.0
        %885 = vmatpush1.msra.mxu0 0.0
        %886 = vmatprep.subr.mxu0 0.0
        %887 = vmatpush1.msra.mxu0 0.0
        %888 = vmatprep.subr.mxu0 0.0
        %889 = vmatpush1.msra.mxu0 0.0
        %890 = vmatprep.subr.mxu0 0.0
        %891 = vmatpush1.msra.mxu0 0.0
        %892 = vmatprep.mubr.f32.mxu0 0.0
        %893 = vmatmul.mubr.f32.gmra.mrb[0].mxu0 %v613
        %v894 = vpop.f32.mrb[0].mxu0
        %v895 = vadd.f32 0.0, %v894
        %v896 = vpop.f32.mrb[0].mxu0
        %897 = vmatprep.mubr.f32.mxu0 0.0
        %898 = vmatmul.mubr.f32.gmra.mrb[0].mxu0 %v616
        %v899 = vpop.f32.mrb[0].mxu0
        %v900 = vadd.f32 0.0, %v899
        %v901 = vpop.f32.mrb[0].mxu0
        %902 = vmatprep.mubr.f32.mxu0 0.0
        %903 = vmatmul.mubr.f32.gmra.mrb[0].mxu0 %v619
        %v904 = vpop.f32.mrb[0].mxu0
        %v905 = vadd.f32 0.0, %v904
        %v906 = vpop.f32.mrb[0].mxu0
        %907 = vmatprep.mubr.f32.mxu0 0.0
        %908 = vmatmul.mubr.f32.gmra.mrb[0].mxu0 %v622
        %v909 = vpop.f32.mrb[0].mxu0
        %v910 = vadd.f32 0.0, %v909
        %v911 = vpop.f32.mrb[0].mxu0
        %912 = vmatprep.mubr.f32.mxu0 0.0
        %913 = vmatmul.mubr.f32.gmra.mrb[0].mxu0 %v625
        %v914 = vpop.f32.mrb[0].mxu0
        %v915 = vadd.f32 0.0, %v914
        %v916 = vpop.f32.mrb[0].mxu0
        %917 = vmatprep.mubr.f32.mxu0 0.0
        %918 = vmatmul.mubr.f32.gmra.mrb[0].mxu0 %v628
        %v919 = vpop.f32.mrb[0].mxu0
        %v920 = vadd.f32 0.0, %v919
        %v921 = vpop.f32.mrb[0].mxu0
        %922 = vmatprep.mubr.f32.mxu0 0.0
        %923 = vmatmul.mubr.f32.gmra.mrb[0].mxu0 %v631
        %v924 = vpop.f32.mrb[0].mxu0
        %v925 = vadd.f32 0.0, %v924
        %v926 = vpop.f32.mrb[0].mxu0
        %927 = vmatprep.mubr.f32.mxu0 0.0
        %928 = vmatmul.mubr.f32.gmra.mrb[0].mxu0 %v634
        %v929 = vpop.f32.mrb[0].mxu0
        %v930 = vadd.f32 0.0, %v929
        %v931 = vpop.f32.mrb[0].mxu0
        %932 = vmatprep.mubr.f32.mxu0 0.0
        %933 = vmatmul.mubr.f32.gmra.mrb[0].mxu0 %v637
        %v934 = vpop.f32.mrb[0].mxu0
        %v935 = vadd.f32 0.0, %v934
        %v936 = vpop.f32.mrb[0].mxu0
        %937 = vmatprep.mubr.f32.mxu0 0.0
        %938 = vmatmul.mubr.f32.gmra.mrb[0].mxu0 %v640
        %v939 = vpop.f32.mrb[0].mxu0
        %v940 = vadd.f32 0.0, %v939
        %v941 = vpop.f32.mrb[0].mxu0
        %942 = vmatprep.mubr.f32.mxu0 0.0
        %943 = vmatmul.mubr.f32.gmra.mrb[0].mxu0 %v643
        %v944 = vpop.f32.mrb[0].mxu0
        %v945 = vadd.f32 0.0, %v944
        %v946 = vpop.f32.mrb[0].mxu0
        %947 = vmatprep.mubr.f32.mxu0 0.0
        %948 = vmatmul.mubr.f32.gmra.mrb[0].mxu0 %v646
        %v949 = vpop.f32.mrb[0].mxu0
        %v950 = vadd.f32 0.0, %v949
        %v951 = vpop.f32.mrb[0].mxu0
        %952 = vmatprep.mubr.f32.mxu0 0.0
        %953 = vmatmul.mubr.f32.gmra.mrb[0].mxu0 %v649
        %v954 = vpop.f32.mrb[0].mxu0
        %v955 = vadd.f32 0.0, %v954
        %v956 = vpop.f32.mrb[0].mxu0
        %957 = vmatprep.mubr.f32.mxu0 0.0
        %958 = vmatmul.mubr.f32.gmra.mrb[0].mxu0 %v652
        %v959 = vpop.f32.mrb[0].mxu0
        %v960 = vadd.f32 0.0, %v959
        %v961 = vpop.f32.mrb[0].mxu0
        %962 = vmatprep.mubr.f32.mxu0 0.0
        %963 = vmatmul.mubr.f32.gmra.mrb[0].mxu0 %v655
        %v964 = vpop.f32.mrb[0].mxu0
        %v965 = vadd.f32 0.0, %v964
        %v966 = vpop.f32.mrb[0].mxu0
        %967 = vmatprep.mubr.f32.mxu0 0.0
        %968 = vmatmul.mubr.f32.gmra.mrb[0].mxu0 %v658
        %v969 = vpop.f32.mrb[0].mxu0
        %v970 = vadd.f32 0.0, %v969
        %v971 = vpop.f32.mrb[0].mxu0
        %972 = vmatprep.mubr.f32.mxu0 0.0
        %973 = vmatmul.mubr.f32.gmra.mrb[0].mxu0 %v661
        %v974 = vpop.f32.mrb[0].mxu0
        %v975 = vadd.f32 0.0, %v974
        %v976 = vpop.f32.mrb[0].mxu0
        %977 = vmatprep.mubr.f32.mxu0 0.0
        %978 = vmatmul.mubr.f32.gmra.mrb[0].mxu0 %v664
        %v979 = vpop.f32.mrb[0].mxu0
        %v980 = vadd.f32 0.0, %v979
        %v981 = vpop.f32.mrb[0].mxu0
        %982 = vmatprep.mubr.f32.mxu0 0.0
        %983 = vmatmul.mubr.f32.gmra.mrb[0].mxu0 %v667
        %v984 = vpop.f32.mrb[0].mxu0
        %v985 = vadd.f32 0.0, %v984
        %v986 = vpop.f32.mrb[0].mxu0
        %987 = vmatprep.mubr.f32.mxu0 0.0
        %988 = vmatmul.mubr.f32.gmra.mrb[0].mxu0 %v670
        %v989 = vpop.f32.mrb[0].mxu0
        %v990 = vadd.f32 0.0, %v989
        %v991 = vpop.f32.mrb[0].mxu0
        %992 = vmatprep.mubr.f32.mxu0 0.0
        %993 = vmatmul.mubr.f32.gmra.mrb[0].mxu0 %v673
        %v994 = vpop.f32.mrb[0].mxu0
        %v995 = vadd.f32 0.0, %v994
        %v996 = vpop.f32.mrb[0].mxu0
        %997 = vmatprep.mubr.f32.mxu0 0.0
        %998 = vmatmul.mubr.f32.gmra.mrb[0].mxu0 %v676
        %v999 = vpop.f32.mrb[0].mxu0
        %v1000 = vadd.f32 0.0, %v999
        %v1001 = vpop.f32.mrb[0].mxu0
        %1002 = vmatprep.mubr.f32.mxu0 0.0
        %1003 = vmatmul.mubr.f32.gmra.mrb[0].mxu0 %v679
        %v1004 = vpop.f32.mrb[0].mxu0
        %v1005 = vadd.f32 0.0, %v1004
        %v1006 = vpop.f32.mrb[0].mxu0
        %1007 = vmatprep.mubr.f32.mxu0 0.0
        %1008 = vmatmul.mubr.f32.gmra.mrb[0].mxu0 %v682
        %v1009 = vpop.f32.mrb[0].mxu0
        %v1010 = vadd.f32 0.0, %v1009
        %v1011 = vpop.f32.mrb[0].mxu0
        %1012 = vmatprep.mubr.f32.mxu0 0.0
        %1013 = vmatmul.mubr.f32.gmra.mrb[0].mxu0 %v685
        %v1014 = vpop.f32.mrb[0].mxu0
        %v1015 = vadd.f32 0.0, %v1014
        %v1016 = vpop.f32.mrb[0].mxu0
        %1017 = vmatprep.mubr.f32.mxu0 0.0
        %1018 = vmatmul.mubr.f32.gmra.mrb[0].mxu0 %v688
        %v1019 = vpop.f32.mrb[0].mxu0
        %v1020 = vadd.f32 0.0, %v1019
        %v1021 = vpop.f32.mrb[0].mxu0
        %1022 = vmatprep.mubr.f32.mxu0 0.0
        %1023 = vmatmul.mubr.f32.gmra.mrb[0].mxu0 %v691
        %v1024 = vpop.f32.mrb[0].mxu0
        %v1025 = vadd.f32 0.0, %v1024
        %v1026 = vpop.f32.mrb[0].mxu0
        %1027 = vmatprep.mubr.f32.mxu0 0.0
        %1028 = vmatmul.mubr.f32.gmra.mrb[0].mxu0 %v694
        %v1029 = vpop.f32.mrb[0].mxu0
        %v1030 = vadd.f32 0.0, %v1029
        %v1031 = vpop.f32.mrb[0].mxu0
        %1032 = vmatprep.mubr.f32.mxu0 0.0
        %1033 = vmatmul.mubr.f32.gmra.mrb[0].mxu0 %v697
        %v1034 = vpop.f32.mrb[0].mxu0
        %v1035 = vadd.f32 0.0, %v1034
        %v1036 = vpop.f32.mrb[0].mxu0
        %1037 = vmatprep.mubr.f32.mxu0 0.0
        %1038 = vmatmul.mubr.f32.gmra.mrb[0].mxu0 %v700
        %v1039 = vpop.f32.mrb[0].mxu0
        %v1040 = vadd.f32 0.0, %v1039
        %v1041 = vpop.f32.mrb[0].mxu0
        %1042 = vmatprep.mubr.f32.mxu0 0.0
        %1043 = vmatmul.mubr.f32.gmra.mrb[0].mxu0 %v703
        %v1044 = vpop.f32.mrb[0].mxu0
        %v1045 = vadd.f32 0.0, %v1044
        %v1046 = vpop.f32.mrb[0].mxu0
        %1047 = vmatprep.mubr.f32.mxu0 0.0
        %1048 = vmatmul.mubr.f32.gmra.mrb[0].mxu0 %v706
        %v1049 = vpop.f32.mrb[0].mxu0
        %v1050 = vadd.f32 0.0, %v1049
        %v1051 = vpop.f32.mrb[0].mxu0
        %1052 = vmatprep.mubr.f32.mxu0 0.0
        %1053 = vmatmul.mubr.f32.gmra.mrb[0].mxu0 %v709
        %v1054 = vpop.f32.mrb[0].mxu0
        %v1055 = vadd.f32 0.0, %v1054
        %v1056 = vpop.f32.mrb[0].mxu0
        %1057 = vmatprep.mubr.f32.mxu0 0.0
        %1058 = vmatmul.mubr.f32.gmra.mrb[0].mxu0 %v712
        %v1059 = vpop.f32.mrb[0].mxu0
        %v1060 = vadd.f32 0.0, %v1059
        %v1061 = vpop.f32.mrb[0].mxu0
        %1062 = vmatprep.mubr.f32.mxu0 0.0
        %1063 = vmatmul.mubr.f32.gmra.mrb[0].mxu0 %v715
        %v1064 = vpop.f32.mrb[0].mxu0
        %v1065 = vadd.f32 0.0, %v1064
        %v1066 = vpop.f32.mrb[0].mxu0
        %1067 = vmatprep.mubr.f32.mxu0 0.0
        %1068 = vmatmul.mubr.f32.gmra.mrb[0].mxu0 %v718
        %v1069 = vpop.f32.mrb[0].mxu0
        %v1070 = vadd.f32 0.0, %v1069
        %v1071 = vpop.f32.mrb[0].mxu0
        %1072 = vmatprep.mubr.f32.mxu0 0.0
        %1073 = vmatmul.mubr.f32.gmra.mrb[0].mxu0 %v721
        %v1074 = vpop.f32.mrb[0].mxu0
        %v1075 = vadd.f32 0.0, %v1074
        %v1076 = vpop.f32.mrb[0].mxu0
        %1077 = vmatprep.mubr.f32.mxu0 0.0
        %1078 = vmatmul.mubr.f32.gmra.mrb[0].mxu0 %v724
        %v1079 = vpop.f32.mrb[0].mxu0
        %v1080 = vadd.f32 0.0, %v1079
        %v1081 = vpop.f32.mrb[0].mxu0
        %1082 = vmatprep.mubr.f32.mxu0 0.0
        %1083 = vmatmul.mubr.f32.gmra.mrb[0].mxu0 %v727
        %v1084 = vpop.f32.mrb[0].mxu0
        %v1085 = vadd.f32 0.0, %v1084
        %v1086 = vpop.f32.mrb[0].mxu0
        %1087 = vmatprep.mubr.f32.mxu0 0.0
        %1088 = vmatmul.mubr.f32.gmra.mrb[0].mxu0 %v730
        %v1089 = vpop.f32.mrb[0].mxu0
        %v1090 = vadd.f32 0.0, %v1089
        %v1091 = vpop.f32.mrb[0].mxu0
        %1092 = vmatprep.mubr.f32.mxu0 0.0
        %1093 = vmatmul.mubr.f32.gmra.mrb[0].mxu0 %v733
        %v1094 = vpop.f32.mrb[0].mxu0
        %v1095 = vadd.f32 0.0, %v1094
        %v1096 = vpop.f32.mrb[0].mxu0
        %1097 = vmatprep.mubr.f32.mxu0 0.0
        %1098 = vmatmul.mubr.f32.gmra.mrb[0].mxu0 %v736
        %v1099 = vpop.f32.mrb[0].mxu0
        %v1100 = vadd.f32 0.0, %v1099
        %v1101 = vpop.f32.mrb[0].mxu0
        %1102 = vmatprep.mubr.f32.mxu0 0.0
        %1103 = vmatmul.mubr.f32.gmra.mrb[0].mxu0 %v739
        %v1104 = vpop.f32.mrb[0].mxu0
        %v1105 = vadd.f32 0.0, %v1104
        %v1106 = vpop.f32.mrb[0].mxu0
        %1107 = vmatprep.mubr.f32.mxu0 0.0
        %1108 = vmatmul.mubr.f32.gmra.mrb[0].mxu0 %v742
        %v1109 = vpop.f32.mrb[0].mxu0
        %v1110 = vadd.f32 0.0, %v1109
        %v1111 = vpop.f32.mrb[0].mxu0
        %1112 = vmatprep.mubr.f32.mxu0 0.0
        %1113 = vmatmul.mubr.f32.gmra.mrb[0].mxu0 %v745
        %v1114 = vpop.f32.mrb[0].mxu0
        %v1115 = vadd.f32 0.0, %v1114
        %v1116 = vpop.f32.mrb[0].mxu0
        %1117 = vmatprep.mubr.f32.mxu0 0.0
        %1118 = vmatmul.mubr.f32.gmra.mrb[0].mxu0 %v748
        %v1119 = vpop.f32.mrb[0].mxu0
        %v1120 = vadd.f32 0.0, %v1119
        %v1121 = vpop.f32.mrb[0].mxu0
        %1122 = vmatprep.mubr.f32.mxu0 0.0
        %1123 = vmatmul.mubr.f32.gmra.mrb[0].mxu0 %v751
        %v1124 = vpop.f32.mrb[0].mxu0
        %v1125 = vadd.f32 0.0, %v1124
        %v1126 = vpop.f32.mrb[0].mxu0
        %1127 = vmatprep.mubr.f32.mxu0 0.0
        %1128 = vmatmul.mubr.f32.gmra.mrb[0].mxu0 %v754
        %v1129 = vpop.f32.mrb[0].mxu0
        %v1130 = vadd.f32 0.0, %v1129
        %v1131 = vpop.f32.mrb[0].mxu0
        %1132 = vmatprep.mubr.f32.mxu0 0.0
        %1133 = vmatmul.mubr.f32.gmra.mrb[0].mxu0 %v757
        %v1134 = vpop.f32.mrb[0].mxu0
        %v1135 = vadd.f32 0.0, %v1134
        %v1136 = vpop.f32.mrb[0].mxu0
        %1137 = vmatprep.mubr.f32.mxu0 0.0
        %1138 = vmatmul.mubr.f32.gmra.mrb[0].mxu0 %v760
        %v1139 = vpop.f32.mrb[0].mxu0
        %v1140 = vadd.f32 0.0, %v1139
        %v1141 = vpop.f32.mrb[0].mxu0
        %1142 = vmatprep.mubr.f32.mxu0 0.0
        %1143 = vmatmul.mubr.f32.gmra.mrb[0].mxu0 %v763
        %v1144 = vpop.f32.mrb[0].mxu0
        %v1145 = vadd.f32 0.0, %v1144
        %v1146 = vpop.f32.mrb[0].mxu0
        %1147 = vmatprep.mubr.f32.mxu0 0.0
        %1148 = vmatmul.mubr.f32.gmra.mrb[0].mxu0 %v766
        %v1149 = vpop.f32.mrb[0].mxu0
        %v1150 = vadd.f32 0.0, %v1149
        %v1151 = vpop.f32.mrb[0].mxu0
        %1152 = vmatprep.mubr.f32.mxu0 0.0
        %1153 = vmatmul.mubr.f32.gmra.mrb[0].mxu0 %v769
        %v1154 = vpop.f32.mrb[0].mxu0
        %v1155 = vadd.f32 0.0, %v1154
        %v1156 = vpop.f32.mrb[0].mxu0
        %1157 = vmatprep.mubr.f32.mxu0 0.0
        %1158 = vmatmul.mubr.f32.gmra.mrb[0].mxu0 %v772
        %v1159 = vpop.f32.mrb[0].mxu0
        %v1160 = vadd.f32 0.0, %v1159
        %v1161 = vpop.f32.mrb[0].mxu0
        %1162 = vmatprep.mubr.f32.mxu0 0.0
        %1163 = vmatmul.mubr.f32.gmra.mrb[0].mxu0 %v775
        %v1164 = vpop.f32.mrb[0].mxu0
        %v1165 = vadd.f32 0.0, %v1164
        %v1166 = vpop.f32.mrb[0].mxu0
        %1167 = vmatprep.mubr.f32.mxu0 0.0
        %1168 = vmatmul.mubr.f32.gmra.mrb[0].mxu0 %v778
        %v1169 = vpop.f32.mrb[0].mxu0
        %v1170 = vadd.f32 0.0, %v1169
        %v1171 = vpop.f32.mrb[0].mxu0
        %1172 = vmatprep.mubr.f32.mxu0 0.0
        %1173 = vmatmul.mubr.f32.gmra.mrb[0].mxu0 %v781
        %v1174 = vpop.f32.mrb[0].mxu0
        %v1175 = vadd.f32 0.0, %v1174
        %v1176 = vpop.f32.mrb[0].mxu0
        %1177 = vmatprep.mubr.f32.mxu0 0.0
        %1178 = vmatmul.mubr.f32.gmra.mrb[0].mxu0 %v784
        %v1179 = vpop.f32.mrb[0].mxu0
        %v1180 = vadd.f32 0.0, %v1179
        %v1181 = vpop.f32.mrb[0].mxu0
        %1182 = vmatprep.mubr.f32.mxu0 0.0
        %1183 = vmatmul.mubr.f32.gmra.mrb[0].mxu0 %v787
        %v1184 = vpop.f32.mrb[0].mxu0
        %v1185 = vadd.f32 0.0, %v1184
        %v1186 = vpop.f32.mrb[0].mxu0
        %1187 = vmatprep.mubr.f32.mxu0 0.0
        %1188 = vmatmul.mubr.f32.gmra.mrb[0].mxu0 %v790
        %v1189 = vpop.f32.mrb[0].mxu0
        %v1190 = vadd.f32 0.0, %v1189
        %v1191 = vpop.f32.mrb[0].mxu0
        %1192 = vmatprep.mubr.f32.mxu0 0.0
        %1193 = vmatmul.mubr.f32.gmra.mrb[0].mxu0 %v793
        %v1194 = vpop.f32.mrb[0].mxu0
        %v1195 = vadd.f32 0.0, %v1194
        %v1196 = vpop.f32.mrb[0].mxu0
        %1197 = vmatprep.mubr.f32.mxu0 0.0
        %1198 = vmatmul.mubr.f32.gmra.mrb[0].mxu0 %v796
        %v1199 = vpop.f32.mrb[0].mxu0
        %v1200 = vadd.f32 0.0, %v1199
        %v1201 = vpop.f32.mrb[0].mxu0
        %1202 = vmatprep.mubr.f32.mxu0 0.0
        %1203 = vmatmul.mubr.f32.gmra.mrb[0].mxu0 %v799
        %v1204 = vpop.f32.mrb[0].mxu0
        %v1205 = vadd.f32 0.0, %v1204
        %v1206 = vpop.f32.mrb[0].mxu0
        %1207 = vmatprep.mubr.f32.mxu0 0.0
        %1208 = vmatmul.mubr.f32.gmra.mrb[0].mxu0 %v802
        %v1209 = vpop.f32.mrb[0].mxu0
        %v1210 = vadd.f32 0.0, %v1209
        %v1211 = vpop.f32.mrb[0].mxu0
        %1212 = vmatprep.mubr.f32.mxu0 0.0
        %1213 = vmatmul.mubr.f32.gmra.mrb[0].mxu0 %v805
        %v1214 = vpop.f32.mrb[0].mxu0
        %v1215 = vadd.f32 0.0, %v1214
        %v1216 = vpop.f32.mrb[0].mxu0
        %1217 = vmatprep.mubr.f32.mxu0 0.0
        %1218 = vmatmul.mubr.f32.gmra.mrb[0].mxu0 %v808
        %v1219 = vpop.f32.mrb[0].mxu0
        %v1220 = vadd.f32 0.0, %v1219
        %v1221 = vpop.f32.mrb[0].mxu0
        %1222 = vmatprep.mubr.f32.mxu0 0.0
        %1223 = vmatmul.mubr.f32.gmra.mrb[0].mxu0 %v811
        %v1224 = vpop.f32.mrb[0].mxu0
        %v1225 = vadd.f32 0.0, %v1224
        %v1226 = vpop.f32.mrb[0].mxu0
        %1227 = vmatprep.mubr.f32.mxu0 0.0
        %1228 = vmatmul.mubr.f32.gmra.mrb[0].mxu0 %v814
        %v1229 = vpop.f32.mrb[0].mxu0
        %v1230 = vadd.f32 0.0, %v1229
        %v1231 = vpop.f32.mrb[0].mxu0
        %1232 = vmatprep.mubr.f32.mxu0 0.0
        %1233 = vmatmul.mubr.f32.gmra.mrb[0].mxu0 %v817
        %v1234 = vpop.f32.mrb[0].mxu0
        %v1235 = vadd.f32 0.0, %v1234
        %v1236 = vpop.f32.mrb[0].mxu0
        %1237 = vmatprep.mubr.f32.mxu0 0.0
        %1238 = vmatmul.mubr.f32.gmra.mrb[0].mxu0 %v820
        %v1239 = vpop.f32.mrb[0].mxu0
        %v1240 = vadd.f32 0.0, %v1239
        %v1241 = vpop.f32.mrb[0].mxu0
        %1242 = vmatprep.mubr.f32.mxu0 0.0
        %1243 = vmatmul.mubr.f32.gmra.mrb[0].mxu0 %v823
        %v1244 = vpop.f32.mrb[0].mxu0
        %v1245 = vadd.f32 0.0, %v1244
        %v1246 = vpop.f32.mrb[0].mxu0
        %1247 = vmatprep.mubr.f32.mxu0 0.0
        %1248 = vmatmul.mubr.f32.gmra.mrb[0].mxu0 %v826
        %v1249 = vpop.f32.mrb[0].mxu0
        %v1250 = vadd.f32 0.0, %v1249
        %v1251 = vpop.f32.mrb[0].mxu0
        %1252 = vdwg.mxu0
        %v1253 = vlaneseq
        %v1254 = vshrl.u32 %v1253, 7
        %v1255 = vsub.s32 4, %v1254
        %v1256 = vrot.slane %v601, %v1255
        %v1257 = vmul.f32 %v895, %v1256
        %v1258 = vmul.f32 %v900, %v1256
        %v1259 = vmul.f32 %v905, %v1256
        %v1260 = vmul.f32 %v910, %v1256
        %v1261 = vmul.f32 %v915, %v1256
        %v1262 = vmul.f32 %v920, %v1256
        %v1263 = vmul.f32 %v925, %v1256
        %v1264 = vmul.f32 %v930, %v1256
        %v1265 = vlaneseq
        %v1266 = vshrl.u32 %v1265, 7
        %v1267 = vsub.s32 5, %v1266
        %v1268 = vrot.slane %v601, %v1267
        %v1269 = vmul.f32 %v935, %v1268
        %v1270 = vmul.f32 %v940, %v1268
        %v1271 = vmul.f32 %v945, %v1268
        %v1272 = vmul.f32 %v950, %v1268
        %v1273 = vmul.f32 %v955, %v1268
        %v1274 = vmul.f32 %v960, %v1268
        %v1275 = vmul.f32 %v965, %v1268
        %v1276 = vmul.f32 %v970, %v1268
        %v1277 = vadd.f32 %v1257, %v1269
        %v1278 = vadd.f32 %v1258, %v1270
        %v1279 = vadd.f32 %v1259, %v1271
        %v1280 = vadd.f32 %v1260, %v1272
        %v1281 = vadd.f32 %v1261, %v1273
        %v1282 = vadd.f32 %v1262, %v1274
        %v1283 = vadd.f32 %v1263, %v1275
        %v1284 = vadd.f32 %v1264, %v1276
        %v1285 = vlaneseq
        %v1286 = vshrl.u32 %v1285, 7
        %v1287 = vsub.s32 6, %v1286
        %v1288 = vrot.slane %v601, %v1287
        %v1289 = vmul.f32 %v975, %v1288
        %v1290 = vmul.f32 %v980, %v1288
        %v1291 = vmul.f32 %v985, %v1288
        %v1292 = vmul.f32 %v990, %v1288
        %v1293 = vmul.f32 %v995, %v1288
        %v1294 = vmul.f32 %v1000, %v1288
        %v1295 = vmul.f32 %v1005, %v1288
        %v1296 = vmul.f32 %v1010, %v1288
        %v1297 = vadd.f32 %v1277, %v1289
        %v1298 = vadd.f32 %v1278, %v1290
        %v1299 = vadd.f32 %v1279, %v1291
        %v1300 = vadd.f32 %v1280, %v1292
        %v1301 = vadd.f32 %v1281, %v1293
        %v1302 = vadd.f32 %v1282, %v1294
        %v1303 = vadd.f32 %v1283, %v1295
        %v1304 = vadd.f32 %v1284, %v1296
        %v1305 = vlaneseq
        %v1306 = vshrl.u32 %v1305, 7
        %v1307 = vsub.s32 7, %v1306
        %v1308 = vrot.slane %v601, %v1307
        %v1309 = vmul.f32 %v1015, %v1308
        %v1310 = vmul.f32 %v1020, %v1308
        %v1311 = vmul.f32 %v1025, %v1308
        %v1312 = vmul.f32 %v1030, %v1308
        %v1313 = vmul.f32 %v1035, %v1308
        %v1314 = vmul.f32 %v1040, %v1308
        %v1315 = vmul.f32 %v1045, %v1308
        %v1316 = vmul.f32 %v1050, %v1308
        %v1317 = vadd.f32 %v1297, %v1309
        %v1318 = vadd.f32 %v1298, %v1310
        %v1319 = vadd.f32 %v1299, %v1311
        %v1320 = vadd.f32 %v1300, %v1312
        %v1321 = vadd.f32 %v1301, %v1313
        %v1322 = vadd.f32 %v1302, %v1314
        %v1323 = vadd.f32 %v1303, %v1315
        %v1324 = vadd.f32 %v1304, %v1316
        %v1325 = vlaneseq
        %v1326 = vshrl.u32 %v1325, 7
        %v1327 = vsub.s32 0, %v1326
        %v1328 = vrot.slane %v602, %v1327
        %v1329 = vmul.f32 %v1055, %v1328
        %v1330 = vmul.f32 %v1060, %v1328
        %v1331 = vmul.f32 %v1065, %v1328
        %v1332 = vmul.f32 %v1070, %v1328
        %v1333 = vmul.f32 %v1075, %v1328
        %v1334 = vmul.f32 %v1080, %v1328
        %v1335 = vmul.f32 %v1085, %v1328
        %v1336 = vmul.f32 %v1090, %v1328
        %v1337 = vadd.f32 %v1317, %v1329
        %v1338 = vadd.f32 %v1318, %v1330
        %v1339 = vadd.f32 %v1319, %v1331
        %v1340 = vadd.f32 %v1320, %v1332
        %v1341 = vadd.f32 %v1321, %v1333
        %v1342 = vadd.f32 %v1322, %v1334
        %v1343 = vadd.f32 %v1323, %v1335
        %v1344 = vadd.f32 %v1324, %v1336
        %v1345 = vlaneseq
        %v1346 = vshrl.u32 %v1345, 7
        %v1347 = vsub.s32 1, %v1346
        %v1348 = vrot.slane %v602, %v1347
        %v1349 = vmul.f32 %v1095, %v1348
        %v1350 = vmul.f32 %v1100, %v1348
        %v1351 = vmul.f32 %v1105, %v1348
        %v1352 = vmul.f32 %v1110, %v1348
        %v1353 = vmul.f32 %v1115, %v1348
        %v1354 = vmul.f32 %v1120, %v1348
        %v1355 = vmul.f32 %v1125, %v1348
        %v1356 = vmul.f32 %v1130, %v1348
        %v1357 = vadd.f32 %v1337, %v1349
        %v1358 = vadd.f32 %v1338, %v1350
        %v1359 = vadd.f32 %v1339, %v1351
        %v1360 = vadd.f32 %v1340, %v1352
        %v1361 = vadd.f32 %v1341, %v1353
        %v1362 = vadd.f32 %v1342, %v1354
        %v1363 = vadd.f32 %v1343, %v1355
        %v1364 = vadd.f32 %v1344, %v1356
        %v1365 = vlaneseq
        %v1366 = vshrl.u32 %v1365, 7
        %v1367 = vsub.s32 2, %v1366
        %v1368 = vrot.slane %v602, %v1367
        %v1369 = vmul.f32 %v1135, %v1368
        %v1370 = vmul.f32 %v1140, %v1368
        %v1371 = vmul.f32 %v1145, %v1368
        %v1372 = vmul.f32 %v1150, %v1368
        %v1373 = vmul.f32 %v1155, %v1368
        %v1374 = vmul.f32 %v1160, %v1368
        %v1375 = vmul.f32 %v1165, %v1368
        %v1376 = vmul.f32 %v1170, %v1368
        %v1377 = vadd.f32 %v1357, %v1369
        %v1378 = vadd.f32 %v1358, %v1370
        %v1379 = vadd.f32 %v1359, %v1371
        %v1380 = vadd.f32 %v1360, %v1372
        %v1381 = vadd.f32 %v1361, %v1373
        %v1382 = vadd.f32 %v1362, %v1374
        %v1383 = vadd.f32 %v1363, %v1375
        %v1384 = vadd.f32 %v1364, %v1376
        %v1385 = vlaneseq
        %v1386 = vshrl.u32 %v1385, 7
        %v1387 = vsub.s32 3, %v1386
        %v1388 = vrot.slane %v602, %v1387
        %v1389 = vmul.f32 %v1175, %v1388
        %v1390 = vmul.f32 %v1180, %v1388
        %v1391 = vmul.f32 %v1185, %v1388
        %v1392 = vmul.f32 %v1190, %v1388
        %v1393 = vmul.f32 %v1195, %v1388
        %v1394 = vmul.f32 %v1200, %v1388
        %v1395 = vmul.f32 %v1205, %v1388
        %v1396 = vmul.f32 %v1210, %v1388
        %v1397 = vadd.f32 %v1377, %v1389
        %v1398 = vadd.f32 %v1378, %v1390
        %v1399 = vadd.f32 %v1379, %v1391
        %v1400 = vadd.f32 %v1380, %v1392
        %v1401 = vadd.f32 %v1381, %v1393
        %v1402 = vadd.f32 %v1382, %v1394
        %v1403 = vadd.f32 %v1383, %v1395
        %v1404 = vadd.f32 %v1384, %v1396
        %v1405 = vlaneseq
        %v1406 = vshrl.u32 %v1405, 7
        %v1407 = vsub.s32 4, %v1406
        %v1408 = vrot.slane %v602, %v1407
        %v1409 = vmul.f32 %v1215, %v1408
        %v1410 = vmul.f32 %v1220, %v1408
        %v1411 = vmul.f32 %v1225, %v1408
        %v1412 = vmul.f32 %v1230, %v1408
        %v1413 = vmul.f32 %v1235, %v1408
        %v1414 = vmul.f32 %v1240, %v1408
        %v1415 = vmul.f32 %v1245, %v1408
        %v1416 = vmul.f32 %v1250, %v1408
        %v1417 = vadd.f32 %v1397, %v1409
        %v1418 = vadd.f32 %v1398, %v1410
        %v1419 = vadd.f32 %v1399, %v1411
        %v1420 = vadd.f32 %v1400, %v1412
        %v1421 = vadd.f32 %v1401, %v1413
        %v1422 = vadd.f32 %v1402, %v1414
        %v1423 = vadd.f32 %v1403, %v1415
        %v1424 = vadd.f32 %v1404, %v1416
        %v1425 = vlaneseq
        %v1426 = vshrl.u32 %v1425, 7
        %v1427 = vsub.s32 5, %v1426
        %v1428 = vrot.slane %v602, %v1427
        %v1429 = vmul.f32 %v1417, %v1428
        %v1430 = vmul.f32 %v1418, %v1428
        %v1431 = vmul.f32 %v1419, %v1428
        %v1432 = vmul.f32 %v1420, %v1428
        %v1433 = vmul.f32 %v1421, %v1428
        %v1434 = vmul.f32 %v1422, %v1428
        %v1435 = vmul.f32 %v1423, %v1428
        %v1436 = vmul.f32 %v1424, %v1428
        %v1437 = vlaneseq
        %v1438 = vshrl.u32 %v1437, 7
        %v1439 = vsub.s32 6, %v1438
        %v1440 = vrot.slane %v602, %v1439
        %v1441 = vadd.f32 %v1429, %v1440
        %v1442 = vadd.f32 %v1430, %v1440
        %v1443 = vadd.f32 %v1431, %v1440
        %v1444 = vadd.f32 %v1432, %v1440
        %v1445 = vadd.f32 %v1433, %v1440
        %v1446 = vadd.f32 %v1434, %v1440
        %v1447 = vadd.f32 %v1435, %v1440
        %v1448 = vadd.f32 %v1436, %v1440
        %v1449 = vsub.f32 1.0, %v610
        %v1450 = vlaneseq
        %v1451 = vshrl.u32 %v1450, 7
        %v1452 = vsub.s32 0, %v1451
        %v1453 = vrot.slane %v1449, %v1452
        %v1454 = vmul.f32 %v1453, %v521
        %v1455 = vmul.f32 %v1453, %v522
        %v1456 = vmul.f32 %v1453, %v523
        %v1457 = vmul.f32 %v1453, %v524
        %v1458 = vmul.f32 %v1453, %v525
        %v1459 = vmul.f32 %v1453, %v526
        %v1460 = vmul.f32 %v1453, %v527
        %v1461 = vmul.f32 %v1453, %v528
        %v1462 = vlaneseq
        %v1463 = vshrl.u32 %v1462, 7
        %v1464 = vsub.s32 0, %v1463
        %v1465 = vrot.slane %v610, %v1464
        %v1466 = vmul.f32 %v1465, %v1441
        %v1467 = vmul.f32 %v1465, %v1442
        %v1468 = vmul.f32 %v1465, %v1443
        %v1469 = vmul.f32 %v1465, %v1444
        %v1470 = vmul.f32 %v1465, %v1445
        %v1471 = vmul.f32 %v1465, %v1446
        %v1472 = vmul.f32 %v1465, %v1447
        %v1473 = vmul.f32 %v1465, %v1448
        %v1474 = vadd.f32 %v1454, %v1466
        %v1475 = vadd.f32 %v1455, %v1467
        %v1476 = vadd.f32 %v1456, %v1468
        %v1477 = vadd.f32 %v1457, %v1469
        %v1478 = vadd.f32 %v1458, %v1470
        %v1479 = vadd.f32 %v1459, %v1471
        %v1480 = vadd.f32 %v1460, %v1472
        %v1481 = vadd.f32 %v1461, %v1473
        %vm1482 = vcmask 261120
        %v1483 = vsel %vm1482, %v1474, 0.0
        %1484 = vadd.xlane.f32.xlu0 %v1483
        %v1485 = vpop.xlane.xlu0 %1484
        %v1486 = vsel %vm1482, %v1475, 0.0
        %1487 = vadd.xlane.f32.xlu0 %v1486
        %v1488 = vpop.xlane.xlu0 %1487
        %v1489 = vsel %vm1482, %v1476, 0.0
        %1490 = vadd.xlane.f32.xlu0 %v1489
        %v1491 = vpop.xlane.xlu0 %1490
        %v1492 = vsel %vm1482, %v1477, 0.0
        %1493 = vadd.xlane.f32.xlu0 %v1492
        %v1494 = vpop.xlane.xlu0 %1493
        %v1495 = vsel %vm1482, %v1478, 0.0
        %1496 = vadd.xlane.f32.xlu0 %v1495
        %v1497 = vpop.xlane.xlu0 %1496
        %v1498 = vsel %vm1482, %v1479, 0.0
        %1499 = vadd.xlane.f32.xlu0 %v1498
        %v1500 = vpop.xlane.xlu0 %1499
        %v1501 = vsel %vm1482, %v1480, 0.0
        %1502 = vadd.xlane.f32.xlu0 %v1501
        %v1503 = vpop.xlane.xlu0 %1502
        %v1504 = vsel %vm1482, %v1481, 0.0
        %1505 = vadd.xlane.f32.xlu0 %v1504
        %v1506 = vpop.xlane.xlu0 %1505
        %v1507 = vrcp.pop 32.0
        %v1508 = vmul.f32 %v1485, %v1507
        %v1509 = vmul.f32 %v1488, %v1507
        %v1510 = vmul.f32 %v1491, %v1507
        %v1511 = vmul.f32 %v1494, %v1507
        %v1512 = vmul.f32 %v1497, %v1507
        %v1513 = vmul.f32 %v1500, %v1507
        %v1514 = vmul.f32 %v1503, %v1507
        %v1515 = vmul.f32 %v1506, %v1507
        %v1516 = vsub.f32 %v1474, %v1508
        %v1517 = vsub.f32 %v1475, %v1509
        %v1518 = vsub.f32 %v1476, %v1510
        %v1519 = vsub.f32 %v1477, %v1511
        %v1520 = vsub.f32 %v1478, %v1512
        %v1521 = vsub.f32 %v1479, %v1513
        %v1522 = vsub.f32 %v1480, %v1514
        %v1523 = vsub.f32 %v1481, %v1515
        %v1524 = vmul.f32 %v1516, %v1516
        %v1525 = vmul.f32 %v1517, %v1517
        %v1526 = vmul.f32 %v1518, %v1518
        %v1527 = vmul.f32 %v1519, %v1519
        %v1528 = vmul.f32 %v1520, %v1520
        %v1529 = vmul.f32 %v1521, %v1521
        %v1530 = vmul.f32 %v1522, %v1522
        %v1531 = vmul.f32 %v1523, %v1523
        %v1532 = vsel %vm1482, %v1524, 0.0
        %1533 = vadd.xlane.f32.xlu0 %v1532
        %v1534 = vpop.xlane.xlu0 %1533
        %v1535 = vsel %vm1482, %v1525, 0.0
        %1536 = vadd.xlane.f32.xlu0 %v1535
        %v1537 = vpop.xlane.xlu0 %1536
        %v1538 = vsel %vm1482, %v1526, 0.0
        %1539 = vadd.xlane.f32.xlu0 %v1538
        %v1540 = vpop.xlane.xlu0 %1539
        %v1541 = vsel %vm1482, %v1527, 0.0
        %1542 = vadd.xlane.f32.xlu0 %v1541
        %v1543 = vpop.xlane.xlu0 %1542
        %v1544 = vsel %vm1482, %v1528, 0.0
        %1545 = vadd.xlane.f32.xlu0 %v1544
        %v1546 = vpop.xlane.xlu0 %1545
        %v1547 = vsel %vm1482, %v1529, 0.0
        %1548 = vadd.xlane.f32.xlu0 %v1547
        %v1549 = vpop.xlane.xlu0 %1548
        %v1550 = vsel %vm1482, %v1530, 0.0
        %1551 = vadd.xlane.f32.xlu0 %v1550
        %v1552 = vpop.xlane.xlu0 %1551
        %v1553 = vsel %vm1482, %v1531, 0.0
        %1554 = vadd.xlane.f32.xlu0 %v1553
        %v1555 = vpop.xlane.xlu0 %1554
        %v1556 = vmul.f32 %v1534, %v1507
        %v1557 = vmul.f32 %v1537, %v1507
        %v1558 = vmul.f32 %v1540, %v1507
        %v1559 = vmul.f32 %v1543, %v1507
        %v1560 = vmul.f32 %v1546, %v1507
        %v1561 = vmul.f32 %v1549, %v1507
        %v1562 = vmul.f32 %v1552, %v1507
        %v1563 = vmul.f32 %v1555, %v1507
        %v1564 = vadd.f32 %v1556, 1e-05
        %v1565 = vadd.f32 %v1557, 1e-05
        %v1566 = vadd.f32 %v1558, 1e-05
        %v1567 = vadd.f32 %v1559, 1e-05
        %v1568 = vadd.f32 %v1560, 1e-05
        %v1569 = vadd.f32 %v1561, 1e-05
        %v1570 = vadd.f32 %v1562, 1e-05
        %v1571 = vadd.f32 %v1563, 1e-05
        %v1572 = vrsqrt.pop %v1564
        %v1573 = vrsqrt.pop %v1565
        %v1574 = vrsqrt.pop %v1566
        %v1575 = vrsqrt.pop %v1567
        %v1576 = vrsqrt.pop %v1568
        %v1577 = vrsqrt.pop %v1569
        %v1578 = vrsqrt.pop %v1570
        %v1579 = vrsqrt.pop %v1571
        %v1580 = vmul.f32 %v1516, %v1572
        %v1581 = vmul.f32 %v1517, %v1573
        %v1582 = vmul.f32 %v1518, %v1574
        %v1583 = vmul.f32 %v1519, %v1575
        %v1584 = vmul.f32 %v1520, %v1576
        %v1585 = vmul.f32 %v1521, %v1577
        %v1586 = vmul.f32 %v1522, %v1578
        %v1587 = vmul.f32 %v1523, %v1579
        %v1588 = vlaneseq
        %v1589 = vshrl.u32 %v1588, 7
        %v1590 = vsub.s32 7, %v1589
        %v1591 = vrot.slane %v602, %v1590
        %v1592 = vmul.f32 %v1580, %v1591
        %v1593 = vmul.f32 %v1581, %v1591
        %v1594 = vmul.f32 %v1582, %v1591
        %v1595 = vmul.f32 %v1583, %v1591
        %v1596 = vmul.f32 %v1584, %v1591
        %v1597 = vmul.f32 %v1585, %v1591
        %v1598 = vmul.f32 %v1586, %v1591
        %v1599 = vmul.f32 %v1587, %v1591
        %v1600 = vlaneseq
        %v1601 = vshrl.u32 %v1600, 7
        %v1602 = vsub.s32 0, %v1601
        %v1603 = vrot.slane %v603, %v1602
        %v1604 = vadd.f32 %v1592, %v1603
        %v1605 = vadd.f32 %v1593, %v1603
        %v1606 = vadd.f32 %v1594, %v1603
        %v1607 = vadd.f32 %v1595, %v1603
        %v1608 = vadd.f32 %v1596, %v1603
        %v1609 = vadd.f32 %v1597, %v1603
        %v1610 = vadd.f32 %v1598, %v1603
        %v1611 = vadd.f32 %v1599, %v1603
        %v1612 = vld [vmem:[%s4] sm:$0xff]
        %v1613 = vld [vmem:[%s4 + $0x8] sm:$0x1]
        %v1614 = vld [vmem:[%s3] sm:$0xff]
        %v1615 = vld [vmem:[%s3 + $0x8] sm:$0xff]
        %v1616 = vld [vmem:[%s3 + $0x10] sm:$0xff]
        %v1617 = vld [vmem:[%s3 + $0x18] sm:$0xff]
        %v1619 = vsel %vm1482, %v1604, 0
        %v1622 = vsel %vm1482, %v1605, 0
        %v1625 = vsel %vm1482, %v1606, 0
        %v1628 = vsel %vm1482, %v1607, 0
        %v1631 = vsel %vm1482, %v1608, 0
        %v1634 = vsel %vm1482, %v1609, 0
        %v1637 = vsel %vm1482, %v1610, 0
        %v1640 = vsel %vm1482, %v1611, 0
        %1642 = vmatprep.subr.mxu0 0.0
        %1643 = vmatpush1.msra.mxu0 %v1614
        %1644 = vmatprep.subr.mxu0 0.0
        %1645 = vmatpush1.msra.mxu0 %v1615
        %1646 = vmatprep.subr.mxu0 0.0
        %1647 = vmatpush1.msra.mxu0 %v1616
        %1648 = vmatprep.subr.mxu0 0.0
        %1649 = vmatpush1.msra.mxu0 %v1617
        %1650 = vmatprep.subr.mxu0 0.0
        %1651 = vmatpush1.msra.mxu0 0.0
        %1652 = vmatprep.subr.mxu0 0.0
        %1653 = vmatpush1.msra.mxu0 0.0
        %1654 = vmatprep.subr.mxu0 0.0
        %1655 = vmatpush1.msra.mxu0 0.0
        %1656 = vmatprep.subr.mxu0 0.0
        %1657 = vmatpush1.msra.mxu0 0.0
        %1658 = vmatprep.subr.mxu0 0.0
        %1659 = vmatpush1.msra.mxu0 0.0
        %1660 = vmatprep.subr.mxu0 0.0
        %1661 = vmatpush1.msra.mxu0 0.0
        %1662 = vmatprep.subr.mxu0 0.0
        %1663 = vmatpush1.msra.mxu0 0.0
        %1664 = vmatprep.subr.mxu0 0.0
        %1665 = vmatpush1.msra.mxu0 0.0
        %1666 = vmatprep.subr.mxu0 0.0
        %1667 = vmatpush1.msra.mxu0 0.0
        %1668 = vmatprep.subr.mxu0 0.0
        %1669 = vmatpush1.msra.mxu0 0.0
        %1670 = vmatprep.subr.mxu0 0.0
        %1671 = vmatpush1.msra.mxu0 0.0
        %1672 = vmatprep.subr.mxu0 0.0
        %1673 = vmatpush1.msra.mxu0 0.0
        %1674 = vmatprep.subr.mxu0 0.0
        %1675 = vmatpush1.msra.mxu0 0.0
        %1676 = vmatprep.subr.mxu0 0.0
        %1677 = vmatpush1.msra.mxu0 0.0
        %1678 = vmatprep.subr.mxu0 0.0
        %1679 = vmatpush1.msra.mxu0 0.0
        %1680 = vmatprep.subr.mxu0 0.0
        %1681 = vmatpush1.msra.mxu0 0.0
        %1682 = vmatprep.subr.mxu0 0.0
        %1683 = vmatpush1.msra.mxu0 0.0
        %1684 = vmatprep.subr.mxu0 0.0
        %1685 = vmatpush1.msra.mxu0 0.0
        %1686 = vmatprep.subr.mxu0 0.0
        %1687 = vmatpush1.msra.mxu0 0.0
        %1688 = vmatprep.subr.mxu0 0.0
        %1689 = vmatpush1.msra.mxu0 0.0
        %1690 = vmatprep.subr.mxu0 0.0
        %1691 = vmatpush1.msra.mxu0 0.0
        %1692 = vmatprep.subr.mxu0 0.0
        %1693 = vmatpush1.msra.mxu0 0.0
        %1694 = vmatprep.subr.mxu0 0.0
        %1695 = vmatpush1.msra.mxu0 0.0
        %1696 = vmatprep.subr.mxu0 0.0
        %1697 = vmatpush1.msra.mxu0 0.0
        %1698 = vmatprep.subr.mxu0 0.0
        %1699 = vmatpush1.msra.mxu0 0.0
        %1700 = vmatprep.subr.mxu0 0.0
        %1701 = vmatpush1.msra.mxu0 0.0
        %1702 = vmatprep.subr.mxu0 0.0
        %1703 = vmatpush1.msra.mxu0 0.0
        %1704 = vmatprep.subr.mxu0 0.0
        %1705 = vmatpush1.msra.mxu0 0.0
        %1706 = vmatprep.mubr.f32.mxu0 0.0
        %1707 = vmatmul.mubr.f32.gmra.mrb[0].mxu0 %v1619
        %v1708 = vpop.f32.mrb[0].mxu0
        %v1709 = vadd.f32 0.0, %v1708
        %v1710 = vpop.f32.mrb[0].mxu0
        %1711 = vmatprep.mubr.f32.mxu0 0.0
        %1712 = vmatmul.mubr.f32.gmra.mrb[0].mxu0 %v1622
        %v1713 = vpop.f32.mrb[0].mxu0
        %v1714 = vadd.f32 0.0, %v1713
        %v1715 = vpop.f32.mrb[0].mxu0
        %1716 = vmatprep.mubr.f32.mxu0 0.0
        %1717 = vmatmul.mubr.f32.gmra.mrb[0].mxu0 %v1625
        %v1718 = vpop.f32.mrb[0].mxu0
        %v1719 = vadd.f32 0.0, %v1718
        %v1720 = vpop.f32.mrb[0].mxu0
        %1721 = vmatprep.mubr.f32.mxu0 0.0
        %1722 = vmatmul.mubr.f32.gmra.mrb[0].mxu0 %v1628
        %v1723 = vpop.f32.mrb[0].mxu0
        %v1724 = vadd.f32 0.0, %v1723
        %v1725 = vpop.f32.mrb[0].mxu0
        %1726 = vmatprep.mubr.f32.mxu0 0.0
        %1727 = vmatmul.mubr.f32.gmra.mrb[0].mxu0 %v1631
        %v1728 = vpop.f32.mrb[0].mxu0
        %v1729 = vadd.f32 0.0, %v1728
        %v1730 = vpop.f32.mrb[0].mxu0
        %1731 = vmatprep.mubr.f32.mxu0 0.0
        %1732 = vmatmul.mubr.f32.gmra.mrb[0].mxu0 %v1634
        %v1733 = vpop.f32.mrb[0].mxu0
        %v1734 = vadd.f32 0.0, %v1733
        %v1735 = vpop.f32.mrb[0].mxu0
        %1736 = vmatprep.mubr.f32.mxu0 0.0
        %1737 = vmatmul.mubr.f32.gmra.mrb[0].mxu0 %v1637
        %v1738 = vpop.f32.mrb[0].mxu0
        %v1739 = vadd.f32 0.0, %v1738
        %v1740 = vpop.f32.mrb[0].mxu0
        %1741 = vmatprep.mubr.f32.mxu0 0.0
        %1742 = vmatmul.mubr.f32.gmra.mrb[0].mxu0 %v1640
        %v1743 = vpop.f32.mrb[0].mxu0
        %v1744 = vadd.f32 0.0, %v1743
        %v1745 = vpop.f32.mrb[0].mxu0
        %1746 = vdwg.mxu0
        %1747 = vmatprep.subr.mxu0 0.0
        %1748 = vmatpush1.msra.mxu0 %v1709
        %1749 = vmatprep.subr.mxu0 0.0
        %1750 = vmatpush1.msra.mxu0 %v1714
        %1751 = vmatprep.subr.mxu0 0.0
        %1752 = vmatpush1.msra.mxu0 %v1719
        %1753 = vmatprep.subr.mxu0 0.0
        %1754 = vmatpush1.msra.mxu0 %v1724
        %1755 = vmatprep.subr.mxu0 0.0
        %1756 = vmatpush1.msra.mxu0 %v1729
        %1757 = vmatprep.subr.mxu0 0.0
        %1758 = vmatpush1.msra.mxu0 %v1734
        %1759 = vmatprep.subr.mxu0 0.0
        %1760 = vmatpush1.msra.mxu0 %v1739
        %1761 = vmatprep.subr.mxu0 0.0
        %1762 = vmatpush1.msra.mxu0 %v1744
        %1763 = vmatprep.subr.mxu0 0.0
        %1764 = vmatpush1.msra.mxu0 0.0
        %1765 = vmatprep.subr.mxu0 0.0
        %1766 = vmatpush1.msra.mxu0 0.0
        %1767 = vmatprep.subr.mxu0 0.0
        %1768 = vmatpush1.msra.mxu0 0.0
        %1769 = vmatprep.subr.mxu0 0.0
        %1770 = vmatpush1.msra.mxu0 0.0
        %1771 = vmatprep.subr.mxu0 0.0
        %1772 = vmatpush1.msra.mxu0 0.0
        %1773 = vmatprep.subr.mxu0 0.0
        %1774 = vmatpush1.msra.mxu0 0.0
        %1775 = vmatprep.subr.mxu0 0.0
        %1776 = vmatpush1.msra.mxu0 0.0
        %1777 = vmatprep.subr.mxu0 0.0
        %1778 = vmatpush1.msra.mxu0 0.0
        %1779 = vmatprep.subr.mxu0 0.0
        %1780 = vmatpush1.msra.mxu0 0.0
        %1781 = vmatprep.subr.mxu0 0.0
        %1782 = vmatpush1.msra.mxu0 0.0
        %1783 = vmatprep.subr.mxu0 0.0
        %1784 = vmatpush1.msra.mxu0 0.0
        %1785 = vmatprep.subr.mxu0 0.0
        %1786 = vmatpush1.msra.mxu0 0.0
        %1787 = vmatprep.subr.mxu0 0.0
        %1788 = vmatpush1.msra.mxu0 0.0
        %1789 = vmatprep.subr.mxu0 0.0
        %1790 = vmatpush1.msra.mxu0 0.0
        %1791 = vmatprep.subr.mxu0 0.0
        %1792 = vmatpush1.msra.mxu0 0.0
        %1793 = vmatprep.subr.mxu0 0.0
        %1794 = vmatpush1.msra.mxu0 0.0
        %1795 = vmatprep.subr.mxu0 0.0
        %1796 = vmatpush1.msra.mxu0 0.0
        %1797 = vmatprep.subr.mxu0 0.0
        %1798 = vmatpush1.msra.mxu0 0.0
        %1799 = vmatprep.subr.mxu0 0.0
        %1800 = vmatpush1.msra.mxu0 0.0
        %1801 = vmatprep.subr.mxu0 0.0
        %1802 = vmatpush1.msra.mxu0 0.0
        %1803 = vmatprep.subr.mxu0 0.0
        %1804 = vmatpush1.msra.mxu0 0.0
        %1805 = vmatprep.subr.mxu0 0.0
        %1806 = vmatpush1.msra.mxu0 0.0
        %1807 = vmatprep.subr.mxu0 0.0
        %1808 = vmatpush1.msra.mxu0 0.0
        %1809 = vmatprep.subr.mxu0 0.0
        %1810 = vmatpush1.msra.mxu0 0.0
        %1811 = vmatprep.mubr.f32.mxu0 0.0
        %1812 = vmatmul.mubr.f32.gmra.mrb[0].mxu0 %v613
        %v1813 = vpop.f32.mrb[0].mxu0
        %v1814 = vadd.f32 0.0, %v1813
        %v1815 = vpop.f32.mrb[0].mxu0
        %1816 = vmatprep.mubr.f32.mxu0 0.0
        %1817 = vmatmul.mubr.f32.gmra.mrb[0].mxu0 %v616
        %v1818 = vpop.f32.mrb[0].mxu0
        %v1819 = vadd.f32 0.0, %v1818
        %v1820 = vpop.f32.mrb[0].mxu0
        %1821 = vmatprep.mubr.f32.mxu0 0.0
        %1822 = vmatmul.mubr.f32.gmra.mrb[0].mxu0 %v619
        %v1823 = vpop.f32.mrb[0].mxu0
        %v1824 = vadd.f32 0.0, %v1823
        %v1825 = vpop.f32.mrb[0].mxu0
        %1826 = vmatprep.mubr.f32.mxu0 0.0
        %1827 = vmatmul.mubr.f32.gmra.mrb[0].mxu0 %v622
        %v1828 = vpop.f32.mrb[0].mxu0
        %v1829 = vadd.f32 0.0, %v1828
        %v1830 = vpop.f32.mrb[0].mxu0
        %1831 = vmatprep.mubr.f32.mxu0 0.0
        %1832 = vmatmul.mubr.f32.gmra.mrb[0].mxu0 %v625
        %v1833 = vpop.f32.mrb[0].mxu0
        %v1834 = vadd.f32 0.0, %v1833
        %v1835 = vpop.f32.mrb[0].mxu0
        %1836 = vmatprep.mubr.f32.mxu0 0.0
        %1837 = vmatmul.mubr.f32.gmra.mrb[0].mxu0 %v628
        %v1838 = vpop.f32.mrb[0].mxu0
        %v1839 = vadd.f32 0.0, %v1838
        %v1840 = vpop.f32.mrb[0].mxu0
        %1841 = vmatprep.mubr.f32.mxu0 0.0
        %1842 = vmatmul.mubr.f32.gmra.mrb[0].mxu0 %v631
        %v1843 = vpop.f32.mrb[0].mxu0
        %v1844 = vadd.f32 0.0, %v1843
        %v1845 = vpop.f32.mrb[0].mxu0
        %1846 = vmatprep.mubr.f32.mxu0 0.0
        %1847 = vmatmul.mubr.f32.gmra.mrb[0].mxu0 %v634
        %v1848 = vpop.f32.mrb[0].mxu0
        %v1849 = vadd.f32 0.0, %v1848
        %v1850 = vpop.f32.mrb[0].mxu0
        %1851 = vmatprep.mubr.f32.mxu0 0.0
        %1852 = vmatmul.mubr.f32.gmra.mrb[0].mxu0 %v637
        %v1853 = vpop.f32.mrb[0].mxu0
        %v1854 = vadd.f32 0.0, %v1853
        %v1855 = vpop.f32.mrb[0].mxu0
        %1856 = vmatprep.mubr.f32.mxu0 0.0
        %1857 = vmatmul.mubr.f32.gmra.mrb[0].mxu0 %v640
        %v1858 = vpop.f32.mrb[0].mxu0
        %v1859 = vadd.f32 0.0, %v1858
        %v1860 = vpop.f32.mrb[0].mxu0
        %1861 = vmatprep.mubr.f32.mxu0 0.0
        %1862 = vmatmul.mubr.f32.gmra.mrb[0].mxu0 %v643
        %v1863 = vpop.f32.mrb[0].mxu0
        %v1864 = vadd.f32 0.0, %v1863
        %v1865 = vpop.f32.mrb[0].mxu0
        %1866 = vmatprep.mubr.f32.mxu0 0.0
        %1867 = vmatmul.mubr.f32.gmra.mrb[0].mxu0 %v646
        %v1868 = vpop.f32.mrb[0].mxu0
        %v1869 = vadd.f32 0.0, %v1868
        %v1870 = vpop.f32.mrb[0].mxu0
        %1871 = vmatprep.mubr.f32.mxu0 0.0
        %1872 = vmatmul.mubr.f32.gmra.mrb[0].mxu0 %v649
        %v1873 = vpop.f32.mrb[0].mxu0
        %v1874 = vadd.f32 0.0, %v1873
        %v1875 = vpop.f32.mrb[0].mxu0
        %1876 = vmatprep.mubr.f32.mxu0 0.0
        %1877 = vmatmul.mubr.f32.gmra.mrb[0].mxu0 %v652
        %v1878 = vpop.f32.mrb[0].mxu0
        %v1879 = vadd.f32 0.0, %v1878
        %v1880 = vpop.f32.mrb[0].mxu0
        %1881 = vmatprep.mubr.f32.mxu0 0.0
        %1882 = vmatmul.mubr.f32.gmra.mrb[0].mxu0 %v655
        %v1883 = vpop.f32.mrb[0].mxu0
        %v1884 = vadd.f32 0.0, %v1883
        %v1885 = vpop.f32.mrb[0].mxu0
        %1886 = vmatprep.mubr.f32.mxu0 0.0
        %1887 = vmatmul.mubr.f32.gmra.mrb[0].mxu0 %v658
        %v1888 = vpop.f32.mrb[0].mxu0
        %v1889 = vadd.f32 0.0, %v1888
        %v1890 = vpop.f32.mrb[0].mxu0
        %1891 = vmatprep.mubr.f32.mxu0 0.0
        %1892 = vmatmul.mubr.f32.gmra.mrb[0].mxu0 %v661
        %v1893 = vpop.f32.mrb[0].mxu0
        %v1894 = vadd.f32 0.0, %v1893
        %v1895 = vpop.f32.mrb[0].mxu0
        %1896 = vmatprep.mubr.f32.mxu0 0.0
        %1897 = vmatmul.mubr.f32.gmra.mrb[0].mxu0 %v664
        %v1898 = vpop.f32.mrb[0].mxu0
        %v1899 = vadd.f32 0.0, %v1898
        %v1900 = vpop.f32.mrb[0].mxu0
        %1901 = vmatprep.mubr.f32.mxu0 0.0
        %1902 = vmatmul.mubr.f32.gmra.mrb[0].mxu0 %v667
        %v1903 = vpop.f32.mrb[0].mxu0
        %v1904 = vadd.f32 0.0, %v1903
        %v1905 = vpop.f32.mrb[0].mxu0
        %1906 = vmatprep.mubr.f32.mxu0 0.0
        %1907 = vmatmul.mubr.f32.gmra.mrb[0].mxu0 %v670
        %v1908 = vpop.f32.mrb[0].mxu0
        %v1909 = vadd.f32 0.0, %v1908
        %v1910 = vpop.f32.mrb[0].mxu0
        %1911 = vmatprep.mubr.f32.mxu0 0.0
        %1912 = vmatmul.mubr.f32.gmra.mrb[0].mxu0 %v673
        %v1913 = vpop.f32.mrb[0].mxu0
        %v1914 = vadd.f32 0.0, %v1913
        %v1915 = vpop.f32.mrb[0].mxu0
        %1916 = vmatprep.mubr.f32.mxu0 0.0
        %1917 = vmatmul.mubr.f32.gmra.mrb[0].mxu0 %v676
        %v1918 = vpop.f32.mrb[0].mxu0
        %v1919 = vadd.f32 0.0, %v1918
        %v1920 = vpop.f32.mrb[0].mxu0
        %1921 = vmatprep.mubr.f32.mxu0 0.0
        %1922 = vmatmul.mubr.f32.gmra.mrb[0].mxu0 %v679
        %v1923 = vpop.f32.mrb[0].mxu0
        %v1924 = vadd.f32 0.0, %v1923
        %v1925 = vpop.f32.mrb[0].mxu0
        %1926 = vmatprep.mubr.f32.mxu0 0.0
        %1927 = vmatmul.mubr.f32.gmra.mrb[0].mxu0 %v682
        %v1928 = vpop.f32.mrb[0].mxu0
        %v1929 = vadd.f32 0.0, %v1928
        %v1930 = vpop.f32.mrb[0].mxu0
        %1931 = vmatprep.mubr.f32.mxu0 0.0
        %1932 = vmatmul.mubr.f32.gmra.mrb[0].mxu0 %v685
        %v1933 = vpop.f32.mrb[0].mxu0
        %v1934 = vadd.f32 0.0, %v1933
        %v1935 = vpop.f32.mrb[0].mxu0
        %1936 = vmatprep.mubr.f32.mxu0 0.0
        %1937 = vmatmul.mubr.f32.gmra.mrb[0].mxu0 %v688
        %v1938 = vpop.f32.mrb[0].mxu0
        %v1939 = vadd.f32 0.0, %v1938
        %v1940 = vpop.f32.mrb[0].mxu0
        %1941 = vmatprep.mubr.f32.mxu0 0.0
        %1942 = vmatmul.mubr.f32.gmra.mrb[0].mxu0 %v691
        %v1943 = vpop.f32.mrb[0].mxu0
        %v1944 = vadd.f32 0.0, %v1943
        %v1945 = vpop.f32.mrb[0].mxu0
        %1946 = vmatprep.mubr.f32.mxu0 0.0
        %1947 = vmatmul.mubr.f32.gmra.mrb[0].mxu0 %v694
        %v1948 = vpop.f32.mrb[0].mxu0
        %v1949 = vadd.f32 0.0, %v1948
        %v1950 = vpop.f32.mrb[0].mxu0
        %1951 = vmatprep.mubr.f32.mxu0 0.0
        %1952 = vmatmul.mubr.f32.gmra.mrb[0].mxu0 %v697
        %v1953 = vpop.f32.mrb[0].mxu0
        %v1954 = vadd.f32 0.0, %v1953
        %v1955 = vpop.f32.mrb[0].mxu0
        %1956 = vmatprep.mubr.f32.mxu0 0.0
        %1957 = vmatmul.mubr.f32.gmra.mrb[0].mxu0 %v700
        %v1958 = vpop.f32.mrb[0].mxu0
        %v1959 = vadd.f32 0.0, %v1958
        %v1960 = vpop.f32.mrb[0].mxu0
        %1961 = vmatprep.mubr.f32.mxu0 0.0
        %1962 = vmatmul.mubr.f32.gmra.mrb[0].mxu0 %v703
        %v1963 = vpop.f32.mrb[0].mxu0
        %v1964 = vadd.f32 0.0, %v1963
        %v1965 = vpop.f32.mrb[0].mxu0
        %1966 = vmatprep.mubr.f32.mxu0 0.0
        %1967 = vmatmul.mubr.f32.gmra.mrb[0].mxu0 %v706
        %v1968 = vpop.f32.mrb[0].mxu0
        %v1969 = vadd.f32 0.0, %v1968
        %v1970 = vpop.f32.mrb[0].mxu0
        %1971 = vmatprep.mubr.f32.mxu0 0.0
        %1972 = vmatmul.mubr.f32.gmra.mrb[0].mxu0 %v709
        %v1973 = vpop.f32.mrb[0].mxu0
        %v1974 = vadd.f32 0.0, %v1973
        %v1975 = vpop.f32.mrb[0].mxu0
        %1976 = vmatprep.mubr.f32.mxu0 0.0
        %1977 = vmatmul.mubr.f32.gmra.mrb[0].mxu0 %v712
        %v1978 = vpop.f32.mrb[0].mxu0
        %v1979 = vadd.f32 0.0, %v1978
        %v1980 = vpop.f32.mrb[0].mxu0
        %1981 = vmatprep.mubr.f32.mxu0 0.0
        %1982 = vmatmul.mubr.f32.gmra.mrb[0].mxu0 %v715
        %v1983 = vpop.f32.mrb[0].mxu0
        %v1984 = vadd.f32 0.0, %v1983
        %v1985 = vpop.f32.mrb[0].mxu0
        %1986 = vmatprep.mubr.f32.mxu0 0.0
        %1987 = vmatmul.mubr.f32.gmra.mrb[0].mxu0 %v718
        %v1988 = vpop.f32.mrb[0].mxu0
        %v1989 = vadd.f32 0.0, %v1988
        %v1990 = vpop.f32.mrb[0].mxu0
        %1991 = vmatprep.mubr.f32.mxu0 0.0
        %1992 = vmatmul.mubr.f32.gmra.mrb[0].mxu0 %v721
        %v1993 = vpop.f32.mrb[0].mxu0
        %v1994 = vadd.f32 0.0, %v1993
        %v1995 = vpop.f32.mrb[0].mxu0
        %1996 = vmatprep.mubr.f32.mxu0 0.0
        %1997 = vmatmul.mubr.f32.gmra.mrb[0].mxu0 %v724
        %v1998 = vpop.f32.mrb[0].mxu0
        %v1999 = vadd.f32 0.0, %v1998
        %v2000 = vpop.f32.mrb[0].mxu0
        %2001 = vmatprep.mubr.f32.mxu0 0.0
        %2002 = vmatmul.mubr.f32.gmra.mrb[0].mxu0 %v727
        %v2003 = vpop.f32.mrb[0].mxu0
        %v2004 = vadd.f32 0.0, %v2003
        %v2005 = vpop.f32.mrb[0].mxu0
        %2006 = vmatprep.mubr.f32.mxu0 0.0
        %2007 = vmatmul.mubr.f32.gmra.mrb[0].mxu0 %v730
        %v2008 = vpop.f32.mrb[0].mxu0
        %v2009 = vadd.f32 0.0, %v2008
        %v2010 = vpop.f32.mrb[0].mxu0
        %2011 = vmatprep.mubr.f32.mxu0 0.0
        %2012 = vmatmul.mubr.f32.gmra.mrb[0].mxu0 %v733
        %v2013 = vpop.f32.mrb[0].mxu0
        %v2014 = vadd.f32 0.0, %v2013
        %v2015 = vpop.f32.mrb[0].mxu0
        %2016 = vmatprep.mubr.f32.mxu0 0.0
        %2017 = vmatmul.mubr.f32.gmra.mrb[0].mxu0 %v736
        %v2018 = vpop.f32.mrb[0].mxu0
        %v2019 = vadd.f32 0.0, %v2018
        %v2020 = vpop.f32.mrb[0].mxu0
        %2021 = vmatprep.mubr.f32.mxu0 0.0
        %2022 = vmatmul.mubr.f32.gmra.mrb[0].mxu0 %v739
        %v2023 = vpop.f32.mrb[0].mxu0
        %v2024 = vadd.f32 0.0, %v2023
        %v2025 = vpop.f32.mrb[0].mxu0
        %2026 = vmatprep.mubr.f32.mxu0 0.0
        %2027 = vmatmul.mubr.f32.gmra.mrb[0].mxu0 %v742
        %v2028 = vpop.f32.mrb[0].mxu0
        %v2029 = vadd.f32 0.0, %v2028
        %v2030 = vpop.f32.mrb[0].mxu0
        %2031 = vmatprep.mubr.f32.mxu0 0.0
        %2032 = vmatmul.mubr.f32.gmra.mrb[0].mxu0 %v745
        %v2033 = vpop.f32.mrb[0].mxu0
        %v2034 = vadd.f32 0.0, %v2033
        %v2035 = vpop.f32.mrb[0].mxu0
        %2036 = vmatprep.mubr.f32.mxu0 0.0
        %2037 = vmatmul.mubr.f32.gmra.mrb[0].mxu0 %v748
        %v2038 = vpop.f32.mrb[0].mxu0
        %v2039 = vadd.f32 0.0, %v2038
        %v2040 = vpop.f32.mrb[0].mxu0
        %2041 = vmatprep.mubr.f32.mxu0 0.0
        %2042 = vmatmul.mubr.f32.gmra.mrb[0].mxu0 %v751
        %v2043 = vpop.f32.mrb[0].mxu0
        %v2044 = vadd.f32 0.0, %v2043
        %v2045 = vpop.f32.mrb[0].mxu0
        %2046 = vmatprep.mubr.f32.mxu0 0.0
        %2047 = vmatmul.mubr.f32.gmra.mrb[0].mxu0 %v754
        %v2048 = vpop.f32.mrb[0].mxu0
        %v2049 = vadd.f32 0.0, %v2048
        %v2050 = vpop.f32.mrb[0].mxu0
        %2051 = vmatprep.mubr.f32.mxu0 0.0
        %2052 = vmatmul.mubr.f32.gmra.mrb[0].mxu0 %v757
        %v2053 = vpop.f32.mrb[0].mxu0
        %v2054 = vadd.f32 0.0, %v2053
        %v2055 = vpop.f32.mrb[0].mxu0
        %2056 = vmatprep.mubr.f32.mxu0 0.0
        %2057 = vmatmul.mubr.f32.gmra.mrb[0].mxu0 %v760
        %v2058 = vpop.f32.mrb[0].mxu0
        %v2059 = vadd.f32 0.0, %v2058
        %v2060 = vpop.f32.mrb[0].mxu0
        %2061 = vmatprep.mubr.f32.mxu0 0.0
        %2062 = vmatmul.mubr.f32.gmra.mrb[0].mxu0 %v763
        %v2063 = vpop.f32.mrb[0].mxu0
        %v2064 = vadd.f32 0.0, %v2063
        %v2065 = vpop.f32.mrb[0].mxu0
        %2066 = vmatprep.mubr.f32.mxu0 0.0
        %2067 = vmatmul.mubr.f32.gmra.mrb[0].mxu0 %v766
        %v2068 = vpop.f32.mrb[0].mxu0
        %v2069 = vadd.f32 0.0, %v2068
        %v2070 = vpop.f32.mrb[0].mxu0
        %2071 = vmatprep.mubr.f32.mxu0 0.0
        %2072 = vmatmul.mubr.f32.gmra.mrb[0].mxu0 %v769
        %v2073 = vpop.f32.mrb[0].mxu0
        %v2074 = vadd.f32 0.0, %v2073
        %v2075 = vpop.f32.mrb[0].mxu0
        %2076 = vmatprep.mubr.f32.mxu0 0.0
        %2077 = vmatmul.mubr.f32.gmra.mrb[0].mxu0 %v772
        %v2078 = vpop.f32.mrb[0].mxu0
        %v2079 = vadd.f32 0.0, %v2078
        %v2080 = vpop.f32.mrb[0].mxu0
        %2081 = vmatprep.mubr.f32.mxu0 0.0
        %2082 = vmatmul.mubr.f32.gmra.mrb[0].mxu0 %v775
        %v2083 = vpop.f32.mrb[0].mxu0
        %v2084 = vadd.f32 0.0, %v2083
        %v2085 = vpop.f32.mrb[0].mxu0
        %2086 = vmatprep.mubr.f32.mxu0 0.0
        %2087 = vmatmul.mubr.f32.gmra.mrb[0].mxu0 %v778
        %v2088 = vpop.f32.mrb[0].mxu0
        %v2089 = vadd.f32 0.0, %v2088
        %v2090 = vpop.f32.mrb[0].mxu0
        %2091 = vmatprep.mubr.f32.mxu0 0.0
        %2092 = vmatmul.mubr.f32.gmra.mrb[0].mxu0 %v781
        %v2093 = vpop.f32.mrb[0].mxu0
        %v2094 = vadd.f32 0.0, %v2093
        %v2095 = vpop.f32.mrb[0].mxu0
        %2096 = vmatprep.mubr.f32.mxu0 0.0
        %2097 = vmatmul.mubr.f32.gmra.mrb[0].mxu0 %v784
        %v2098 = vpop.f32.mrb[0].mxu0
        %v2099 = vadd.f32 0.0, %v2098
        %v2100 = vpop.f32.mrb[0].mxu0
        %2101 = vmatprep.mubr.f32.mxu0 0.0
        %2102 = vmatmul.mubr.f32.gmra.mrb[0].mxu0 %v787
        %v2103 = vpop.f32.mrb[0].mxu0
        %v2104 = vadd.f32 0.0, %v2103
        %v2105 = vpop.f32.mrb[0].mxu0
        %2106 = vmatprep.mubr.f32.mxu0 0.0
        %2107 = vmatmul.mubr.f32.gmra.mrb[0].mxu0 %v790
        %v2108 = vpop.f32.mrb[0].mxu0
        %v2109 = vadd.f32 0.0, %v2108
        %v2110 = vpop.f32.mrb[0].mxu0
        %2111 = vmatprep.mubr.f32.mxu0 0.0
        %2112 = vmatmul.mubr.f32.gmra.mrb[0].mxu0 %v793
        %v2113 = vpop.f32.mrb[0].mxu0
        %v2114 = vadd.f32 0.0, %v2113
        %v2115 = vpop.f32.mrb[0].mxu0
        %2116 = vmatprep.mubr.f32.mxu0 0.0
        %2117 = vmatmul.mubr.f32.gmra.mrb[0].mxu0 %v796
        %v2118 = vpop.f32.mrb[0].mxu0
        %v2119 = vadd.f32 0.0, %v2118
        %v2120 = vpop.f32.mrb[0].mxu0
        %2121 = vmatprep.mubr.f32.mxu0 0.0
        %2122 = vmatmul.mubr.f32.gmra.mrb[0].mxu0 %v799
        %v2123 = vpop.f32.mrb[0].mxu0
        %v2124 = vadd.f32 0.0, %v2123
        %v2125 = vpop.f32.mrb[0].mxu0
        %2126 = vmatprep.mubr.f32.mxu0 0.0
        %2127 = vmatmul.mubr.f32.gmra.mrb[0].mxu0 %v802
        %v2128 = vpop.f32.mrb[0].mxu0
        %v2129 = vadd.f32 0.0, %v2128
        %v2130 = vpop.f32.mrb[0].mxu0
        %2131 = vmatprep.mubr.f32.mxu0 0.0
        %2132 = vmatmul.mubr.f32.gmra.mrb[0].mxu0 %v805
        %v2133 = vpop.f32.mrb[0].mxu0
        %v2134 = vadd.f32 0.0, %v2133
        %v2135 = vpop.f32.mrb[0].mxu0
        %2136 = vmatprep.mubr.f32.mxu0 0.0
        %2137 = vmatmul.mubr.f32.gmra.mrb[0].mxu0 %v808
        %v2138 = vpop.f32.mrb[0].mxu0
        %v2139 = vadd.f32 0.0, %v2138
        %v2140 = vpop.f32.mrb[0].mxu0
        %2141 = vmatprep.mubr.f32.mxu0 0.0
        %2142 = vmatmul.mubr.f32.gmra.mrb[0].mxu0 %v811
        %v2143 = vpop.f32.mrb[0].mxu0
        %v2144 = vadd.f32 0.0, %v2143
        %v2145 = vpop.f32.mrb[0].mxu0
        %2146 = vmatprep.mubr.f32.mxu0 0.0
        %2147 = vmatmul.mubr.f32.gmra.mrb[0].mxu0 %v814
        %v2148 = vpop.f32.mrb[0].mxu0
        %v2149 = vadd.f32 0.0, %v2148
        %v2150 = vpop.f32.mrb[0].mxu0
        %2151 = vmatprep.mubr.f32.mxu0 0.0
        %2152 = vmatmul.mubr.f32.gmra.mrb[0].mxu0 %v817
        %v2153 = vpop.f32.mrb[0].mxu0
        %v2154 = vadd.f32 0.0, %v2153
        %v2155 = vpop.f32.mrb[0].mxu0
        %2156 = vmatprep.mubr.f32.mxu0 0.0
        %2157 = vmatmul.mubr.f32.gmra.mrb[0].mxu0 %v820
        %v2158 = vpop.f32.mrb[0].mxu0
        %v2159 = vadd.f32 0.0, %v2158
        %v2160 = vpop.f32.mrb[0].mxu0
        %2161 = vmatprep.mubr.f32.mxu0 0.0
        %2162 = vmatmul.mubr.f32.gmra.mrb[0].mxu0 %v823
        %v2163 = vpop.f32.mrb[0].mxu0
        %v2164 = vadd.f32 0.0, %v2163
        %v2165 = vpop.f32.mrb[0].mxu0
        %2166 = vmatprep.mubr.f32.mxu0 0.0
        %2167 = vmatmul.mubr.f32.gmra.mrb[0].mxu0 %v826
        %v2168 = vpop.f32.mrb[0].mxu0
        %v2169 = vadd.f32 0.0, %v2168
        %v2170 = vpop.f32.mrb[0].mxu0
        %2171 = vdwg.mxu0
        %v2172 = vlaneseq
        %v2173 = vshrl.u32 %v2172, 7
        %v2174 = vsub.s32 0, %v2173
        %v2175 = vrot.slane %v1612, %v2174
        %v2176 = vmul.f32 %v1814, %v2175
        %v2177 = vmul.f32 %v1819, %v2175
        %v2178 = vmul.f32 %v1824, %v2175
        %v2179 = vmul.f32 %v1829, %v2175
        %v2180 = vmul.f32 %v1834, %v2175
        %v2181 = vmul.f32 %v1839, %v2175
        %v2182 = vmul.f32 %v1844, %v2175
        %v2183 = vmul.f32 %v1849, %v2175
        %v2184 = vlaneseq
        %v2185 = vshrl.u32 %v2184, 7
        %v2186 = vsub.s32 1, %v2185
        %v2187 = vrot.slane %v1612, %v2186
        %v2188 = vmul.f32 %v1854, %v2187
        %v2189 = vmul.f32 %v1859, %v2187
        %v2190 = vmul.f32 %v1864, %v2187
        %v2191 = vmul.f32 %v1869, %v2187
        %v2192 = vmul.f32 %v1874, %v2187
        %v2193 = vmul.f32 %v1879, %v2187
        %v2194 = vmul.f32 %v1884, %v2187
        %v2195 = vmul.f32 %v1889, %v2187
        %v2196 = vadd.f32 %v2176, %v2188
        %v2197 = vadd.f32 %v2177, %v2189
        %v2198 = vadd.f32 %v2178, %v2190
        %v2199 = vadd.f32 %v2179, %v2191
        %v2200 = vadd.f32 %v2180, %v2192
        %v2201 = vadd.f32 %v2181, %v2193
        %v2202 = vadd.f32 %v2182, %v2194
        %v2203 = vadd.f32 %v2183, %v2195
        %v2204 = vlaneseq
        %v2205 = vshrl.u32 %v2204, 7
        %v2206 = vsub.s32 2, %v2205
        %v2207 = vrot.slane %v1612, %v2206
        %v2208 = vmul.f32 %v1894, %v2207
        %v2209 = vmul.f32 %v1899, %v2207
        %v2210 = vmul.f32 %v1904, %v2207
        %v2211 = vmul.f32 %v1909, %v2207
        %v2212 = vmul.f32 %v1914, %v2207
        %v2213 = vmul.f32 %v1919, %v2207
        %v2214 = vmul.f32 %v1924, %v2207
        %v2215 = vmul.f32 %v1929, %v2207
        %v2216 = vadd.f32 %v2196, %v2208
        %v2217 = vadd.f32 %v2197, %v2209
        %v2218 = vadd.f32 %v2198, %v2210
        %v2219 = vadd.f32 %v2199, %v2211
        %v2220 = vadd.f32 %v2200, %v2212
        %v2221 = vadd.f32 %v2201, %v2213
        %v2222 = vadd.f32 %v2202, %v2214
        %v2223 = vadd.f32 %v2203, %v2215
        %v2224 = vlaneseq
        %v2225 = vshrl.u32 %v2224, 7
        %v2226 = vsub.s32 3, %v2225
        %v2227 = vrot.slane %v1612, %v2226
        %v2228 = vmul.f32 %v1934, %v2227
        %v2229 = vmul.f32 %v1939, %v2227
        %v2230 = vmul.f32 %v1944, %v2227
        %v2231 = vmul.f32 %v1949, %v2227
        %v2232 = vmul.f32 %v1954, %v2227
        %v2233 = vmul.f32 %v1959, %v2227
        %v2234 = vmul.f32 %v1964, %v2227
        %v2235 = vmul.f32 %v1969, %v2227
        %v2236 = vadd.f32 %v2216, %v2228
        %v2237 = vadd.f32 %v2217, %v2229
        %v2238 = vadd.f32 %v2218, %v2230
        %v2239 = vadd.f32 %v2219, %v2231
        %v2240 = vadd.f32 %v2220, %v2232
        %v2241 = vadd.f32 %v2221, %v2233
        %v2242 = vadd.f32 %v2222, %v2234
        %v2243 = vadd.f32 %v2223, %v2235
        %v2244 = vlaneseq
        %v2245 = vshrl.u32 %v2244, 7
        %v2246 = vsub.s32 4, %v2245
        %v2247 = vrot.slane %v1612, %v2246
        %v2248 = vmul.f32 %v1974, %v2247
        %v2249 = vmul.f32 %v1979, %v2247
        %v2250 = vmul.f32 %v1984, %v2247
        %v2251 = vmul.f32 %v1989, %v2247
        %v2252 = vmul.f32 %v1994, %v2247
        %v2253 = vmul.f32 %v1999, %v2247
        %v2254 = vmul.f32 %v2004, %v2247
        %v2255 = vmul.f32 %v2009, %v2247
        %v2256 = vadd.f32 %v2236, %v2248
        %v2257 = vadd.f32 %v2237, %v2249
        %v2258 = vadd.f32 %v2238, %v2250
        %v2259 = vadd.f32 %v2239, %v2251
        %v2260 = vadd.f32 %v2240, %v2252
        %v2261 = vadd.f32 %v2241, %v2253
        %v2262 = vadd.f32 %v2242, %v2254
        %v2263 = vadd.f32 %v2243, %v2255
        %v2264 = vlaneseq
        %v2265 = vshrl.u32 %v2264, 7
        %v2266 = vsub.s32 5, %v2265
        %v2267 = vrot.slane %v1612, %v2266
        %v2268 = vmul.f32 %v2014, %v2267
        %v2269 = vmul.f32 %v2019, %v2267
        %v2270 = vmul.f32 %v2024, %v2267
        %v2271 = vmul.f32 %v2029, %v2267
        %v2272 = vmul.f32 %v2034, %v2267
        %v2273 = vmul.f32 %v2039, %v2267
        %v2274 = vmul.f32 %v2044, %v2267
        %v2275 = vmul.f32 %v2049, %v2267
        %v2276 = vadd.f32 %v2256, %v2268
        %v2277 = vadd.f32 %v2257, %v2269
        %v2278 = vadd.f32 %v2258, %v2270
        %v2279 = vadd.f32 %v2259, %v2271
        %v2280 = vadd.f32 %v2260, %v2272
        %v2281 = vadd.f32 %v2261, %v2273
        %v2282 = vadd.f32 %v2262, %v2274
        %v2283 = vadd.f32 %v2263, %v2275
        %v2284 = vlaneseq
        %v2285 = vshrl.u32 %v2284, 7
        %v2286 = vsub.s32 6, %v2285
        %v2287 = vrot.slane %v1612, %v2286
        %v2288 = vmul.f32 %v2054, %v2287
        %v2289 = vmul.f32 %v2059, %v2287
        %v2290 = vmul.f32 %v2064, %v2287
        %v2291 = vmul.f32 %v2069, %v2287
        %v2292 = vmul.f32 %v2074, %v2287
        %v2293 = vmul.f32 %v2079, %v2287
        %v2294 = vmul.f32 %v2084, %v2287
        %v2295 = vmul.f32 %v2089, %v2287
        %v2296 = vadd.f32 %v2276, %v2288
        %v2297 = vadd.f32 %v2277, %v2289
        %v2298 = vadd.f32 %v2278, %v2290
        %v2299 = vadd.f32 %v2279, %v2291
        %v2300 = vadd.f32 %v2280, %v2292
        %v2301 = vadd.f32 %v2281, %v2293
        %v2302 = vadd.f32 %v2282, %v2294
        %v2303 = vadd.f32 %v2283, %v2295
        %v2304 = vlaneseq
        %v2305 = vshrl.u32 %v2304, 7
        %v2306 = vsub.s32 7, %v2305
        %v2307 = vrot.slane %v1612, %v2306
        %v2308 = vmul.f32 %v2094, %v2307
        %v2309 = vmul.f32 %v2099, %v2307
        %v2310 = vmul.f32 %v2104, %v2307
        %v2311 = vmul.f32 %v2109, %v2307
        %v2312 = vmul.f32 %v2114, %v2307
        %v2313 = vmul.f32 %v2119, %v2307
        %v2314 = vmul.f32 %v2124, %v2307
        %v2315 = vmul.f32 %v2129, %v2307
        %v2316 = vadd.f32 %v2296, %v2308
        %v2317 = vadd.f32 %v2297, %v2309
        %v2318 = vadd.f32 %v2298, %v2310
        %v2319 = vadd.f32 %v2299, %v2311
        %v2320 = vadd.f32 %v2300, %v2312
        %v2321 = vadd.f32 %v2301, %v2313
        %v2322 = vadd.f32 %v2302, %v2314
        %v2323 = vadd.f32 %v2303, %v2315
        %v2324 = vlaneseq
        %v2325 = vshrl.u32 %v2324, 7
        %v2326 = vsub.s32 0, %v2325
        %v2327 = vrot.slane %v1613, %v2326
        %v2328 = vmul.f32 %v2134, %v2327
        %v2329 = vmul.f32 %v2139, %v2327
        %v2330 = vmul.f32 %v2144, %v2327
        %v2331 = vmul.f32 %v2149, %v2327
        %v2332 = vmul.f32 %v2154, %v2327
        %v2333 = vmul.f32 %v2159, %v2327
        %v2334 = vmul.f32 %v2164, %v2327
        %v2335 = vmul.f32 %v2169, %v2327
        %v2336 = vadd.f32 %v2316, %v2328
        %v2337 = vadd.f32 %v2317, %v2329
        %v2338 = vadd.f32 %v2318, %v2330
        %v2339 = vadd.f32 %v2319, %v2331
        %v2340 = vadd.f32 %v2320, %v2332
        %v2341 = vadd.f32 %v2321, %v2333
        %v2342 = vadd.f32 %v2322, %v2334
        %v2343 = vadd.f32 %v2323, %v2335
        %v2344 = vld [vmem:[#allocation6] sm:$0x1]
        %v2346 = vlaneseq
        %v2347 = vshrl.u32 %v2346, 7
        %v2348 = vsub.s32 0, %v2347
        %v2349 = vrot.slane %v2344, %v2348
        %2350 = vrot.lane.b32.xlu0 %v2349, 32
        %v2351 = vpop.permute.xlu0 %2350
        %v2353 = vadd.f32 %v2336, %v2351
        %v2354 = vadd.f32 %v2337, %v2351
        %v2355 = vadd.f32 %v2338, %v2351
        %v2356 = vadd.f32 %v2339, %v2351
        %v2357 = vadd.f32 %v2340, %v2351
        %v2358 = vadd.f32 %v2341, %v2351
        %v2359 = vadd.f32 %v2342, %v2351
        %v2360 = vadd.f32 %v2343, %v2351
        %vm2361 = vcmask 392448
        %v2362 = vsel %vm2361, %v2353, -inf
        %v2363 = vsel %vm2361, %v2354, -inf
        %v2364 = vsel %vm2361, %v2355, -inf
        %v2365 = vsel %vm2361, %v2356, -inf
        %v2366 = vsel %vm2361, %v2357, -inf
        %v2367 = vmax.f32 %v2362, %v2366
        %v2368 = vsel %vm2361, %v2358, -inf
        %v2369 = vmax.f32 %v2363, %v2368
        %v2370 = vsel %vm2361, %v2359, -inf
        %v2371 = vmax.f32 %v2364, %v2370
        %v2372 = vsel %vm2361, %v2360, -inf
        %v2373 = vmax.f32 %v2365, %v2372
        %v2374 = vmax.f32 %v2367, %v2369
        %v2375 = vmax.f32 %v2371, %v2373
        %v2376 = vmax.f32 %v2374, %v2375
        %v2377 = vrot.slane %v2376, 4
        %v2378 = vmax.f32 %v2376, %v2377
        %v2379 = vrot.slane %v2378, 2
        %v2380 = vmax.f32 %v2378, %v2379
        %v2381 = vrot.slane %v2380, 1
        %v2382 = vmax.f32 %v2380, %v2381
        %v2383 = vsub.f32 %v2353, %v2382
        %v2384 = vsub.f32 %v2354, %v2382
        %v2385 = vsub.f32 %v2355, %v2382
        %v2386 = vsub.f32 %v2356, %v2382
        %v2387 = vsub.f32 %v2357, %v2382
        %v2388 = vsub.f32 %v2358, %v2382
        %v2389 = vsub.f32 %v2359, %v2382
        %v2390 = vsub.f32 %v2360, %v2382
        %v2391 = vmul.f32 %v2383, 1.442695
        %v2392 = vpow.pop %v2391
        %v2393 = vmul.f32 %v2384, 1.442695
        %v2394 = vpow.pop %v2393
        %v2395 = vmul.f32 %v2385, 1.442695
        %v2396 = vpow.pop %v2395
        %v2397 = vmul.f32 %v2386, 1.442695
        %v2398 = vpow.pop %v2397
        %v2399 = vmul.f32 %v2387, 1.442695
        %v2400 = vpow.pop %v2399
        %v2401 = vmul.f32 %v2388, 1.442695
        %v2402 = vpow.pop %v2401
        %v2403 = vmul.f32 %v2389, 1.442695
        %v2404 = vpow.pop %v2403
        %v2405 = vmul.f32 %v2390, 1.442695
        %v2406 = vpow.pop %v2405
        %v2407 = vsel %vm2361, %v2392, 0.0
        %v2408 = vsel %vm2361, %v2394, 0.0
        %v2409 = vadd.f32 %v2407, %v2408
        %v2410 = vsel %vm2361, %v2396, 0.0
        %v2411 = vadd.f32 %v2409, %v2410
        %v2412 = vsel %vm2361, %v2398, 0.0
        %v2413 = vadd.f32 %v2411, %v2412
        %v2414 = vsel %vm2361, %v2400, 0.0
        %v2415 = vadd.f32 %v2413, %v2414
        %v2416 = vsel %vm2361, %v2402, 0.0
        %v2417 = vadd.f32 %v2415, %v2416
        %v2418 = vsel %vm2361, %v2404, 0.0
        %v2419 = vadd.f32 %v2417, %v2418
        %v2420 = vsel %vm2361, %v2406, 0.0
        %v2421 = vadd.f32 %v2419, %v2420
        %v2422 = vrot.slane %v2421, 4
        %v2423 = vadd.f32 %v2421, %v2422
        %v2424 = vrot.slane %v2423, 2
        %v2425 = vadd.f32 %v2423, %v2424
        %v2426 = vrot.slane %v2425, 1
        %v2427 = vadd.f32 %v2425, %v2426
        %v2428 = vrcp.pop %v2427
        %v2429 = vmul.f32 %v2392, %v2428
        %v2430 = vmul.f32 %v2394, %v2428
        %v2431 = vmul.f32 %v2396, %v2428
        %v2432 = vmul.f32 %v2398, %v2428
        %v2433 = vmul.f32 %v2400, %v2428
        %v2434 = vmul.f32 %v2402, %v2428
        %v2435 = vmul.f32 %v2404, %v2428
        %v2436 = vmul.f32 %v2406, %v2428
        %2445 = vrot.lane.b32.xlu0 %v2336, 32
        %v2446 = vpop.permute.xlu0 %2445
        %2447 = vrot.lane.b32.xlu0 %v2337, 32
        %v2448 = vpop.permute.xlu0 %2447
        %2449 = vrot.lane.b32.xlu0 %v2338, 32
        %v2450 = vpop.permute.xlu0 %2449
        %2451 = vrot.lane.b32.xlu0 %v2339, 32
        %v2452 = vpop.permute.xlu0 %2451
        %2453 = vrot.lane.b32.xlu0 %v2340, 32
        %v2454 = vpop.permute.xlu0 %2453
        %2455 = vrot.lane.b32.xlu0 %v2341, 32
        %v2456 = vpop.permute.xlu0 %2455
        %2457 = vrot.lane.b32.xlu0 %v2342, 32
        %v2458 = vpop.permute.xlu0 %2457
        %2459 = vrot.lane.b32.xlu0 %v2343, 32
        %v2460 = vpop.permute.xlu0 %2459
        %v2469 = vmul.f32 %v2429, %v2446
        %v2470 = vmul.f32 %v2430, %v2448
        %v2471 = vmul.f32 %v2431, %v2450
        %v2472 = vmul.f32 %v2432, %v2452
        %v2473 = vmul.f32 %v2433, %v2454
        %v2474 = vmul.f32 %v2434, %v2456
        %v2475 = vmul.f32 %v2435, %v2458
        %v2476 = vmul.f32 %v2436, %v2460
        %2485 = vrot.lane.b32.xlu0 %v2469, 96
        %v2486 = vpop.permute.xlu0 %2485
        %2487 = vrot.lane.b32.xlu0 %v2470, 96
        %v2488 = vpop.permute.xlu0 %2487
        %2489 = vrot.lane.b32.xlu0 %v2471, 96
        %v2490 = vpop.permute.xlu0 %2489
        %2491 = vrot.lane.b32.xlu0 %v2472, 96
        %v2492 = vpop.permute.xlu0 %2491
        %2493 = vrot.lane.b32.xlu0 %v2473, 96
        %v2494 = vpop.permute.xlu0 %2493
        %2495 = vrot.lane.b32.xlu0 %v2474, 96
        %v2496 = vpop.permute.xlu0 %2495
        %2497 = vrot.lane.b32.xlu0 %v2475, 96
        %v2498 = vpop.permute.xlu0 %2497
        %2499 = vrot.lane.b32.xlu0 %v2476, 96
        %v2500 = vpop.permute.xlu0 %2499
        %2509 = vxpose.xlu0.b32.start [1/16] %v2486, 128
        %2510 = vxpose.xlu0.b32.cont [2/16] %v2488, 128
        %2511 = vxpose.xlu0.b32.cont [3/16] %v2490, 128
        %2512 = vxpose.xlu0.b32.cont [4/16] %v2492, 128
        %2513 = vxpose.xlu0.b32.cont [5/16] %v2494, 128
        %2514 = vxpose.xlu0.b32.cont [6/16] %v2496, 128
        %2515 = vxpose.xlu0.b32.cont [7/16] %v2498, 128
        %2516 = vxpose.xlu0.b32.cont [8/16] %v2500, 128
        %2517 = vxpose.xlu0.b32.cont [9/16] 0.0, 128
        %2518 = vxpose.xlu0.b32.cont [10/16] 0.0, 128
        %2519 = vxpose.xlu0.b32.cont [11/16] 0.0, 128
        %2520 = vxpose.xlu0.b32.cont [12/16] 0.0, 128
        %2521 = vxpose.xlu0.b32.cont [13/16] 0.0, 128
        %2522 = vxpose.xlu0.b32.cont [14/16] 0.0, 128
        %2523 = vxpose.xlu0.b32.cont [15/16] 0.0, 128
        %2524 = vxpose.xlu0.b32.end [16/16] 0.0, 128
        %v2525 = vpop.trf.xlu0
        %v2526 = vpop.trf.xlu0
        %v2527 = vpop.trf.xlu0
        %v2528 = vpop.trf.xlu0
        %v2529 = vpop.trf.xlu0
        %v2530 = vpop.trf.xlu0
        %v2531 = vpop.trf.xlu0
        %v2532 = vpop.trf.xlu0
        %v2533 = vpop.trf.xlu0
        %v2534 = vpop.trf.xlu0
        %v2535 = vpop.trf.xlu0
        %v2536 = vpop.trf.xlu0
        %v2537 = vpop.trf.xlu0
        %v2538 = vpop.trf.xlu0
        %v2539 = vpop.trf.xlu0
        %v2540 = vpop.trf.xlu0
        %v2542 = vsel %vm611, %v2525, 0
        %v2545 = vsel %vm611, %v2526, 0
        %2547 = vmatprep.subr.mxu0 0.0
        %2548 = vmatpush1.msra.mxu0 %v1604
        %2549 = vmatprep.subr.mxu0 0.0
        %2550 = vmatpush1.msra.mxu0 %v1605
        %2551 = vmatprep.subr.mxu0 0.0
        %2552 = vmatpush1.msra.mxu0 %v1606
        %2553 = vmatprep.subr.mxu0 0.0
        %2554 = vmatpush1.msra.mxu0 %v1607
        %2555 = vmatprep.subr.mxu0 0.0
        %2556 = vmatpush1.msra.mxu0 %v1608
        %2557 = vmatprep.subr.mxu0 0.0
        %2558 = vmatpush1.msra.mxu0 %v1609
        %2559 = vmatprep.subr.mxu0 0.0
        %2560 = vmatpush1.msra.mxu0 %v1610
        %2561 = vmatprep.subr.mxu0 0.0
        %2562 = vmatpush1.msra.mxu0 %v1611
        %2563 = vmatprep.subr.mxu0 0.0
        %2564 = vmatpush1.msra.mxu0 0.0
        %2565 = vmatprep.subr.mxu0 0.0
        %2566 = vmatpush1.msra.mxu0 0.0
        %2567 = vmatprep.subr.mxu0 0.0
        %2568 = vmatpush1.msra.mxu0 0.0
        %2569 = vmatprep.subr.mxu0 0.0
        %2570 = vmatpush1.msra.mxu0 0.0
        %2571 = vmatprep.subr.mxu0 0.0
        %2572 = vmatpush1.msra.mxu0 0.0
        %2573 = vmatprep.subr.mxu0 0.0
        %2574 = vmatpush1.msra.mxu0 0.0
        %2575 = vmatprep.subr.mxu0 0.0
        %2576 = vmatpush1.msra.mxu0 0.0
        %2577 = vmatprep.subr.mxu0 0.0
        %2578 = vmatpush1.msra.mxu0 0.0
        %2579 = vmatprep.subr.mxu0 0.0
        %2580 = vmatpush1.msra.mxu0 0.0
        %2581 = vmatprep.subr.mxu0 0.0
        %2582 = vmatpush1.msra.mxu0 0.0
        %2583 = vmatprep.subr.mxu0 0.0
        %2584 = vmatpush1.msra.mxu0 0.0
        %2585 = vmatprep.subr.mxu0 0.0
        %2586 = vmatpush1.msra.mxu0 0.0
        %2587 = vmatprep.subr.mxu0 0.0
        %2588 = vmatpush1.msra.mxu0 0.0
        %2589 = vmatprep.subr.mxu0 0.0
        %2590 = vmatpush1.msra.mxu0 0.0
        %2591 = vmatprep.subr.mxu0 0.0
        %2592 = vmatpush1.msra.mxu0 0.0
        %2593 = vmatprep.subr.mxu0 0.0
        %2594 = vmatpush1.msra.mxu0 0.0
        %2595 = vmatprep.subr.mxu0 0.0
        %2596 = vmatpush1.msra.mxu0 0.0
        %2597 = vmatprep.subr.mxu0 0.0
        %2598 = vmatpush1.msra.mxu0 0.0
        %2599 = vmatprep.subr.mxu0 0.0
        %2600 = vmatpush1.msra.mxu0 0.0
        %2601 = vmatprep.subr.mxu0 0.0
        %2602 = vmatpush1.msra.mxu0 0.0
        %2603 = vmatprep.subr.mxu0 0.0
        %2604 = vmatpush1.msra.mxu0 0.0
        %2605 = vmatprep.subr.mxu0 0.0
        %2606 = vmatpush1.msra.mxu0 0.0
        %2607 = vmatprep.subr.mxu0 0.0
        %2608 = vmatpush1.msra.mxu0 0.0
        %2609 = vmatprep.subr.mxu0 0.0
        %2610 = vmatpush1.msra.mxu0 0.0
        %2611 = vmatprep.mubr.f32.mxu0 0.0
        %2612 = vmatmul.mubr.f32.gmra.mrb[0].mxu0 %v2542
        %v2613 = vpop.f32.mrb[0].mxu0
        %v2614 = vadd.f32 0.0, %v2613
        %v2615 = vpop.f32.mrb[0].mxu0
        %2616 = vmatprep.mubr.f32.mxu0 0.0
        %2617 = vmatmul.mubr.f32.gmra.mrb[0].mxu0 %v2545
        %v2618 = vpop.f32.mrb[0].mxu0
        %v2619 = vadd.f32 0.0, %v2618
        %v2620 = vpop.f32.mrb[0].mxu0
        %2621 = vdwg.mxu0
        %v2622 = vld [vmem:[%s6] sm:$0xff]
        %v2623 = vld [vmem:[%s6 + $0x8] sm:$0xff]
        %v2624 = vld [vmem:[%s6 + $0x10] sm:$0xff]
        %v2625 = vld [vmem:[%s6 + $0x18] sm:$0xff]
        %v2627 = vsel %vm1482, %v2614, 0
        %v2630 = vsel %vm1482, %v2619, 0
        %2632 = vmatprep.subr.mxu0 0.0
        %2633 = vmatpush1.msra.mxu0 %v2622
        %2634 = vmatprep.subr.mxu0 0.0
        %2635 = vmatpush1.msra.mxu0 %v2623
        %2636 = vmatprep.subr.mxu0 0.0
        %2637 = vmatpush1.msra.mxu0 %v2624
        %2638 = vmatprep.subr.mxu0 0.0
        %2639 = vmatpush1.msra.mxu0 %v2625
        %2640 = vmatprep.subr.mxu0 0.0
        %2641 = vmatpush1.msra.mxu0 0.0
        %2642 = vmatprep.subr.mxu0 0.0
        %2643 = vmatpush1.msra.mxu0 0.0
        %2644 = vmatprep.subr.mxu0 0.0
        %2645 = vmatpush1.msra.mxu0 0.0
        %2646 = vmatprep.subr.mxu0 0.0
        %2647 = vmatpush1.msra.mxu0 0.0
        %2648 = vmatprep.subr.mxu0 0.0
        %2649 = vmatpush1.msra.mxu0 0.0
        %2650 = vmatprep.subr.mxu0 0.0
        %2651 = vmatpush1.msra.mxu0 0.0
        %2652 = vmatprep.subr.mxu0 0.0
        %2653 = vmatpush1.msra.mxu0 0.0
        %2654 = vmatprep.subr.mxu0 0.0
        %2655 = vmatpush1.msra.mxu0 0.0
        %2656 = vmatprep.subr.mxu0 0.0
        %2657 = vmatpush1.msra.mxu0 0.0
        %2658 = vmatprep.subr.mxu0 0.0
        %2659 = vmatpush1.msra.mxu0 0.0
        %2660 = vmatprep.subr.mxu0 0.0
        %2661 = vmatpush1.msra.mxu0 0.0
        %2662 = vmatprep.subr.mxu0 0.0
        %2663 = vmatpush1.msra.mxu0 0.0
        %2664 = vmatprep.subr.mxu0 0.0
        %2665 = vmatpush1.msra.mxu0 0.0
        %2666 = vmatprep.subr.mxu0 0.0
        %2667 = vmatpush1.msra.mxu0 0.0
        %2668 = vmatprep.subr.mxu0 0.0
        %2669 = vmatpush1.msra.mxu0 0.0
        %2670 = vmatprep.subr.mxu0 0.0
        %2671 = vmatpush1.msra.mxu0 0.0
        %2672 = vmatprep.subr.mxu0 0.0
        %2673 = vmatpush1.msra.mxu0 0.0
        %2674 = vmatprep.subr.mxu0 0.0
        %2675 = vmatpush1.msra.mxu0 0.0
        %2676 = vmatprep.subr.mxu0 0.0
        %2677 = vmatpush1.msra.mxu0 0.0
        %2678 = vmatprep.subr.mxu0 0.0
        %2679 = vmatpush1.msra.mxu0 0.0
        %2680 = vmatprep.subr.mxu0 0.0
        %2681 = vmatpush1.msra.mxu0 0.0
        %2682 = vmatprep.subr.mxu0 0.0
        %2683 = vmatpush1.msra.mxu0 0.0
        %2684 = vmatprep.subr.mxu0 0.0
        %2685 = vmatpush1.msra.mxu0 0.0
        %2686 = vmatprep.subr.mxu0 0.0
        %2687 = vmatpush1.msra.mxu0 0.0
        %2688 = vmatprep.subr.mxu0 0.0
        %2689 = vmatpush1.msra.mxu0 0.0
        %2690 = vmatprep.subr.mxu0 0.0
        %2691 = vmatpush1.msra.mxu0 0.0
        %2692 = vmatprep.subr.mxu0 0.0
        %2693 = vmatpush1.msra.mxu0 0.0
        %2694 = vmatprep.subr.mxu0 0.0
        %2695 = vmatpush1.msra.mxu0 0.0
        %2696 = vmatprep.mubr.f32.mxu0 0.0
        %2697 = vmatmul.mubr.f32.gmra.mrb[0].mxu0 %v2627
        %v2698 = vpop.f32.mrb[0].mxu0
        %v2699 = vadd.f32 0.0, %v2698
        %v2700 = vpop.f32.mrb[0].mxu0
        %2701 = vmatprep.mubr.f32.mxu0 0.0
        %2702 = vmatmul.mubr.f32.gmra.mrb[0].mxu0 %v2630
        %v2703 = vpop.f32.mrb[0].mxu0
        %v2704 = vadd.f32 0.0, %v2703
        %v2705 = vpop.f32.mrb[0].mxu0
        %2706 = vdwg.mxu0
        %v2707 = vld [vmem:[%s7] sm:$0xff]
        %v2708 = vld [vmem:[%s7 + $0x8] sm:$0xff]
        %v2709 = vld [vmem:[%s7 + $0x10] sm:$0xff]
        %v2710 = vld [vmem:[%s7 + $0x18] sm:$0xff]
        %2711 = vmatprep.subr.mxu0 0.0
        %2712 = vmatpush1.msra.mxu0 %v2707
        %2713 = vmatprep.subr.mxu0 0.0
        %2714 = vmatpush1.msra.mxu0 %v2708
        %2715 = vmatprep.subr.mxu0 0.0
        %2716 = vmatpush1.msra.mxu0 %v2709
        %2717 = vmatprep.subr.mxu0 0.0
        %2718 = vmatpush1.msra.mxu0 %v2710
        %2719 = vmatprep.subr.mxu0 0.0
        %2720 = vmatpush1.msra.mxu0 0.0
        %2721 = vmatprep.subr.mxu0 0.0
        %2722 = vmatpush1.msra.mxu0 0.0
        %2723 = vmatprep.subr.mxu0 0.0
        %2724 = vmatpush1.msra.mxu0 0.0
        %2725 = vmatprep.subr.mxu0 0.0
        %2726 = vmatpush1.msra.mxu0 0.0
        %2727 = vmatprep.subr.mxu0 0.0
        %2728 = vmatpush1.msra.mxu0 0.0
        %2729 = vmatprep.subr.mxu0 0.0
        %2730 = vmatpush1.msra.mxu0 0.0
        %2731 = vmatprep.subr.mxu0 0.0
        %2732 = vmatpush1.msra.mxu0 0.0
        %2733 = vmatprep.subr.mxu0 0.0
        %2734 = vmatpush1.msra.mxu0 0.0
        %2735 = vmatprep.subr.mxu0 0.0
        %2736 = vmatpush1.msra.mxu0 0.0
        %2737 = vmatprep.subr.mxu0 0.0
        %2738 = vmatpush1.msra.mxu0 0.0
        %2739 = vmatprep.subr.mxu0 0.0
        %2740 = vmatpush1.msra.mxu0 0.0
        %2741 = vmatprep.subr.mxu0 0.0
        %2742 = vmatpush1.msra.mxu0 0.0
        %2743 = vmatprep.subr.mxu0 0.0
        %2744 = vmatpush1.msra.mxu0 0.0
        %2745 = vmatprep.subr.mxu0 0.0
        %2746 = vmatpush1.msra.mxu0 0.0
        %2747 = vmatprep.subr.mxu0 0.0
        %2748 = vmatpush1.msra.mxu0 0.0
        %2749 = vmatprep.subr.mxu0 0.0
        %2750 = vmatpush1.msra.mxu0 0.0
        %2751 = vmatprep.subr.mxu0 0.0
        %2752 = vmatpush1.msra.mxu0 0.0
        %2753 = vmatprep.subr.mxu0 0.0
        %2754 = vmatpush1.msra.mxu0 0.0
        %2755 = vmatprep.subr.mxu0 0.0
        %2756 = vmatpush1.msra.mxu0 0.0
        %2757 = vmatprep.subr.mxu0 0.0
        %2758 = vmatpush1.msra.mxu0 0.0
        %2759 = vmatprep.subr.mxu0 0.0
        %2760 = vmatpush1.msra.mxu0 0.0
        %2761 = vmatprep.subr.mxu0 0.0
        %2762 = vmatpush1.msra.mxu0 0.0
        %2763 = vmatprep.subr.mxu0 0.0
        %2764 = vmatpush1.msra.mxu0 0.0
        %2765 = vmatprep.subr.mxu0 0.0
        %2766 = vmatpush1.msra.mxu0 0.0
        %2767 = vmatprep.subr.mxu0 0.0
        %2768 = vmatpush1.msra.mxu0 0.0
        %2769 = vmatprep.subr.mxu0 0.0
        %2770 = vmatpush1.msra.mxu0 0.0
        %2771 = vmatprep.subr.mxu0 0.0
        %2772 = vmatpush1.msra.mxu0 0.0
        %2773 = vmatprep.subr.mxu0 0.0
        %2774 = vmatpush1.msra.mxu0 0.0
        %2775 = vmatprep.mubr.f32.mxu0 0.0
        %2776 = vmatmul.mubr.f32.gmra.mrb[0].mxu0 %v2627
        %v2777 = vpop.f32.mrb[0].mxu0
        %v2778 = vadd.f32 0.0, %v2777
        %v2779 = vpop.f32.mrb[0].mxu0
        %2780 = vmatprep.mubr.f32.mxu0 0.0
        %2781 = vmatmul.mubr.f32.gmra.mrb[0].mxu0 %v2630
        %v2782 = vpop.f32.mrb[0].mxu0
        %v2783 = vadd.f32 0.0, %v2782
        %v2784 = vpop.f32.mrb[0].mxu0
        %2785 = vdwg.mxu0
        %s2786 = sld [smem:[#allocation8]]
        %v2787 = vxor.u32 %v2778, 2147483648
        %v2788 = vxor.u32 %v2783, 2147483648
        %v2789 = vmul.f32 %v2787, 1.442695
        %v2790 = vpow.pop %v2789
        %v2791 = vmul.f32 %v2788, 1.442695
        %v2792 = vpow.pop %v2791
        %v2793 = vadd.f32 %v2790, 1.0
        %v2794 = vadd.f32 %v2792, 1.0
        %v2795 = vrcp.pop %v2793
        %v2796 = vmul.f32 1.0, %v2795
        %v2797 = vrcp.pop %v2794
        %v2798 = vmul.f32 1.0, %v2797
        %v2799 = vmul.f32 %v2778, %v2796
        %v2800 = vmul.f32 %v2783, %v2798
        %v2801 = vstv %s2786
        %v2802 = vadd.f32 %v2799, %v2801
        %v2803 = vadd.f32 %v2800, %v2801
        %v2804 = vmul.f32 %v2699, %v2802
        %v2805 = vmul.f32 %v2704, %v2803
        %v2806 = vld [vmem:[%s8] sm:$0xff]
        %v2807 = vld [vmem:[%s8 + $0x8] sm:$0xff]
        %v2808 = vld [vmem:[%s8 + $0x10] sm:$0xff]
        %v2809 = vld [vmem:[%s8 + $0x18] sm:$0xff]
        %v2811 = vsel %vm1482, %v2804, 0
        %v2814 = vsel %vm1482, %v2805, 0
        %2816 = vmatprep.subr.mxu0 0.0
        %2817 = vmatpush1.msra.mxu0 %v2806
        %2818 = vmatprep.subr.mxu0 0.0
        %2819 = vmatpush1.msra.mxu0 %v2807
        %2820 = vmatprep.subr.mxu0 0.0
        %2821 = vmatpush1.msra.mxu0 %v2808
        %2822 = vmatprep.subr.mxu0 0.0
        %2823 = vmatpush1.msra.mxu0 %v2809
        %2824 = vmatprep.subr.mxu0 0.0
        %2825 = vmatpush1.msra.mxu0 0.0
        %2826 = vmatprep.subr.mxu0 0.0
        %2827 = vmatpush1.msra.mxu0 0.0
        %2828 = vmatprep.subr.mxu0 0.0
        %2829 = vmatpush1.msra.mxu0 0.0
        %2830 = vmatprep.subr.mxu0 0.0
        %2831 = vmatpush1.msra.mxu0 0.0
        %2832 = vmatprep.subr.mxu0 0.0
        %2833 = vmatpush1.msra.mxu0 0.0
        %2834 = vmatprep.subr.mxu0 0.0
        %2835 = vmatpush1.msra.mxu0 0.0
        %2836 = vmatprep.subr.mxu0 0.0
        %2837 = vmatpush1.msra.mxu0 0.0
        %2838 = vmatprep.subr.mxu0 0.0
        %2839 = vmatpush1.msra.mxu0 0.0
        %2840 = vmatprep.subr.mxu0 0.0
        %2841 = vmatpush1.msra.mxu0 0.0
        %2842 = vmatprep.subr.mxu0 0.0
        %2843 = vmatpush1.msra.mxu0 0.0
        %2844 = vmatprep.subr.mxu0 0.0
        %2845 = vmatpush1.msra.mxu0 0.0
        %2846 = vmatprep.subr.mxu0 0.0
        %2847 = vmatpush1.msra.mxu0 0.0
        %2848 = vmatprep.subr.mxu0 0.0
        %2849 = vmatpush1.msra.mxu0 0.0
        %2850 = vmatprep.subr.mxu0 0.0
        %2851 = vmatpush1.msra.mxu0 0.0
        %2852 = vmatprep.subr.mxu0 0.0
        %2853 = vmatpush1.msra.mxu0 0.0
        %2854 = vmatprep.subr.mxu0 0.0
        %2855 = vmatpush1.msra.mxu0 0.0
        %2856 = vmatprep.subr.mxu0 0.0
        %2857 = vmatpush1.msra.mxu0 0.0
        %2858 = vmatprep.subr.mxu0 0.0
        %2859 = vmatpush1.msra.mxu0 0.0
        %2860 = vmatprep.subr.mxu0 0.0
        %2861 = vmatpush1.msra.mxu0 0.0
        %2862 = vmatprep.subr.mxu0 0.0
        %2863 = vmatpush1.msra.mxu0 0.0
        %2864 = vmatprep.subr.mxu0 0.0
        %2865 = vmatpush1.msra.mxu0 0.0
        %2866 = vmatprep.subr.mxu0 0.0
        %2867 = vmatpush1.msra.mxu0 0.0
        %2868 = vmatprep.subr.mxu0 0.0
        %2869 = vmatpush1.msra.mxu0 0.0
        %2870 = vmatprep.subr.mxu0 0.0
        %2871 = vmatpush1.msra.mxu0 0.0
        %2872 = vmatprep.subr.mxu0 0.0
        %2873 = vmatpush1.msra.mxu0 0.0
        %2874 = vmatprep.subr.mxu0 0.0
        %2875 = vmatpush1.msra.mxu0 0.0
        %2876 = vmatprep.subr.mxu0 0.0
        %2877 = vmatpush1.msra.mxu0 0.0
        %2878 = vmatprep.subr.mxu0 0.0
        %2879 = vmatpush1.msra.mxu0 0.0
        %2880 = vmatprep.mubr.f32.mxu0 0.0
        %2881 = vmatmul.mubr.f32.gmra.mrb[0].mxu0 %v2811
        %v2882 = vpop.f32.mrb[0].mxu0
        %v2883 = vadd.f32 0.0, %v2882
        %v2884 = vpop.f32.mrb[0].mxu0
        %2885 = vmatprep.mubr.f32.mxu0 0.0
        %2886 = vmatmul.mubr.f32.gmra.mrb[0].mxu0 %v2814
        %v2887 = vpop.f32.mrb[0].mxu0
        %v2888 = vadd.f32 0.0, %v2887
        %v2889 = vpop.f32.mrb[0].mxu0
        %2890 = vdwg.mxu0
        %2891 = vrot.lane.b32.xlu0 %v2336, 112
        %v2892 = vpop.permute.xlu0 %2891
        %2893 = vrot.lane.b32.xlu0 %v2337, 112
        %v2894 = vpop.permute.xlu0 %2893
        %2895 = vrot.lane.b32.xlu0 %v2338, 112
        %v2896 = vpop.permute.xlu0 %2895
        %2897 = vrot.lane.b32.xlu0 %v2339, 112
        %v2898 = vpop.permute.xlu0 %2897
        %2899 = vrot.lane.b32.xlu0 %v2340, 112
        %v2900 = vpop.permute.xlu0 %2899
        %2901 = vrot.lane.b32.xlu0 %v2341, 112
        %v2902 = vpop.permute.xlu0 %2901
        %2903 = vrot.lane.b32.xlu0 %v2342, 112
        %v2904 = vpop.permute.xlu0 %2903
        %2905 = vrot.lane.b32.xlu0 %v2343, 112
        %v2906 = vpop.permute.xlu0 %2905
        %vm2907 = vcmask 130048
        %v2908 = vsel %vm2907, %v2892, 0
        %v2910 = vsel %vm2907, %v2894, 0
        %v2912 = vsel %vm2907, %v2896, 0
        %v2914 = vsel %vm2907, %v2898, 0
        %v2916 = vsel %vm2907, %v2900, 0
        %v2918 = vsel %vm2907, %v2902, 0
        %v2920 = vsel %vm2907, %v2904, 0
        %v2922 = vsel %vm2907, %v2906, 0
        %2924 = vmatprep.subr.mxu0 0.0
        %2925 = vmatpush1.msra.mxu0 %v2883
        %2926 = vmatprep.subr.mxu0 0.0
        %2927 = vmatpush1.msra.mxu0 %v2888
        %2928 = vmatprep.subr.mxu0 0.0
        %2929 = vmatpush1.msra.mxu0 0.0
        %2930 = vmatprep.subr.mxu0 0.0
        %2931 = vmatpush1.msra.mxu0 0.0
        %2932 = vmatprep.subr.mxu0 0.0
        %2933 = vmatpush1.msra.mxu0 0.0
        %2934 = vmatprep.subr.mxu0 0.0
        %2935 = vmatpush1.msra.mxu0 0.0
        %2936 = vmatprep.subr.mxu0 0.0
        %2937 = vmatpush1.msra.mxu0 0.0
        %2938 = vmatprep.subr.mxu0 0.0
        %2939 = vmatpush1.msra.mxu0 0.0
        %2940 = vmatprep.subr.mxu0 0.0
        %2941 = vmatpush1.msra.mxu0 0.0
        %2942 = vmatprep.subr.mxu0 0.0
        %2943 = vmatpush1.msra.mxu0 0.0
        %2944 = vmatprep.subr.mxu0 0.0
        %2945 = vmatpush1.msra.mxu0 0.0
        %2946 = vmatprep.subr.mxu0 0.0
        %2947 = vmatpush1.msra.mxu0 0.0
        %2948 = vmatprep.subr.mxu0 0.0
        %2949 = vmatpush1.msra.mxu0 0.0
        %2950 = vmatprep.subr.mxu0 0.0
        %2951 = vmatpush1.msra.mxu0 0.0
        %2952 = vmatprep.subr.mxu0 0.0
        %2953 = vmatpush1.msra.mxu0 0.0
        %2954 = vmatprep.subr.mxu0 0.0
        %2955 = vmatpush1.msra.mxu0 0.0
        %2956 = vmatprep.subr.mxu0 0.0
        %2957 = vmatpush1.msra.mxu0 0.0
        %2958 = vmatprep.subr.mxu0 0.0
        %2959 = vmatpush1.msra.mxu0 0.0
        %2960 = vmatprep.subr.mxu0 0.0
        %2961 = vmatpush1.msra.mxu0 0.0
        %2962 = vmatprep.subr.mxu0 0.0
        %2963 = vmatpush1.msra.mxu0 0.0
        %2964 = vmatprep.subr.mxu0 0.0
        %2965 = vmatpush1.msra.mxu0 0.0
        %2966 = vmatprep.subr.mxu0 0.0
        %2967 = vmatpush1.msra.mxu0 0.0
        %2968 = vmatprep.subr.mxu0 0.0
        %2969 = vmatpush1.msra.mxu0 0.0
        %2970 = vmatprep.subr.mxu0 0.0
        %2971 = vmatpush1.msra.mxu0 0.0
        %2972 = vmatprep.subr.mxu0 0.0
        %2973 = vmatpush1.msra.mxu0 0.0
        %2974 = vmatprep.subr.mxu0 0.0
        %2975 = vmatpush1.msra.mxu0 0.0
        %2976 = vmatprep.subr.mxu0 0.0
        %2977 = vmatpush1.msra.mxu0 0.0
        %2978 = vmatprep.subr.mxu0 0.0
        %2979 = vmatpush1.msra.mxu0 0.0
        %2980 = vmatprep.subr.mxu0 0.0
        %2981 = vmatpush1.msra.mxu0 0.0
        %2982 = vmatprep.subr.mxu0 0.0
        %2983 = vmatpush1.msra.mxu0 0.0
        %2984 = vmatprep.subr.mxu0 0.0
        %2985 = vmatpush1.msra.mxu0 0.0
        %2986 = vmatprep.subr.mxu0 0.0
        %2987 = vmatpush1.msra.mxu0 0.0
        %2988 = vmatprep.mubr.f32.mxu0 0.0
        %2989 = vmatmul.mubr.f32.gmra.mrb[0].mxu0 %v2908
        %v2990 = vpop.f32.mrb[0].mxu0
        %v2991 = vadd.f32 0.0, %v2990
        %v2992 = vpop.f32.mrb[0].mxu0
        %2993 = vmatprep.mubr.f32.mxu0 0.0
        %2994 = vmatmul.mubr.f32.gmra.mrb[0].mxu0 %v2910
        %v2995 = vpop.f32.mrb[0].mxu0
        %v2996 = vadd.f32 0.0, %v2995
        %v2997 = vpop.f32.mrb[0].mxu0
        %2998 = vmatprep.mubr.f32.mxu0 0.0
        %2999 = vmatmul.mubr.f32.gmra.mrb[0].mxu0 %v2912
        %v3000 = vpop.f32.mrb[0].mxu0
        %v3001 = vadd.f32 0.0, %v3000
        %v3002 = vpop.f32.mrb[0].mxu0
        %3003 = vmatprep.mubr.f32.mxu0 0.0
        %3004 = vmatmul.mubr.f32.gmra.mrb[0].mxu0 %v2914
        %v3005 = vpop.f32.mrb[0].mxu0
        %v3006 = vadd.f32 0.0, %v3005
        %v3007 = vpop.f32.mrb[0].mxu0
        %3008 = vmatprep.mubr.f32.mxu0 0.0
        %3009 = vmatmul.mubr.f32.gmra.mrb[0].mxu0 %v2916
        %v3010 = vpop.f32.mrb[0].mxu0
        %v3011 = vadd.f32 0.0, %v3010
        %v3012 = vpop.f32.mrb[0].mxu0
        %3013 = vmatprep.mubr.f32.mxu0 0.0
        %3014 = vmatmul.mubr.f32.gmra.mrb[0].mxu0 %v2918
        %v3015 = vpop.f32.mrb[0].mxu0
        %v3016 = vadd.f32 0.0, %v3015
        %v3017 = vpop.f32.mrb[0].mxu0
        %3018 = vmatprep.mubr.f32.mxu0 0.0
        %3019 = vmatmul.mubr.f32.gmra.mrb[0].mxu0 %v2920
        %v3020 = vpop.f32.mrb[0].mxu0
        %v3021 = vadd.f32 0.0, %v3020
        %v3022 = vpop.f32.mrb[0].mxu0
        %3023 = vmatprep.mubr.f32.mxu0 0.0
        %3024 = vmatmul.mubr.f32.gmra.mrb[0].mxu0 %v2922
        %v3025 = vpop.f32.mrb[0].mxu0
        %v3026 = vadd.f32 0.0, %v3025
        %v3027 = vpop.f32.mrb[0].mxu0
        %3028 = vdwg.mxu0
        %v3029 = vlaneseq
        %v3030 = vshrl.u32 %v3029, 7
        %v3031 = vsub.s32 1, %v3030
        %v3032 = vrot.slane %v1449, %v3031
        %v3033 = vmul.f32 %v3032, %v1474
        %v3034 = vmul.f32 %v3032, %v1475
        %v3035 = vmul.f32 %v3032, %v1476
        %v3036 = vmul.f32 %v3032, %v1477
        %v3037 = vmul.f32 %v3032, %v1478
        %v3038 = vmul.f32 %v3032, %v1479
        %v3039 = vmul.f32 %v3032, %v1480
        %v3040 = vmul.f32 %v3032, %v1481
        %v3041 = vlaneseq
        %v3042 = vshrl.u32 %v3041, 7
        %v3043 = vsub.s32 1, %v3042
        %v3044 = vrot.slane %v610, %v3043
        %v3045 = vmul.f32 %v3044, %v2991
        %v3046 = vmul.f32 %v3044, %v2996
        %v3047 = vmul.f32 %v3044, %v3001
        %v3048 = vmul.f32 %v3044, %v3006
        %v3049 = vmul.f32 %v3044, %v3011
        %v3050 = vmul.f32 %v3044, %v3016
        %v3051 = vmul.f32 %v3044, %v3021
        %v3052 = vmul.f32 %v3044, %v3026
        %v3053 = vadd.f32 %v3033, %v3045
        %v3054 = vadd.f32 %v3034, %v3046
        %v3055 = vadd.f32 %v3035, %v3047
        %v3056 = vadd.f32 %v3036, %v3048
        %v3057 = vadd.f32 %v3037, %v3049
        %v3058 = vadd.f32 %v3038, %v3050
        %v3059 = vadd.f32 %v3039, %v3051
        %v3060 = vadd.f32 %v3040, %v3052
        %3061 = vmatprep.subr.mxu0 0.0
        %3062 = vmatpush1.msra.mxu0 %v3053
        %3063 = vmatprep.subr.mxu0 0.0
        %3064 = vmatpush1.msra.mxu0 %v3054
        %3065 = vmatprep.subr.mxu0 0.0
        %3066 = vmatpush1.msra.mxu0 %v3055
        %3067 = vmatprep.subr.mxu0 0.0
        %3068 = vmatpush1.msra.mxu0 %v3056
        %3069 = vmatprep.subr.mxu0 0.0
        %3070 = vmatpush1.msra.mxu0 %v3057
        %3071 = vmatprep.subr.mxu0 0.0
        %3072 = vmatpush1.msra.mxu0 %v3058
        %3073 = vmatprep.subr.mxu0 0.0
        %3074 = vmatpush1.msra.mxu0 %v3059
        %3075 = vmatprep.subr.mxu0 0.0
        %3076 = vmatpush1.msra.mxu0 %v3060
        %3077 = vmatprep.subr.mxu0 0.0
        %3078 = vmatpush1.msra.mxu0 0.0
        %3079 = vmatprep.subr.mxu0 0.0
        %3080 = vmatpush1.msra.mxu0 0.0
        %3081 = vmatprep.subr.mxu0 0.0
        %3082 = vmatpush1.msra.mxu0 0.0
        %3083 = vmatprep.subr.mxu0 0.0
        %3084 = vmatpush1.msra.mxu0 0.0
        %3085 = vmatprep.subr.mxu0 0.0
        %3086 = vmatpush1.msra.mxu0 0.0
        %3087 = vmatprep.subr.mxu0 0.0
        %3088 = vmatpush1.msra.mxu0 0.0
        %3089 = vmatprep.subr.mxu0 0.0
        %3090 = vmatpush1.msra.mxu0 0.0
        %3091 = vmatprep.subr.mxu0 0.0
        %3092 = vmatpush1.msra.mxu0 0.0
        %3093 = vmatprep.subr.mxu0 0.0
        %3094 = vmatpush1.msra.mxu0 0.0
        %3095 = vmatprep.subr.mxu0 0.0
        %3096 = vmatpush1.msra.mxu0 0.0
        %3097 = vmatprep.subr.mxu0 0.0
        %3098 = vmatpush1.msra.mxu0 0.0
        %3099 = vmatprep.subr.mxu0 0.0
        %3100 = vmatpush1.msra.mxu0 0.0
        %3101 = vmatprep.subr.mxu0 0.0
        %3102 = vmatpush1.msra.mxu0 0.0
        %3103 = vmatprep.subr.mxu0 0.0
        %3104 = vmatpush1.msra.mxu0 0.0
        %3105 = vmatprep.subr.mxu0 0.0
        %3106 = vmatpush1.msra.mxu0 0.0
        %3107 = vmatprep.subr.mxu0 0.0
        %3108 = vmatpush1.msra.mxu0 0.0
        %3109 = vmatprep.subr.mxu0 0.0
        %3110 = vmatpush1.msra.mxu0 0.0
        %3111 = vmatprep.subr.mxu0 0.0
        %3112 = vmatpush1.msra.mxu0 0.0
        %3113 = vmatprep.subr.mxu0 0.0
        %3114 = vmatpush1.msra.mxu0 0.0
        %3115 = vmatprep.subr.mxu0 0.0
        %3116 = vmatpush1.msra.mxu0 0.0
        %3117 = vmatprep.subr.mxu0 0.0
        %3118 = vmatpush1.msra.mxu0 0.0
        %3119 = vmatprep.subr.mxu0 0.0
        %3120 = vmatpush1.msra.mxu0 0.0
        %3121 = vmatprep.subr.mxu0 0.0
        %3122 = vmatpush1.msra.mxu0 0.0
        %3123 = vmatprep.subr.mxu0 0.0
        %3124 = vmatpush1.msra.mxu0 0.0
        %3125 = vmatprep.mubr.f32.mxu0 0.0
        %3126 = vmatmul.mubr.f32.gmra.mrb[0].mxu0 %v613
        %v3127 = vpop.f32.mrb[0].mxu0
        %v3128 = vadd.f32 0.0, %v3127
        %v3129 = vpop.f32.mrb[0].mxu0
        %3130 = vmatprep.mubr.f32.mxu0 0.0
        %3131 = vmatmul.mubr.f32.gmra.mrb[0].mxu0 %v616
        %v3132 = vpop.f32.mrb[0].mxu0
        %v3133 = vadd.f32 0.0, %v3132
        %v3134 = vpop.f32.mrb[0].mxu0
        %3135 = vmatprep.mubr.f32.mxu0 0.0
        %3136 = vmatmul.mubr.f32.gmra.mrb[0].mxu0 %v619
        %v3137 = vpop.f32.mrb[0].mxu0
        %v3138 = vadd.f32 0.0, %v3137
        %v3139 = vpop.f32.mrb[0].mxu0
        %3140 = vmatprep.mubr.f32.mxu0 0.0
        %3141 = vmatmul.mubr.f32.gmra.mrb[0].mxu0 %v622
        %v3142 = vpop.f32.mrb[0].mxu0
        %v3143 = vadd.f32 0.0, %v3142
        %v3144 = vpop.f32.mrb[0].mxu0
        %3145 = vmatprep.mubr.f32.mxu0 0.0
        %3146 = vmatmul.mubr.f32.gmra.mrb[0].mxu0 %v625
        %v3147 = vpop.f32.mrb[0].mxu0
        %v3148 = vadd.f32 0.0, %v3147
        %v3149 = vpop.f32.mrb[0].mxu0
        %3150 = vmatprep.mubr.f32.mxu0 0.0
        %3151 = vmatmul.mubr.f32.gmra.mrb[0].mxu0 %v628
        %v3152 = vpop.f32.mrb[0].mxu0
        %v3153 = vadd.f32 0.0, %v3152
        %v3154 = vpop.f32.mrb[0].mxu0
        %3155 = vmatprep.mubr.f32.mxu0 0.0
        %3156 = vmatmul.mubr.f32.gmra.mrb[0].mxu0 %v631
        %v3157 = vpop.f32.mrb[0].mxu0
        %v3158 = vadd.f32 0.0, %v3157
        %v3159 = vpop.f32.mrb[0].mxu0
        %3160 = vmatprep.mubr.f32.mxu0 0.0
        %3161 = vmatmul.mubr.f32.gmra.mrb[0].mxu0 %v634
        %v3162 = vpop.f32.mrb[0].mxu0
        %v3163 = vadd.f32 0.0, %v3162
        %v3164 = vpop.f32.mrb[0].mxu0
        %3165 = vmatprep.mubr.f32.mxu0 0.0
        %3166 = vmatmul.mubr.f32.gmra.mrb[0].mxu0 %v637
        %v3167 = vpop.f32.mrb[0].mxu0
        %v3168 = vadd.f32 0.0, %v3167
        %v3169 = vpop.f32.mrb[0].mxu0
        %3170 = vmatprep.mubr.f32.mxu0 0.0
        %3171 = vmatmul.mubr.f32.gmra.mrb[0].mxu0 %v640
        %v3172 = vpop.f32.mrb[0].mxu0
        %v3173 = vadd.f32 0.0, %v3172
        %v3174 = vpop.f32.mrb[0].mxu0
        %3175 = vmatprep.mubr.f32.mxu0 0.0
        %3176 = vmatmul.mubr.f32.gmra.mrb[0].mxu0 %v643
        %v3177 = vpop.f32.mrb[0].mxu0
        %v3178 = vadd.f32 0.0, %v3177
        %v3179 = vpop.f32.mrb[0].mxu0
        %3180 = vmatprep.mubr.f32.mxu0 0.0
        %3181 = vmatmul.mubr.f32.gmra.mrb[0].mxu0 %v646
        %v3182 = vpop.f32.mrb[0].mxu0
        %v3183 = vadd.f32 0.0, %v3182
        %v3184 = vpop.f32.mrb[0].mxu0
        %3185 = vmatprep.mubr.f32.mxu0 0.0
        %3186 = vmatmul.mubr.f32.gmra.mrb[0].mxu0 %v649
        %v3187 = vpop.f32.mrb[0].mxu0
        %v3188 = vadd.f32 0.0, %v3187
        %v3189 = vpop.f32.mrb[0].mxu0
        %3190 = vmatprep.mubr.f32.mxu0 0.0
        %3191 = vmatmul.mubr.f32.gmra.mrb[0].mxu0 %v652
        %v3192 = vpop.f32.mrb[0].mxu0
        %v3193 = vadd.f32 0.0, %v3192
        %v3194 = vpop.f32.mrb[0].mxu0
        %3195 = vmatprep.mubr.f32.mxu0 0.0
        %3196 = vmatmul.mubr.f32.gmra.mrb[0].mxu0 %v655
        %v3197 = vpop.f32.mrb[0].mxu0
        %v3198 = vadd.f32 0.0, %v3197
        %v3199 = vpop.f32.mrb[0].mxu0
        %3200 = vmatprep.mubr.f32.mxu0 0.0
        %3201 = vmatmul.mubr.f32.gmra.mrb[0].mxu0 %v658
        %v3202 = vpop.f32.mrb[0].mxu0
        %v3203 = vadd.f32 0.0, %v3202
        %v3204 = vpop.f32.mrb[0].mxu0
        %3205 = vmatprep.mubr.f32.mxu0 0.0
        %3206 = vmatmul.mubr.f32.gmra.mrb[0].mxu0 %v661
        %v3207 = vpop.f32.mrb[0].mxu0
        %v3208 = vadd.f32 0.0, %v3207
        %v3209 = vpop.f32.mrb[0].mxu0
        %3210 = vmatprep.mubr.f32.mxu0 0.0
        %3211 = vmatmul.mubr.f32.gmra.mrb[0].mxu0 %v664
        %v3212 = vpop.f32.mrb[0].mxu0
        %v3213 = vadd.f32 0.0, %v3212
        %v3214 = vpop.f32.mrb[0].mxu0
        %3215 = vmatprep.mubr.f32.mxu0 0.0
        %3216 = vmatmul.mubr.f32.gmra.mrb[0].mxu0 %v667
        %v3217 = vpop.f32.mrb[0].mxu0
        %v3218 = vadd.f32 0.0, %v3217
        %v3219 = vpop.f32.mrb[0].mxu0
        %3220 = vmatprep.mubr.f32.mxu0 0.0
        %3221 = vmatmul.mubr.f32.gmra.mrb[0].mxu0 %v670
        %v3222 = vpop.f32.mrb[0].mxu0
        %v3223 = vadd.f32 0.0, %v3222
        %v3224 = vpop.f32.mrb[0].mxu0
        %3225 = vmatprep.mubr.f32.mxu0 0.0
        %3226 = vmatmul.mubr.f32.gmra.mrb[0].mxu0 %v673
        %v3227 = vpop.f32.mrb[0].mxu0
        %v3228 = vadd.f32 0.0, %v3227
        %v3229 = vpop.f32.mrb[0].mxu0
        %3230 = vmatprep.mubr.f32.mxu0 0.0
        %3231 = vmatmul.mubr.f32.gmra.mrb[0].mxu0 %v676
        %v3232 = vpop.f32.mrb[0].mxu0
        %v3233 = vadd.f32 0.0, %v3232
        %v3234 = vpop.f32.mrb[0].mxu0
        %3235 = vmatprep.mubr.f32.mxu0 0.0
        %3236 = vmatmul.mubr.f32.gmra.mrb[0].mxu0 %v679
        %v3237 = vpop.f32.mrb[0].mxu0
        %v3238 = vadd.f32 0.0, %v3237
        %v3239 = vpop.f32.mrb[0].mxu0
        %3240 = vmatprep.mubr.f32.mxu0 0.0
        %3241 = vmatmul.mubr.f32.gmra.mrb[0].mxu0 %v682
        %v3242 = vpop.f32.mrb[0].mxu0
        %v3243 = vadd.f32 0.0, %v3242
        %v3244 = vpop.f32.mrb[0].mxu0
        %3245 = vmatprep.mubr.f32.mxu0 0.0
        %3246 = vmatmul.mubr.f32.gmra.mrb[0].mxu0 %v685
        %v3247 = vpop.f32.mrb[0].mxu0
        %v3248 = vadd.f32 0.0, %v3247
        %v3249 = vpop.f32.mrb[0].mxu0
        %3250 = vmatprep.mubr.f32.mxu0 0.0
        %3251 = vmatmul.mubr.f32.gmra.mrb[0].mxu0 %v688
        %v3252 = vpop.f32.mrb[0].mxu0
        %v3253 = vadd.f32 0.0, %v3252
        %v3254 = vpop.f32.mrb[0].mxu0
        %3255 = vmatprep.mubr.f32.mxu0 0.0
        %3256 = vmatmul.mubr.f32.gmra.mrb[0].mxu0 %v691
        %v3257 = vpop.f32.mrb[0].mxu0
        %v3258 = vadd.f32 0.0, %v3257
        %v3259 = vpop.f32.mrb[0].mxu0
        %3260 = vmatprep.mubr.f32.mxu0 0.0
        %3261 = vmatmul.mubr.f32.gmra.mrb[0].mxu0 %v694
        %v3262 = vpop.f32.mrb[0].mxu0
        %v3263 = vadd.f32 0.0, %v3262
        %v3264 = vpop.f32.mrb[0].mxu0
        %3265 = vmatprep.mubr.f32.mxu0 0.0
        %3266 = vmatmul.mubr.f32.gmra.mrb[0].mxu0 %v697
        %v3267 = vpop.f32.mrb[0].mxu0
        %v3268 = vadd.f32 0.0, %v3267
        %v3269 = vpop.f32.mrb[0].mxu0
        %3270 = vmatprep.mubr.f32.mxu0 0.0
        %3271 = vmatmul.mubr.f32.gmra.mrb[0].mxu0 %v700
        %v3272 = vpop.f32.mrb[0].mxu0
        %v3273 = vadd.f32 0.0, %v3272
        %v3274 = vpop.f32.mrb[0].mxu0
        %3275 = vmatprep.mubr.f32.mxu0 0.0
        %3276 = vmatmul.mubr.f32.gmra.mrb[0].mxu0 %v703
        %v3277 = vpop.f32.mrb[0].mxu0
        %v3278 = vadd.f32 0.0, %v3277
        %v3279 = vpop.f32.mrb[0].mxu0
        %3280 = vmatprep.mubr.f32.mxu0 0.0
        %3281 = vmatmul.mubr.f32.gmra.mrb[0].mxu0 %v706
        %v3282 = vpop.f32.mrb[0].mxu0
        %v3283 = vadd.f32 0.0, %v3282
        %v3284 = vpop.f32.mrb[0].mxu0
        %3285 = vmatprep.mubr.f32.mxu0 0.0
        %3286 = vmatmul.mubr.f32.gmra.mrb[0].mxu0 %v709
        %v3287 = vpop.f32.mrb[0].mxu0
        %v3288 = vadd.f32 0.0, %v3287
        %v3289 = vpop.f32.mrb[0].mxu0
        %3290 = vmatprep.mubr.f32.mxu0 0.0
        %3291 = vmatmul.mubr.f32.gmra.mrb[0].mxu0 %v712
        %v3292 = vpop.f32.mrb[0].mxu0
        %v3293 = vadd.f32 0.0, %v3292
        %v3294 = vpop.f32.mrb[0].mxu0
        %3295 = vmatprep.mubr.f32.mxu0 0.0
        %3296 = vmatmul.mubr.f32.gmra.mrb[0].mxu0 %v715
        %v3297 = vpop.f32.mrb[0].mxu0
        %v3298 = vadd.f32 0.0, %v3297
        %v3299 = vpop.f32.mrb[0].mxu0
        %3300 = vmatprep.mubr.f32.mxu0 0.0
        %3301 = vmatmul.mubr.f32.gmra.mrb[0].mxu0 %v718
        %v3302 = vpop.f32.mrb[0].mxu0
        %v3303 = vadd.f32 0.0, %v3302
        %v3304 = vpop.f32.mrb[0].mxu0
        %3305 = vmatprep.mubr.f32.mxu0 0.0
        %3306 = vmatmul.mubr.f32.gmra.mrb[0].mxu0 %v721
        %v3307 = vpop.f32.mrb[0].mxu0
        %v3308 = vadd.f32 0.0, %v3307
        %v3309 = vpop.f32.mrb[0].mxu0
        %3310 = vmatprep.mubr.f32.mxu0 0.0
        %3311 = vmatmul.mubr.f32.gmra.mrb[0].mxu0 %v724
        %v3312 = vpop.f32.mrb[0].mxu0
        %v3313 = vadd.f32 0.0, %v3312
        %v3314 = vpop.f32.mrb[0].mxu0
        %3315 = vmatprep.mubr.f32.mxu0 0.0
        %3316 = vmatmul.mubr.f32.gmra.mrb[0].mxu0 %v727
        %v3317 = vpop.f32.mrb[0].mxu0
        %v3318 = vadd.f32 0.0, %v3317
        %v3319 = vpop.f32.mrb[0].mxu0
        %3320 = vmatprep.mubr.f32.mxu0 0.0
        %3321 = vmatmul.mubr.f32.gmra.mrb[0].mxu0 %v730
        %v3322 = vpop.f32.mrb[0].mxu0
        %v3323 = vadd.f32 0.0, %v3322
        %v3324 = vpop.f32.mrb[0].mxu0
        %3325 = vmatprep.mubr.f32.mxu0 0.0
        %3326 = vmatmul.mubr.f32.gmra.mrb[0].mxu0 %v733
        %v3327 = vpop.f32.mrb[0].mxu0
        %v3328 = vadd.f32 0.0, %v3327
        %v3329 = vpop.f32.mrb[0].mxu0
        %3330 = vmatprep.mubr.f32.mxu0 0.0
        %3331 = vmatmul.mubr.f32.gmra.mrb[0].mxu0 %v736
        %v3332 = vpop.f32.mrb[0].mxu0
        %v3333 = vadd.f32 0.0, %v3332
        %v3334 = vpop.f32.mrb[0].mxu0
        %3335 = vmatprep.mubr.f32.mxu0 0.0
        %3336 = vmatmul.mubr.f32.gmra.mrb[0].mxu0 %v739
        %v3337 = vpop.f32.mrb[0].mxu0
        %v3338 = vadd.f32 0.0, %v3337
        %v3339 = vpop.f32.mrb[0].mxu0
        %3340 = vmatprep.mubr.f32.mxu0 0.0
        %3341 = vmatmul.mubr.f32.gmra.mrb[0].mxu0 %v742
        %v3342 = vpop.f32.mrb[0].mxu0
        %v3343 = vadd.f32 0.0, %v3342
        %v3344 = vpop.f32.mrb[0].mxu0
        %3345 = vmatprep.mubr.f32.mxu0 0.0
        %3346 = vmatmul.mubr.f32.gmra.mrb[0].mxu0 %v745
        %v3347 = vpop.f32.mrb[0].mxu0
        %v3348 = vadd.f32 0.0, %v3347
        %v3349 = vpop.f32.mrb[0].mxu0
        %3350 = vmatprep.mubr.f32.mxu0 0.0
        %3351 = vmatmul.mubr.f32.gmra.mrb[0].mxu0 %v748
        %v3352 = vpop.f32.mrb[0].mxu0
        %v3353 = vadd.f32 0.0, %v3352
        %v3354 = vpop.f32.mrb[0].mxu0
        %3355 = vmatprep.mubr.f32.mxu0 0.0
        %3356 = vmatmul.mubr.f32.gmra.mrb[0].mxu0 %v751
        %v3357 = vpop.f32.mrb[0].mxu0
        %v3358 = vadd.f32 0.0, %v3357
        %v3359 = vpop.f32.mrb[0].mxu0
        %3360 = vmatprep.mubr.f32.mxu0 0.0
        %3361 = vmatmul.mubr.f32.gmra.mrb[0].mxu0 %v754
        %v3362 = vpop.f32.mrb[0].mxu0
        %v3363 = vadd.f32 0.0, %v3362
        %v3364 = vpop.f32.mrb[0].mxu0
        %3365 = vmatprep.mubr.f32.mxu0 0.0
        %3366 = vmatmul.mubr.f32.gmra.mrb[0].mxu0 %v757
        %v3367 = vpop.f32.mrb[0].mxu0
        %v3368 = vadd.f32 0.0, %v3367
        %v3369 = vpop.f32.mrb[0].mxu0
        %3370 = vmatprep.mubr.f32.mxu0 0.0
        %3371 = vmatmul.mubr.f32.gmra.mrb[0].mxu0 %v760
        %v3372 = vpop.f32.mrb[0].mxu0
        %v3373 = vadd.f32 0.0, %v3372
        %v3374 = vpop.f32.mrb[0].mxu0
        %3375 = vmatprep.mubr.f32.mxu0 0.0
        %3376 = vmatmul.mubr.f32.gmra.mrb[0].mxu0 %v763
        %v3377 = vpop.f32.mrb[0].mxu0
        %v3378 = vadd.f32 0.0, %v3377
        %v3379 = vpop.f32.mrb[0].mxu0
        %3380 = vmatprep.mubr.f32.mxu0 0.0
        %3381 = vmatmul.mubr.f32.gmra.mrb[0].mxu0 %v766
        %v3382 = vpop.f32.mrb[0].mxu0
        %v3383 = vadd.f32 0.0, %v3382
        %v3384 = vpop.f32.mrb[0].mxu0
        %3385 = vmatprep.mubr.f32.mxu0 0.0
        %3386 = vmatmul.mubr.f32.gmra.mrb[0].mxu0 %v769
        %v3387 = vpop.f32.mrb[0].mxu0
        %v3388 = vadd.f32 0.0, %v3387
        %v3389 = vpop.f32.mrb[0].mxu0
        %3390 = vmatprep.mubr.f32.mxu0 0.0
        %3391 = vmatmul.mubr.f32.gmra.mrb[0].mxu0 %v772
        %v3392 = vpop.f32.mrb[0].mxu0
        %v3393 = vadd.f32 0.0, %v3392
        %v3394 = vpop.f32.mrb[0].mxu0
        %3395 = vmatprep.mubr.f32.mxu0 0.0
        %3396 = vmatmul.mubr.f32.gmra.mrb[0].mxu0 %v775
        %v3397 = vpop.f32.mrb[0].mxu0
        %v3398 = vadd.f32 0.0, %v3397
        %v3399 = vpop.f32.mrb[0].mxu0
        %3400 = vmatprep.mubr.f32.mxu0 0.0
        %3401 = vmatmul.mubr.f32.gmra.mrb[0].mxu0 %v778
        %v3402 = vpop.f32.mrb[0].mxu0
        %v3403 = vadd.f32 0.0, %v3402
        %v3404 = vpop.f32.mrb[0].mxu0
        %3405 = vmatprep.mubr.f32.mxu0 0.0
        %3406 = vmatmul.mubr.f32.gmra.mrb[0].mxu0 %v781
        %v3407 = vpop.f32.mrb[0].mxu0
        %v3408 = vadd.f32 0.0, %v3407
        %v3409 = vpop.f32.mrb[0].mxu0
        %3410 = vmatprep.mubr.f32.mxu0 0.0
        %3411 = vmatmul.mubr.f32.gmra.mrb[0].mxu0 %v784
        %v3412 = vpop.f32.mrb[0].mxu0
        %v3413 = vadd.f32 0.0, %v3412
        %v3414 = vpop.f32.mrb[0].mxu0
        %3415 = vmatprep.mubr.f32.mxu0 0.0
        %3416 = vmatmul.mubr.f32.gmra.mrb[0].mxu0 %v787
        %v3417 = vpop.f32.mrb[0].mxu0
        %v3418 = vadd.f32 0.0, %v3417
        %v3419 = vpop.f32.mrb[0].mxu0
        %3420 = vmatprep.mubr.f32.mxu0 0.0
        %3421 = vmatmul.mubr.f32.gmra.mrb[0].mxu0 %v790
        %v3422 = vpop.f32.mrb[0].mxu0
        %v3423 = vadd.f32 0.0, %v3422
        %v3424 = vpop.f32.mrb[0].mxu0
        %3425 = vmatprep.mubr.f32.mxu0 0.0
        %3426 = vmatmul.mubr.f32.gmra.mrb[0].mxu0 %v793
        %v3427 = vpop.f32.mrb[0].mxu0
        %v3428 = vadd.f32 0.0, %v3427
        %v3429 = vpop.f32.mrb[0].mxu0
        %3430 = vmatprep.mubr.f32.mxu0 0.0
        %3431 = vmatmul.mubr.f32.gmra.mrb[0].mxu0 %v796
        %v3432 = vpop.f32.mrb[0].mxu0
        %v3433 = vadd.f32 0.0, %v3432
        %v3434 = vpop.f32.mrb[0].mxu0
        %3435 = vmatprep.mubr.f32.mxu0 0.0
        %3436 = vmatmul.mubr.f32.gmra.mrb[0].mxu0 %v799
        %v3437 = vpop.f32.mrb[0].mxu0
        %v3438 = vadd.f32 0.0, %v3437
        %v3439 = vpop.f32.mrb[0].mxu0
        %3440 = vmatprep.mubr.f32.mxu0 0.0
        %3441 = vmatmul.mubr.f32.gmra.mrb[0].mxu0 %v802
        %v3442 = vpop.f32.mrb[0].mxu0
        %v3443 = vadd.f32 0.0, %v3442
        %v3444 = vpop.f32.mrb[0].mxu0
        %3445 = vmatprep.mubr.f32.mxu0 0.0
        %3446 = vmatmul.mubr.f32.gmra.mrb[0].mxu0 %v805
        %v3447 = vpop.f32.mrb[0].mxu0
        %v3448 = vadd.f32 0.0, %v3447
        %v3449 = vpop.f32.mrb[0].mxu0
        %3450 = vmatprep.mubr.f32.mxu0 0.0
        %3451 = vmatmul.mubr.f32.gmra.mrb[0].mxu0 %v808
        %v3452 = vpop.f32.mrb[0].mxu0
        %v3453 = vadd.f32 0.0, %v3452
        %v3454 = vpop.f32.mrb[0].mxu0
        %3455 = vmatprep.mubr.f32.mxu0 0.0
        %3456 = vmatmul.mubr.f32.gmra.mrb[0].mxu0 %v811
        %v3457 = vpop.f32.mrb[0].mxu0
        %v3458 = vadd.f32 0.0, %v3457
        %v3459 = vpop.f32.mrb[0].mxu0
        %3460 = vmatprep.mubr.f32.mxu0 0.0
        %3461 = vmatmul.mubr.f32.gmra.mrb[0].mxu0 %v814
        %v3462 = vpop.f32.mrb[0].mxu0
        %v3463 = vadd.f32 0.0, %v3462
        %v3464 = vpop.f32.mrb[0].mxu0
        %3465 = vmatprep.mubr.f32.mxu0 0.0
        %3466 = vmatmul.mubr.f32.gmra.mrb[0].mxu0 %v817
        %v3467 = vpop.f32.mrb[0].mxu0
        %v3468 = vadd.f32 0.0, %v3467
        %v3469 = vpop.f32.mrb[0].mxu0
        %3470 = vmatprep.mubr.f32.mxu0 0.0
        %3471 = vmatmul.mubr.f32.gmra.mrb[0].mxu0 %v820
        %v3472 = vpop.f32.mrb[0].mxu0
        %v3473 = vadd.f32 0.0, %v3472
        %v3474 = vpop.f32.mrb[0].mxu0
        %3475 = vmatprep.mubr.f32.mxu0 0.0
        %3476 = vmatmul.mubr.f32.gmra.mrb[0].mxu0 %v823
        %v3477 = vpop.f32.mrb[0].mxu0
        %v3478 = vadd.f32 0.0, %v3477
        %v3479 = vpop.f32.mrb[0].mxu0
        %3480 = vmatprep.mubr.f32.mxu0 0.0
        %3481 = vmatmul.mubr.f32.gmra.mrb[0].mxu0 %v826
        %v3482 = vpop.f32.mrb[0].mxu0
        %v3483 = vadd.f32 0.0, %v3482
        %v3484 = vpop.f32.mrb[0].mxu0
        %3485 = vdwg.mxu0
        %v3486 = vlaneseq
        %v3487 = vshrl.u32 %v3486, 7
        %v3488 = vsub.s32 1, %v3487
        %v3489 = vrot.slane %v603, %v3488
        %v3490 = vmul.f32 %v3128, %v3489
        %v3491 = vmul.f32 %v3133, %v3489
        %v3492 = vmul.f32 %v3138, %v3489
        %v3493 = vmul.f32 %v3143, %v3489
        %v3494 = vmul.f32 %v3148, %v3489
        %v3495 = vmul.f32 %v3153, %v3489
        %v3496 = vmul.f32 %v3158, %v3489
        %v3497 = vmul.f32 %v3163, %v3489
        %v3498 = vlaneseq
        %v3499 = vshrl.u32 %v3498, 7
        %v3500 = vsub.s32 2, %v3499
        %v3501 = vrot.slane %v603, %v3500
        %v3502 = vmul.f32 %v3168, %v3501
        %v3503 = vmul.f32 %v3173, %v3501
        %v3504 = vmul.f32 %v3178, %v3501
        %v3505 = vmul.f32 %v3183, %v3501
        %v3506 = vmul.f32 %v3188, %v3501
        %v3507 = vmul.f32 %v3193, %v3501
        %v3508 = vmul.f32 %v3198, %v3501
        %v3509 = vmul.f32 %v3203, %v3501
        %v3510 = vadd.f32 %v3490, %v3502
        %v3511 = vadd.f32 %v3491, %v3503
        %v3512 = vadd.f32 %v3492, %v3504
        %v3513 = vadd.f32 %v3493, %v3505
        %v3514 = vadd.f32 %v3494, %v3506
        %v3515 = vadd.f32 %v3495, %v3507
        %v3516 = vadd.f32 %v3496, %v3508
        %v3517 = vadd.f32 %v3497, %v3509
        %v3518 = vlaneseq
        %v3519 = vshrl.u32 %v3518, 7
        %v3520 = vsub.s32 3, %v3519
        %v3521 = vrot.slane %v603, %v3520
        %v3522 = vmul.f32 %v3208, %v3521
        %v3523 = vmul.f32 %v3213, %v3521
        %v3524 = vmul.f32 %v3218, %v3521
        %v3525 = vmul.f32 %v3223, %v3521
        %v3526 = vmul.f32 %v3228, %v3521
        %v3527 = vmul.f32 %v3233, %v3521
        %v3528 = vmul.f32 %v3238, %v3521
        %v3529 = vmul.f32 %v3243, %v3521
        %v3530 = vadd.f32 %v3510, %v3522
        %v3531 = vadd.f32 %v3511, %v3523
        %v3532 = vadd.f32 %v3512, %v3524
        %v3533 = vadd.f32 %v3513, %v3525
        %v3534 = vadd.f32 %v3514, %v3526
        %v3535 = vadd.f32 %v3515, %v3527
        %v3536 = vadd.f32 %v3516, %v3528
        %v3537 = vadd.f32 %v3517, %v3529
        %v3538 = vlaneseq
        %v3539 = vshrl.u32 %v3538, 7
        %v3540 = vsub.s32 4, %v3539
        %v3541 = vrot.slane %v603, %v3540
        %v3542 = vmul.f32 %v3248, %v3541
        %v3543 = vmul.f32 %v3253, %v3541
        %v3544 = vmul.f32 %v3258, %v3541
        %v3545 = vmul.f32 %v3263, %v3541
        %v3546 = vmul.f32 %v3268, %v3541
        %v3547 = vmul.f32 %v3273, %v3541
        %v3548 = vmul.f32 %v3278, %v3541
        %v3549 = vmul.f32 %v3283, %v3541
        %v3550 = vadd.f32 %v3530, %v3542
        %v3551 = vadd.f32 %v3531, %v3543
        %v3552 = vadd.f32 %v3532, %v3544
        %v3553 = vadd.f32 %v3533, %v3545
        %v3554 = vadd.f32 %v3534, %v3546
        %v3555 = vadd.f32 %v3535, %v3547
        %v3556 = vadd.f32 %v3536, %v3548
        %v3557 = vadd.f32 %v3537, %v3549
        %v3558 = vlaneseq
        %v3559 = vshrl.u32 %v3558, 7
        %v3560 = vsub.s32 5, %v3559
        %v3561 = vrot.slane %v603, %v3560
        %v3562 = vmul.f32 %v3288, %v3561
        %v3563 = vmul.f32 %v3293, %v3561
        %v3564 = vmul.f32 %v3298, %v3561
        %v3565 = vmul.f32 %v3303, %v3561
        %v3566 = vmul.f32 %v3308, %v3561
        %v3567 = vmul.f32 %v3313, %v3561
        %v3568 = vmul.f32 %v3318, %v3561
        %v3569 = vmul.f32 %v3323, %v3561
        %v3570 = vadd.f32 %v3550, %v3562
        %v3571 = vadd.f32 %v3551, %v3563
        %v3572 = vadd.f32 %v3552, %v3564
        %v3573 = vadd.f32 %v3553, %v3565
        %v3574 = vadd.f32 %v3554, %v3566
        %v3575 = vadd.f32 %v3555, %v3567
        %v3576 = vadd.f32 %v3556, %v3568
        %v3577 = vadd.f32 %v3557, %v3569
        %v3578 = vlaneseq
        %v3579 = vshrl.u32 %v3578, 7
        %v3580 = vsub.s32 6, %v3579
        %v3581 = vrot.slane %v603, %v3580
        %v3582 = vmul.f32 %v3328, %v3581
        %v3583 = vmul.f32 %v3333, %v3581
        %v3584 = vmul.f32 %v3338, %v3581
        %v3585 = vmul.f32 %v3343, %v3581
        %v3586 = vmul.f32 %v3348, %v3581
        %v3587 = vmul.f32 %v3353, %v3581
        %v3588 = vmul.f32 %v3358, %v3581
        %v3589 = vmul.f32 %v3363, %v3581
        %v3590 = vadd.f32 %v3570, %v3582
        %v3591 = vadd.f32 %v3571, %v3583
        %v3592 = vadd.f32 %v3572, %v3584
        %v3593 = vadd.f32 %v3573, %v3585
        %v3594 = vadd.f32 %v3574, %v3586
        %v3595 = vadd.f32 %v3575, %v3587
        %v3596 = vadd.f32 %v3576, %v3588
        %v3597 = vadd.f32 %v3577, %v3589
        %v3598 = vlaneseq
        %v3599 = vshrl.u32 %v3598, 7
        %v3600 = vsub.s32 7, %v3599
        %v3601 = vrot.slane %v603, %v3600
        %v3602 = vmul.f32 %v3368, %v3601
        %v3603 = vmul.f32 %v3373, %v3601
        %v3604 = vmul.f32 %v3378, %v3601
        %v3605 = vmul.f32 %v3383, %v3601
        %v3606 = vmul.f32 %v3388, %v3601
        %v3607 = vmul.f32 %v3393, %v3601
        %v3608 = vmul.f32 %v3398, %v3601
        %v3609 = vmul.f32 %v3403, %v3601
        %v3610 = vadd.f32 %v3590, %v3602
        %v3611 = vadd.f32 %v3591, %v3603
        %v3612 = vadd.f32 %v3592, %v3604
        %v3613 = vadd.f32 %v3593, %v3605
        %v3614 = vadd.f32 %v3594, %v3606
        %v3615 = vadd.f32 %v3595, %v3607
        %v3616 = vadd.f32 %v3596, %v3608
        %v3617 = vadd.f32 %v3597, %v3609
        %v3618 = vlaneseq
        %v3619 = vshrl.u32 %v3618, 7
        %v3620 = vsub.s32 0, %v3619
        %v3621 = vrot.slane %v604, %v3620
        %v3622 = vmul.f32 %v3408, %v3621
        %v3623 = vmul.f32 %v3413, %v3621
        %v3624 = vmul.f32 %v3418, %v3621
        %v3625 = vmul.f32 %v3423, %v3621
        %v3626 = vmul.f32 %v3428, %v3621
        %v3627 = vmul.f32 %v3433, %v3621
        %v3628 = vmul.f32 %v3438, %v3621
        %v3629 = vmul.f32 %v3443, %v3621
        %v3630 = vadd.f32 %v3610, %v3622
        %v3631 = vadd.f32 %v3611, %v3623
        %v3632 = vadd.f32 %v3612, %v3624
        %v3633 = vadd.f32 %v3613, %v3625
        %v3634 = vadd.f32 %v3614, %v3626
        %v3635 = vadd.f32 %v3615, %v3627
        %v3636 = vadd.f32 %v3616, %v3628
        %v3637 = vadd.f32 %v3617, %v3629
        %v3638 = vlaneseq
        %v3639 = vshrl.u32 %v3638, 7
        %v3640 = vsub.s32 1, %v3639
        %v3641 = vrot.slane %v604, %v3640
        %v3642 = vmul.f32 %v3448, %v3641
        %v3643 = vmul.f32 %v3453, %v3641
        %v3644 = vmul.f32 %v3458, %v3641
        %v3645 = vmul.f32 %v3463, %v3641
        %v3646 = vmul.f32 %v3468, %v3641
        %v3647 = vmul.f32 %v3473, %v3641
        %v3648 = vmul.f32 %v3478, %v3641
        %v3649 = vmul.f32 %v3483, %v3641
        %v3650 = vadd.f32 %v3630, %v3642
        %v3651 = vadd.f32 %v3631, %v3643
        %v3652 = vadd.f32 %v3632, %v3644
        %v3653 = vadd.f32 %v3633, %v3645
        %v3654 = vadd.f32 %v3634, %v3646
        %v3655 = vadd.f32 %v3635, %v3647
        %v3656 = vadd.f32 %v3636, %v3648
        %v3657 = vadd.f32 %v3637, %v3649
        %v3658 = vlaneseq
        %v3659 = vshrl.u32 %v3658, 7
        %v3660 = vsub.s32 2, %v3659
        %v3661 = vrot.slane %v604, %v3660
        %v3662 = vmul.f32 %v3650, %v3661
        %v3663 = vmul.f32 %v3651, %v3661
        %v3664 = vmul.f32 %v3652, %v3661
        %v3665 = vmul.f32 %v3653, %v3661
        %v3666 = vmul.f32 %v3654, %v3661
        %v3667 = vmul.f32 %v3655, %v3661
        %v3668 = vmul.f32 %v3656, %v3661
        %v3669 = vmul.f32 %v3657, %v3661
        %v3670 = vlaneseq
        %v3671 = vshrl.u32 %v3670, 7
        %v3672 = vsub.s32 3, %v3671
        %v3673 = vrot.slane %v604, %v3672
        %v3674 = vadd.f32 %v3662, %v3673
        %v3675 = vadd.f32 %v3663, %v3673
        %v3676 = vadd.f32 %v3664, %v3673
        %v3677 = vadd.f32 %v3665, %v3673
        %v3678 = vadd.f32 %v3666, %v3673
        %v3679 = vadd.f32 %v3667, %v3673
        %v3680 = vadd.f32 %v3668, %v3673
        %v3681 = vadd.f32 %v3669, %v3673
        %v3682 = vlaneseq
        %v3683 = vshrl.u32 %v3682, 7
        %v3684 = vsub.s32 2, %v3683
        %v3685 = vrot.slane %v1449, %v3684
        %v3686 = vmul.f32 %v3685, %v3053
        %v3687 = vmul.f32 %v3685, %v3054
        %v3688 = vmul.f32 %v3685, %v3055
        %v3689 = vmul.f32 %v3685, %v3056
        %v3690 = vmul.f32 %v3685, %v3057
        %v3691 = vmul.f32 %v3685, %v3058
        %v3692 = vmul.f32 %v3685, %v3059
        %v3693 = vmul.f32 %v3685, %v3060
        %v3694 = vlaneseq
        %v3695 = vshrl.u32 %v3694, 7
        %v3696 = vsub.s32 2, %v3695
        %v3697 = vrot.slane %v610, %v3696
        %v3698 = vmul.f32 %v3697, %v3674
        %v3699 = vmul.f32 %v3697, %v3675
        %v3700 = vmul.f32 %v3697, %v3676
        %v3701 = vmul.f32 %v3697, %v3677
        %v3702 = vmul.f32 %v3697, %v3678
        %v3703 = vmul.f32 %v3697, %v3679
        %v3704 = vmul.f32 %v3697, %v3680
        %v3705 = vmul.f32 %v3697, %v3681
        %v3706 = vadd.f32 %v3686, %v3698
        %v3707 = vadd.f32 %v3687, %v3699
        %v3708 = vadd.f32 %v3688, %v3700
        %v3709 = vadd.f32 %v3689, %v3701
        %v3710 = vadd.f32 %v3690, %v3702
        %v3711 = vadd.f32 %v3691, %v3703
        %v3712 = vadd.f32 %v3692, %v3704
        %v3713 = vadd.f32 %v3693, %v3705
        %v3714 = vld [vmem:[%s10] sm:$0x3]
        %v3715 = vld [vmem:[%s9] sm:$0xff]
        %v3716 = vld [vmem:[%s9 + $0x8] sm:$0xff]
        %v3717 = vld [vmem:[%s9 + $0x10] sm:$0xff]
        %v3718 = vld [vmem:[%s9 + $0x18] sm:$0xff]
        %v3720 = vsel %vm1482, %v3706, 0
        %v3723 = vsel %vm1482, %v3707, 0
        %v3726 = vsel %vm1482, %v3708, 0
        %v3729 = vsel %vm1482, %v3709, 0
        %v3732 = vsel %vm1482, %v3710, 0
        %v3735 = vsel %vm1482, %v3711, 0
        %v3738 = vsel %vm1482, %v3712, 0
        %v3741 = vsel %vm1482, %v3713, 0
        %3743 = vmatprep.subr.mxu0 0.0
        %3744 = vmatpush1.msra.mxu0 %v3715
        %3745 = vmatprep.subr.mxu0 0.0
        %3746 = vmatpush1.msra.mxu0 %v3716
        %3747 = vmatprep.subr.mxu0 0.0
        %3748 = vmatpush1.msra.mxu0 %v3717
        %3749 = vmatprep.subr.mxu0 0.0
        %3750 = vmatpush1.msra.mxu0 %v3718
        %3751 = vmatprep.subr.mxu0 0.0
        %3752 = vmatpush1.msra.mxu0 0.0
        %3753 = vmatprep.subr.mxu0 0.0
        %3754 = vmatpush1.msra.mxu0 0.0
        %3755 = vmatprep.subr.mxu0 0.0
        %3756 = vmatpush1.msra.mxu0 0.0
        %3757 = vmatprep.subr.mxu0 0.0
        %3758 = vmatpush1.msra.mxu0 0.0
        %3759 = vmatprep.subr.mxu0 0.0
        %3760 = vmatpush1.msra.mxu0 0.0
        %3761 = vmatprep.subr.mxu0 0.0
        %3762 = vmatpush1.msra.mxu0 0.0
        %3763 = vmatprep.subr.mxu0 0.0
        %3764 = vmatpush1.msra.mxu0 0.0
        %3765 = vmatprep.subr.mxu0 0.0
        %3766 = vmatpush1.msra.mxu0 0.0
        %3767 = vmatprep.subr.mxu0 0.0
        %3768 = vmatpush1.msra.mxu0 0.0
        %3769 = vmatprep.subr.mxu0 0.0
        %3770 = vmatpush1.msra.mxu0 0.0
        %3771 = vmatprep.subr.mxu0 0.0
        %3772 = vmatpush1.msra.mxu0 0.0
        %3773 = vmatprep.subr.mxu0 0.0
        %3774 = vmatpush1.msra.mxu0 0.0
        %3775 = vmatprep.subr.mxu0 0.0
        %3776 = vmatpush1.msra.mxu0 0.0
        %3777 = vmatprep.subr.mxu0 0.0
        %3778 = vmatpush1.msra.mxu0 0.0
        %3779 = vmatprep.subr.mxu0 0.0
        %3780 = vmatpush1.msra.mxu0 0.0
        %3781 = vmatprep.subr.mxu0 0.0
        %3782 = vmatpush1.msra.mxu0 0.0
        %3783 = vmatprep.subr.mxu0 0.0
        %3784 = vmatpush1.msra.mxu0 0.0
        %3785 = vmatprep.subr.mxu0 0.0
        %3786 = vmatpush1.msra.mxu0 0.0
        %3787 = vmatprep.subr.mxu0 0.0
        %3788 = vmatpush1.msra.mxu0 0.0
        %3789 = vmatprep.subr.mxu0 0.0
        %3790 = vmatpush1.msra.mxu0 0.0
        %3791 = vmatprep.subr.mxu0 0.0
        %3792 = vmatpush1.msra.mxu0 0.0
        %3793 = vmatprep.subr.mxu0 0.0
        %3794 = vmatpush1.msra.mxu0 0.0
        %3795 = vmatprep.subr.mxu0 0.0
        %3796 = vmatpush1.msra.mxu0 0.0
        %3797 = vmatprep.subr.mxu0 0.0
        %3798 = vmatpush1.msra.mxu0 0.0
        %3799 = vmatprep.subr.mxu0 0.0
        %3800 = vmatpush1.msra.mxu0 0.0
        %3801 = vmatprep.subr.mxu0 0.0
        %3802 = vmatpush1.msra.mxu0 0.0
        %3803 = vmatprep.subr.mxu0 0.0
        %3804 = vmatpush1.msra.mxu0 0.0
        %3805 = vmatprep.subr.mxu0 0.0
        %3806 = vmatpush1.msra.mxu0 0.0
        %3807 = vmatprep.mubr.f32.mxu0 0.0
        %3808 = vmatmul.mubr.f32.gmra.mrb[0].mxu0 %v3720
        %v3809 = vpop.f32.mrb[0].mxu0
        %v3810 = vadd.f32 0.0, %v3809
        %v3811 = vpop.f32.mrb[0].mxu0
        %3812 = vmatprep.mubr.f32.mxu0 0.0
        %3813 = vmatmul.mubr.f32.gmra.mrb[0].mxu0 %v3723
        %v3814 = vpop.f32.mrb[0].mxu0
        %v3815 = vadd.f32 0.0, %v3814
        %v3816 = vpop.f32.mrb[0].mxu0
        %3817 = vmatprep.mubr.f32.mxu0 0.0
        %3818 = vmatmul.mubr.f32.gmra.mrb[0].mxu0 %v3726
        %v3819 = vpop.f32.mrb[0].mxu0
        %v3820 = vadd.f32 0.0, %v3819
        %v3821 = vpop.f32.mrb[0].mxu0
        %3822 = vmatprep.mubr.f32.mxu0 0.0
        %3823 = vmatmul.mubr.f32.gmra.mrb[0].mxu0 %v3729
        %v3824 = vpop.f32.mrb[0].mxu0
        %v3825 = vadd.f32 0.0, %v3824
        %v3826 = vpop.f32.mrb[0].mxu0
        %3827 = vmatprep.mubr.f32.mxu0 0.0
        %3828 = vmatmul.mubr.f32.gmra.mrb[0].mxu0 %v3732
        %v3829 = vpop.f32.mrb[0].mxu0
        %v3830 = vadd.f32 0.0, %v3829
        %v3831 = vpop.f32.mrb[0].mxu0
        %3832 = vmatprep.mubr.f32.mxu0 0.0
        %3833 = vmatmul.mubr.f32.gmra.mrb[0].mxu0 %v3735
        %v3834 = vpop.f32.mrb[0].mxu0
        %v3835 = vadd.f32 0.0, %v3834
        %v3836 = vpop.f32.mrb[0].mxu0
        %3837 = vmatprep.mubr.f32.mxu0 0.0
        %3838 = vmatmul.mubr.f32.gmra.mrb[0].mxu0 %v3738
        %v3839 = vpop.f32.mrb[0].mxu0
        %v3840 = vadd.f32 0.0, %v3839
        %v3841 = vpop.f32.mrb[0].mxu0
        %3842 = vmatprep.mubr.f32.mxu0 0.0
        %3843 = vmatmul.mubr.f32.gmra.mrb[0].mxu0 %v3741
        %v3844 = vpop.f32.mrb[0].mxu0
        %v3845 = vadd.f32 0.0, %v3844
        %v3846 = vpop.f32.mrb[0].mxu0
        %3847 = vdwg.mxu0
        %v3848 = vlaneseq
        %v3849 = vshrl.u32 %v3848, 7
        %v3850 = vsub.s32 0, %v3849
        %v3851 = vrot.slane %v3714, %v3850
        %v3852 = vmul.f32 %v3810, %v3851
        %v3853 = vmul.f32 %v3815, %v3851
        %v3854 = vmul.f32 %v3820, %v3851
        %v3855 = vmul.f32 %v3825, %v3851
        %v3856 = vmul.f32 %v3830, %v3851
        %v3857 = vmul.f32 %v3835, %v3851
        %v3858 = vmul.f32 %v3840, %v3851
        %v3859 = vmul.f32 %v3845, %v3851
        %v3860 = vlaneseq
        %v3861 = vshrl.u32 %v3860, 7
        %v3862 = vsub.s32 1, %v3861
        %v3863 = vrot.slane %v3714, %v3862
        %v3864 = vadd.f32 %v3852, %v3863
        %v3865 = vadd.f32 %v3853, %v3863
        %v3866 = vadd.f32 %v3854, %v3863
        %v3867 = vadd.f32 %v3855, %v3863
        %v3868 = vadd.f32 %v3856, %v3863
        %v3869 = vadd.f32 %v3857, %v3863
        %v3870 = vadd.f32 %v3858, %v3863
        %v3871 = vadd.f32 %v3859, %v3863
        %v3872 = vmax.f32 %v3864, 0.0
        %v3873 = vmax.f32 %v3865, 0.0
        %v3874 = vmax.f32 %v3866, 0.0
        %v3875 = vmax.f32 %v3867, 0.0
        %v3876 = vmax.f32 %v3868, 0.0
        %v3877 = vmax.f32 %v3869, 0.0
        %v3878 = vmax.f32 %v3870, 0.0
        %v3879 = vmax.f32 %v3871, 0.0
        %v3880 = vld [vmem:[%s11] sm:$0xff]
        %v3881 = vld [vmem:[%s11 + $0x8] sm:$0xff]
        %v3882 = vld [vmem:[%s11 + $0x10] sm:$0xff]
        %v3883 = vld [vmem:[%s11 + $0x18] sm:$0xff]
        %v3884 = vld [vmem:[%s11 + $0x20] sm:$0xff]
        %v3885 = vld [vmem:[%s11 + $0x28] sm:$0xff]
        %v3886 = vld [vmem:[%s11 + $0x30] sm:$0xff]
        %v3887 = vld [vmem:[%s11 + $0x38] sm:$0xff]
        %v3888 = vld [vmem:[%s11 + $0x40] sm:$0xff]
        %v3889 = vld [vmem:[%s11 + $0x48] sm:$0xff]
        %v3890 = vld [vmem:[%s11 + $0x50] sm:$0xff]
        %v3891 = vld [vmem:[%s11 + $0x58] sm:$0xff]
        %v3892 = vld [vmem:[%s11 + $0x60] sm:$0xff]
        %v3893 = vld [vmem:[%s11 + $0x68] sm:$0xff]
        %v3894 = vld [vmem:[%s11 + $0x70] sm:$0xff]
        %v3895 = vld [vmem:[%s11 + $0x78] sm:$0xff]
        %3896 = vmatprep.subr.mxu0 0.0
        %3897 = vmatpush1.msra.mxu0 %v3880
        %3898 = vmatprep.subr.mxu0 0.0
        %3899 = vmatpush1.msra.mxu0 %v3881
        %3900 = vmatprep.subr.mxu0 0.0
        %3901 = vmatpush1.msra.mxu0 %v3882
        %3902 = vmatprep.subr.mxu0 0.0
        %3903 = vmatpush1.msra.mxu0 %v3883
        %3904 = vmatprep.subr.mxu0 0.0
        %3905 = vmatpush1.msra.mxu0 %v3884
        %3906 = vmatprep.subr.mxu0 0.0
        %3907 = vmatpush1.msra.mxu0 %v3885
        %3908 = vmatprep.subr.mxu0 0.0
        %3909 = vmatpush1.msra.mxu0 %v3886
        %3910 = vmatprep.subr.mxu0 0.0
        %3911 = vmatpush1.msra.mxu0 %v3887
        %3912 = vmatprep.subr.mxu0 0.0
        %3913 = vmatpush1.msra.mxu0 %v3888
        %3914 = vmatprep.subr.mxu0 0.0
        %3915 = vmatpush1.msra.mxu0 %v3889
        %3916 = vmatprep.subr.mxu0 0.0
        %3917 = vmatpush1.msra.mxu0 %v3890
        %3918 = vmatprep.subr.mxu0 0.0
        %3919 = vmatpush1.msra.mxu0 %v3891
        %3920 = vmatprep.subr.mxu0 0.0
        %3921 = vmatpush1.msra.mxu0 %v3892
        %3922 = vmatprep.subr.mxu0 0.0
        %3923 = vmatpush1.msra.mxu0 %v3893
        %3924 = vmatprep.subr.mxu0 0.0
        %3925 = vmatpush1.msra.mxu0 %v3894
        %3926 = vmatprep.subr.mxu0 0.0
        %3927 = vmatpush1.msra.mxu0 %v3895
        %3928 = vmatprep.subr.mxu0 0.0
        %3929 = vmatpush1.msra.mxu0 0.0
        %3930 = vmatprep.subr.mxu0 0.0
        %3931 = vmatpush1.msra.mxu0 0.0
        %3932 = vmatprep.subr.mxu0 0.0
        %3933 = vmatpush1.msra.mxu0 0.0
        %3934 = vmatprep.subr.mxu0 0.0
        %3935 = vmatpush1.msra.mxu0 0.0
        %3936 = vmatprep.subr.mxu0 0.0
        %3937 = vmatpush1.msra.mxu0 0.0
        %3938 = vmatprep.subr.mxu0 0.0
        %3939 = vmatpush1.msra.mxu0 0.0
        %3940 = vmatprep.subr.mxu0 0.0
        %3941 = vmatpush1.msra.mxu0 0.0
        %3942 = vmatprep.subr.mxu0 0.0
        %3943 = vmatpush1.msra.mxu0 0.0
        %3944 = vmatprep.subr.mxu0 0.0
        %3945 = vmatpush1.msra.mxu0 0.0
        %3946 = vmatprep.subr.mxu0 0.0
        %3947 = vmatpush1.msra.mxu0 0.0
        %3948 = vmatprep.subr.mxu0 0.0
        %3949 = vmatpush1.msra.mxu0 0.0
        %3950 = vmatprep.subr.mxu0 0.0
        %3951 = vmatpush1.msra.mxu0 0.0
        %3952 = vmatprep.subr.mxu0 0.0
        %3953 = vmatpush1.msra.mxu0 0.0
        %3954 = vmatprep.subr.mxu0 0.0
        %3955 = vmatpush1.msra.mxu0 0.0
        %3956 = vmatprep.subr.mxu0 0.0
        %3957 = vmatpush1.msra.mxu0 0.0
        %3958 = vmatprep.subr.mxu0 0.0
        %3959 = vmatpush1.msra.mxu0 0.0
        %3960 = vmatprep.mubr.f32.mxu0 0.0
        %3961 = vmatmul.mubr.f32.gmra.mrb[0].mxu0 %v3872
        %v3962 = vpop.f32.mrb[0].mxu0
        %v3963 = vadd.f32 0.0, %v3962
        %v3964 = vpop.f32.mrb[0].mxu0
        %3965 = vmatprep.mubr.f32.mxu0 0.0
        %3966 = vmatmul.mubr.f32.gmra.mrb[0].mxu0 %v3873
        %v3967 = vpop.f32.mrb[0].mxu0
        %v3968 = vadd.f32 0.0, %v3967
        %v3969 = vpop.f32.mrb[0].mxu0
        %3970 = vmatprep.mubr.f32.mxu0 0.0
        %3971 = vmatmul.mubr.f32.gmra.mrb[0].mxu0 %v3874
        %v3972 = vpop.f32.mrb[0].mxu0
        %v3973 = vadd.f32 0.0, %v3972
        %v3974 = vpop.f32.mrb[0].mxu0
        %3975 = vmatprep.mubr.f32.mxu0 0.0
        %3976 = vmatmul.mubr.f32.gmra.mrb[0].mxu0 %v3875
        %v3977 = vpop.f32.mrb[0].mxu0
        %v3978 = vadd.f32 0.0, %v3977
        %v3979 = vpop.f32.mrb[0].mxu0
        %3980 = vmatprep.mubr.f32.mxu0 0.0
        %3981 = vmatmul.mubr.f32.gmra.mrb[0].mxu0 %v3876
        %v3982 = vpop.f32.mrb[0].mxu0
        %v3983 = vadd.f32 0.0, %v3982
        %v3984 = vpop.f32.mrb[0].mxu0
        %3985 = vmatprep.mubr.f32.mxu0 0.0
        %3986 = vmatmul.mubr.f32.gmra.mrb[0].mxu0 %v3877
        %v3987 = vpop.f32.mrb[0].mxu0
        %v3988 = vadd.f32 0.0, %v3987
        %v3989 = vpop.f32.mrb[0].mxu0
        %3990 = vmatprep.mubr.f32.mxu0 0.0
        %3991 = vmatmul.mubr.f32.gmra.mrb[0].mxu0 %v3878
        %v3992 = vpop.f32.mrb[0].mxu0
        %v3993 = vadd.f32 0.0, %v3992
        %v3994 = vpop.f32.mrb[0].mxu0
        %3995 = vmatprep.mubr.f32.mxu0 0.0
        %3996 = vmatmul.mubr.f32.gmra.mrb[0].mxu0 %v3879
        %v3997 = vpop.f32.mrb[0].mxu0
        %v3998 = vadd.f32 0.0, %v3997
        %v3999 = vpop.f32.mrb[0].mxu0
        %4000 = vdwg.mxu0
        %v4001 = vlaneseq
        %v4002 = vshrl.u32 %v4001, 7
        %v4003 = vsub.s32 4, %v4002
        %v4004 = vrot.slane %v604, %v4003
        %v4005 = vmul.f32 %v3963, %v4004
        %v4006 = vmul.f32 %v3968, %v4004
        %v4007 = vmul.f32 %v3973, %v4004
        %v4008 = vmul.f32 %v3978, %v4004
        %v4009 = vmul.f32 %v3983, %v4004
        %v4010 = vmul.f32 %v3988, %v4004
        %v4011 = vmul.f32 %v3993, %v4004
        %v4012 = vmul.f32 %v3998, %v4004
        %v4013 = vlaneseq
        %v4014 = vshrl.u32 %v4013, 7
        %v4015 = vsub.s32 5, %v4014
        %v4016 = vrot.slane %v604, %v4015
        %v4017 = vadd.f32 %v4005, %v4016
        %v4018 = vadd.f32 %v4006, %v4016
        %v4019 = vadd.f32 %v4007, %v4016
        %v4020 = vadd.f32 %v4008, %v4016
        %v4021 = vadd.f32 %v4009, %v4016
        %v4022 = vadd.f32 %v4010, %v4016
        %v4023 = vadd.f32 %v4011, %v4016
        %v4024 = vadd.f32 %v4012, %v4016
        %v4025 = vlaneseq
        %v4026 = vshrl.u32 %v4025, 7
        %v4027 = vsub.s32 3, %v4026
        %v4028 = vrot.slane %v1449, %v4027
        %v4029 = vmul.f32 %v4028, %v3706
        %v4030 = vmul.f32 %v4028, %v3707
        %v4031 = vmul.f32 %v4028, %v3708
        %v4032 = vmul.f32 %v4028, %v3709
        %v4033 = vmul.f32 %v4028, %v3710
        %v4034 = vmul.f32 %v4028, %v3711
        %v4035 = vmul.f32 %v4028, %v3712
        %v4036 = vmul.f32 %v4028, %v3713
        %v4037 = vlaneseq
        %v4038 = vshrl.u32 %v4037, 7
        %v4039 = vsub.s32 3, %v4038
        %v4040 = vrot.slane %v610, %v4039
        %v4041 = vmul.f32 %v4040, %v4017
        %v4042 = vmul.f32 %v4040, %v4018
        %v4043 = vmul.f32 %v4040, %v4019
        %v4044 = vmul.f32 %v4040, %v4020
        %v4045 = vmul.f32 %v4040, %v4021
        %v4046 = vmul.f32 %v4040, %v4022
        %v4047 = vmul.f32 %v4040, %v4023
        %v4048 = vmul.f32 %v4040, %v4024
        %v4049 = vadd.f32 %v4029, %v4041
        %v4050 = vadd.f32 %v4030, %v4042
        %v4051 = vadd.f32 %v4031, %v4043
        %v4052 = vadd.f32 %v4032, %v4044
        %v4053 = vadd.f32 %v4033, %v4045
        %v4054 = vadd.f32 %v4034, %v4046
        %v4055 = vadd.f32 %v4035, %v4047
        %v4056 = vadd.f32 %v4036, %v4048
        %s4057 = scalar_lea.vmem %s2, 32
        %v4058 = vld [vmem:[%s4057] sm:$0xff]
        %v4059 = vld [vmem:[%s4057 + $0x8] sm:$0xff]
        %v4060 = vld [vmem:[%s4057 + $0x10] sm:$0xff]
        %v4061 = vld [vmem:[%s4057 + $0x18] sm:$0x3f]
        %v4062 = vxor.u32 %v4058, 2147483648
        %v4063 = vmul.f32 %v4062, 1.442695
        %v4064 = vpow.pop %v4063
        %v4065 = vadd.f32 %v4064, 1.0
        %v4066 = vrcp.pop %v4065
        %v4067 = vmul.f32 1.0, %v4066
        %4068 = vmatprep.subr.mxu0 0.0
        %4069 = vmatpush1.msra.mxu0 %v4049
        %4070 = vmatprep.subr.mxu0 0.0
        %4071 = vmatpush1.msra.mxu0 %v4050
        %4072 = vmatprep.subr.mxu0 0.0
        %4073 = vmatpush1.msra.mxu0 %v4051
        %4074 = vmatprep.subr.mxu0 0.0
        %4075 = vmatpush1.msra.mxu0 %v4052
        %4076 = vmatprep.subr.mxu0 0.0
        %4077 = vmatpush1.msra.mxu0 %v4053
        %4078 = vmatprep.subr.mxu0 0.0
        %4079 = vmatpush1.msra.mxu0 %v4054
        %4080 = vmatprep.subr.mxu0 0.0
        %4081 = vmatpush1.msra.mxu0 %v4055
        %4082 = vmatprep.subr.mxu0 0.0
        %4083 = vmatpush1.msra.mxu0 %v4056
        %4084 = vmatprep.subr.mxu0 0.0
        %4085 = vmatpush1.msra.mxu0 0.0
        %4086 = vmatprep.subr.mxu0 0.0
        %4087 = vmatpush1.msra.mxu0 0.0
        %4088 = vmatprep.subr.mxu0 0.0
        %4089 = vmatpush1.msra.mxu0 0.0
        %4090 = vmatprep.subr.mxu0 0.0
        %4091 = vmatpush1.msra.mxu0 0.0
        %4092 = vmatprep.subr.mxu0 0.0
        %4093 = vmatpush1.msra.mxu0 0.0
        %4094 = vmatprep.subr.mxu0 0.0
        %4095 = vmatpush1.msra.mxu0 0.0
        %4096 = vmatprep.subr.mxu0 0.0
        %4097 = vmatpush1.msra.mxu0 0.0
        %4098 = vmatprep.subr.mxu0 0.0
        %4099 = vmatpush1.msra.mxu0 0.0
        %4100 = vmatprep.subr.mxu0 0.0
        %4101 = vmatpush1.msra.mxu0 0.0
        %4102 = vmatprep.subr.mxu0 0.0
        %4103 = vmatpush1.msra.mxu0 0.0
        %4104 = vmatprep.subr.mxu0 0.0
        %4105 = vmatpush1.msra.mxu0 0.0
        %4106 = vmatprep.subr.mxu0 0.0
        %4107 = vmatpush1.msra.mxu0 0.0
        %4108 = vmatprep.subr.mxu0 0.0
        %4109 = vmatpush1.msra.mxu0 0.0
        %4110 = vmatprep.subr.mxu0 0.0
        %4111 = vmatpush1.msra.mxu0 0.0
        %4112 = vmatprep.subr.mxu0 0.0
        %4113 = vmatpush1.msra.mxu0 0.0
        %4114 = vmatprep.subr.mxu0 0.0
        %4115 = vmatpush1.msra.mxu0 0.0
        %4116 = vmatprep.subr.mxu0 0.0
        %4117 = vmatpush1.msra.mxu0 0.0
        %4118 = vmatprep.subr.mxu0 0.0
        %4119 = vmatpush1.msra.mxu0 0.0
        %4120 = vmatprep.subr.mxu0 0.0
        %4121 = vmatpush1.msra.mxu0 0.0
        %4122 = vmatprep.subr.mxu0 0.0
        %4123 = vmatpush1.msra.mxu0 0.0
        %4124 = vmatprep.subr.mxu0 0.0
        %4125 = vmatpush1.msra.mxu0 0.0
        %4126 = vmatprep.subr.mxu0 0.0
        %4127 = vmatpush1.msra.mxu0 0.0
        %4128 = vmatprep.subr.mxu0 0.0
        %4129 = vmatpush1.msra.mxu0 0.0
        %4130 = vmatprep.subr.mxu0 0.0
        %4131 = vmatpush1.msra.mxu0 0.0
        %4132 = vmatprep.mubr.f32.mxu0 0.0
        %4133 = vmatmul.mubr.f32.gmra.mrb[0].mxu0 %v613
        %v4134 = vpop.f32.mrb[0].mxu0
        %v4135 = vadd.f32 0.0, %v4134
        %v4136 = vpop.f32.mrb[0].mxu0
        %4137 = vmatprep.mubr.f32.mxu0 0.0
        %4138 = vmatmul.mubr.f32.gmra.mrb[0].mxu0 %v616
        %v4139 = vpop.f32.mrb[0].mxu0
        %v4140 = vadd.f32 0.0, %v4139
        %v4141 = vpop.f32.mrb[0].mxu0
        %4142 = vmatprep.mubr.f32.mxu0 0.0
        %4143 = vmatmul.mubr.f32.gmra.mrb[0].mxu0 %v619
        %v4144 = vpop.f32.mrb[0].mxu0
        %v4145 = vadd.f32 0.0, %v4144
        %v4146 = vpop.f32.mrb[0].mxu0
        %4147 = vmatprep.mubr.f32.mxu0 0.0
        %4148 = vmatmul.mubr.f32.gmra.mrb[0].mxu0 %v622
        %v4149 = vpop.f32.mrb[0].mxu0
        %v4150 = vadd.f32 0.0, %v4149
        %v4151 = vpop.f32.mrb[0].mxu0
        %4152 = vmatprep.mubr.f32.mxu0 0.0
        %4153 = vmatmul.mubr.f32.gmra.mrb[0].mxu0 %v625
        %v4154 = vpop.f32.mrb[0].mxu0
        %v4155 = vadd.f32 0.0, %v4154
        %v4156 = vpop.f32.mrb[0].mxu0
        %4157 = vmatprep.mubr.f32.mxu0 0.0
        %4158 = vmatmul.mubr.f32.gmra.mrb[0].mxu0 %v628
        %v4159 = vpop.f32.mrb[0].mxu0
        %v4160 = vadd.f32 0.0, %v4159
        %v4161 = vpop.f32.mrb[0].mxu0
        %4162 = vmatprep.mubr.f32.mxu0 0.0
        %4163 = vmatmul.mubr.f32.gmra.mrb[0].mxu0 %v631
        %v4164 = vpop.f32.mrb[0].mxu0
        %v4165 = vadd.f32 0.0, %v4164
        %v4166 = vpop.f32.mrb[0].mxu0
        %4167 = vmatprep.mubr.f32.mxu0 0.0
        %4168 = vmatmul.mubr.f32.gmra.mrb[0].mxu0 %v634
        %v4169 = vpop.f32.mrb[0].mxu0
        %v4170 = vadd.f32 0.0, %v4169
        %v4171 = vpop.f32.mrb[0].mxu0
        %4172 = vmatprep.mubr.f32.mxu0 0.0
        %4173 = vmatmul.mubr.f32.gmra.mrb[0].mxu0 %v637
        %v4174 = vpop.f32.mrb[0].mxu0
        %v4175 = vadd.f32 0.0, %v4174
        %v4176 = vpop.f32.mrb[0].mxu0
        %4177 = vmatprep.mubr.f32.mxu0 0.0
        %4178 = vmatmul.mubr.f32.gmra.mrb[0].mxu0 %v640
        %v4179 = vpop.f32.mrb[0].mxu0
        %v4180 = vadd.f32 0.0, %v4179
        %v4181 = vpop.f32.mrb[0].mxu0
        %4182 = vmatprep.mubr.f32.mxu0 0.0
        %4183 = vmatmul.mubr.f32.gmra.mrb[0].mxu0 %v643
        %v4184 = vpop.f32.mrb[0].mxu0
        %v4185 = vadd.f32 0.0, %v4184
        %v4186 = vpop.f32.mrb[0].mxu0
        %4187 = vmatprep.mubr.f32.mxu0 0.0
        %4188 = vmatmul.mubr.f32.gmra.mrb[0].mxu0 %v646
        %v4189 = vpop.f32.mrb[0].mxu0
        %v4190 = vadd.f32 0.0, %v4189
        %v4191 = vpop.f32.mrb[0].mxu0
        %4192 = vmatprep.mubr.f32.mxu0 0.0
        %4193 = vmatmul.mubr.f32.gmra.mrb[0].mxu0 %v649
        %v4194 = vpop.f32.mrb[0].mxu0
        %v4195 = vadd.f32 0.0, %v4194
        %v4196 = vpop.f32.mrb[0].mxu0
        %4197 = vmatprep.mubr.f32.mxu0 0.0
        %4198 = vmatmul.mubr.f32.gmra.mrb[0].mxu0 %v652
        %v4199 = vpop.f32.mrb[0].mxu0
        %v4200 = vadd.f32 0.0, %v4199
        %v4201 = vpop.f32.mrb[0].mxu0
        %4202 = vmatprep.mubr.f32.mxu0 0.0
        %4203 = vmatmul.mubr.f32.gmra.mrb[0].mxu0 %v655
        %v4204 = vpop.f32.mrb[0].mxu0
        %v4205 = vadd.f32 0.0, %v4204
        %v4206 = vpop.f32.mrb[0].mxu0
        %4207 = vmatprep.mubr.f32.mxu0 0.0
        %4208 = vmatmul.mubr.f32.gmra.mrb[0].mxu0 %v658
        %v4209 = vpop.f32.mrb[0].mxu0
        %v4210 = vadd.f32 0.0, %v4209
        %v4211 = vpop.f32.mrb[0].mxu0
        %4212 = vmatprep.mubr.f32.mxu0 0.0
        %4213 = vmatmul.mubr.f32.gmra.mrb[0].mxu0 %v661
        %v4214 = vpop.f32.mrb[0].mxu0
        %v4215 = vadd.f32 0.0, %v4214
        %v4216 = vpop.f32.mrb[0].mxu0
        %4217 = vmatprep.mubr.f32.mxu0 0.0
        %4218 = vmatmul.mubr.f32.gmra.mrb[0].mxu0 %v664
        %v4219 = vpop.f32.mrb[0].mxu0
        %v4220 = vadd.f32 0.0, %v4219
        %v4221 = vpop.f32.mrb[0].mxu0
        %4222 = vmatprep.mubr.f32.mxu0 0.0
        %4223 = vmatmul.mubr.f32.gmra.mrb[0].mxu0 %v667
        %v4224 = vpop.f32.mrb[0].mxu0
        %v4225 = vadd.f32 0.0, %v4224
        %v4226 = vpop.f32.mrb[0].mxu0
        %4227 = vmatprep.mubr.f32.mxu0 0.0
        %4228 = vmatmul.mubr.f32.gmra.mrb[0].mxu0 %v670
        %v4229 = vpop.f32.mrb[0].mxu0
        %v4230 = vadd.f32 0.0, %v4229
        %v4231 = vpop.f32.mrb[0].mxu0
        %4232 = vmatprep.mubr.f32.mxu0 0.0
        %4233 = vmatmul.mubr.f32.gmra.mrb[0].mxu0 %v673
        %v4234 = vpop.f32.mrb[0].mxu0
        %v4235 = vadd.f32 0.0, %v4234
        %v4236 = vpop.f32.mrb[0].mxu0
        %4237 = vmatprep.mubr.f32.mxu0 0.0
        %4238 = vmatmul.mubr.f32.gmra.mrb[0].mxu0 %v676
        %v4239 = vpop.f32.mrb[0].mxu0
        %v4240 = vadd.f32 0.0, %v4239
        %v4241 = vpop.f32.mrb[0].mxu0
        %4242 = vmatprep.mubr.f32.mxu0 0.0
        %4243 = vmatmul.mubr.f32.gmra.mrb[0].mxu0 %v679
        %v4244 = vpop.f32.mrb[0].mxu0
        %v4245 = vadd.f32 0.0, %v4244
        %v4246 = vpop.f32.mrb[0].mxu0
        %4247 = vmatprep.mubr.f32.mxu0 0.0
        %4248 = vmatmul.mubr.f32.gmra.mrb[0].mxu0 %v682
        %v4249 = vpop.f32.mrb[0].mxu0
        %v4250 = vadd.f32 0.0, %v4249
        %v4251 = vpop.f32.mrb[0].mxu0
        %4252 = vmatprep.mubr.f32.mxu0 0.0
        %4253 = vmatmul.mubr.f32.gmra.mrb[0].mxu0 %v685
        %v4254 = vpop.f32.mrb[0].mxu0
        %v4255 = vadd.f32 0.0, %v4254
        %v4256 = vpop.f32.mrb[0].mxu0
        %4257 = vmatprep.mubr.f32.mxu0 0.0
        %4258 = vmatmul.mubr.f32.gmra.mrb[0].mxu0 %v688
        %v4259 = vpop.f32.mrb[0].mxu0
        %v4260 = vadd.f32 0.0, %v4259
        %v4261 = vpop.f32.mrb[0].mxu0
        %4262 = vmatprep.mubr.f32.mxu0 0.0
        %4263 = vmatmul.mubr.f32.gmra.mrb[0].mxu0 %v691
        %v4264 = vpop.f32.mrb[0].mxu0
        %v4265 = vadd.f32 0.0, %v4264
        %v4266 = vpop.f32.mrb[0].mxu0
        %4267 = vmatprep.mubr.f32.mxu0 0.0
        %4268 = vmatmul.mubr.f32.gmra.mrb[0].mxu0 %v694
        %v4269 = vpop.f32.mrb[0].mxu0
        %v4270 = vadd.f32 0.0, %v4269
        %v4271 = vpop.f32.mrb[0].mxu0
        %4272 = vmatprep.mubr.f32.mxu0 0.0
        %4273 = vmatmul.mubr.f32.gmra.mrb[0].mxu0 %v697
        %v4274 = vpop.f32.mrb[0].mxu0
        %v4275 = vadd.f32 0.0, %v4274
        %v4276 = vpop.f32.mrb[0].mxu0
        %4277 = vmatprep.mubr.f32.mxu0 0.0
        %4278 = vmatmul.mubr.f32.gmra.mrb[0].mxu0 %v700
        %v4279 = vpop.f32.mrb[0].mxu0
        %v4280 = vadd.f32 0.0, %v4279
        %v4281 = vpop.f32.mrb[0].mxu0
        %4282 = vmatprep.mubr.f32.mxu0 0.0
        %4283 = vmatmul.mubr.f32.gmra.mrb[0].mxu0 %v703
        %v4284 = vpop.f32.mrb[0].mxu0
        %v4285 = vadd.f32 0.0, %v4284
        %v4286 = vpop.f32.mrb[0].mxu0
        %4287 = vmatprep.mubr.f32.mxu0 0.0
        %4288 = vmatmul.mubr.f32.gmra.mrb[0].mxu0 %v706
        %v4289 = vpop.f32.mrb[0].mxu0
        %v4290 = vadd.f32 0.0, %v4289
        %v4291 = vpop.f32.mrb[0].mxu0
        %4292 = vmatprep.mubr.f32.mxu0 0.0
        %4293 = vmatmul.mubr.f32.gmra.mrb[0].mxu0 %v709
        %v4294 = vpop.f32.mrb[0].mxu0
        %v4295 = vadd.f32 0.0, %v4294
        %v4296 = vpop.f32.mrb[0].mxu0
        %4297 = vmatprep.mubr.f32.mxu0 0.0
        %4298 = vmatmul.mubr.f32.gmra.mrb[0].mxu0 %v712
        %v4299 = vpop.f32.mrb[0].mxu0
        %v4300 = vadd.f32 0.0, %v4299
        %v4301 = vpop.f32.mrb[0].mxu0
        %4302 = vmatprep.mubr.f32.mxu0 0.0
        %4303 = vmatmul.mubr.f32.gmra.mrb[0].mxu0 %v715
        %v4304 = vpop.f32.mrb[0].mxu0
        %v4305 = vadd.f32 0.0, %v4304
        %v4306 = vpop.f32.mrb[0].mxu0
        %4307 = vmatprep.mubr.f32.mxu0 0.0
        %4308 = vmatmul.mubr.f32.gmra.mrb[0].mxu0 %v718
        %v4309 = vpop.f32.mrb[0].mxu0
        %v4310 = vadd.f32 0.0, %v4309
        %v4311 = vpop.f32.mrb[0].mxu0
        %4312 = vmatprep.mubr.f32.mxu0 0.0
        %4313 = vmatmul.mubr.f32.gmra.mrb[0].mxu0 %v721
        %v4314 = vpop.f32.mrb[0].mxu0
        %v4315 = vadd.f32 0.0, %v4314
        %v4316 = vpop.f32.mrb[0].mxu0
        %4317 = vmatprep.mubr.f32.mxu0 0.0
        %4318 = vmatmul.mubr.f32.gmra.mrb[0].mxu0 %v724
        %v4319 = vpop.f32.mrb[0].mxu0
        %v4320 = vadd.f32 0.0, %v4319
        %v4321 = vpop.f32.mrb[0].mxu0
        %4322 = vmatprep.mubr.f32.mxu0 0.0
        %4323 = vmatmul.mubr.f32.gmra.mrb[0].mxu0 %v727
        %v4324 = vpop.f32.mrb[0].mxu0
        %v4325 = vadd.f32 0.0, %v4324
        %v4326 = vpop.f32.mrb[0].mxu0
        %4327 = vmatprep.mubr.f32.mxu0 0.0
        %4328 = vmatmul.mubr.f32.gmra.mrb[0].mxu0 %v730
        %v4329 = vpop.f32.mrb[0].mxu0
        %v4330 = vadd.f32 0.0, %v4329
        %v4331 = vpop.f32.mrb[0].mxu0
        %4332 = vmatprep.mubr.f32.mxu0 0.0
        %4333 = vmatmul.mubr.f32.gmra.mrb[0].mxu0 %v733
        %v4334 = vpop.f32.mrb[0].mxu0
        %v4335 = vadd.f32 0.0, %v4334
        %v4336 = vpop.f32.mrb[0].mxu0
        %4337 = vmatprep.mubr.f32.mxu0 0.0
        %4338 = vmatmul.mubr.f32.gmra.mrb[0].mxu0 %v736
        %v4339 = vpop.f32.mrb[0].mxu0
        %v4340 = vadd.f32 0.0, %v4339
        %v4341 = vpop.f32.mrb[0].mxu0
        %4342 = vmatprep.mubr.f32.mxu0 0.0
        %4343 = vmatmul.mubr.f32.gmra.mrb[0].mxu0 %v739
        %v4344 = vpop.f32.mrb[0].mxu0
        %v4345 = vadd.f32 0.0, %v4344
        %v4346 = vpop.f32.mrb[0].mxu0
        %4347 = vmatprep.mubr.f32.mxu0 0.0
        %4348 = vmatmul.mubr.f32.gmra.mrb[0].mxu0 %v742
        %v4349 = vpop.f32.mrb[0].mxu0
        %v4350 = vadd.f32 0.0, %v4349
        %v4351 = vpop.f32.mrb[0].mxu0
        %4352 = vmatprep.mubr.f32.mxu0 0.0
        %4353 = vmatmul.mubr.f32.gmra.mrb[0].mxu0 %v745
        %v4354 = vpop.f32.mrb[0].mxu0
        %v4355 = vadd.f32 0.0, %v4354
        %v4356 = vpop.f32.mrb[0].mxu0
        %4357 = vmatprep.mubr.f32.mxu0 0.0
        %4358 = vmatmul.mubr.f32.gmra.mrb[0].mxu0 %v748
        %v4359 = vpop.f32.mrb[0].mxu0
        %v4360 = vadd.f32 0.0, %v4359
        %v4361 = vpop.f32.mrb[0].mxu0
        %4362 = vmatprep.mubr.f32.mxu0 0.0
        %4363 = vmatmul.mubr.f32.gmra.mrb[0].mxu0 %v751
        %v4364 = vpop.f32.mrb[0].mxu0
        %v4365 = vadd.f32 0.0, %v4364
        %v4366 = vpop.f32.mrb[0].mxu0
        %4367 = vmatprep.mubr.f32.mxu0 0.0
        %4368 = vmatmul.mubr.f32.gmra.mrb[0].mxu0 %v754
        %v4369 = vpop.f32.mrb[0].mxu0
        %v4370 = vadd.f32 0.0, %v4369
        %v4371 = vpop.f32.mrb[0].mxu0
        %4372 = vmatprep.mubr.f32.mxu0 0.0
        %4373 = vmatmul.mubr.f32.gmra.mrb[0].mxu0 %v757
        %v4374 = vpop.f32.mrb[0].mxu0
        %v4375 = vadd.f32 0.0, %v4374
        %v4376 = vpop.f32.mrb[0].mxu0
        %4377 = vmatprep.mubr.f32.mxu0 0.0
        %4378 = vmatmul.mubr.f32.gmra.mrb[0].mxu0 %v760
        %v4379 = vpop.f32.mrb[0].mxu0
        %v4380 = vadd.f32 0.0, %v4379
        %v4381 = vpop.f32.mrb[0].mxu0
        %4382 = vmatprep.mubr.f32.mxu0 0.0
        %4383 = vmatmul.mubr.f32.gmra.mrb[0].mxu0 %v763
        %v4384 = vpop.f32.mrb[0].mxu0
        %v4385 = vadd.f32 0.0, %v4384
        %v4386 = vpop.f32.mrb[0].mxu0
        %4387 = vmatprep.mubr.f32.mxu0 0.0
        %4388 = vmatmul.mubr.f32.gmra.mrb[0].mxu0 %v766
        %v4389 = vpop.f32.mrb[0].mxu0
        %v4390 = vadd.f32 0.0, %v4389
        %v4391 = vpop.f32.mrb[0].mxu0
        %4392 = vmatprep.mubr.f32.mxu0 0.0
        %4393 = vmatmul.mubr.f32.gmra.mrb[0].mxu0 %v769
        %v4394 = vpop.f32.mrb[0].mxu0
        %v4395 = vadd.f32 0.0, %v4394
        %v4396 = vpop.f32.mrb[0].mxu0
        %4397 = vmatprep.mubr.f32.mxu0 0.0
        %4398 = vmatmul.mubr.f32.gmra.mrb[0].mxu0 %v772
        %v4399 = vpop.f32.mrb[0].mxu0
        %v4400 = vadd.f32 0.0, %v4399
        %v4401 = vpop.f32.mrb[0].mxu0
        %4402 = vmatprep.mubr.f32.mxu0 0.0
        %4403 = vmatmul.mubr.f32.gmra.mrb[0].mxu0 %v775
        %v4404 = vpop.f32.mrb[0].mxu0
        %v4405 = vadd.f32 0.0, %v4404
        %v4406 = vpop.f32.mrb[0].mxu0
        %4407 = vmatprep.mubr.f32.mxu0 0.0
        %4408 = vmatmul.mubr.f32.gmra.mrb[0].mxu0 %v778
        %v4409 = vpop.f32.mrb[0].mxu0
        %v4410 = vadd.f32 0.0, %v4409
        %v4411 = vpop.f32.mrb[0].mxu0
        %4412 = vmatprep.mubr.f32.mxu0 0.0
        %4413 = vmatmul.mubr.f32.gmra.mrb[0].mxu0 %v781
        %v4414 = vpop.f32.mrb[0].mxu0
        %v4415 = vadd.f32 0.0, %v4414
        %v4416 = vpop.f32.mrb[0].mxu0
        %4417 = vmatprep.mubr.f32.mxu0 0.0
        %4418 = vmatmul.mubr.f32.gmra.mrb[0].mxu0 %v784
        %v4419 = vpop.f32.mrb[0].mxu0
        %v4420 = vadd.f32 0.0, %v4419
        %v4421 = vpop.f32.mrb[0].mxu0
        %4422 = vmatprep.mubr.f32.mxu0 0.0
        %4423 = vmatmul.mubr.f32.gmra.mrb[0].mxu0 %v787
        %v4424 = vpop.f32.mrb[0].mxu0
        %v4425 = vadd.f32 0.0, %v4424
        %v4426 = vpop.f32.mrb[0].mxu0
        %4427 = vmatprep.mubr.f32.mxu0 0.0
        %4428 = vmatmul.mubr.f32.gmra.mrb[0].mxu0 %v790
        %v4429 = vpop.f32.mrb[0].mxu0
        %v4430 = vadd.f32 0.0, %v4429
        %v4431 = vpop.f32.mrb[0].mxu0
        %4432 = vmatprep.mubr.f32.mxu0 0.0
        %4433 = vmatmul.mubr.f32.gmra.mrb[0].mxu0 %v793
        %v4434 = vpop.f32.mrb[0].mxu0
        %v4435 = vadd.f32 0.0, %v4434
        %v4436 = vpop.f32.mrb[0].mxu0
        %4437 = vmatprep.mubr.f32.mxu0 0.0
        %4438 = vmatmul.mubr.f32.gmra.mrb[0].mxu0 %v796
        %v4439 = vpop.f32.mrb[0].mxu0
        %v4440 = vadd.f32 0.0, %v4439
        %v4441 = vpop.f32.mrb[0].mxu0
        %4442 = vmatprep.mubr.f32.mxu0 0.0
        %4443 = vmatmul.mubr.f32.gmra.mrb[0].mxu0 %v799
        %v4444 = vpop.f32.mrb[0].mxu0
        %v4445 = vadd.f32 0.0, %v4444
        %v4446 = vpop.f32.mrb[0].mxu0
        %4447 = vmatprep.mubr.f32.mxu0 0.0
        %4448 = vmatmul.mubr.f32.gmra.mrb[0].mxu0 %v802
        %v4449 = vpop.f32.mrb[0].mxu0
        %v4450 = vadd.f32 0.0, %v4449
        %v4451 = vpop.f32.mrb[0].mxu0
        %4452 = vmatprep.mubr.f32.mxu0 0.0
        %4453 = vmatmul.mubr.f32.gmra.mrb[0].mxu0 %v805
        %v4454 = vpop.f32.mrb[0].mxu0
        %v4455 = vadd.f32 0.0, %v4454
        %v4456 = vpop.f32.mrb[0].mxu0
        %4457 = vmatprep.mubr.f32.mxu0 0.0
        %4458 = vmatmul.mubr.f32.gmra.mrb[0].mxu0 %v808
        %v4459 = vpop.f32.mrb[0].mxu0
        %v4460 = vadd.f32 0.0, %v4459
        %v4461 = vpop.f32.mrb[0].mxu0
        %4462 = vmatprep.mubr.f32.mxu0 0.0
        %4463 = vmatmul.mubr.f32.gmra.mrb[0].mxu0 %v811
        %v4464 = vpop.f32.mrb[0].mxu0
        %v4465 = vadd.f32 0.0, %v4464
        %v4466 = vpop.f32.mrb[0].mxu0
        %4467 = vmatprep.mubr.f32.mxu0 0.0
        %4468 = vmatmul.mubr.f32.gmra.mrb[0].mxu0 %v814
        %v4469 = vpop.f32.mrb[0].mxu0
        %v4470 = vadd.f32 0.0, %v4469
        %v4471 = vpop.f32.mrb[0].mxu0
        %4472 = vmatprep.mubr.f32.mxu0 0.0
        %4473 = vmatmul.mubr.f32.gmra.mrb[0].mxu0 %v817
        %v4474 = vpop.f32.mrb[0].mxu0
        %v4475 = vadd.f32 0.0, %v4474
        %v4476 = vpop.f32.mrb[0].mxu0
        %4477 = vmatprep.mubr.f32.mxu0 0.0
        %4478 = vmatmul.mubr.f32.gmra.mrb[0].mxu0 %v820
        %v4479 = vpop.f32.mrb[0].mxu0
        %v4480 = vadd.f32 0.0, %v4479
        %v4481 = vpop.f32.mrb[0].mxu0
        %4482 = vmatprep.mubr.f32.mxu0 0.0
        %4483 = vmatmul.mubr.f32.gmra.mrb[0].mxu0 %v823
        %v4484 = vpop.f32.mrb[0].mxu0
        %v4485 = vadd.f32 0.0, %v4484
        %v4486 = vpop.f32.mrb[0].mxu0
        %4487 = vmatprep.mubr.f32.mxu0 0.0
        %4488 = vmatmul.mubr.f32.gmra.mrb[0].mxu0 %v826
        %v4489 = vpop.f32.mrb[0].mxu0
        %v4490 = vadd.f32 0.0, %v4489
        %v4491 = vpop.f32.mrb[0].mxu0
        %4492 = vdwg.mxu0
        %v4493 = vlaneseq
        %v4494 = vshrl.u32 %v4493, 7
        %v4495 = vsub.s32 4, %v4494
        %v4496 = vrot.slane %v4058, %v4495
        %v4497 = vmul.f32 %v4135, %v4496
        %v4498 = vmul.f32 %v4140, %v4496
        %v4499 = vmul.f32 %v4145, %v4496
        %v4500 = vmul.f32 %v4150, %v4496
        %v4501 = vmul.f32 %v4155, %v4496
        %v4502 = vmul.f32 %v4160, %v4496
        %v4503 = vmul.f32 %v4165, %v4496
        %v4504 = vmul.f32 %v4170, %v4496
        %v4505 = vlaneseq
        %v4506 = vshrl.u32 %v4505, 7
        %v4507 = vsub.s32 5, %v4506
        %v4508 = vrot.slane %v4058, %v4507
        %v4509 = vmul.f32 %v4175, %v4508
        %v4510 = vmul.f32 %v4180, %v4508
        %v4511 = vmul.f32 %v4185, %v4508
        %v4512 = vmul.f32 %v4190, %v4508
        %v4513 = vmul.f32 %v4195, %v4508
        %v4514 = vmul.f32 %v4200, %v4508
        %v4515 = vmul.f32 %v4205, %v4508
        %v4516 = vmul.f32 %v4210, %v4508
        %v4517 = vadd.f32 %v4497, %v4509
        %v4518 = vadd.f32 %v4498, %v4510
        %v4519 = vadd.f32 %v4499, %v4511
        %v4520 = vadd.f32 %v4500, %v4512
        %v4521 = vadd.f32 %v4501, %v4513
        %v4522 = vadd.f32 %v4502, %v4514
        %v4523 = vadd.f32 %v4503, %v4515
        %v4524 = vadd.f32 %v4504, %v4516
        %v4525 = vlaneseq
        %v4526 = vshrl.u32 %v4525, 7
        %v4527 = vsub.s32 6, %v4526
        %v4528 = vrot.slane %v4058, %v4527
        %v4529 = vmul.f32 %v4215, %v4528
        %v4530 = vmul.f32 %v4220, %v4528
        %v4531 = vmul.f32 %v4225, %v4528
        %v4532 = vmul.f32 %v4230, %v4528
        %v4533 = vmul.f32 %v4235, %v4528
        %v4534 = vmul.f32 %v4240, %v4528
        %v4535 = vmul.f32 %v4245, %v4528
        %v4536 = vmul.f32 %v4250, %v4528
        %v4537 = vadd.f32 %v4517, %v4529
        %v4538 = vadd.f32 %v4518, %v4530
        %v4539 = vadd.f32 %v4519, %v4531
        %v4540 = vadd.f32 %v4520, %v4532
        %v4541 = vadd.f32 %v4521, %v4533
        %v4542 = vadd.f32 %v4522, %v4534
        %v4543 = vadd.f32 %v4523, %v4535
        %v4544 = vadd.f32 %v4524, %v4536
        %v4545 = vlaneseq
        %v4546 = vshrl.u32 %v4545, 7
        %v4547 = vsub.s32 7, %v4546
        %v4548 = vrot.slane %v4058, %v4547
        %v4549 = vmul.f32 %v4255, %v4548
        %v4550 = vmul.f32 %v4260, %v4548
        %v4551 = vmul.f32 %v4265, %v4548
        %v4552 = vmul.f32 %v4270, %v4548
        %v4553 = vmul.f32 %v4275, %v4548
        %v4554 = vmul.f32 %v4280, %v4548
        %v4555 = vmul.f32 %v4285, %v4548
        %v4556 = vmul.f32 %v4290, %v4548
        %v4557 = vadd.f32 %v4537, %v4549
        %v4558 = vadd.f32 %v4538, %v4550
        %v4559 = vadd.f32 %v4539, %v4551
        %v4560 = vadd.f32 %v4540, %v4552
        %v4561 = vadd.f32 %v4541, %v4553
        %v4562 = vadd.f32 %v4542, %v4554
        %v4563 = vadd.f32 %v4543, %v4555
        %v4564 = vadd.f32 %v4544, %v4556
        %v4565 = vlaneseq
        %v4566 = vshrl.u32 %v4565, 7
        %v4567 = vsub.s32 0, %v4566
        %v4568 = vrot.slane %v4059, %v4567
        %v4569 = vmul.f32 %v4295, %v4568
        %v4570 = vmul.f32 %v4300, %v4568
        %v4571 = vmul.f32 %v4305, %v4568
        %v4572 = vmul.f32 %v4310, %v4568
        %v4573 = vmul.f32 %v4315, %v4568
        %v4574 = vmul.f32 %v4320, %v4568
        %v4575 = vmul.f32 %v4325, %v4568
        %v4576 = vmul.f32 %v4330, %v4568
        %v4577 = vadd.f32 %v4557, %v4569
        %v4578 = vadd.f32 %v4558, %v4570
        %v4579 = vadd.f32 %v4559, %v4571
        %v4580 = vadd.f32 %v4560, %v4572
        %v4581 = vadd.f32 %v4561, %v4573
        %v4582 = vadd.f32 %v4562, %v4574
        %v4583 = vadd.f32 %v4563, %v4575
        %v4584 = vadd.f32 %v4564, %v4576
        %v4585 = vlaneseq
        %v4586 = vshrl.u32 %v4585, 7
        %v4587 = vsub.s32 1, %v4586
        %v4588 = vrot.slane %v4059, %v4587
        %v4589 = vmul.f32 %v4335, %v4588
        %v4590 = vmul.f32 %v4340, %v4588
        %v4591 = vmul.f32 %v4345, %v4588
        %v4592 = vmul.f32 %v4350, %v4588
        %v4593 = vmul.f32 %v4355, %v4588
        %v4594 = vmul.f32 %v4360, %v4588
        %v4595 = vmul.f32 %v4365, %v4588
        %v4596 = vmul.f32 %v4370, %v4588
        %v4597 = vadd.f32 %v4577, %v4589
        %v4598 = vadd.f32 %v4578, %v4590
        %v4599 = vadd.f32 %v4579, %v4591
        %v4600 = vadd.f32 %v4580, %v4592
        %v4601 = vadd.f32 %v4581, %v4593
        %v4602 = vadd.f32 %v4582, %v4594
        %v4603 = vadd.f32 %v4583, %v4595
        %v4604 = vadd.f32 %v4584, %v4596
        %v4605 = vlaneseq
        %v4606 = vshrl.u32 %v4605, 7
        %v4607 = vsub.s32 2, %v4606
        %v4608 = vrot.slane %v4059, %v4607
        %v4609 = vmul.f32 %v4375, %v4608
        %v4610 = vmul.f32 %v4380, %v4608
        %v4611 = vmul.f32 %v4385, %v4608
        %v4612 = vmul.f32 %v4390, %v4608
        %v4613 = vmul.f32 %v4395, %v4608
        %v4614 = vmul.f32 %v4400, %v4608
        %v4615 = vmul.f32 %v4405, %v4608
        %v4616 = vmul.f32 %v4410, %v4608
        %v4617 = vadd.f32 %v4597, %v4609
        %v4618 = vadd.f32 %v4598, %v4610
        %v4619 = vadd.f32 %v4599, %v4611
        %v4620 = vadd.f32 %v4600, %v4612
        %v4621 = vadd.f32 %v4601, %v4613
        %v4622 = vadd.f32 %v4602, %v4614
        %v4623 = vadd.f32 %v4603, %v4615
        %v4624 = vadd.f32 %v4604, %v4616
        %v4625 = vlaneseq
        %v4626 = vshrl.u32 %v4625, 7
        %v4627 = vsub.s32 3, %v4626
        %v4628 = vrot.slane %v4059, %v4627
        %v4629 = vmul.f32 %v4415, %v4628
        %v4630 = vmul.f32 %v4420, %v4628
        %v4631 = vmul.f32 %v4425, %v4628
        %v4632 = vmul.f32 %v4430, %v4628
        %v4633 = vmul.f32 %v4435, %v4628
        %v4634 = vmul.f32 %v4440, %v4628
        %v4635 = vmul.f32 %v4445, %v4628
        %v4636 = vmul.f32 %v4450, %v4628
        %v4637 = vadd.f32 %v4617, %v4629
        %v4638 = vadd.f32 %v4618, %v4630
        %v4639 = vadd.f32 %v4619, %v4631
        %v4640 = vadd.f32 %v4620, %v4632
        %v4641 = vadd.f32 %v4621, %v4633
        %v4642 = vadd.f32 %v4622, %v4634
        %v4643 = vadd.f32 %v4623, %v4635
        %v4644 = vadd.f32 %v4624, %v4636
        %v4645 = vlaneseq
        %v4646 = vshrl.u32 %v4645, 7
        %v4647 = vsub.s32 4, %v4646
        %v4648 = vrot.slane %v4059, %v4647
        %v4649 = vmul.f32 %v4455, %v4648
        %v4650 = vmul.f32 %v4460, %v4648
        %v4651 = vmul.f32 %v4465, %v4648
        %v4652 = vmul.f32 %v4470, %v4648
        %v4653 = vmul.f32 %v4475, %v4648
        %v4654 = vmul.f32 %v4480, %v4648
        %v4655 = vmul.f32 %v4485, %v4648
        %v4656 = vmul.f32 %v4490, %v4648
        %v4657 = vadd.f32 %v4637, %v4649
        %v4658 = vadd.f32 %v4638, %v4650
        %v4659 = vadd.f32 %v4639, %v4651
        %v4660 = vadd.f32 %v4640, %v4652
        %v4661 = vadd.f32 %v4641, %v4653
        %v4662 = vadd.f32 %v4642, %v4654
        %v4663 = vadd.f32 %v4643, %v4655
        %v4664 = vadd.f32 %v4644, %v4656
        %v4665 = vlaneseq
        %v4666 = vshrl.u32 %v4665, 7
        %v4667 = vsub.s32 5, %v4666
        %v4668 = vrot.slane %v4059, %v4667
        %v4669 = vmul.f32 %v4657, %v4668
        %v4670 = vmul.f32 %v4658, %v4668
        %v4671 = vmul.f32 %v4659, %v4668
        %v4672 = vmul.f32 %v4660, %v4668
        %v4673 = vmul.f32 %v4661, %v4668
        %v4674 = vmul.f32 %v4662, %v4668
        %v4675 = vmul.f32 %v4663, %v4668
        %v4676 = vmul.f32 %v4664, %v4668
        %v4677 = vlaneseq
        %v4678 = vshrl.u32 %v4677, 7
        %v4679 = vsub.s32 6, %v4678
        %v4680 = vrot.slane %v4059, %v4679
        %v4681 = vadd.f32 %v4669, %v4680
        %v4682 = vadd.f32 %v4670, %v4680
        %v4683 = vadd.f32 %v4671, %v4680
        %v4684 = vadd.f32 %v4672, %v4680
        %v4685 = vadd.f32 %v4673, %v4680
        %v4686 = vadd.f32 %v4674, %v4680
        %v4687 = vadd.f32 %v4675, %v4680
        %v4688 = vadd.f32 %v4676, %v4680
        %v4689 = vsub.f32 1.0, %v4067
        %v4690 = vlaneseq
        %v4691 = vshrl.u32 %v4690, 7
        %v4692 = vsub.s32 0, %v4691
        %v4693 = vrot.slane %v4689, %v4692
        %v4694 = vmul.f32 %v4693, %v4049
        %v4695 = vmul.f32 %v4693, %v4050
        %v4696 = vmul.f32 %v4693, %v4051
        %v4697 = vmul.f32 %v4693, %v4052
        %v4698 = vmul.f32 %v4693, %v4053
        %v4699 = vmul.f32 %v4693, %v4054
        %v4700 = vmul.f32 %v4693, %v4055
        %v4701 = vmul.f32 %v4693, %v4056
        %v4702 = vlaneseq
        %v4703 = vshrl.u32 %v4702, 7
        %v4704 = vsub.s32 0, %v4703
        %v4705 = vrot.slane %v4067, %v4704
        %v4706 = vmul.f32 %v4705, %v4681
        %v4707 = vmul.f32 %v4705, %v4682
        %v4708 = vmul.f32 %v4705, %v4683
        %v4709 = vmul.f32 %v4705, %v4684
        %v4710 = vmul.f32 %v4705, %v4685
        %v4711 = vmul.f32 %v4705, %v4686
        %v4712 = vmul.f32 %v4705, %v4687
        %v4713 = vmul.f32 %v4705, %v4688
        %v4714 = vadd.f32 %v4694, %v4706
        %v4715 = vadd.f32 %v4695, %v4707
        %v4716 = vadd.f32 %v4696, %v4708
        %v4717 = vadd.f32 %v4697, %v4709
        %v4718 = vadd.f32 %v4698, %v4710
        %v4719 = vadd.f32 %v4699, %v4711
        %v4720 = vadd.f32 %v4700, %v4712
        %v4721 = vadd.f32 %v4701, %v4713
        %v4722 = vsel %vm1482, %v4714, 0.0
        %4723 = vadd.xlane.f32.xlu0 %v4722
        %v4724 = vpop.xlane.xlu0 %4723
        %v4725 = vsel %vm1482, %v4715, 0.0
        %4726 = vadd.xlane.f32.xlu0 %v4725
        %v4727 = vpop.xlane.xlu0 %4726
        %v4728 = vsel %vm1482, %v4716, 0.0
        %4729 = vadd.xlane.f32.xlu0 %v4728
        %v4730 = vpop.xlane.xlu0 %4729
        %v4731 = vsel %vm1482, %v4717, 0.0
        %4732 = vadd.xlane.f32.xlu0 %v4731
        %v4733 = vpop.xlane.xlu0 %4732
        %v4734 = vsel %vm1482, %v4718, 0.0
        %4735 = vadd.xlane.f32.xlu0 %v4734
        %v4736 = vpop.xlane.xlu0 %4735
        %v4737 = vsel %vm1482, %v4719, 0.0
        %4738 = vadd.xlane.f32.xlu0 %v4737
        %v4739 = vpop.xlane.xlu0 %4738
        %v4740 = vsel %vm1482, %v4720, 0.0
        %4741 = vadd.xlane.f32.xlu0 %v4740
        %v4742 = vpop.xlane.xlu0 %4741
        %v4743 = vsel %vm1482, %v4721, 0.0
        %4744 = vadd.xlane.f32.xlu0 %v4743
        %v4745 = vpop.xlane.xlu0 %4744
        %v4746 = vmul.f32 %v4724, %v1507
        %v4747 = vmul.f32 %v4727, %v1507
        %v4748 = vmul.f32 %v4730, %v1507
        %v4749 = vmul.f32 %v4733, %v1507
        %v4750 = vmul.f32 %v4736, %v1507
        %v4751 = vmul.f32 %v4739, %v1507
        %v4752 = vmul.f32 %v4742, %v1507
        %v4753 = vmul.f32 %v4745, %v1507
        %v4754 = vsub.f32 %v4714, %v4746
        %v4755 = vsub.f32 %v4715, %v4747
        %v4756 = vsub.f32 %v4716, %v4748
        %v4757 = vsub.f32 %v4717, %v4749
        %v4758 = vsub.f32 %v4718, %v4750
        %v4759 = vsub.f32 %v4719, %v4751
        %v4760 = vsub.f32 %v4720, %v4752
        %v4761 = vsub.f32 %v4721, %v4753
        %v4762 = vmul.f32 %v4754, %v4754
        %v4763 = vmul.f32 %v4755, %v4755
        %v4764 = vmul.f32 %v4756, %v4756
        %v4765 = vmul.f32 %v4757, %v4757
        %v4766 = vmul.f32 %v4758, %v4758
        %v4767 = vmul.f32 %v4759, %v4759
        %v4768 = vmul.f32 %v4760, %v4760
        %v4769 = vmul.f32 %v4761, %v4761
        %v4770 = vsel %vm1482, %v4762, 0.0
        %4771 = vadd.xlane.f32.xlu0 %v4770
        %v4772 = vpop.xlane.xlu0 %4771
        %v4773 = vsel %vm1482, %v4763, 0.0
        %4774 = vadd.xlane.f32.xlu0 %v4773
        %v4775 = vpop.xlane.xlu0 %4774
        %v4776 = vsel %vm1482, %v4764, 0.0
        %4777 = vadd.xlane.f32.xlu0 %v4776
        %v4778 = vpop.xlane.xlu0 %4777
        %v4779 = vsel %vm1482, %v4765, 0.0
        %4780 = vadd.xlane.f32.xlu0 %v4779
        %v4781 = vpop.xlane.xlu0 %4780
        %v4782 = vsel %vm1482, %v4766, 0.0
        %4783 = vadd.xlane.f32.xlu0 %v4782
        %v4784 = vpop.xlane.xlu0 %4783
        %v4785 = vsel %vm1482, %v4767, 0.0
        %4786 = vadd.xlane.f32.xlu0 %v4785
        %v4787 = vpop.xlane.xlu0 %4786
        %v4788 = vsel %vm1482, %v4768, 0.0
        %4789 = vadd.xlane.f32.xlu0 %v4788
        %v4790 = vpop.xlane.xlu0 %4789
        %v4791 = vsel %vm1482, %v4769, 0.0
        %4792 = vadd.xlane.f32.xlu0 %v4791
        %v4793 = vpop.xlane.xlu0 %4792
        %v4794 = vmul.f32 %v4772, %v1507
        %v4795 = vmul.f32 %v4775, %v1507
        %v4796 = vmul.f32 %v4778, %v1507
        %v4797 = vmul.f32 %v4781, %v1507
        %v4798 = vmul.f32 %v4784, %v1507
        %v4799 = vmul.f32 %v4787, %v1507
        %v4800 = vmul.f32 %v4790, %v1507
        %v4801 = vmul.f32 %v4793, %v1507
        %v4802 = vadd.f32 %v4794, 1e-05
        %v4803 = vadd.f32 %v4795, 1e-05
        %v4804 = vadd.f32 %v4796, 1e-05
        %v4805 = vadd.f32 %v4797, 1e-05
        %v4806 = vadd.f32 %v4798, 1e-05
        %v4807 = vadd.f32 %v4799, 1e-05
        %v4808 = vadd.f32 %v4800, 1e-05
        %v4809 = vadd.f32 %v4801, 1e-05
        %v4810 = vrsqrt.pop %v4802
        %v4811 = vrsqrt.pop %v4803
        %v4812 = vrsqrt.pop %v4804
        %v4813 = vrsqrt.pop %v4805
        %v4814 = vrsqrt.pop %v4806
        %v4815 = vrsqrt.pop %v4807
        %v4816 = vrsqrt.pop %v4808
        %v4817 = vrsqrt.pop %v4809
        %v4818 = vmul.f32 %v4754, %v4810
        %v4819 = vmul.f32 %v4755, %v4811
        %v4820 = vmul.f32 %v4756, %v4812
        %v4821 = vmul.f32 %v4757, %v4813
        %v4822 = vmul.f32 %v4758, %v4814
        %v4823 = vmul.f32 %v4759, %v4815
        %v4824 = vmul.f32 %v4760, %v4816
        %v4825 = vmul.f32 %v4761, %v4817
        %v4826 = vlaneseq
        %v4827 = vshrl.u32 %v4826, 7
        %v4828 = vsub.s32 7, %v4827
        %v4829 = vrot.slane %v4059, %v4828
        %v4830 = vmul.f32 %v4818, %v4829
        %v4831 = vmul.f32 %v4819, %v4829
        %v4832 = vmul.f32 %v4820, %v4829
        %v4833 = vmul.f32 %v4821, %v4829
        %v4834 = vmul.f32 %v4822, %v4829
        %v4835 = vmul.f32 %v4823, %v4829
        %v4836 = vmul.f32 %v4824, %v4829
        %v4837 = vmul.f32 %v4825, %v4829
        %v4838 = vlaneseq
        %v4839 = vshrl.u32 %v4838, 7
        %v4840 = vsub.s32 0, %v4839
        %v4841 = vrot.slane %v4060, %v4840
        %v4842 = vadd.f32 %v4830, %v4841
        %v4843 = vadd.f32 %v4831, %v4841
        %v4844 = vadd.f32 %v4832, %v4841
        %v4845 = vadd.f32 %v4833, %v4841
        %v4846 = vadd.f32 %v4834, %v4841
        %v4847 = vadd.f32 %v4835, %v4841
        %v4848 = vadd.f32 %v4836, %v4841
        %v4849 = vadd.f32 %v4837, %v4841
        %s4850 = scalar_lea.vmem %s4, 16
        %v4851 = vld [vmem:[%s4850] sm:$0xff]
        %v4852 = vld [vmem:[%s4850 + $0x8] sm:$0x1]
        %s4853 = scalar_lea.vmem %s3, 32
        %v4854 = vld [vmem:[%s4853] sm:$0xff]
        %v4855 = vld [vmem:[%s4853 + $0x8] sm:$0xff]
        %v4856 = vld [vmem:[%s4853 + $0x10] sm:$0xff]
        %v4857 = vld [vmem:[%s4853 + $0x18] sm:$0xff]
        %v4859 = vsel %vm1482, %v4842, 0
        %v4862 = vsel %vm1482, %v4843, 0
        %v4865 = vsel %vm1482, %v4844, 0
        %v4868 = vsel %vm1482, %v4845, 0
        %v4871 = vsel %vm1482, %v4846, 0
        %v4874 = vsel %vm1482, %v4847, 0
        %v4877 = vsel %vm1482, %v4848, 0
        %v4880 = vsel %vm1482, %v4849, 0
        %4882 = vmatprep.subr.mxu0 0.0
        %4883 = vmatpush1.msra.mxu0 %v4854
        %4884 = vmatprep.subr.mxu0 0.0
        %4885 = vmatpush1.msra.mxu0 %v4855
        %4886 = vmatprep.subr.mxu0 0.0
        %4887 = vmatpush1.msra.mxu0 %v4856
        %4888 = vmatprep.subr.mxu0 0.0
        %4889 = vmatpush1.msra.mxu0 %v4857
        %4890 = vmatprep.subr.mxu0 0.0
        %4891 = vmatpush1.msra.mxu0 0.0
        %4892 = vmatprep.subr.mxu0 0.0
        %4893 = vmatpush1.msra.mxu0 0.0
        %4894 = vmatprep.subr.mxu0 0.0
        %4895 = vmatpush1.msra.mxu0 0.0
        %4896 = vmatprep.subr.mxu0 0.0
        %4897 = vmatpush1.msra.mxu0 0.0
        %4898 = vmatprep.subr.mxu0 0.0
        %4899 = vmatpush1.msra.mxu0 0.0
        %4900 = vmatprep.subr.mxu0 0.0
        %4901 = vmatpush1.msra.mxu0 0.0
        %4902 = vmatprep.subr.mxu0 0.0
        %4903 = vmatpush1.msra.mxu0 0.0
        %4904 = vmatprep.subr.mxu0 0.0
        %4905 = vmatpush1.msra.mxu0 0.0
        %4906 = vmatprep.subr.mxu0 0.0
        %4907 = vmatpush1.msra.mxu0 0.0
        %4908 = vmatprep.subr.mxu0 0.0
        %4909 = vmatpush1.msra.mxu0 0.0
        %4910 = vmatprep.subr.mxu0 0.0
        %4911 = vmatpush1.msra.mxu0 0.0
        %4912 = vmatprep.subr.mxu0 0.0
        %4913 = vmatpush1.msra.mxu0 0.0
        %4914 = vmatprep.subr.mxu0 0.0
        %4915 = vmatpush1.msra.mxu0 0.0
        %4916 = vmatprep.subr.mxu0 0.0
        %4917 = vmatpush1.msra.mxu0 0.0
        %4918 = vmatprep.subr.mxu0 0.0
        %4919 = vmatpush1.msra.mxu0 0.0
        %4920 = vmatprep.subr.mxu0 0.0
        %4921 = vmatpush1.msra.mxu0 0.0
        %4922 = vmatprep.subr.mxu0 0.0
        %4923 = vmatpush1.msra.mxu0 0.0
        %4924 = vmatprep.subr.mxu0 0.0
        %4925 = vmatpush1.msra.mxu0 0.0
        %4926 = vmatprep.subr.mxu0 0.0
        %4927 = vmatpush1.msra.mxu0 0.0
        %4928 = vmatprep.subr.mxu0 0.0
        %4929 = vmatpush1.msra.mxu0 0.0
        %4930 = vmatprep.subr.mxu0 0.0
        %4931 = vmatpush1.msra.mxu0 0.0
        %4932 = vmatprep.subr.mxu0 0.0
        %4933 = vmatpush1.msra.mxu0 0.0
        %4934 = vmatprep.subr.mxu0 0.0
        %4935 = vmatpush1.msra.mxu0 0.0
        %4936 = vmatprep.subr.mxu0 0.0
        %4937 = vmatpush1.msra.mxu0 0.0
        %4938 = vmatprep.subr.mxu0 0.0
        %4939 = vmatpush1.msra.mxu0 0.0
        %4940 = vmatprep.subr.mxu0 0.0
        %4941 = vmatpush1.msra.mxu0 0.0
        %4942 = vmatprep.subr.mxu0 0.0
        %4943 = vmatpush1.msra.mxu0 0.0
        %4944 = vmatprep.subr.mxu0 0.0
        %4945 = vmatpush1.msra.mxu0 0.0
        %4946 = vmatprep.mubr.f32.mxu0 0.0
        %4947 = vmatmul.mubr.f32.gmra.mrb[0].mxu0 %v4859
        %v4948 = vpop.f32.mrb[0].mxu0
        %v4949 = vadd.f32 0.0, %v4948
        %v4950 = vpop.f32.mrb[0].mxu0
        %4951 = vmatprep.mubr.f32.mxu0 0.0
        %4952 = vmatmul.mubr.f32.gmra.mrb[0].mxu0 %v4862
        %v4953 = vpop.f32.mrb[0].mxu0
        %v4954 = vadd.f32 0.0, %v4953
        %v4955 = vpop.f32.mrb[0].mxu0
        %4956 = vmatprep.mubr.f32.mxu0 0.0
        %4957 = vmatmul.mubr.f32.gmra.mrb[0].mxu0 %v4865
        %v4958 = vpop.f32.mrb[0].mxu0
        %v4959 = vadd.f32 0.0, %v4958
        %v4960 = vpop.f32.mrb[0].mxu0
        %4961 = vmatprep.mubr.f32.mxu0 0.0
        %4962 = vmatmul.mubr.f32.gmra.mrb[0].mxu0 %v4868
        %v4963 = vpop.f32.mrb[0].mxu0
        %v4964 = vadd.f32 0.0, %v4963
        %v4965 = vpop.f32.mrb[0].mxu0
        %4966 = vmatprep.mubr.f32.mxu0 0.0
        %4967 = vmatmul.mubr.f32.gmra.mrb[0].mxu0 %v4871
        %v4968 = vpop.f32.mrb[0].mxu0
        %v4969 = vadd.f32 0.0, %v4968
        %v4970 = vpop.f32.mrb[0].mxu0
        %4971 = vmatprep.mubr.f32.mxu0 0.0
        %4972 = vmatmul.mubr.f32.gmra.mrb[0].mxu0 %v4874
        %v4973 = vpop.f32.mrb[0].mxu0
        %v4974 = vadd.f32 0.0, %v4973
        %v4975 = vpop.f32.mrb[0].mxu0
        %4976 = vmatprep.mubr.f32.mxu0 0.0
        %4977 = vmatmul.mubr.f32.gmra.mrb[0].mxu0 %v4877
        %v4978 = vpop.f32.mrb[0].mxu0
        %v4979 = vadd.f32 0.0, %v4978
        %v4980 = vpop.f32.mrb[0].mxu0
        %4981 = vmatprep.mubr.f32.mxu0 0.0
        %4982 = vmatmul.mubr.f32.gmra.mrb[0].mxu0 %v4880
        %v4983 = vpop.f32.mrb[0].mxu0
        %v4984 = vadd.f32 0.0, %v4983
        %v4985 = vpop.f32.mrb[0].mxu0
        %4986 = vdwg.mxu0
        %4987 = vmatprep.subr.mxu0 0.0
        %4988 = vmatpush1.msra.mxu0 %v4949
        %4989 = vmatprep.subr.mxu0 0.0
        %4990 = vmatpush1.msra.mxu0 %v4954
        %4991 = vmatprep.subr.mxu0 0.0
        %4992 = vmatpush1.msra.mxu0 %v4959
        %4993 = vmatprep.subr.mxu0 0.0
        %4994 = vmatpush1.msra.mxu0 %v4964
        %4995 = vmatprep.subr.mxu0 0.0
        %4996 = vmatpush1.msra.mxu0 %v4969
        %4997 = vmatprep.subr.mxu0 0.0
        %4998 = vmatpush1.msra.mxu0 %v4974
        %4999 = vmatprep.subr.mxu0 0.0
        %5000 = vmatpush1.msra.mxu0 %v4979
        %5001 = vmatprep.subr.mxu0 0.0
        %5002 = vmatpush1.msra.mxu0 %v4984
        %5003 = vmatprep.subr.mxu0 0.0
        %5004 = vmatpush1.msra.mxu0 0.0
        %5005 = vmatprep.subr.mxu0 0.0
        %5006 = vmatpush1.msra.mxu0 0.0
        %5007 = vmatprep.subr.mxu0 0.0
        %5008 = vmatpush1.msra.mxu0 0.0
        %5009 = vmatprep.subr.mxu0 0.0
        %5010 = vmatpush1.msra.mxu0 0.0
        %5011 = vmatprep.subr.mxu0 0.0
        %5012 = vmatpush1.msra.mxu0 0.0
        %5013 = vmatprep.subr.mxu0 0.0
        %5014 = vmatpush1.msra.mxu0 0.0
        %5015 = vmatprep.subr.mxu0 0.0
        %5016 = vmatpush1.msra.mxu0 0.0
        %5017 = vmatprep.subr.mxu0 0.0
        %5018 = vmatpush1.msra.mxu0 0.0
        %5019 = vmatprep.subr.mxu0 0.0
        %5020 = vmatpush1.msra.mxu0 0.0
        %5021 = vmatprep.subr.mxu0 0.0
        %5022 = vmatpush1.msra.mxu0 0.0
        %5023 = vmatprep.subr.mxu0 0.0
        %5024 = vmatpush1.msra.mxu0 0.0
        %5025 = vmatprep.subr.mxu0 0.0
        %5026 = vmatpush1.msra.mxu0 0.0
        %5027 = vmatprep.subr.mxu0 0.0
        %5028 = vmatpush1.msra.mxu0 0.0
        %5029 = vmatprep.subr.mxu0 0.0
        %5030 = vmatpush1.msra.mxu0 0.0
        %5031 = vmatprep.subr.mxu0 0.0
        %5032 = vmatpush1.msra.mxu0 0.0
        %5033 = vmatprep.subr.mxu0 0.0
        %5034 = vmatpush1.msra.mxu0 0.0
        %5035 = vmatprep.subr.mxu0 0.0
        %5036 = vmatpush1.msra.mxu0 0.0
        %5037 = vmatprep.subr.mxu0 0.0
        %5038 = vmatpush1.msra.mxu0 0.0
        %5039 = vmatprep.subr.mxu0 0.0
        %5040 = vmatpush1.msra.mxu0 0.0
        %5041 = vmatprep.subr.mxu0 0.0
        %5042 = vmatpush1.msra.mxu0 0.0
        %5043 = vmatprep.subr.mxu0 0.0
        %5044 = vmatpush1.msra.mxu0 0.0
        %5045 = vmatprep.subr.mxu0 0.0
        %5046 = vmatpush1.msra.mxu0 0.0
        %5047 = vmatprep.subr.mxu0 0.0
        %5048 = vmatpush1.msra.mxu0 0.0
        %5049 = vmatprep.subr.mxu0 0.0
        %5050 = vmatpush1.msra.mxu0 0.0
        %5051 = vmatprep.mubr.f32.mxu0 0.0
        %5052 = vmatmul.mubr.f32.gmra.mrb[0].mxu0 %v613
        %v5053 = vpop.f32.mrb[0].mxu0
        %v5054 = vadd.f32 0.0, %v5053
        %v5055 = vpop.f32.mrb[0].mxu0
        %5056 = vmatprep.mubr.f32.mxu0 0.0
        %5057 = vmatmul.mubr.f32.gmra.mrb[0].mxu0 %v616
        %v5058 = vpop.f32.mrb[0].mxu0
        %v5059 = vadd.f32 0.0, %v5058
        %v5060 = vpop.f32.mrb[0].mxu0
        %5061 = vmatprep.mubr.f32.mxu0 0.0
        %5062 = vmatmul.mubr.f32.gmra.mrb[0].mxu0 %v619
        %v5063 = vpop.f32.mrb[0].mxu0
        %v5064 = vadd.f32 0.0, %v5063
        %v5065 = vpop.f32.mrb[0].mxu0
        %5066 = vmatprep.mubr.f32.mxu0 0.0
        %5067 = vmatmul.mubr.f32.gmra.mrb[0].mxu0 %v622
        %v5068 = vpop.f32.mrb[0].mxu0
        %v5069 = vadd.f32 0.0, %v5068
        %v5070 = vpop.f32.mrb[0].mxu0
        %5071 = vmatprep.mubr.f32.mxu0 0.0
        %5072 = vmatmul.mubr.f32.gmra.mrb[0].mxu0 %v625
        %v5073 = vpop.f32.mrb[0].mxu0
        %v5074 = vadd.f32 0.0, %v5073
        %v5075 = vpop.f32.mrb[0].mxu0
        %5076 = vmatprep.mubr.f32.mxu0 0.0
        %5077 = vmatmul.mubr.f32.gmra.mrb[0].mxu0 %v628
        %v5078 = vpop.f32.mrb[0].mxu0
        %v5079 = vadd.f32 0.0, %v5078
        %v5080 = vpop.f32.mrb[0].mxu0
        %5081 = vmatprep.mubr.f32.mxu0 0.0
        %5082 = vmatmul.mubr.f32.gmra.mrb[0].mxu0 %v631
        %v5083 = vpop.f32.mrb[0].mxu0
        %v5084 = vadd.f32 0.0, %v5083
        %v5085 = vpop.f32.mrb[0].mxu0
        %5086 = vmatprep.mubr.f32.mxu0 0.0
        %5087 = vmatmul.mubr.f32.gmra.mrb[0].mxu0 %v634
        %v5088 = vpop.f32.mrb[0].mxu0
        %v5089 = vadd.f32 0.0, %v5088
        %v5090 = vpop.f32.mrb[0].mxu0
        %5091 = vmatprep.mubr.f32.mxu0 0.0
        %5092 = vmatmul.mubr.f32.gmra.mrb[0].mxu0 %v637
        %v5093 = vpop.f32.mrb[0].mxu0
        %v5094 = vadd.f32 0.0, %v5093
        %v5095 = vpop.f32.mrb[0].mxu0
        %5096 = vmatprep.mubr.f32.mxu0 0.0
        %5097 = vmatmul.mubr.f32.gmra.mrb[0].mxu0 %v640
        %v5098 = vpop.f32.mrb[0].mxu0
        %v5099 = vadd.f32 0.0, %v5098
        %v5100 = vpop.f32.mrb[0].mxu0
        %5101 = vmatprep.mubr.f32.mxu0 0.0
        %5102 = vmatmul.mubr.f32.gmra.mrb[0].mxu0 %v643
        %v5103 = vpop.f32.mrb[0].mxu0
        %v5104 = vadd.f32 0.0, %v5103
        %v5105 = vpop.f32.mrb[0].mxu0
        %5106 = vmatprep.mubr.f32.mxu0 0.0
        %5107 = vmatmul.mubr.f32.gmra.mrb[0].mxu0 %v646
        %v5108 = vpop.f32.mrb[0].mxu0
        %v5109 = vadd.f32 0.0, %v5108
        %v5110 = vpop.f32.mrb[0].mxu0
        %5111 = vmatprep.mubr.f32.mxu0 0.0
        %5112 = vmatmul.mubr.f32.gmra.mrb[0].mxu0 %v649
        %v5113 = vpop.f32.mrb[0].mxu0
        %v5114 = vadd.f32 0.0, %v5113
        %v5115 = vpop.f32.mrb[0].mxu0
        %5116 = vmatprep.mubr.f32.mxu0 0.0
        %5117 = vmatmul.mubr.f32.gmra.mrb[0].mxu0 %v652
        %v5118 = vpop.f32.mrb[0].mxu0
        %v5119 = vadd.f32 0.0, %v5118
        %v5120 = vpop.f32.mrb[0].mxu0
        %5121 = vmatprep.mubr.f32.mxu0 0.0
        %5122 = vmatmul.mubr.f32.gmra.mrb[0].mxu0 %v655
        %v5123 = vpop.f32.mrb[0].mxu0
        %v5124 = vadd.f32 0.0, %v5123
        %v5125 = vpop.f32.mrb[0].mxu0
        %5126 = vmatprep.mubr.f32.mxu0 0.0
        %5127 = vmatmul.mubr.f32.gmra.mrb[0].mxu0 %v658
        %v5128 = vpop.f32.mrb[0].mxu0
        %v5129 = vadd.f32 0.0, %v5128
        %v5130 = vpop.f32.mrb[0].mxu0
        %5131 = vmatprep.mubr.f32.mxu0 0.0
        %5132 = vmatmul.mubr.f32.gmra.mrb[0].mxu0 %v661
        %v5133 = vpop.f32.mrb[0].mxu0
        %v5134 = vadd.f32 0.0, %v5133
        %v5135 = vpop.f32.mrb[0].mxu0
        %5136 = vmatprep.mubr.f32.mxu0 0.0
        %5137 = vmatmul.mubr.f32.gmra.mrb[0].mxu0 %v664
        %v5138 = vpop.f32.mrb[0].mxu0
        %v5139 = vadd.f32 0.0, %v5138
        %v5140 = vpop.f32.mrb[0].mxu0
        %5141 = vmatprep.mubr.f32.mxu0 0.0
        %5142 = vmatmul.mubr.f32.gmra.mrb[0].mxu0 %v667
        %v5143 = vpop.f32.mrb[0].mxu0
        %v5144 = vadd.f32 0.0, %v5143
        %v5145 = vpop.f32.mrb[0].mxu0
        %5146 = vmatprep.mubr.f32.mxu0 0.0
        %5147 = vmatmul.mubr.f32.gmra.mrb[0].mxu0 %v670
        %v5148 = vpop.f32.mrb[0].mxu0
        %v5149 = vadd.f32 0.0, %v5148
        %v5150 = vpop.f32.mrb[0].mxu0
        %5151 = vmatprep.mubr.f32.mxu0 0.0
        %5152 = vmatmul.mubr.f32.gmra.mrb[0].mxu0 %v673
        %v5153 = vpop.f32.mrb[0].mxu0
        %v5154 = vadd.f32 0.0, %v5153
        %v5155 = vpop.f32.mrb[0].mxu0
        %5156 = vmatprep.mubr.f32.mxu0 0.0
        %5157 = vmatmul.mubr.f32.gmra.mrb[0].mxu0 %v676
        %v5158 = vpop.f32.mrb[0].mxu0
        %v5159 = vadd.f32 0.0, %v5158
        %v5160 = vpop.f32.mrb[0].mxu0
        %5161 = vmatprep.mubr.f32.mxu0 0.0
        %5162 = vmatmul.mubr.f32.gmra.mrb[0].mxu0 %v679
        %v5163 = vpop.f32.mrb[0].mxu0
        %v5164 = vadd.f32 0.0, %v5163
        %v5165 = vpop.f32.mrb[0].mxu0
        %5166 = vmatprep.mubr.f32.mxu0 0.0
        %5167 = vmatmul.mubr.f32.gmra.mrb[0].mxu0 %v682
        %v5168 = vpop.f32.mrb[0].mxu0
        %v5169 = vadd.f32 0.0, %v5168
        %v5170 = vpop.f32.mrb[0].mxu0
        %5171 = vmatprep.mubr.f32.mxu0 0.0
        %5172 = vmatmul.mubr.f32.gmra.mrb[0].mxu0 %v685
        %v5173 = vpop.f32.mrb[0].mxu0
        %v5174 = vadd.f32 0.0, %v5173
        %v5175 = vpop.f32.mrb[0].mxu0
        %5176 = vmatprep.mubr.f32.mxu0 0.0
        %5177 = vmatmul.mubr.f32.gmra.mrb[0].mxu0 %v688
        %v5178 = vpop.f32.mrb[0].mxu0
        %v5179 = vadd.f32 0.0, %v5178
        %v5180 = vpop.f32.mrb[0].mxu0
        %5181 = vmatprep.mubr.f32.mxu0 0.0
        %5182 = vmatmul.mubr.f32.gmra.mrb[0].mxu0 %v691
        %v5183 = vpop.f32.mrb[0].mxu0
        %v5184 = vadd.f32 0.0, %v5183
        %v5185 = vpop.f32.mrb[0].mxu0
        %5186 = vmatprep.mubr.f32.mxu0 0.0
        %5187 = vmatmul.mubr.f32.gmra.mrb[0].mxu0 %v694
        %v5188 = vpop.f32.mrb[0].mxu0
        %v5189 = vadd.f32 0.0, %v5188
        %v5190 = vpop.f32.mrb[0].mxu0
        %5191 = vmatprep.mubr.f32.mxu0 0.0
        %5192 = vmatmul.mubr.f32.gmra.mrb[0].mxu0 %v697
        %v5193 = vpop.f32.mrb[0].mxu0
        %v5194 = vadd.f32 0.0, %v5193
        %v5195 = vpop.f32.mrb[0].mxu0
        %5196 = vmatprep.mubr.f32.mxu0 0.0
        %5197 = vmatmul.mubr.f32.gmra.mrb[0].mxu0 %v700
        %v5198 = vpop.f32.mrb[0].mxu0
        %v5199 = vadd.f32 0.0, %v5198
        %v5200 = vpop.f32.mrb[0].mxu0
        %5201 = vmatprep.mubr.f32.mxu0 0.0
        %5202 = vmatmul.mubr.f32.gmra.mrb[0].mxu0 %v703
        %v5203 = vpop.f32.mrb[0].mxu0
        %v5204 = vadd.f32 0.0, %v5203
        %v5205 = vpop.f32.mrb[0].mxu0
        %5206 = vmatprep.mubr.f32.mxu0 0.0
        %5207 = vmatmul.mubr.f32.gmra.mrb[0].mxu0 %v706
        %v5208 = vpop.f32.mrb[0].mxu0
        %v5209 = vadd.f32 0.0, %v5208
        %v5210 = vpop.f32.mrb[0].mxu0
        %5211 = vmatprep.mubr.f32.mxu0 0.0
        %5212 = vmatmul.mubr.f32.gmra.mrb[0].mxu0 %v709
        %v5213 = vpop.f32.mrb[0].mxu0
        %v5214 = vadd.f32 0.0, %v5213
        %v5215 = vpop.f32.mrb[0].mxu0
        %5216 = vmatprep.mubr.f32.mxu0 0.0
        %5217 = vmatmul.mubr.f32.gmra.mrb[0].mxu0 %v712
        %v5218 = vpop.f32.mrb[0].mxu0
        %v5219 = vadd.f32 0.0, %v5218
        %v5220 = vpop.f32.mrb[0].mxu0
        %5221 = vmatprep.mubr.f32.mxu0 0.0
        %5222 = vmatmul.mubr.f32.gmra.mrb[0].mxu0 %v715
        %v5223 = vpop.f32.mrb[0].mxu0
        %v5224 = vadd.f32 0.0, %v5223
        %v5225 = vpop.f32.mrb[0].mxu0
        %5226 = vmatprep.mubr.f32.mxu0 0.0
        %5227 = vmatmul.mubr.f32.gmra.mrb[0].mxu0 %v718
        %v5228 = vpop.f32.mrb[0].mxu0
        %v5229 = vadd.f32 0.0, %v5228
        %v5230 = vpop.f32.mrb[0].mxu0
        %5231 = vmatprep.mubr.f32.mxu0 0.0
        %5232 = vmatmul.mubr.f32.gmra.mrb[0].mxu0 %v721
        %v5233 = vpop.f32.mrb[0].mxu0
        %v5234 = vadd.f32 0.0, %v5233
        %v5235 = vpop.f32.mrb[0].mxu0
        %5236 = vmatprep.mubr.f32.mxu0 0.0
        %5237 = vmatmul.mubr.f32.gmra.mrb[0].mxu0 %v724
        %v5238 = vpop.f32.mrb[0].mxu0
        %v5239 = vadd.f32 0.0, %v5238
        %v5240 = vpop.f32.mrb[0].mxu0
        %5241 = vmatprep.mubr.f32.mxu0 0.0
        %5242 = vmatmul.mubr.f32.gmra.mrb[0].mxu0 %v727
        %v5243 = vpop.f32.mrb[0].mxu0
        %v5244 = vadd.f32 0.0, %v5243
        %v5245 = vpop.f32.mrb[0].mxu0
        %5246 = vmatprep.mubr.f32.mxu0 0.0
        %5247 = vmatmul.mubr.f32.gmra.mrb[0].mxu0 %v730
        %v5248 = vpop.f32.mrb[0].mxu0
        %v5249 = vadd.f32 0.0, %v5248
        %v5250 = vpop.f32.mrb[0].mxu0
        %5251 = vmatprep.mubr.f32.mxu0 0.0
        %5252 = vmatmul.mubr.f32.gmra.mrb[0].mxu0 %v733
        %v5253 = vpop.f32.mrb[0].mxu0
        %v5254 = vadd.f32 0.0, %v5253
        %v5255 = vpop.f32.mrb[0].mxu0
        %5256 = vmatprep.mubr.f32.mxu0 0.0
        %5257 = vmatmul.mubr.f32.gmra.mrb[0].mxu0 %v736
        %v5258 = vpop.f32.mrb[0].mxu0
        %v5259 = vadd.f32 0.0, %v5258
        %v5260 = vpop.f32.mrb[0].mxu0
        %5261 = vmatprep.mubr.f32.mxu0 0.0
        %5262 = vmatmul.mubr.f32.gmra.mrb[0].mxu0 %v739
        %v5263 = vpop.f32.mrb[0].mxu0
        %v5264 = vadd.f32 0.0, %v5263
        %v5265 = vpop.f32.mrb[0].mxu0
        %5266 = vmatprep.mubr.f32.mxu0 0.0
        %5267 = vmatmul.mubr.f32.gmra.mrb[0].mxu0 %v742
        %v5268 = vpop.f32.mrb[0].mxu0
        %v5269 = vadd.f32 0.0, %v5268
        %v5270 = vpop.f32.mrb[0].mxu0
        %5271 = vmatprep.mubr.f32.mxu0 0.0
        %5272 = vmatmul.mubr.f32.gmra.mrb[0].mxu0 %v745
        %v5273 = vpop.f32.mrb[0].mxu0
        %v5274 = vadd.f32 0.0, %v5273
        %v5275 = vpop.f32.mrb[0].mxu0
        %5276 = vmatprep.mubr.f32.mxu0 0.0
        %5277 = vmatmul.mubr.f32.gmra.mrb[0].mxu0 %v748
        %v5278 = vpop.f32.mrb[0].mxu0
        %v5279 = vadd.f32 0.0, %v5278
        %v5280 = vpop.f32.mrb[0].mxu0
        %5281 = vmatprep.mubr.f32.mxu0 0.0
        %5282 = vmatmul.mubr.f32.gmra.mrb[0].mxu0 %v751
        %v5283 = vpop.f32.mrb[0].mxu0
        %v5284 = vadd.f32 0.0, %v5283
        %v5285 = vpop.f32.mrb[0].mxu0
        %5286 = vmatprep.mubr.f32.mxu0 0.0
        %5287 = vmatmul.mubr.f32.gmra.mrb[0].mxu0 %v754
        %v5288 = vpop.f32.mrb[0].mxu0
        %v5289 = vadd.f32 0.0, %v5288
        %v5290 = vpop.f32.mrb[0].mxu0
        %5291 = vmatprep.mubr.f32.mxu0 0.0
        %5292 = vmatmul.mubr.f32.gmra.mrb[0].mxu0 %v757
        %v5293 = vpop.f32.mrb[0].mxu0
        %v5294 = vadd.f32 0.0, %v5293
        %v5295 = vpop.f32.mrb[0].mxu0
        %5296 = vmatprep.mubr.f32.mxu0 0.0
        %5297 = vmatmul.mubr.f32.gmra.mrb[0].mxu0 %v760
        %v5298 = vpop.f32.mrb[0].mxu0
        %v5299 = vadd.f32 0.0, %v5298
        %v5300 = vpop.f32.mrb[0].mxu0
        %5301 = vmatprep.mubr.f32.mxu0 0.0
        %5302 = vmatmul.mubr.f32.gmra.mrb[0].mxu0 %v763
        %v5303 = vpop.f32.mrb[0].mxu0
        %v5304 = vadd.f32 0.0, %v5303
        %v5305 = vpop.f32.mrb[0].mxu0
        %5306 = vmatprep.mubr.f32.mxu0 0.0
        %5307 = vmatmul.mubr.f32.gmra.mrb[0].mxu0 %v766
        %v5308 = vpop.f32.mrb[0].mxu0
        %v5309 = vadd.f32 0.0, %v5308
        %v5310 = vpop.f32.mrb[0].mxu0
        %5311 = vmatprep.mubr.f32.mxu0 0.0
        %5312 = vmatmul.mubr.f32.gmra.mrb[0].mxu0 %v769
        %v5313 = vpop.f32.mrb[0].mxu0
        %v5314 = vadd.f32 0.0, %v5313
        %v5315 = vpop.f32.mrb[0].mxu0
        %5316 = vmatprep.mubr.f32.mxu0 0.0
        %5317 = vmatmul.mubr.f32.gmra.mrb[0].mxu0 %v772
        %v5318 = vpop.f32.mrb[0].mxu0
        %v5319 = vadd.f32 0.0, %v5318
        %v5320 = vpop.f32.mrb[0].mxu0
        %5321 = vmatprep.mubr.f32.mxu0 0.0
        %5322 = vmatmul.mubr.f32.gmra.mrb[0].mxu0 %v775
        %v5323 = vpop.f32.mrb[0].mxu0
        %v5324 = vadd.f32 0.0, %v5323
        %v5325 = vpop.f32.mrb[0].mxu0
        %5326 = vmatprep.mubr.f32.mxu0 0.0
        %5327 = vmatmul.mubr.f32.gmra.mrb[0].mxu0 %v778
        %v5328 = vpop.f32.mrb[0].mxu0
        %v5329 = vadd.f32 0.0, %v5328
        %v5330 = vpop.f32.mrb[0].mxu0
        %5331 = vmatprep.mubr.f32.mxu0 0.0
        %5332 = vmatmul.mubr.f32.gmra.mrb[0].mxu0 %v781
        %v5333 = vpop.f32.mrb[0].mxu0
        %v5334 = vadd.f32 0.0, %v5333
        %v5335 = vpop.f32.mrb[0].mxu0
        %5336 = vmatprep.mubr.f32.mxu0 0.0
        %5337 = vmatmul.mubr.f32.gmra.mrb[0].mxu0 %v784
        %v5338 = vpop.f32.mrb[0].mxu0
        %v5339 = vadd.f32 0.0, %v5338
        %v5340 = vpop.f32.mrb[0].mxu0
        %5341 = vmatprep.mubr.f32.mxu0 0.0
        %5342 = vmatmul.mubr.f32.gmra.mrb[0].mxu0 %v787
        %v5343 = vpop.f32.mrb[0].mxu0
        %v5344 = vadd.f32 0.0, %v5343
        %v5345 = vpop.f32.mrb[0].mxu0
        %5346 = vmatprep.mubr.f32.mxu0 0.0
        %5347 = vmatmul.mubr.f32.gmra.mrb[0].mxu0 %v790
        %v5348 = vpop.f32.mrb[0].mxu0
        %v5349 = vadd.f32 0.0, %v5348
        %v5350 = vpop.f32.mrb[0].mxu0
        %5351 = vmatprep.mubr.f32.mxu0 0.0
        %5352 = vmatmul.mubr.f32.gmra.mrb[0].mxu0 %v793
        %v5353 = vpop.f32.mrb[0].mxu0
        %v5354 = vadd.f32 0.0, %v5353
        %v5355 = vpop.f32.mrb[0].mxu0
        %5356 = vmatprep.mubr.f32.mxu0 0.0
        %5357 = vmatmul.mubr.f32.gmra.mrb[0].mxu0 %v796
        %v5358 = vpop.f32.mrb[0].mxu0
        %v5359 = vadd.f32 0.0, %v5358
        %v5360 = vpop.f32.mrb[0].mxu0
        %5361 = vmatprep.mubr.f32.mxu0 0.0
        %5362 = vmatmul.mubr.f32.gmra.mrb[0].mxu0 %v799
        %v5363 = vpop.f32.mrb[0].mxu0
        %v5364 = vadd.f32 0.0, %v5363
        %v5365 = vpop.f32.mrb[0].mxu0
        %5366 = vmatprep.mubr.f32.mxu0 0.0
        %5367 = vmatmul.mubr.f32.gmra.mrb[0].mxu0 %v802
        %v5368 = vpop.f32.mrb[0].mxu0
        %v5369 = vadd.f32 0.0, %v5368
        %v5370 = vpop.f32.mrb[0].mxu0
        %5371 = vmatprep.mubr.f32.mxu0 0.0
        %5372 = vmatmul.mubr.f32.gmra.mrb[0].mxu0 %v805
        %v5373 = vpop.f32.mrb[0].mxu0
        %v5374 = vadd.f32 0.0, %v5373
        %v5375 = vpop.f32.mrb[0].mxu0
        %5376 = vmatprep.mubr.f32.mxu0 0.0
        %5377 = vmatmul.mubr.f32.gmra.mrb[0].mxu0 %v808
        %v5378 = vpop.f32.mrb[0].mxu0
        %v5379 = vadd.f32 0.0, %v5378
        %v5380 = vpop.f32.mrb[0].mxu0
        %5381 = vmatprep.mubr.f32.mxu0 0.0
        %5382 = vmatmul.mubr.f32.gmra.mrb[0].mxu0 %v811
        %v5383 = vpop.f32.mrb[0].mxu0
        %v5384 = vadd.f32 0.0, %v5383
        %v5385 = vpop.f32.mrb[0].mxu0
        %5386 = vmatprep.mubr.f32.mxu0 0.0
        %5387 = vmatmul.mubr.f32.gmra.mrb[0].mxu0 %v814
        %v5388 = vpop.f32.mrb[0].mxu0
        %v5389 = vadd.f32 0.0, %v5388
        %v5390 = vpop.f32.mrb[0].mxu0
        %5391 = vmatprep.mubr.f32.mxu0 0.0
        %5392 = vmatmul.mubr.f32.gmra.mrb[0].mxu0 %v817
        %v5393 = vpop.f32.mrb[0].mxu0
        %v5394 = vadd.f32 0.0, %v5393
        %v5395 = vpop.f32.mrb[0].mxu0
        %5396 = vmatprep.mubr.f32.mxu0 0.0
        %5397 = vmatmul.mubr.f32.gmra.mrb[0].mxu0 %v820
        %v5398 = vpop.f32.mrb[0].mxu0
        %v5399 = vadd.f32 0.0, %v5398
        %v5400 = vpop.f32.mrb[0].mxu0
        %5401 = vmatprep.mubr.f32.mxu0 0.0
        %5402 = vmatmul.mubr.f32.gmra.mrb[0].mxu0 %v823
        %v5403 = vpop.f32.mrb[0].mxu0
        %v5404 = vadd.f32 0.0, %v5403
        %v5405 = vpop.f32.mrb[0].mxu0
        %5406 = vmatprep.mubr.f32.mxu0 0.0
        %5407 = vmatmul.mubr.f32.gmra.mrb[0].mxu0 %v826
        %v5408 = vpop.f32.mrb[0].mxu0
        %v5409 = vadd.f32 0.0, %v5408
        %v5410 = vpop.f32.mrb[0].mxu0
        %5411 = vdwg.mxu0
        %v5412 = vlaneseq
        %v5413 = vshrl.u32 %v5412, 7
        %v5414 = vsub.s32 0, %v5413
        %v5415 = vrot.slane %v4851, %v5414
        %v5416 = vmul.f32 %v5054, %v5415
        %v5417 = vmul.f32 %v5059, %v5415
        %v5418 = vmul.f32 %v5064, %v5415
        %v5419 = vmul.f32 %v5069, %v5415
        %v5420 = vmul.f32 %v5074, %v5415
        %v5421 = vmul.f32 %v5079, %v5415
        %v5422 = vmul.f32 %v5084, %v5415
        %v5423 = vmul.f32 %v5089, %v5415
        %v5424 = vlaneseq
        %v5425 = vshrl.u32 %v5424, 7
        %v5426 = vsub.s32 1, %v5425
        %v5427 = vrot.slane %v4851, %v5426
        %v5428 = vmul.f32 %v5094, %v5427
        %v5429 = vmul.f32 %v5099, %v5427
        %v5430 = vmul.f32 %v5104, %v5427
        %v5431 = vmul.f32 %v5109, %v5427
        %v5432 = vmul.f32 %v5114, %v5427
        %v5433 = vmul.f32 %v5119, %v5427
        %v5434 = vmul.f32 %v5124, %v5427
        %v5435 = vmul.f32 %v5129, %v5427
        %v5436 = vadd.f32 %v5416, %v5428
        %v5437 = vadd.f32 %v5417, %v5429
        %v5438 = vadd.f32 %v5418, %v5430
        %v5439 = vadd.f32 %v5419, %v5431
        %v5440 = vadd.f32 %v5420, %v5432
        %v5441 = vadd.f32 %v5421, %v5433
        %v5442 = vadd.f32 %v5422, %v5434
        %v5443 = vadd.f32 %v5423, %v5435
        %v5444 = vlaneseq
        %v5445 = vshrl.u32 %v5444, 7
        %v5446 = vsub.s32 2, %v5445
        %v5447 = vrot.slane %v4851, %v5446
        %v5448 = vmul.f32 %v5134, %v5447
        %v5449 = vmul.f32 %v5139, %v5447
        %v5450 = vmul.f32 %v5144, %v5447
        %v5451 = vmul.f32 %v5149, %v5447
        %v5452 = vmul.f32 %v5154, %v5447
        %v5453 = vmul.f32 %v5159, %v5447
        %v5454 = vmul.f32 %v5164, %v5447
        %v5455 = vmul.f32 %v5169, %v5447
        %v5456 = vadd.f32 %v5436, %v5448
        %v5457 = vadd.f32 %v5437, %v5449
        %v5458 = vadd.f32 %v5438, %v5450
        %v5459 = vadd.f32 %v5439, %v5451
        %v5460 = vadd.f32 %v5440, %v5452
        %v5461 = vadd.f32 %v5441, %v5453
        %v5462 = vadd.f32 %v5442, %v5454
        %v5463 = vadd.f32 %v5443, %v5455
        %v5464 = vlaneseq
        %v5465 = vshrl.u32 %v5464, 7
        %v5466 = vsub.s32 3, %v5465
        %v5467 = vrot.slane %v4851, %v5466
        %v5468 = vmul.f32 %v5174, %v5467
        %v5469 = vmul.f32 %v5179, %v5467
        %v5470 = vmul.f32 %v5184, %v5467
        %v5471 = vmul.f32 %v5189, %v5467
        %v5472 = vmul.f32 %v5194, %v5467
        %v5473 = vmul.f32 %v5199, %v5467
        %v5474 = vmul.f32 %v5204, %v5467
        %v5475 = vmul.f32 %v5209, %v5467
        %v5476 = vadd.f32 %v5456, %v5468
        %v5477 = vadd.f32 %v5457, %v5469
        %v5478 = vadd.f32 %v5458, %v5470
        %v5479 = vadd.f32 %v5459, %v5471
        %v5480 = vadd.f32 %v5460, %v5472
        %v5481 = vadd.f32 %v5461, %v5473
        %v5482 = vadd.f32 %v5462, %v5474
        %v5483 = vadd.f32 %v5463, %v5475
        %v5484 = vlaneseq
        %v5485 = vshrl.u32 %v5484, 7
        %v5486 = vsub.s32 4, %v5485
        %v5487 = vrot.slane %v4851, %v5486
        %v5488 = vmul.f32 %v5214, %v5487
        %v5489 = vmul.f32 %v5219, %v5487
        %v5490 = vmul.f32 %v5224, %v5487
        %v5491 = vmul.f32 %v5229, %v5487
        %v5492 = vmul.f32 %v5234, %v5487
        %v5493 = vmul.f32 %v5239, %v5487
        %v5494 = vmul.f32 %v5244, %v5487
        %v5495 = vmul.f32 %v5249, %v5487
        %v5496 = vadd.f32 %v5476, %v5488
        %v5497 = vadd.f32 %v5477, %v5489
        %v5498 = vadd.f32 %v5478, %v5490
        %v5499 = vadd.f32 %v5479, %v5491
        %v5500 = vadd.f32 %v5480, %v5492
        %v5501 = vadd.f32 %v5481, %v5493
        %v5502 = vadd.f32 %v5482, %v5494
        %v5503 = vadd.f32 %v5483, %v5495
        %v5504 = vlaneseq
        %v5505 = vshrl.u32 %v5504, 7
        %v5506 = vsub.s32 5, %v5505
        %v5507 = vrot.slane %v4851, %v5506
        %v5508 = vmul.f32 %v5254, %v5507
        %v5509 = vmul.f32 %v5259, %v5507
        %v5510 = vmul.f32 %v5264, %v5507
        %v5511 = vmul.f32 %v5269, %v5507
        %v5512 = vmul.f32 %v5274, %v5507
        %v5513 = vmul.f32 %v5279, %v5507
        %v5514 = vmul.f32 %v5284, %v5507
        %v5515 = vmul.f32 %v5289, %v5507
        %v5516 = vadd.f32 %v5496, %v5508
        %v5517 = vadd.f32 %v5497, %v5509
        %v5518 = vadd.f32 %v5498, %v5510
        %v5519 = vadd.f32 %v5499, %v5511
        %v5520 = vadd.f32 %v5500, %v5512
        %v5521 = vadd.f32 %v5501, %v5513
        %v5522 = vadd.f32 %v5502, %v5514
        %v5523 = vadd.f32 %v5503, %v5515
        %v5524 = vlaneseq
        %v5525 = vshrl.u32 %v5524, 7
        %v5526 = vsub.s32 6, %v5525
        %v5527 = vrot.slane %v4851, %v5526
        %v5528 = vmul.f32 %v5294, %v5527
        %v5529 = vmul.f32 %v5299, %v5527
        %v5530 = vmul.f32 %v5304, %v5527
        %v5531 = vmul.f32 %v5309, %v5527
        %v5532 = vmul.f32 %v5314, %v5527
        %v5533 = vmul.f32 %v5319, %v5527
        %v5534 = vmul.f32 %v5324, %v5527
        %v5535 = vmul.f32 %v5329, %v5527
        %v5536 = vadd.f32 %v5516, %v5528
        %v5537 = vadd.f32 %v5517, %v5529
        %v5538 = vadd.f32 %v5518, %v5530
        %v5539 = vadd.f32 %v5519, %v5531
        %v5540 = vadd.f32 %v5520, %v5532
        %v5541 = vadd.f32 %v5521, %v5533
        %v5542 = vadd.f32 %v5522, %v5534
        %v5543 = vadd.f32 %v5523, %v5535
        %v5544 = vlaneseq
        %v5545 = vshrl.u32 %v5544, 7
        %v5546 = vsub.s32 7, %v5545
        %v5547 = vrot.slane %v4851, %v5546
        %v5548 = vmul.f32 %v5334, %v5547
        %v5549 = vmul.f32 %v5339, %v5547
        %v5550 = vmul.f32 %v5344, %v5547
        %v5551 = vmul.f32 %v5349, %v5547
        %v5552 = vmul.f32 %v5354, %v5547
        %v5553 = vmul.f32 %v5359, %v5547
        %v5554 = vmul.f32 %v5364, %v5547
        %v5555 = vmul.f32 %v5369, %v5547
        %v5556 = vadd.f32 %v5536, %v5548
        %v5557 = vadd.f32 %v5537, %v5549
        %v5558 = vadd.f32 %v5538, %v5550
        %v5559 = vadd.f32 %v5539, %v5551
        %v5560 = vadd.f32 %v5540, %v5552
        %v5561 = vadd.f32 %v5541, %v5553
        %v5562 = vadd.f32 %v5542, %v5554
        %v5563 = vadd.f32 %v5543, %v5555
        %v5564 = vlaneseq
        %v5565 = vshrl.u32 %v5564, 7
        %v5566 = vsub.s32 0, %v5565
        %v5567 = vrot.slane %v4852, %v5566
        %v5568 = vmul.f32 %v5374, %v5567
        %v5569 = vmul.f32 %v5379, %v5567
        %v5570 = vmul.f32 %v5384, %v5567
        %v5571 = vmul.f32 %v5389, %v5567
        %v5572 = vmul.f32 %v5394, %v5567
        %v5573 = vmul.f32 %v5399, %v5567
        %v5574 = vmul.f32 %v5404, %v5567
        %v5575 = vmul.f32 %v5409, %v5567
        %v5576 = vadd.f32 %v5556, %v5568
        %v5577 = vadd.f32 %v5557, %v5569
        %v5578 = vadd.f32 %v5558, %v5570
        %v5579 = vadd.f32 %v5559, %v5571
        %v5580 = vadd.f32 %v5560, %v5572
        %v5581 = vadd.f32 %v5561, %v5573
        %v5582 = vadd.f32 %v5562, %v5574
        %v5583 = vadd.f32 %v5563, %v5575
        %s5584 = scalar_lea.vmem [#allocation6], 1
        %v5585 = vld [vmem:[%s5584] sm:$0x1]
        %v5587 = vlaneseq
        %v5588 = vshrl.u32 %v5587, 7
        %v5589 = vsub.s32 0, %v5588
        %v5590 = vrot.slane %v5585, %v5589
        %5591 = vrot.lane.b32.xlu0 %v5590, 32
        %v5592 = vpop.permute.xlu0 %5591
        %v5594 = vadd.f32 %v5576, %v5592
        %v5595 = vadd.f32 %v5577, %v5592
        %v5596 = vadd.f32 %v5578, %v5592
        %v5597 = vadd.f32 %v5579, %v5592
        %v5598 = vadd.f32 %v5580, %v5592
        %v5599 = vadd.f32 %v5581, %v5592
        %v5600 = vadd.f32 %v5582, %v5592
        %v5601 = vadd.f32 %v5583, %v5592
        %v5602 = vsel %vm2361, %v5594, -inf
        %v5603 = vsel %vm2361, %v5595, -inf
        %v5604 = vsel %vm2361, %v5596, -inf
        %v5605 = vsel %vm2361, %v5597, -inf
        %v5606 = vsel %vm2361, %v5598, -inf
        %v5607 = vmax.f32 %v5602, %v5606
        %v5608 = vsel %vm2361, %v5599, -inf
        %v5609 = vmax.f32 %v5603, %v5608
        %v5610 = vsel %vm2361, %v5600, -inf
        %v5611 = vmax.f32 %v5604, %v5610
        %v5612 = vsel %vm2361, %v5601, -inf
        %v5613 = vmax.f32 %v5605, %v5612
        %v5614 = vmax.f32 %v5607, %v5609
        %v5615 = vmax.f32 %v5611, %v5613
        %v5616 = vmax.f32 %v5614, %v5615
        %v5617 = vrot.slane %v5616, 4
        %v5618 = vmax.f32 %v5616, %v5617
        %v5619 = vrot.slane %v5618, 2
        %v5620 = vmax.f32 %v5618, %v5619
        %v5621 = vrot.slane %v5620, 1
        %v5622 = vmax.f32 %v5620, %v5621
        %v5623 = vsub.f32 %v5594, %v5622
        %v5624 = vsub.f32 %v5595, %v5622
        %v5625 = vsub.f32 %v5596, %v5622
        %v5626 = vsub.f32 %v5597, %v5622
        %v5627 = vsub.f32 %v5598, %v5622
        %v5628 = vsub.f32 %v5599, %v5622
        %v5629 = vsub.f32 %v5600, %v5622
        %v5630 = vsub.f32 %v5601, %v5622
        %v5631 = vmul.f32 %v5623, 1.442695
        %v5632 = vpow.pop %v5631
        %v5633 = vmul.f32 %v5624, 1.442695
        %v5634 = vpow.pop %v5633
        %v5635 = vmul.f32 %v5625, 1.442695
        %v5636 = vpow.pop %v5635
        %v5637 = vmul.f32 %v5626, 1.442695
        %v5638 = vpow.pop %v5637
        %v5639 = vmul.f32 %v5627, 1.442695
        %v5640 = vpow.pop %v5639
        %v5641 = vmul.f32 %v5628, 1.442695
        %v5642 = vpow.pop %v5641
        %v5643 = vmul.f32 %v5629, 1.442695
        %v5644 = vpow.pop %v5643
        %v5645 = vmul.f32 %v5630, 1.442695
        %v5646 = vpow.pop %v5645
        %v5647 = vsel %vm2361, %v5632, 0.0
        %v5648 = vsel %vm2361, %v5634, 0.0
        %v5649 = vadd.f32 %v5647, %v5648
        %v5650 = vsel %vm2361, %v5636, 0.0
        %v5651 = vadd.f32 %v5649, %v5650
        %v5652 = vsel %vm2361, %v5638, 0.0
        %v5653 = vadd.f32 %v5651, %v5652
        %v5654 = vsel %vm2361, %v5640, 0.0
        %v5655 = vadd.f32 %v5653, %v5654
        %v5656 = vsel %vm2361, %v5642, 0.0
        %v5657 = vadd.f32 %v5655, %v5656
        %v5658 = vsel %vm2361, %v5644, 0.0
        %v5659 = vadd.f32 %v5657, %v5658
        %v5660 = vsel %vm2361, %v5646, 0.0
        %v5661 = vadd.f32 %v5659, %v5660
        %v5662 = vrot.slane %v5661, 4
        %v5663 = vadd.f32 %v5661, %v5662
        %v5664 = vrot.slane %v5663, 2
        %v5665 = vadd.f32 %v5663, %v5664
        %v5666 = vrot.slane %v5665, 1
        %v5667 = vadd.f32 %v5665, %v5666
        %v5668 = vrcp.pop %v5667
        %v5669 = vmul.f32 %v5632, %v5668
        %v5670 = vmul.f32 %v5634, %v5668
        %v5671 = vmul.f32 %v5636, %v5668
        %v5672 = vmul.f32 %v5638, %v5668
        %v5673 = vmul.f32 %v5640, %v5668
        %v5674 = vmul.f32 %v5642, %v5668
        %v5675 = vmul.f32 %v5644, %v5668
        %v5676 = vmul.f32 %v5646, %v5668
        %5685 = vrot.lane.b32.xlu0 %v5576, 32
        %v5686 = vpop.permute.xlu0 %5685
        %5687 = vrot.lane.b32.xlu0 %v5577, 32
        %v5688 = vpop.permute.xlu0 %5687
        %5689 = vrot.lane.b32.xlu0 %v5578, 32
        %v5690 = vpop.permute.xlu0 %5689
        %5691 = vrot.lane.b32.xlu0 %v5579, 32
        %v5692 = vpop.permute.xlu0 %5691
        %5693 = vrot.lane.b32.xlu0 %v5580, 32
        %v5694 = vpop.permute.xlu0 %5693
        %5695 = vrot.lane.b32.xlu0 %v5581, 32
        %v5696 = vpop.permute.xlu0 %5695
        %5697 = vrot.lane.b32.xlu0 %v5582, 32
        %v5698 = vpop.permute.xlu0 %5697
        %5699 = vrot.lane.b32.xlu0 %v5583, 32
        %v5700 = vpop.permute.xlu0 %5699
        %v5709 = vmul.f32 %v5669, %v5686
        %v5710 = vmul.f32 %v5670, %v5688
        %v5711 = vmul.f32 %v5671, %v5690
        %v5712 = vmul.f32 %v5672, %v5692
        %v5713 = vmul.f32 %v5673, %v5694
        %v5714 = vmul.f32 %v5674, %v5696
        %v5715 = vmul.f32 %v5675, %v5698
        %v5716 = vmul.f32 %v5676, %v5700
        %5725 = vrot.lane.b32.xlu0 %v5709, 96
        %v5726 = vpop.permute.xlu0 %5725
        %5727 = vrot.lane.b32.xlu0 %v5710, 96
        %v5728 = vpop.permute.xlu0 %5727
        %5729 = vrot.lane.b32.xlu0 %v5711, 96
        %v5730 = vpop.permute.xlu0 %5729
        %5731 = vrot.lane.b32.xlu0 %v5712, 96
        %v5732 = vpop.permute.xlu0 %5731
        %5733 = vrot.lane.b32.xlu0 %v5713, 96
        %v5734 = vpop.permute.xlu0 %5733
        %5735 = vrot.lane.b32.xlu0 %v5714, 96
        %v5736 = vpop.permute.xlu0 %5735
        %5737 = vrot.lane.b32.xlu0 %v5715, 96
        %v5738 = vpop.permute.xlu0 %5737
        %5739 = vrot.lane.b32.xlu0 %v5716, 96
        %v5740 = vpop.permute.xlu0 %5739
        %5749 = vxpose.xlu0.b32.start [1/16] %v5726, 128
        %5750 = vxpose.xlu0.b32.cont [2/16] %v5728, 128
        %5751 = vxpose.xlu0.b32.cont [3/16] %v5730, 128
        %5752 = vxpose.xlu0.b32.cont [4/16] %v5732, 128
        %5753 = vxpose.xlu0.b32.cont [5/16] %v5734, 128
        %5754 = vxpose.xlu0.b32.cont [6/16] %v5736, 128
        %5755 = vxpose.xlu0.b32.cont [7/16] %v5738, 128
        %5756 = vxpose.xlu0.b32.cont [8/16] %v5740, 128
        %5757 = vxpose.xlu0.b32.cont [9/16] 0.0, 128
        %5758 = vxpose.xlu0.b32.cont [10/16] 0.0, 128
        %5759 = vxpose.xlu0.b32.cont [11/16] 0.0, 128
        %5760 = vxpose.xlu0.b32.cont [12/16] 0.0, 128
        %5761 = vxpose.xlu0.b32.cont [13/16] 0.0, 128
        %5762 = vxpose.xlu0.b32.cont [14/16] 0.0, 128
        %5763 = vxpose.xlu0.b32.cont [15/16] 0.0, 128
        %5764 = vxpose.xlu0.b32.end [16/16] 0.0, 128
        %v5765 = vpop.trf.xlu0
        %v5766 = vpop.trf.xlu0
        %v5767 = vpop.trf.xlu0
        %v5768 = vpop.trf.xlu0
        %v5769 = vpop.trf.xlu0
        %v5770 = vpop.trf.xlu0
        %v5771 = vpop.trf.xlu0
        %v5772 = vpop.trf.xlu0
        %v5773 = vpop.trf.xlu0
        %v5774 = vpop.trf.xlu0
        %v5775 = vpop.trf.xlu0
        %v5776 = vpop.trf.xlu0
        %v5777 = vpop.trf.xlu0
        %v5778 = vpop.trf.xlu0
        %v5779 = vpop.trf.xlu0
        %v5780 = vpop.trf.xlu0
        %v5782 = vsel %vm611, %v5765, 0
        %v5785 = vsel %vm611, %v5766, 0
        %5787 = vmatprep.subr.mxu0 0.0
        %5788 = vmatpush1.msra.mxu0 %v4842
        %5789 = vmatprep.subr.mxu0 0.0
        %5790 = vmatpush1.msra.mxu0 %v4843
        %5791 = vmatprep.subr.mxu0 0.0
        %5792 = vmatpush1.msra.mxu0 %v4844
        %5793 = vmatprep.subr.mxu0 0.0
        %5794 = vmatpush1.msra.mxu0 %v4845
        %5795 = vmatprep.subr.mxu0 0.0
        %5796 = vmatpush1.msra.mxu0 %v4846
        %5797 = vmatprep.subr.mxu0 0.0
        %5798 = vmatpush1.msra.mxu0 %v4847
        %5799 = vmatprep.subr.mxu0 0.0
        %5800 = vmatpush1.msra.mxu0 %v4848
        %5801 = vmatprep.subr.mxu0 0.0
        %5802 = vmatpush1.msra.mxu0 %v4849
        %5803 = vmatprep.subr.mxu0 0.0
        %5804 = vmatpush1.msra.mxu0 0.0
        %5805 = vmatprep.subr.mxu0 0.0
        %5806 = vmatpush1.msra.mxu0 0.0
        %5807 = vmatprep.subr.mxu0 0.0
        %5808 = vmatpush1.msra.mxu0 0.0
        %5809 = vmatprep.subr.mxu0 0.0
        %5810 = vmatpush1.msra.mxu0 0.0
        %5811 = vmatprep.subr.mxu0 0.0
        %5812 = vmatpush1.msra.mxu0 0.0
        %5813 = vmatprep.subr.mxu0 0.0
        %5814 = vmatpush1.msra.mxu0 0.0
        %5815 = vmatprep.subr.mxu0 0.0
        %5816 = vmatpush1.msra.mxu0 0.0
        %5817 = vmatprep.subr.mxu0 0.0
        %5818 = vmatpush1.msra.mxu0 0.0
        %5819 = vmatprep.subr.mxu0 0.0
        %5820 = vmatpush1.msra.mxu0 0.0
        %5821 = vmatprep.subr.mxu0 0.0
        %5822 = vmatpush1.msra.mxu0 0.0
        %5823 = vmatprep.subr.mxu0 0.0
        %5824 = vmatpush1.msra.mxu0 0.0
        %5825 = vmatprep.subr.mxu0 0.0
        %5826 = vmatpush1.msra.mxu0 0.0
        %5827 = vmatprep.subr.mxu0 0.0
        %5828 = vmatpush1.msra.mxu0 0.0
        %5829 = vmatprep.subr.mxu0 0.0
        %5830 = vmatpush1.msra.mxu0 0.0
        %5831 = vmatprep.subr.mxu0 0.0
        %5832 = vmatpush1.msra.mxu0 0.0
        %5833 = vmatprep.subr.mxu0 0.0
        %5834 = vmatpush1.msra.mxu0 0.0
        %5835 = vmatprep.subr.mxu0 0.0
        %5836 = vmatpush1.msra.mxu0 0.0
        %5837 = vmatprep.subr.mxu0 0.0
        %5838 = vmatpush1.msra.mxu0 0.0
        %5839 = vmatprep.subr.mxu0 0.0
        %5840 = vmatpush1.msra.mxu0 0.0
        %5841 = vmatprep.subr.mxu0 0.0
        %5842 = vmatpush1.msra.mxu0 0.0
        %5843 = vmatprep.subr.mxu0 0.0
        %5844 = vmatpush1.msra.mxu0 0.0
        %5845 = vmatprep.subr.mxu0 0.0
        %5846 = vmatpush1.msra.mxu0 0.0
        %5847 = vmatprep.subr.mxu0 0.0
        %5848 = vmatpush1.msra.mxu0 0.0
        %5849 = vmatprep.subr.mxu0 0.0
        %5850 = vmatpush1.msra.mxu0 0.0
        %5851 = vmatprep.mubr.f32.mxu0 0.0
        %5852 = vmatmul.mubr.f32.gmra.mrb[0].mxu0 %v5782
        %v5853 = vpop.f32.mrb[0].mxu0
        %v5854 = vadd.f32 0.0, %v5853
        %v5855 = vpop.f32.mrb[0].mxu0
        %5856 = vmatprep.mubr.f32.mxu0 0.0
        %5857 = vmatmul.mubr.f32.gmra.mrb[0].mxu0 %v5785
        %v5858 = vpop.f32.mrb[0].mxu0
        %v5859 = vadd.f32 0.0, %v5858
        %v5860 = vpop.f32.mrb[0].mxu0
        %5861 = vdwg.mxu0
        %s5862 = scalar_lea.vmem %s6, 32
        %v5863 = vld [vmem:[%s5862] sm:$0xff]
        %v5864 = vld [vmem:[%s5862 + $0x8] sm:$0xff]
        %v5865 = vld [vmem:[%s5862 + $0x10] sm:$0xff]
        %v5866 = vld [vmem:[%s5862 + $0x18] sm:$0xff]
        %v5868 = vsel %vm1482, %v5854, 0
        %v5871 = vsel %vm1482, %v5859, 0
        %5873 = vmatprep.subr.mxu0 0.0
        %5874 = vmatpush1.msra.mxu0 %v5863
        %5875 = vmatprep.subr.mxu0 0.0
        %5876 = vmatpush1.msra.mxu0 %v5864
        %5877 = vmatprep.subr.mxu0 0.0
        %5878 = vmatpush1.msra.mxu0 %v5865
        %5879 = vmatprep.subr.mxu0 0.0
        %5880 = vmatpush1.msra.mxu0 %v5866
        %5881 = vmatprep.subr.mxu0 0.0
        %5882 = vmatpush1.msra.mxu0 0.0
        %5883 = vmatprep.subr.mxu0 0.0
        %5884 = vmatpush1.msra.mxu0 0.0
        %5885 = vmatprep.subr.mxu0 0.0
        %5886 = vmatpush1.msra.mxu0 0.0
        %5887 = vmatprep.subr.mxu0 0.0
        %5888 = vmatpush1.msra.mxu0 0.0
        %5889 = vmatprep.subr.mxu0 0.0
        %5890 = vmatpush1.msra.mxu0 0.0
        %5891 = vmatprep.subr.mxu0 0.0
        %5892 = vmatpush1.msra.mxu0 0.0
        %5893 = vmatprep.subr.mxu0 0.0
        %5894 = vmatpush1.msra.mxu0 0.0
        %5895 = vmatprep.subr.mxu0 0.0
        %5896 = vmatpush1.msra.mxu0 0.0
        %5897 = vmatprep.subr.mxu0 0.0
        %5898 = vmatpush1.msra.mxu0 0.0
        %5899 = vmatprep.subr.mxu0 0.0
        %5900 = vmatpush1.msra.mxu0 0.0
        %5901 = vmatprep.subr.mxu0 0.0
        %5902 = vmatpush1.msra.mxu0 0.0
        %5903 = vmatprep.subr.mxu0 0.0
        %5904 = vmatpush1.msra.mxu0 0.0
        %5905 = vmatprep.subr.mxu0 0.0
        %5906 = vmatpush1.msra.mxu0 0.0
        %5907 = vmatprep.subr.mxu0 0.0
        %5908 = vmatpush1.msra.mxu0 0.0
        %5909 = vmatprep.subr.mxu0 0.0
        %5910 = vmatpush1.msra.mxu0 0.0
        %5911 = vmatprep.subr.mxu0 0.0
        %5912 = vmatpush1.msra.mxu0 0.0
        %5913 = vmatprep.subr.mxu0 0.0
        %5914 = vmatpush1.msra.mxu0 0.0
        %5915 = vmatprep.subr.mxu0 0.0
        %5916 = vmatpush1.msra.mxu0 0.0
        %5917 = vmatprep.subr.mxu0 0.0
        %5918 = vmatpush1.msra.mxu0 0.0
        %5919 = vmatprep.subr.mxu0 0.0
        %5920 = vmatpush1.msra.mxu0 0.0
        %5921 = vmatprep.subr.mxu0 0.0
        %5922 = vmatpush1.msra.mxu0 0.0
        %5923 = vmatprep.subr.mxu0 0.0
        %5924 = vmatpush1.msra.mxu0 0.0
        %5925 = vmatprep.subr.mxu0 0.0
        %5926 = vmatpush1.msra.mxu0 0.0
        %5927 = vmatprep.subr.mxu0 0.0
        %5928 = vmatpush1.msra.mxu0 0.0
        %5929 = vmatprep.subr.mxu0 0.0
        %5930 = vmatpush1.msra.mxu0 0.0
        %5931 = vmatprep.subr.mxu0 0.0
        %5932 = vmatpush1.msra.mxu0 0.0
        %5933 = vmatprep.subr.mxu0 0.0
        %5934 = vmatpush1.msra.mxu0 0.0
        %5935 = vmatprep.subr.mxu0 0.0
        %5936 = vmatpush1.msra.mxu0 0.0
        %5937 = vmatprep.mubr.f32.mxu0 0.0
        %5938 = vmatmul.mubr.f32.gmra.mrb[0].mxu0 %v5868
        %v5939 = vpop.f32.mrb[0].mxu0
        %v5940 = vadd.f32 0.0, %v5939
        %v5941 = vpop.f32.mrb[0].mxu0
        %5942 = vmatprep.mubr.f32.mxu0 0.0
        %5943 = vmatmul.mubr.f32.gmra.mrb[0].mxu0 %v5871
        %v5944 = vpop.f32.mrb[0].mxu0
        %v5945 = vadd.f32 0.0, %v5944
        %v5946 = vpop.f32.mrb[0].mxu0
        %5947 = vdwg.mxu0
        %s5948 = scalar_lea.vmem %s7, 32
        %v5949 = vld [vmem:[%s5948] sm:$0xff]
        %v5950 = vld [vmem:[%s5948 + $0x8] sm:$0xff]
        %v5951 = vld [vmem:[%s5948 + $0x10] sm:$0xff]
        %v5952 = vld [vmem:[%s5948 + $0x18] sm:$0xff]
        %5953 = vmatprep.subr.mxu0 0.0
        %5954 = vmatpush1.msra.mxu0 %v5949
        %5955 = vmatprep.subr.mxu0 0.0
        %5956 = vmatpush1.msra.mxu0 %v5950
        %5957 = vmatprep.subr.mxu0 0.0
        %5958 = vmatpush1.msra.mxu0 %v5951
        %5959 = vmatprep.subr.mxu0 0.0
        %5960 = vmatpush1.msra.mxu0 %v5952
        %5961 = vmatprep.subr.mxu0 0.0
        %5962 = vmatpush1.msra.mxu0 0.0
        %5963 = vmatprep.subr.mxu0 0.0
        %5964 = vmatpush1.msra.mxu0 0.0
        %5965 = vmatprep.subr.mxu0 0.0
        %5966 = vmatpush1.msra.mxu0 0.0
        %5967 = vmatprep.subr.mxu0 0.0
        %5968 = vmatpush1.msra.mxu0 0.0
        %5969 = vmatprep.subr.mxu0 0.0
        %5970 = vmatpush1.msra.mxu0 0.0
        %5971 = vmatprep.subr.mxu0 0.0
        %5972 = vmatpush1.msra.mxu0 0.0
        %5973 = vmatprep.subr.mxu0 0.0
        %5974 = vmatpush1.msra.mxu0 0.0
        %5975 = vmatprep.subr.mxu0 0.0
        %5976 = vmatpush1.msra.mxu0 0.0
        %5977 = vmatprep.subr.mxu0 0.0
        %5978 = vmatpush1.msra.mxu0 0.0
        %5979 = vmatprep.subr.mxu0 0.0
        %5980 = vmatpush1.msra.mxu0 0.0
        %5981 = vmatprep.subr.mxu0 0.0
        %5982 = vmatpush1.msra.mxu0 0.0
        %5983 = vmatprep.subr.mxu0 0.0
        %5984 = vmatpush1.msra.mxu0 0.0
        %5985 = vmatprep.subr.mxu0 0.0
        %5986 = vmatpush1.msra.mxu0 0.0
        %5987 = vmatprep.subr.mxu0 0.0
        %5988 = vmatpush1.msra.mxu0 0.0
        %5989 = vmatprep.subr.mxu0 0.0
        %5990 = vmatpush1.msra.mxu0 0.0
        %5991 = vmatprep.subr.mxu0 0.0
        %5992 = vmatpush1.msra.mxu0 0.0
        %5993 = vmatprep.subr.mxu0 0.0
        %5994 = vmatpush1.msra.mxu0 0.0
        %5995 = vmatprep.subr.mxu0 0.0
        %5996 = vmatpush1.msra.mxu0 0.0
        %5997 = vmatprep.subr.mxu0 0.0
        %5998 = vmatpush1.msra.mxu0 0.0
        %5999 = vmatprep.subr.mxu0 0.0
        %6000 = vmatpush1.msra.mxu0 0.0
        %6001 = vmatprep.subr.mxu0 0.0
        %6002 = vmatpush1.msra.mxu0 0.0
        %6003 = vmatprep.subr.mxu0 0.0
        %6004 = vmatpush1.msra.mxu0 0.0
        %6005 = vmatprep.subr.mxu0 0.0
        %6006 = vmatpush1.msra.mxu0 0.0
        %6007 = vmatprep.subr.mxu0 0.0
        %6008 = vmatpush1.msra.mxu0 0.0
        %6009 = vmatprep.subr.mxu0 0.0
        %6010 = vmatpush1.msra.mxu0 0.0
        %6011 = vmatprep.subr.mxu0 0.0
        %6012 = vmatpush1.msra.mxu0 0.0
        %6013 = vmatprep.subr.mxu0 0.0
        %6014 = vmatpush1.msra.mxu0 0.0
        %6015 = vmatprep.subr.mxu0 0.0
        %6016 = vmatpush1.msra.mxu0 0.0
        %6017 = vmatprep.mubr.f32.mxu0 0.0
        %6018 = vmatmul.mubr.f32.gmra.mrb[0].mxu0 %v5868
        %v6019 = vpop.f32.mrb[0].mxu0
        %v6020 = vadd.f32 0.0, %v6019
        %v6021 = vpop.f32.mrb[0].mxu0
        %6022 = vmatprep.mubr.f32.mxu0 0.0
        %6023 = vmatmul.mubr.f32.gmra.mrb[0].mxu0 %v5871
        %v6024 = vpop.f32.mrb[0].mxu0
        %v6025 = vadd.f32 0.0, %v6024
        %v6026 = vpop.f32.mrb[0].mxu0
        %6027 = vdwg.mxu0
        %s6028 = sld [smem:[#allocation8 + $0x1]]
        %v6029 = vxor.u32 %v6020, 2147483648
        %v6030 = vxor.u32 %v6025, 2147483648
        %v6031 = vmul.f32 %v6029, 1.442695
        %v6032 = vpow.pop %v6031
        %v6033 = vmul.f32 %v6030, 1.442695
        %v6034 = vpow.pop %v6033
        %v6035 = vadd.f32 %v6032, 1.0
        %v6036 = vadd.f32 %v6034, 1.0
        %v6037 = vrcp.pop %v6035
        %v6038 = vmul.f32 1.0, %v6037
        %v6039 = vrcp.pop %v6036
        %v6040 = vmul.f32 1.0, %v6039
        %v6041 = vmul.f32 %v6020, %v6038
        %v6042 = vmul.f32 %v6025, %v6040
        %v6043 = vstv %s6028
        %v6044 = vadd.f32 %v6041, %v6043
        %v6045 = vadd.f32 %v6042, %v6043
        %v6046 = vmul.f32 %v5940, %v6044
        %v6047 = vmul.f32 %v5945, %v6045
        %s6048 = scalar_lea.vmem %s8, 32
        %v6049 = vld [vmem:[%s6048] sm:$0xff]
        %v6050 = vld [vmem:[%s6048 + $0x8] sm:$0xff]
        %v6051 = vld [vmem:[%s6048 + $0x10] sm:$0xff]
        %v6052 = vld [vmem:[%s6048 + $0x18] sm:$0xff]
        %v6054 = vsel %vm1482, %v6046, 0
        %v6057 = vsel %vm1482, %v6047, 0
        %6059 = vmatprep.subr.mxu0 0.0
        %6060 = vmatpush1.msra.mxu0 %v6049
        %6061 = vmatprep.subr.mxu0 0.0
        %6062 = vmatpush1.msra.mxu0 %v6050
        %6063 = vmatprep.subr.mxu0 0.0
        %6064 = vmatpush1.msra.mxu0 %v6051
        %6065 = vmatprep.subr.mxu0 0.0
        %6066 = vmatpush1.msra.mxu0 %v6052
        %6067 = vmatprep.subr.mxu0 0.0
        %6068 = vmatpush1.msra.mxu0 0.0
        %6069 = vmatprep.subr.mxu0 0.0
        %6070 = vmatpush1.msra.mxu0 0.0
        %6071 = vmatprep.subr.mxu0 0.0
        %6072 = vmatpush1.msra.mxu0 0.0
        %6073 = vmatprep.subr.mxu0 0.0
        %6074 = vmatpush1.msra.mxu0 0.0
        %6075 = vmatprep.subr.mxu0 0.0
        %6076 = vmatpush1.msra.mxu0 0.0
        %6077 = vmatprep.subr.mxu0 0.0
        %6078 = vmatpush1.msra.mxu0 0.0
        %6079 = vmatprep.subr.mxu0 0.0
        %6080 = vmatpush1.msra.mxu0 0.0
        %6081 = vmatprep.subr.mxu0 0.0
        %6082 = vmatpush1.msra.mxu0 0.0
        %6083 = vmatprep.subr.mxu0 0.0
        %6084 = vmatpush1.msra.mxu0 0.0
        %6085 = vmatprep.subr.mxu0 0.0
        %6086 = vmatpush1.msra.mxu0 0.0
        %6087 = vmatprep.subr.mxu0 0.0
        %6088 = vmatpush1.msra.mxu0 0.0
        %6089 = vmatprep.subr.mxu0 0.0
        %6090 = vmatpush1.msra.mxu0 0.0
        %6091 = vmatprep.subr.mxu0 0.0
        %6092 = vmatpush1.msra.mxu0 0.0
        %6093 = vmatprep.subr.mxu0 0.0
        %6094 = vmatpush1.msra.mxu0 0.0
        %6095 = vmatprep.subr.mxu0 0.0
        %6096 = vmatpush1.msra.mxu0 0.0
        %6097 = vmatprep.subr.mxu0 0.0
        %6098 = vmatpush1.msra.mxu0 0.0
        %6099 = vmatprep.subr.mxu0 0.0
        %6100 = vmatpush1.msra.mxu0 0.0
        %6101 = vmatprep.subr.mxu0 0.0
        %6102 = vmatpush1.msra.mxu0 0.0
        %6103 = vmatprep.subr.mxu0 0.0
        %6104 = vmatpush1.msra.mxu0 0.0
        %6105 = vmatprep.subr.mxu0 0.0
        %6106 = vmatpush1.msra.mxu0 0.0
        %6107 = vmatprep.subr.mxu0 0.0
        %6108 = vmatpush1.msra.mxu0 0.0
        %6109 = vmatprep.subr.mxu0 0.0
        %6110 = vmatpush1.msra.mxu0 0.0
        %6111 = vmatprep.subr.mxu0 0.0
        %6112 = vmatpush1.msra.mxu0 0.0
        %6113 = vmatprep.subr.mxu0 0.0
        %6114 = vmatpush1.msra.mxu0 0.0
        %6115 = vmatprep.subr.mxu0 0.0
        %6116 = vmatpush1.msra.mxu0 0.0
        %6117 = vmatprep.subr.mxu0 0.0
        %6118 = vmatpush1.msra.mxu0 0.0
        %6119 = vmatprep.subr.mxu0 0.0
        %6120 = vmatpush1.msra.mxu0 0.0
        %6121 = vmatprep.subr.mxu0 0.0
        %6122 = vmatpush1.msra.mxu0 0.0
        %6123 = vmatprep.mubr.f32.mxu0 0.0
        %6124 = vmatmul.mubr.f32.gmra.mrb[0].mxu0 %v6054
        %v6125 = vpop.f32.mrb[0].mxu0
        %v6126 = vadd.f32 0.0, %v6125
        %v6127 = vpop.f32.mrb[0].mxu0
        %6128 = vmatprep.mubr.f32.mxu0 0.0
        %6129 = vmatmul.mubr.f32.gmra.mrb[0].mxu0 %v6057
        %v6130 = vpop.f32.mrb[0].mxu0
        %v6131 = vadd.f32 0.0, %v6130
        %v6132 = vpop.f32.mrb[0].mxu0
        %6133 = vdwg.mxu0
        %6134 = vrot.lane.b32.xlu0 %v5576, 112
        %v6135 = vpop.permute.xlu0 %6134
        %6136 = vrot.lane.b32.xlu0 %v5577, 112
        %v6137 = vpop.permute.xlu0 %6136
        %6138 = vrot.lane.b32.xlu0 %v5578, 112
        %v6139 = vpop.permute.xlu0 %6138
        %6140 = vrot.lane.b32.xlu0 %v5579, 112
        %v6141 = vpop.permute.xlu0 %6140
        %6142 = vrot.lane.b32.xlu0 %v5580, 112
        %v6143 = vpop.permute.xlu0 %6142
        %6144 = vrot.lane.b32.xlu0 %v5581, 112
        %v6145 = vpop.permute.xlu0 %6144
        %6146 = vrot.lane.b32.xlu0 %v5582, 112
        %v6147 = vpop.permute.xlu0 %6146
        %6148 = vrot.lane.b32.xlu0 %v5583, 112
        %v6149 = vpop.permute.xlu0 %6148
        %v6150 = vsel %vm2907, %v6135, 0
        %v6152 = vsel %vm2907, %v6137, 0
        %v6154 = vsel %vm2907, %v6139, 0
        %v6156 = vsel %vm2907, %v6141, 0
        %v6158 = vsel %vm2907, %v6143, 0
        %v6160 = vsel %vm2907, %v6145, 0
        %v6162 = vsel %vm2907, %v6147, 0
        %v6164 = vsel %vm2907, %v6149, 0
        %6166 = vmatprep.subr.mxu0 0.0
        %6167 = vmatpush1.msra.mxu0 %v6126
        %6168 = vmatprep.subr.mxu0 0.0
        %6169 = vmatpush1.msra.mxu0 %v6131
        %6170 = vmatprep.subr.mxu0 0.0
        %6171 = vmatpush1.msra.mxu0 0.0
        %6172 = vmatprep.subr.mxu0 0.0
        %6173 = vmatpush1.msra.mxu0 0.0
        %6174 = vmatprep.subr.mxu0 0.0
        %6175 = vmatpush1.msra.mxu0 0.0
        %6176 = vmatprep.subr.mxu0 0.0
        %6177 = vmatpush1.msra.mxu0 0.0
        %6178 = vmatprep.subr.mxu0 0.0
        %6179 = vmatpush1.msra.mxu0 0.0
        %6180 = vmatprep.subr.mxu0 0.0
        %6181 = vmatpush1.msra.mxu0 0.0
        %6182 = vmatprep.subr.mxu0 0.0
        %6183 = vmatpush1.msra.mxu0 0.0
        %6184 = vmatprep.subr.mxu0 0.0
        %6185 = vmatpush1.msra.mxu0 0.0
        %6186 = vmatprep.subr.mxu0 0.0
        %6187 = vmatpush1.msra.mxu0 0.0
        %6188 = vmatprep.subr.mxu0 0.0
        %6189 = vmatpush1.msra.mxu0 0.0
        %6190 = vmatprep.subr.mxu0 0.0
        %6191 = vmatpush1.msra.mxu0 0.0
        %6192 = vmatprep.subr.mxu0 0.0
        %6193 = vmatpush1.msra.mxu0 0.0
        %6194 = vmatprep.subr.mxu0 0.0
        %6195 = vmatpush1.msra.mxu0 0.0
        %6196 = vmatprep.subr.mxu0 0.0
        %6197 = vmatpush1.msra.mxu0 0.0
        %6198 = vmatprep.subr.mxu0 0.0
        %6199 = vmatpush1.msra.mxu0 0.0
        %6200 = vmatprep.subr.mxu0 0.0
        %6201 = vmatpush1.msra.mxu0 0.0
        %6202 = vmatprep.subr.mxu0 0.0
        %6203 = vmatpush1.msra.mxu0 0.0
        %6204 = vmatprep.subr.mxu0 0.0
        %6205 = vmatpush1.msra.mxu0 0.0
        %6206 = vmatprep.subr.mxu0 0.0
        %6207 = vmatpush1.msra.mxu0 0.0
        %6208 = vmatprep.subr.mxu0 0.0
        %6209 = vmatpush1.msra.mxu0 0.0
        %6210 = vmatprep.subr.mxu0 0.0
        %6211 = vmatpush1.msra.mxu0 0.0
        %6212 = vmatprep.subr.mxu0 0.0
        %6213 = vmatpush1.msra.mxu0 0.0
        %6214 = vmatprep.subr.mxu0 0.0
        %6215 = vmatpush1.msra.mxu0 0.0
        %6216 = vmatprep.subr.mxu0 0.0
        %6217 = vmatpush1.msra.mxu0 0.0
        %6218 = vmatprep.subr.mxu0 0.0
        %6219 = vmatpush1.msra.mxu0 0.0
        %6220 = vmatprep.subr.mxu0 0.0
        %6221 = vmatpush1.msra.mxu0 0.0
        %6222 = vmatprep.subr.mxu0 0.0
        %6223 = vmatpush1.msra.mxu0 0.0
        %6224 = vmatprep.subr.mxu0 0.0
        %6225 = vmatpush1.msra.mxu0 0.0
        %6226 = vmatprep.subr.mxu0 0.0
        %6227 = vmatpush1.msra.mxu0 0.0
        %6228 = vmatprep.subr.mxu0 0.0
        %6229 = vmatpush1.msra.mxu0 0.0
        %6230 = vmatprep.mubr.f32.mxu0 0.0
        %6231 = vmatmul.mubr.f32.gmra.mrb[0].mxu0 %v6150
        %v6232 = vpop.f32.mrb[0].mxu0
        %v6233 = vadd.f32 0.0, %v6232
        %v6234 = vpop.f32.mrb[0].mxu0
        %6235 = vmatprep.mubr.f32.mxu0 0.0
        %6236 = vmatmul.mubr.f32.gmra.mrb[0].mxu0 %v6152
        %v6237 = vpop.f32.mrb[0].mxu0
        %v6238 = vadd.f32 0.0, %v6237
        %v6239 = vpop.f32.mrb[0].mxu0
        %6240 = vmatprep.mubr.f32.mxu0 0.0
        %6241 = vmatmul.mubr.f32.gmra.mrb[0].mxu0 %v6154
        %v6242 = vpop.f32.mrb[0].mxu0
        %v6243 = vadd.f32 0.0, %v6242
        %v6244 = vpop.f32.mrb[0].mxu0
        %6245 = vmatprep.mubr.f32.mxu0 0.0
        %6246 = vmatmul.mubr.f32.gmra.mrb[0].mxu0 %v6156
        %v6247 = vpop.f32.mrb[0].mxu0
        %v6248 = vadd.f32 0.0, %v6247
        %v6249 = vpop.f32.mrb[0].mxu0
        %6250 = vmatprep.mubr.f32.mxu0 0.0
        %6251 = vmatmul.mubr.f32.gmra.mrb[0].mxu0 %v6158
        %v6252 = vpop.f32.mrb[0].mxu0
        %v6253 = vadd.f32 0.0, %v6252
        %v6254 = vpop.f32.mrb[0].mxu0
        %6255 = vmatprep.mubr.f32.mxu0 0.0
        %6256 = vmatmul.mubr.f32.gmra.mrb[0].mxu0 %v6160
        %v6257 = vpop.f32.mrb[0].mxu0
        %v6258 = vadd.f32 0.0, %v6257
        %v6259 = vpop.f32.mrb[0].mxu0
        %6260 = vmatprep.mubr.f32.mxu0 0.0
        %6261 = vmatmul.mubr.f32.gmra.mrb[0].mxu0 %v6162
        %v6262 = vpop.f32.mrb[0].mxu0
        %v6263 = vadd.f32 0.0, %v6262
        %v6264 = vpop.f32.mrb[0].mxu0
        %6265 = vmatprep.mubr.f32.mxu0 0.0
        %6266 = vmatmul.mubr.f32.gmra.mrb[0].mxu0 %v6164
        %v6267 = vpop.f32.mrb[0].mxu0
        %v6268 = vadd.f32 0.0, %v6267
        %v6269 = vpop.f32.mrb[0].mxu0
        %6270 = vdwg.mxu0
        %v6271 = vlaneseq
        %v6272 = vshrl.u32 %v6271, 7
        %v6273 = vsub.s32 1, %v6272
        %v6274 = vrot.slane %v4689, %v6273
        %v6275 = vmul.f32 %v6274, %v4714
        %v6276 = vmul.f32 %v6274, %v4715
        %v6277 = vmul.f32 %v6274, %v4716
        %v6278 = vmul.f32 %v6274, %v4717
        %v6279 = vmul.f32 %v6274, %v4718
        %v6280 = vmul.f32 %v6274, %v4719
        %v6281 = vmul.f32 %v6274, %v4720
        %v6282 = vmul.f32 %v6274, %v4721
        %v6283 = vlaneseq
        %v6284 = vshrl.u32 %v6283, 7
        %v6285 = vsub.s32 1, %v6284
        %v6286 = vrot.slane %v4067, %v6285
        %v6287 = vmul.f32 %v6286, %v6233
        %v6288 = vmul.f32 %v6286, %v6238
        %v6289 = vmul.f32 %v6286, %v6243
        %v6290 = vmul.f32 %v6286, %v6248
        %v6291 = vmul.f32 %v6286, %v6253
        %v6292 = vmul.f32 %v6286, %v6258
        %v6293 = vmul.f32 %v6286, %v6263
        %v6294 = vmul.f32 %v6286, %v6268
        %v6295 = vadd.f32 %v6275, %v6287
        %v6296 = vadd.f32 %v6276, %v6288
        %v6297 = vadd.f32 %v6277, %v6289
        %v6298 = vadd.f32 %v6278, %v6290
        %v6299 = vadd.f32 %v6279, %v6291
        %v6300 = vadd.f32 %v6280, %v6292
        %v6301 = vadd.f32 %v6281, %v6293
        %v6302 = vadd.f32 %v6282, %v6294
        %6303 = vmatprep.subr.mxu0 0.0
        %6304 = vmatpush1.msra.mxu0 %v6295
        %6305 = vmatprep.subr.mxu0 0.0
        %6306 = vmatpush1.msra.mxu0 %v6296
        %6307 = vmatprep.subr.mxu0 0.0
        %6308 = vmatpush1.msra.mxu0 %v6297
        %6309 = vmatprep.subr.mxu0 0.0
        %6310 = vmatpush1.msra.mxu0 %v6298
        %6311 = vmatprep.subr.mxu0 0.0
        %6312 = vmatpush1.msra.mxu0 %v6299
        %6313 = vmatprep.subr.mxu0 0.0
        %6314 = vmatpush1.msra.mxu0 %v6300
        %6315 = vmatprep.subr.mxu0 0.0
        %6316 = vmatpush1.msra.mxu0 %v6301
        %6317 = vmatprep.subr.mxu0 0.0
        %6318 = vmatpush1.msra.mxu0 %v6302
        %6319 = vmatprep.subr.mxu0 0.0
        %6320 = vmatpush1.msra.mxu0 0.0
        %6321 = vmatprep.subr.mxu0 0.0
        %6322 = vmatpush1.msra.mxu0 0.0
        %6323 = vmatprep.subr.mxu0 0.0
        %6324 = vmatpush1.msra.mxu0 0.0
        %6325 = vmatprep.subr.mxu0 0.0
        %6326 = vmatpush1.msra.mxu0 0.0
        %6327 = vmatprep.subr.mxu0 0.0
        %6328 = vmatpush1.msra.mxu0 0.0
        %6329 = vmatprep.subr.mxu0 0.0
        %6330 = vmatpush1.msra.mxu0 0.0
        %6331 = vmatprep.subr.mxu0 0.0
        %6332 = vmatpush1.msra.mxu0 0.0
        %6333 = vmatprep.subr.mxu0 0.0
        %6334 = vmatpush1.msra.mxu0 0.0
        %6335 = vmatprep.subr.mxu0 0.0
        %6336 = vmatpush1.msra.mxu0 0.0
        %6337 = vmatprep.subr.mxu0 0.0
        %6338 = vmatpush1.msra.mxu0 0.0
        %6339 = vmatprep.subr.mxu0 0.0
        %6340 = vmatpush1.msra.mxu0 0.0
        %6341 = vmatprep.subr.mxu0 0.0
        %6342 = vmatpush1.msra.mxu0 0.0
        %6343 = vmatprep.subr.mxu0 0.0
        %6344 = vmatpush1.msra.mxu0 0.0
        %6345 = vmatprep.subr.mxu0 0.0
        %6346 = vmatpush1.msra.mxu0 0.0
        %6347 = vmatprep.subr.mxu0 0.0
        %6348 = vmatpush1.msra.mxu0 0.0
        %6349 = vmatprep.subr.mxu0 0.0
        %6350 = vmatpush1.msra.mxu0 0.0
        %6351 = vmatprep.subr.mxu0 0.0
        %6352 = vmatpush1.msra.mxu0 0.0
        %6353 = vmatprep.subr.mxu0 0.0
        %6354 = vmatpush1.msra.mxu0 0.0
        %6355 = vmatprep.subr.mxu0 0.0
        %6356 = vmatpush1.msra.mxu0 0.0
        %6357 = vmatprep.subr.mxu0 0.0
        %6358 = vmatpush1.msra.mxu0 0.0
        %6359 = vmatprep.subr.mxu0 0.0
        %6360 = vmatpush1.msra.mxu0 0.0
        %6361 = vmatprep.subr.mxu0 0.0
        %6362 = vmatpush1.msra.mxu0 0.0
        %6363 = vmatprep.subr.mxu0 0.0
        %6364 = vmatpush1.msra.mxu0 0.0
        %6365 = vmatprep.subr.mxu0 0.0
        %6366 = vmatpush1.msra.mxu0 0.0
        %6367 = vmatprep.mubr.f32.mxu0 0.0
        %6368 = vmatmul.mubr.f32.gmra.mrb[0].mxu0 %v613
        %v6369 = vpop.f32.mrb[0].mxu0
        %v6370 = vadd.f32 0.0, %v6369
        %v6371 = vpop.f32.mrb[0].mxu0
        %6372 = vmatprep.mubr.f32.mxu0 0.0
        %6373 = vmatmul.mubr.f32.gmra.mrb[0].mxu0 %v616
        %v6374 = vpop.f32.mrb[0].mxu0
        %v6375 = vadd.f32 0.0, %v6374
        %v6376 = vpop.f32.mrb[0].mxu0
        %6377 = vmatprep.mubr.f32.mxu0 0.0
        %6378 = vmatmul.mubr.f32.gmra.mrb[0].mxu0 %v619
        %v6379 = vpop.f32.mrb[0].mxu0
        %v6380 = vadd.f32 0.0, %v6379
        %v6381 = vpop.f32.mrb[0].mxu0
        %6382 = vmatprep.mubr.f32.mxu0 0.0
        %6383 = vmatmul.mubr.f32.gmra.mrb[0].mxu0 %v622
        %v6384 = vpop.f32.mrb[0].mxu0
        %v6385 = vadd.f32 0.0, %v6384
        %v6386 = vpop.f32.mrb[0].mxu0
        %6387 = vmatprep.mubr.f32.mxu0 0.0
        %6388 = vmatmul.mubr.f32.gmra.mrb[0].mxu0 %v625
        %v6389 = vpop.f32.mrb[0].mxu0
        %v6390 = vadd.f32 0.0, %v6389
        %v6391 = vpop.f32.mrb[0].mxu0
        %6392 = vmatprep.mubr.f32.mxu0 0.0
        %6393 = vmatmul.mubr.f32.gmra.mrb[0].mxu0 %v628
        %v6394 = vpop.f32.mrb[0].mxu0
        %v6395 = vadd.f32 0.0, %v6394
        %v6396 = vpop.f32.mrb[0].mxu0
        %6397 = vmatprep.mubr.f32.mxu0 0.0
        %6398 = vmatmul.mubr.f32.gmra.mrb[0].mxu0 %v631
        %v6399 = vpop.f32.mrb[0].mxu0
        %v6400 = vadd.f32 0.0, %v6399
        %v6401 = vpop.f32.mrb[0].mxu0
        %6402 = vmatprep.mubr.f32.mxu0 0.0
        %6403 = vmatmul.mubr.f32.gmra.mrb[0].mxu0 %v634
        %v6404 = vpop.f32.mrb[0].mxu0
        %v6405 = vadd.f32 0.0, %v6404
        %v6406 = vpop.f32.mrb[0].mxu0
        %6407 = vmatprep.mubr.f32.mxu0 0.0
        %6408 = vmatmul.mubr.f32.gmra.mrb[0].mxu0 %v637
        %v6409 = vpop.f32.mrb[0].mxu0
        %v6410 = vadd.f32 0.0, %v6409
        %v6411 = vpop.f32.mrb[0].mxu0
        %6412 = vmatprep.mubr.f32.mxu0 0.0
        %6413 = vmatmul.mubr.f32.gmra.mrb[0].mxu0 %v640
        %v6414 = vpop.f32.mrb[0].mxu0
        %v6415 = vadd.f32 0.0, %v6414
        %v6416 = vpop.f32.mrb[0].mxu0
        %6417 = vmatprep.mubr.f32.mxu0 0.0
        %6418 = vmatmul.mubr.f32.gmra.mrb[0].mxu0 %v643
        %v6419 = vpop.f32.mrb[0].mxu0
        %v6420 = vadd.f32 0.0, %v6419
        %v6421 = vpop.f32.mrb[0].mxu0
        %6422 = vmatprep.mubr.f32.mxu0 0.0
        %6423 = vmatmul.mubr.f32.gmra.mrb[0].mxu0 %v646
        %v6424 = vpop.f32.mrb[0].mxu0
        %v6425 = vadd.f32 0.0, %v6424
        %v6426 = vpop.f32.mrb[0].mxu0
        %6427 = vmatprep.mubr.f32.mxu0 0.0
        %6428 = vmatmul.mubr.f32.gmra.mrb[0].mxu0 %v649
        %v6429 = vpop.f32.mrb[0].mxu0
        %v6430 = vadd.f32 0.0, %v6429
        %v6431 = vpop.f32.mrb[0].mxu0
        %6432 = vmatprep.mubr.f32.mxu0 0.0
        %6433 = vmatmul.mubr.f32.gmra.mrb[0].mxu0 %v652
        %v6434 = vpop.f32.mrb[0].mxu0
        %v6435 = vadd.f32 0.0, %v6434
        %v6436 = vpop.f32.mrb[0].mxu0
        %6437 = vmatprep.mubr.f32.mxu0 0.0
        %6438 = vmatmul.mubr.f32.gmra.mrb[0].mxu0 %v655
        %v6439 = vpop.f32.mrb[0].mxu0
        %v6440 = vadd.f32 0.0, %v6439
        %v6441 = vpop.f32.mrb[0].mxu0
        %6442 = vmatprep.mubr.f32.mxu0 0.0
        %6443 = vmatmul.mubr.f32.gmra.mrb[0].mxu0 %v658
        %v6444 = vpop.f32.mrb[0].mxu0
        %v6445 = vadd.f32 0.0, %v6444
        %v6446 = vpop.f32.mrb[0].mxu0
        %6447 = vmatprep.mubr.f32.mxu0 0.0
        %6448 = vmatmul.mubr.f32.gmra.mrb[0].mxu0 %v661
        %v6449 = vpop.f32.mrb[0].mxu0
        %v6450 = vadd.f32 0.0, %v6449
        %v6451 = vpop.f32.mrb[0].mxu0
        %6452 = vmatprep.mubr.f32.mxu0 0.0
        %6453 = vmatmul.mubr.f32.gmra.mrb[0].mxu0 %v664
        %v6454 = vpop.f32.mrb[0].mxu0
        %v6455 = vadd.f32 0.0, %v6454
        %v6456 = vpop.f32.mrb[0].mxu0
        %6457 = vmatprep.mubr.f32.mxu0 0.0
        %6458 = vmatmul.mubr.f32.gmra.mrb[0].mxu0 %v667
        %v6459 = vpop.f32.mrb[0].mxu0
        %v6460 = vadd.f32 0.0, %v6459
        %v6461 = vpop.f32.mrb[0].mxu0
        %6462 = vmatprep.mubr.f32.mxu0 0.0
        %6463 = vmatmul.mubr.f32.gmra.mrb[0].mxu0 %v670
        %v6464 = vpop.f32.mrb[0].mxu0
        %v6465 = vadd.f32 0.0, %v6464
        %v6466 = vpop.f32.mrb[0].mxu0
        %6467 = vmatprep.mubr.f32.mxu0 0.0
        %6468 = vmatmul.mubr.f32.gmra.mrb[0].mxu0 %v673
        %v6469 = vpop.f32.mrb[0].mxu0
        %v6470 = vadd.f32 0.0, %v6469
        %v6471 = vpop.f32.mrb[0].mxu0
        %6472 = vmatprep.mubr.f32.mxu0 0.0
        %6473 = vmatmul.mubr.f32.gmra.mrb[0].mxu0 %v676
        %v6474 = vpop.f32.mrb[0].mxu0
        %v6475 = vadd.f32 0.0, %v6474
        %v6476 = vpop.f32.mrb[0].mxu0
        %6477 = vmatprep.mubr.f32.mxu0 0.0
        %6478 = vmatmul.mubr.f32.gmra.mrb[0].mxu0 %v679
        %v6479 = vpop.f32.mrb[0].mxu0
        %v6480 = vadd.f32 0.0, %v6479
        %v6481 = vpop.f32.mrb[0].mxu0
        %6482 = vmatprep.mubr.f32.mxu0 0.0
        %6483 = vmatmul.mubr.f32.gmra.mrb[0].mxu0 %v682
        %v6484 = vpop.f32.mrb[0].mxu0
        %v6485 = vadd.f32 0.0, %v6484
        %v6486 = vpop.f32.mrb[0].mxu0
        %6487 = vmatprep.mubr.f32.mxu0 0.0
        %6488 = vmatmul.mubr.f32.gmra.mrb[0].mxu0 %v685
        %v6489 = vpop.f32.mrb[0].mxu0
        %v6490 = vadd.f32 0.0, %v6489
        %v6491 = vpop.f32.mrb[0].mxu0
        %6492 = vmatprep.mubr.f32.mxu0 0.0
        %6493 = vmatmul.mubr.f32.gmra.mrb[0].mxu0 %v688
        %v6494 = vpop.f32.mrb[0].mxu0
        %v6495 = vadd.f32 0.0, %v6494
        %v6496 = vpop.f32.mrb[0].mxu0
        %6497 = vmatprep.mubr.f32.mxu0 0.0
        %6498 = vmatmul.mubr.f32.gmra.mrb[0].mxu0 %v691
        %v6499 = vpop.f32.mrb[0].mxu0
        %v6500 = vadd.f32 0.0, %v6499
        %v6501 = vpop.f32.mrb[0].mxu0
        %6502 = vmatprep.mubr.f32.mxu0 0.0
        %6503 = vmatmul.mubr.f32.gmra.mrb[0].mxu0 %v694
        %v6504 = vpop.f32.mrb[0].mxu0
        %v6505 = vadd.f32 0.0, %v6504
        %v6506 = vpop.f32.mrb[0].mxu0
        %6507 = vmatprep.mubr.f32.mxu0 0.0
        %6508 = vmatmul.mubr.f32.gmra.mrb[0].mxu0 %v697
        %v6509 = vpop.f32.mrb[0].mxu0
        %v6510 = vadd.f32 0.0, %v6509
        %v6511 = vpop.f32.mrb[0].mxu0
        %6512 = vmatprep.mubr.f32.mxu0 0.0
        %6513 = vmatmul.mubr.f32.gmra.mrb[0].mxu0 %v700
        %v6514 = vpop.f32.mrb[0].mxu0
        %v6515 = vadd.f32 0.0, %v6514
        %v6516 = vpop.f32.mrb[0].mxu0
        %6517 = vmatprep.mubr.f32.mxu0 0.0
        %6518 = vmatmul.mubr.f32.gmra.mrb[0].mxu0 %v703
        %v6519 = vpop.f32.mrb[0].mxu0
        %v6520 = vadd.f32 0.0, %v6519
        %v6521 = vpop.f32.mrb[0].mxu0
        %6522 = vmatprep.mubr.f32.mxu0 0.0
        %6523 = vmatmul.mubr.f32.gmra.mrb[0].mxu0 %v706
        %v6524 = vpop.f32.mrb[0].mxu0
        %v6525 = vadd.f32 0.0, %v6524
        %v6526 = vpop.f32.mrb[0].mxu0
        %6527 = vmatprep.mubr.f32.mxu0 0.0
        %6528 = vmatmul.mubr.f32.gmra.mrb[0].mxu0 %v709
        %v6529 = vpop.f32.mrb[0].mxu0
        %v6530 = vadd.f32 0.0, %v6529
        %v6531 = vpop.f32.mrb[0].mxu0
        %6532 = vmatprep.mubr.f32.mxu0 0.0
        %6533 = vmatmul.mubr.f32.gmra.mrb[0].mxu0 %v712
        %v6534 = vpop.f32.mrb[0].mxu0
        %v6535 = vadd.f32 0.0, %v6534
        %v6536 = vpop.f32.mrb[0].mxu0
        %6537 = vmatprep.mubr.f32.mxu0 0.0
        %6538 = vmatmul.mubr.f32.gmra.mrb[0].mxu0 %v715
        %v6539 = vpop.f32.mrb[0].mxu0
        %v6540 = vadd.f32 0.0, %v6539
        %v6541 = vpop.f32.mrb[0].mxu0
        %6542 = vmatprep.mubr.f32.mxu0 0.0
        %6543 = vmatmul.mubr.f32.gmra.mrb[0].mxu0 %v718
        %v6544 = vpop.f32.mrb[0].mxu0
        %v6545 = vadd.f32 0.0, %v6544
        %v6546 = vpop.f32.mrb[0].mxu0
        %6547 = vmatprep.mubr.f32.mxu0 0.0
        %6548 = vmatmul.mubr.f32.gmra.mrb[0].mxu0 %v721
        %v6549 = vpop.f32.mrb[0].mxu0
        %v6550 = vadd.f32 0.0, %v6549
        %v6551 = vpop.f32.mrb[0].mxu0
        %6552 = vmatprep.mubr.f32.mxu0 0.0
        %6553 = vmatmul.mubr.f32.gmra.mrb[0].mxu0 %v724
        %v6554 = vpop.f32.mrb[0].mxu0
        %v6555 = vadd.f32 0.0, %v6554
        %v6556 = vpop.f32.mrb[0].mxu0
        %6557 = vmatprep.mubr.f32.mxu0 0.0
        %6558 = vmatmul.mubr.f32.gmra.mrb[0].mxu0 %v727
        %v6559 = vpop.f32.mrb[0].mxu0
        %v6560 = vadd.f32 0.0, %v6559
        %v6561 = vpop.f32.mrb[0].mxu0
        %6562 = vmatprep.mubr.f32.mxu0 0.0
        %6563 = vmatmul.mubr.f32.gmra.mrb[0].mxu0 %v730
        %v6564 = vpop.f32.mrb[0].mxu0
        %v6565 = vadd.f32 0.0, %v6564
        %v6566 = vpop.f32.mrb[0].mxu0
        %6567 = vmatprep.mubr.f32.mxu0 0.0
        %6568 = vmatmul.mubr.f32.gmra.mrb[0].mxu0 %v733
        %v6569 = vpop.f32.mrb[0].mxu0
        %v6570 = vadd.f32 0.0, %v6569
        %v6571 = vpop.f32.mrb[0].mxu0
        %6572 = vmatprep.mubr.f32.mxu0 0.0
        %6573 = vmatmul.mubr.f32.gmra.mrb[0].mxu0 %v736
        %v6574 = vpop.f32.mrb[0].mxu0
        %v6575 = vadd.f32 0.0, %v6574
        %v6576 = vpop.f32.mrb[0].mxu0
        %6577 = vmatprep.mubr.f32.mxu0 0.0
        %6578 = vmatmul.mubr.f32.gmra.mrb[0].mxu0 %v739
        %v6579 = vpop.f32.mrb[0].mxu0
        %v6580 = vadd.f32 0.0, %v6579
        %v6581 = vpop.f32.mrb[0].mxu0
        %6582 = vmatprep.mubr.f32.mxu0 0.0
        %6583 = vmatmul.mubr.f32.gmra.mrb[0].mxu0 %v742
        %v6584 = vpop.f32.mrb[0].mxu0
        %v6585 = vadd.f32 0.0, %v6584
        %v6586 = vpop.f32.mrb[0].mxu0
        %6587 = vmatprep.mubr.f32.mxu0 0.0
        %6588 = vmatmul.mubr.f32.gmra.mrb[0].mxu0 %v745
        %v6589 = vpop.f32.mrb[0].mxu0
        %v6590 = vadd.f32 0.0, %v6589
        %v6591 = vpop.f32.mrb[0].mxu0
        %6592 = vmatprep.mubr.f32.mxu0 0.0
        %6593 = vmatmul.mubr.f32.gmra.mrb[0].mxu0 %v748
        %v6594 = vpop.f32.mrb[0].mxu0
        %v6595 = vadd.f32 0.0, %v6594
        %v6596 = vpop.f32.mrb[0].mxu0
        %6597 = vmatprep.mubr.f32.mxu0 0.0
        %6598 = vmatmul.mubr.f32.gmra.mrb[0].mxu0 %v751
        %v6599 = vpop.f32.mrb[0].mxu0
        %v6600 = vadd.f32 0.0, %v6599
        %v6601 = vpop.f32.mrb[0].mxu0
        %6602 = vmatprep.mubr.f32.mxu0 0.0
        %6603 = vmatmul.mubr.f32.gmra.mrb[0].mxu0 %v754
        %v6604 = vpop.f32.mrb[0].mxu0
        %v6605 = vadd.f32 0.0, %v6604
        %v6606 = vpop.f32.mrb[0].mxu0
        %6607 = vmatprep.mubr.f32.mxu0 0.0
        %6608 = vmatmul.mubr.f32.gmra.mrb[0].mxu0 %v757
        %v6609 = vpop.f32.mrb[0].mxu0
        %v6610 = vadd.f32 0.0, %v6609
        %v6611 = vpop.f32.mrb[0].mxu0
        %6612 = vmatprep.mubr.f32.mxu0 0.0
        %6613 = vmatmul.mubr.f32.gmra.mrb[0].mxu0 %v760
        %v6614 = vpop.f32.mrb[0].mxu0
        %v6615 = vadd.f32 0.0, %v6614
        %v6616 = vpop.f32.mrb[0].mxu0
        %6617 = vmatprep.mubr.f32.mxu0 0.0
        %6618 = vmatmul.mubr.f32.gmra.mrb[0].mxu0 %v763
        %v6619 = vpop.f32.mrb[0].mxu0
        %v6620 = vadd.f32 0.0, %v6619
        %v6621 = vpop.f32.mrb[0].mxu0
        %6622 = vmatprep.mubr.f32.mxu0 0.0
        %6623 = vmatmul.mubr.f32.gmra.mrb[0].mxu0 %v766
        %v6624 = vpop.f32.mrb[0].mxu0
        %v6625 = vadd.f32 0.0, %v6624
        %v6626 = vpop.f32.mrb[0].mxu0
        %6627 = vmatprep.mubr.f32.mxu0 0.0
        %6628 = vmatmul.mubr.f32.gmra.mrb[0].mxu0 %v769
        %v6629 = vpop.f32.mrb[0].mxu0
        %v6630 = vadd.f32 0.0, %v6629
        %v6631 = vpop.f32.mrb[0].mxu0
        %6632 = vmatprep.mubr.f32.mxu0 0.0
        %6633 = vmatmul.mubr.f32.gmra.mrb[0].mxu0 %v772
        %v6634 = vpop.f32.mrb[0].mxu0
        %v6635 = vadd.f32 0.0, %v6634
        %v6636 = vpop.f32.mrb[0].mxu0
        %6637 = vmatprep.mubr.f32.mxu0 0.0
        %6638 = vmatmul.mubr.f32.gmra.mrb[0].mxu0 %v775
        %v6639 = vpop.f32.mrb[0].mxu0
        %v6640 = vadd.f32 0.0, %v6639
        %v6641 = vpop.f32.mrb[0].mxu0
        %6642 = vmatprep.mubr.f32.mxu0 0.0
        %6643 = vmatmul.mubr.f32.gmra.mrb[0].mxu0 %v778
        %v6644 = vpop.f32.mrb[0].mxu0
        %v6645 = vadd.f32 0.0, %v6644
        %v6646 = vpop.f32.mrb[0].mxu0
        %6647 = vmatprep.mubr.f32.mxu0 0.0
        %6648 = vmatmul.mubr.f32.gmra.mrb[0].mxu0 %v781
        %v6649 = vpop.f32.mrb[0].mxu0
        %v6650 = vadd.f32 0.0, %v6649
        %v6651 = vpop.f32.mrb[0].mxu0
        %6652 = vmatprep.mubr.f32.mxu0 0.0
        %6653 = vmatmul.mubr.f32.gmra.mrb[0].mxu0 %v784
        %v6654 = vpop.f32.mrb[0].mxu0
        %v6655 = vadd.f32 0.0, %v6654
        %v6656 = vpop.f32.mrb[0].mxu0
        %6657 = vmatprep.mubr.f32.mxu0 0.0
        %6658 = vmatmul.mubr.f32.gmra.mrb[0].mxu0 %v787
        %v6659 = vpop.f32.mrb[0].mxu0
        %v6660 = vadd.f32 0.0, %v6659
        %v6661 = vpop.f32.mrb[0].mxu0
        %6662 = vmatprep.mubr.f32.mxu0 0.0
        %6663 = vmatmul.mubr.f32.gmra.mrb[0].mxu0 %v790
        %v6664 = vpop.f32.mrb[0].mxu0
        %v6665 = vadd.f32 0.0, %v6664
        %v6666 = vpop.f32.mrb[0].mxu0
        %6667 = vmatprep.mubr.f32.mxu0 0.0
        %6668 = vmatmul.mubr.f32.gmra.mrb[0].mxu0 %v793
        %v6669 = vpop.f32.mrb[0].mxu0
        %v6670 = vadd.f32 0.0, %v6669
        %v6671 = vpop.f32.mrb[0].mxu0
        %6672 = vmatprep.mubr.f32.mxu0 0.0
        %6673 = vmatmul.mubr.f32.gmra.mrb[0].mxu0 %v796
        %v6674 = vpop.f32.mrb[0].mxu0
        %v6675 = vadd.f32 0.0, %v6674
        %v6676 = vpop.f32.mrb[0].mxu0
        %6677 = vmatprep.mubr.f32.mxu0 0.0
        %6678 = vmatmul.mubr.f32.gmra.mrb[0].mxu0 %v799
        %v6679 = vpop.f32.mrb[0].mxu0
        %v6680 = vadd.f32 0.0, %v6679
        %v6681 = vpop.f32.mrb[0].mxu0
        %6682 = vmatprep.mubr.f32.mxu0 0.0
        %6683 = vmatmul.mubr.f32.gmra.mrb[0].mxu0 %v802
        %v6684 = vpop.f32.mrb[0].mxu0
        %v6685 = vadd.f32 0.0, %v6684
        %v6686 = vpop.f32.mrb[0].mxu0
        %6687 = vmatprep.mubr.f32.mxu0 0.0
        %6688 = vmatmul.mubr.f32.gmra.mrb[0].mxu0 %v805
        %v6689 = vpop.f32.mrb[0].mxu0
        %v6690 = vadd.f32 0.0, %v6689
        %v6691 = vpop.f32.mrb[0].mxu0
        %6692 = vmatprep.mubr.f32.mxu0 0.0
        %6693 = vmatmul.mubr.f32.gmra.mrb[0].mxu0 %v808
        %v6694 = vpop.f32.mrb[0].mxu0
        %v6695 = vadd.f32 0.0, %v6694
        %v6696 = vpop.f32.mrb[0].mxu0
        %6697 = vmatprep.mubr.f32.mxu0 0.0
        %6698 = vmatmul.mubr.f32.gmra.mrb[0].mxu0 %v811
        %v6699 = vpop.f32.mrb[0].mxu0
        %v6700 = vadd.f32 0.0, %v6699
        %v6701 = vpop.f32.mrb[0].mxu0
        %6702 = vmatprep.mubr.f32.mxu0 0.0
        %6703 = vmatmul.mubr.f32.gmra.mrb[0].mxu0 %v814
        %v6704 = vpop.f32.mrb[0].mxu0
        %v6705 = vadd.f32 0.0, %v6704
        %v6706 = vpop.f32.mrb[0].mxu0
        %6707 = vmatprep.mubr.f32.mxu0 0.0
        %6708 = vmatmul.mubr.f32.gmra.mrb[0].mxu0 %v817
        %v6709 = vpop.f32.mrb[0].mxu0
        %v6710 = vadd.f32 0.0, %v6709
        %v6711 = vpop.f32.mrb[0].mxu0
        %6712 = vmatprep.mubr.f32.mxu0 0.0
        %6713 = vmatmul.mubr.f32.gmra.mrb[0].mxu0 %v820
        %v6714 = vpop.f32.mrb[0].mxu0
        %v6715 = vadd.f32 0.0, %v6714
        %v6716 = vpop.f32.mrb[0].mxu0
        %6717 = vmatprep.mubr.f32.mxu0 0.0
        %6718 = vmatmul.mubr.f32.gmra.mrb[0].mxu0 %v823
        %v6719 = vpop.f32.mrb[0].mxu0
        %v6720 = vadd.f32 0.0, %v6719
        %v6721 = vpop.f32.mrb[0].mxu0
        %6722 = vmatprep.mubr.f32.mxu0 0.0
        %6723 = vmatmul.mubr.f32.gmra.mrb[0].mxu0 %v826
        %v6724 = vpop.f32.mrb[0].mxu0
        %v6725 = vadd.f32 0.0, %v6724
        %v6726 = vpop.f32.mrb[0].mxu0
        %6727 = vdwg.mxu0
        %v6728 = vlaneseq
        %v6729 = vshrl.u32 %v6728, 7
        %v6730 = vsub.s32 1, %v6729
        %v6731 = vrot.slane %v4060, %v6730
        %v6732 = vmul.f32 %v6370, %v6731
        %v6733 = vmul.f32 %v6375, %v6731
        %v6734 = vmul.f32 %v6380, %v6731
        %v6735 = vmul.f32 %v6385, %v6731
        %v6736 = vmul.f32 %v6390, %v6731
        %v6737 = vmul.f32 %v6395, %v6731
        %v6738 = vmul.f32 %v6400, %v6731
        %v6739 = vmul.f32 %v6405, %v6731
        %v6740 = vlaneseq
        %v6741 = vshrl.u32 %v6740, 7
        %v6742 = vsub.s32 2, %v6741
        %v6743 = vrot.slane %v4060, %v6742
        %v6744 = vmul.f32 %v6410, %v6743
        %v6745 = vmul.f32 %v6415, %v6743
        %v6746 = vmul.f32 %v6420, %v6743
        %v6747 = vmul.f32 %v6425, %v6743
        %v6748 = vmul.f32 %v6430, %v6743
        %v6749 = vmul.f32 %v6435, %v6743
        %v6750 = vmul.f32 %v6440, %v6743
        %v6751 = vmul.f32 %v6445, %v6743
        %v6752 = vadd.f32 %v6732, %v6744
        %v6753 = vadd.f32 %v6733, %v6745
        %v6754 = vadd.f32 %v6734, %v6746
        %v6755 = vadd.f32 %v6735, %v6747
        %v6756 = vadd.f32 %v6736, %v6748
        %v6757 = vadd.f32 %v6737, %v6749
        %v6758 = vadd.f32 %v6738, %v6750
        %v6759 = vadd.f32 %v6739, %v6751
        %v6760 = vlaneseq
        %v6761 = vshrl.u32 %v6760, 7
        %v6762 = vsub.s32 3, %v6761
        %v6763 = vrot.slane %v4060, %v6762
        %v6764 = vmul.f32 %v6450, %v6763
        %v6765 = vmul.f32 %v6455, %v6763
        %v6766 = vmul.f32 %v6460, %v6763
        %v6767 = vmul.f32 %v6465, %v6763
        %v6768 = vmul.f32 %v6470, %v6763
        %v6769 = vmul.f32 %v6475, %v6763
        %v6770 = vmul.f32 %v6480, %v6763
        %v6771 = vmul.f32 %v6485, %v6763
        %v6772 = vadd.f32 %v6752, %v6764
        %v6773 = vadd.f32 %v6753, %v6765
        %v6774 = vadd.f32 %v6754, %v6766
        %v6775 = vadd.f32 %v6755, %v6767
        %v6776 = vadd.f32 %v6756, %v6768
        %v6777 = vadd.f32 %v6757, %v6769
        %v6778 = vadd.f32 %v6758, %v6770
        %v6779 = vadd.f32 %v6759, %v6771
        %v6780 = vlaneseq
        %v6781 = vshrl.u32 %v6780, 7
        %v6782 = vsub.s32 4, %v6781
        %v6783 = vrot.slane %v4060, %v6782
        %v6784 = vmul.f32 %v6490, %v6783
        %v6785 = vmul.f32 %v6495, %v6783
        %v6786 = vmul.f32 %v6500, %v6783
        %v6787 = vmul.f32 %v6505, %v6783
        %v6788 = vmul.f32 %v6510, %v6783
        %v6789 = vmul.f32 %v6515, %v6783
        %v6790 = vmul.f32 %v6520, %v6783
        %v6791 = vmul.f32 %v6525, %v6783
        %v6792 = vadd.f32 %v6772, %v6784
        %v6793 = vadd.f32 %v6773, %v6785
        %v6794 = vadd.f32 %v6774, %v6786
        %v6795 = vadd.f32 %v6775, %v6787
        %v6796 = vadd.f32 %v6776, %v6788
        %v6797 = vadd.f32 %v6777, %v6789
        %v6798 = vadd.f32 %v6778, %v6790
        %v6799 = vadd.f32 %v6779, %v6791
        %v6800 = vlaneseq
        %v6801 = vshrl.u32 %v6800, 7
        %v6802 = vsub.s32 5, %v6801
        %v6803 = vrot.slane %v4060, %v6802
        %v6804 = vmul.f32 %v6530, %v6803
        %v6805 = vmul.f32 %v6535, %v6803
        %v6806 = vmul.f32 %v6540, %v6803
        %v6807 = vmul.f32 %v6545, %v6803
        %v6808 = vmul.f32 %v6550, %v6803
        %v6809 = vmul.f32 %v6555, %v6803
        %v6810 = vmul.f32 %v6560, %v6803
        %v6811 = vmul.f32 %v6565, %v6803
        %v6812 = vadd.f32 %v6792, %v6804
        %v6813 = vadd.f32 %v6793, %v6805
        %v6814 = vadd.f32 %v6794, %v6806
        %v6815 = vadd.f32 %v6795, %v6807
        %v6816 = vadd.f32 %v6796, %v6808
        %v6817 = vadd.f32 %v6797, %v6809
        %v6818 = vadd.f32 %v6798, %v6810
        %v6819 = vadd.f32 %v6799, %v6811
        %v6820 = vlaneseq
        %v6821 = vshrl.u32 %v6820, 7
        %v6822 = vsub.s32 6, %v6821
        %v6823 = vrot.slane %v4060, %v6822
        %v6824 = vmul.f32 %v6570, %v6823
        %v6825 = vmul.f32 %v6575, %v6823
        %v6826 = vmul.f32 %v6580, %v6823
        %v6827 = vmul.f32 %v6585, %v6823
        %v6828 = vmul.f32 %v6590, %v6823
        %v6829 = vmul.f32 %v6595, %v6823
        %v6830 = vmul.f32 %v6600, %v6823
        %v6831 = vmul.f32 %v6605, %v6823
        %v6832 = vadd.f32 %v6812, %v6824
        %v6833 = vadd.f32 %v6813, %v6825
        %v6834 = vadd.f32 %v6814, %v6826
        %v6835 = vadd.f32 %v6815, %v6827
        %v6836 = vadd.f32 %v6816, %v6828
        %v6837 = vadd.f32 %v6817, %v6829
        %v6838 = vadd.f32 %v6818, %v6830
        %v6839 = vadd.f32 %v6819, %v6831
        %v6840 = vlaneseq
        %v6841 = vshrl.u32 %v6840, 7
        %v6842 = vsub.s32 7, %v6841
        %v6843 = vrot.slane %v4060, %v6842
        %v6844 = vmul.f32 %v6610, %v6843
        %v6845 = vmul.f32 %v6615, %v6843
        %v6846 = vmul.f32 %v6620, %v6843
        %v6847 = vmul.f32 %v6625, %v6843
        %v6848 = vmul.f32 %v6630, %v6843
        %v6849 = vmul.f32 %v6635, %v6843
        %v6850 = vmul.f32 %v6640, %v6843
        %v6851 = vmul.f32 %v6645, %v6843
        %v6852 = vadd.f32 %v6832, %v6844
        %v6853 = vadd.f32 %v6833, %v6845
        %v6854 = vadd.f32 %v6834, %v6846
        %v6855 = vadd.f32 %v6835, %v6847
        %v6856 = vadd.f32 %v6836, %v6848
        %v6857 = vadd.f32 %v6837, %v6849
        %v6858 = vadd.f32 %v6838, %v6850
        %v6859 = vadd.f32 %v6839, %v6851
        %v6860 = vlaneseq
        %v6861 = vshrl.u32 %v6860, 7
        %v6862 = vsub.s32 0, %v6861
        %v6863 = vrot.slane %v4061, %v6862
        %v6864 = vmul.f32 %v6650, %v6863
        %v6865 = vmul.f32 %v6655, %v6863
        %v6866 = vmul.f32 %v6660, %v6863
        %v6867 = vmul.f32 %v6665, %v6863
        %v6868 = vmul.f32 %v6670, %v6863
        %v6869 = vmul.f32 %v6675, %v6863
        %v6870 = vmul.f32 %v6680, %v6863
        %v6871 = vmul.f32 %v6685, %v6863
        %v6872 = vadd.f32 %v6852, %v6864
        %v6873 = vadd.f32 %v6853, %v6865
        %v6874 = vadd.f32 %v6854, %v6866
        %v6875 = vadd.f32 %v6855, %v6867
        %v6876 = vadd.f32 %v6856, %v6868
        %v6877 = vadd.f32 %v6857, %v6869
        %v6878 = vadd.f32 %v6858, %v6870
        %v6879 = vadd.f32 %v6859, %v6871
        %v6880 = vlaneseq
        %v6881 = vshrl.u32 %v6880, 7
        %v6882 = vsub.s32 1, %v6881
        %v6883 = vrot.slane %v4061, %v6882
        %v6884 = vmul.f32 %v6690, %v6883
        %v6885 = vmul.f32 %v6695, %v6883
        %v6886 = vmul.f32 %v6700, %v6883
        %v6887 = vmul.f32 %v6705, %v6883
        %v6888 = vmul.f32 %v6710, %v6883
        %v6889 = vmul.f32 %v6715, %v6883
        %v6890 = vmul.f32 %v6720, %v6883
        %v6891 = vmul.f32 %v6725, %v6883
        %v6892 = vadd.f32 %v6872, %v6884
        %v6893 = vadd.f32 %v6873, %v6885
        %v6894 = vadd.f32 %v6874, %v6886
        %v6895 = vadd.f32 %v6875, %v6887
        %v6896 = vadd.f32 %v6876, %v6888
        %v6897 = vadd.f32 %v6877, %v6889
        %v6898 = vadd.f32 %v6878, %v6890
        %v6899 = vadd.f32 %v6879, %v6891
        %v6900 = vlaneseq
        %v6901 = vshrl.u32 %v6900, 7
        %v6902 = vsub.s32 2, %v6901
        %v6903 = vrot.slane %v4061, %v6902
        %v6904 = vmul.f32 %v6892, %v6903
        %v6905 = vmul.f32 %v6893, %v6903
        %v6906 = vmul.f32 %v6894, %v6903
        %v6907 = vmul.f32 %v6895, %v6903
        %v6908 = vmul.f32 %v6896, %v6903
        %v6909 = vmul.f32 %v6897, %v6903
        %v6910 = vmul.f32 %v6898, %v6903
        %v6911 = vmul.f32 %v6899, %v6903
        %v6912 = vlaneseq
        %v6913 = vshrl.u32 %v6912, 7
        %v6914 = vsub.s32 3, %v6913
        %v6915 = vrot.slane %v4061, %v6914
        %v6916 = vadd.f32 %v6904, %v6915
        %v6917 = vadd.f32 %v6905, %v6915
        %v6918 = vadd.f32 %v6906, %v6915
        %v6919 = vadd.f32 %v6907, %v6915
        %v6920 = vadd.f32 %v6908, %v6915
        %v6921 = vadd.f32 %v6909, %v6915
        %v6922 = vadd.f32 %v6910, %v6915
        %v6923 = vadd.f32 %v6911, %v6915
        %v6924 = vlaneseq
        %v6925 = vshrl.u32 %v6924, 7
        %v6926 = vsub.s32 2, %v6925
        %v6927 = vrot.slane %v4689, %v6926
        %v6928 = vmul.f32 %v6927, %v6295
        %v6929 = vmul.f32 %v6927, %v6296
        %v6930 = vmul.f32 %v6927, %v6297
        %v6931 = vmul.f32 %v6927, %v6298
        %v6932 = vmul.f32 %v6927, %v6299
        %v6933 = vmul.f32 %v6927, %v6300
        %v6934 = vmul.f32 %v6927, %v6301
        %v6935 = vmul.f32 %v6927, %v6302
        %v6936 = vlaneseq
        %v6937 = vshrl.u32 %v6936, 7
        %v6938 = vsub.s32 2, %v6937
        %v6939 = vrot.slane %v4067, %v6938
        %v6940 = vmul.f32 %v6939, %v6916
        %v6941 = vmul.f32 %v6939, %v6917
        %v6942 = vmul.f32 %v6939, %v6918
        %v6943 = vmul.f32 %v6939, %v6919
        %v6944 = vmul.f32 %v6939, %v6920
        %v6945 = vmul.f32 %v6939, %v6921
        %v6946 = vmul.f32 %v6939, %v6922
        %v6947 = vmul.f32 %v6939, %v6923
        %v6948 = vadd.f32 %v6928, %v6940
        %v6949 = vadd.f32 %v6929, %v6941
        %v6950 = vadd.f32 %v6930, %v6942
        %v6951 = vadd.f32 %v6931, %v6943
        %v6952 = vadd.f32 %v6932, %v6944
        %v6953 = vadd.f32 %v6933, %v6945
        %v6954 = vadd.f32 %v6934, %v6946
        %v6955 = vadd.f32 %v6935, %v6947
        %s6956 = scalar_lea.vmem %s10, 2
        %v6957 = vld [vmem:[%s6956] sm:$0x3]
        %s6958 = scalar_lea.vmem %s9, 32
        %v6959 = vld [vmem:[%s6958] sm:$0xff]
        %v6960 = vld [vmem:[%s6958 + $0x8] sm:$0xff]
        %v6961 = vld [vmem:[%s6958 + $0x10] sm:$0xff]
        %v6962 = vld [vmem:[%s6958 + $0x18] sm:$0xff]
        %v6964 = vsel %vm1482, %v6948, 0
        %v6967 = vsel %vm1482, %v6949, 0
        %v6970 = vsel %vm1482, %v6950, 0
        %v6973 = vsel %vm1482, %v6951, 0
        %v6976 = vsel %vm1482, %v6952, 0
        %v6979 = vsel %vm1482, %v6953, 0
        %v6982 = vsel %vm1482, %v6954, 0
        %v6985 = vsel %vm1482, %v6955, 0
        %6987 = vmatprep.subr.mxu0 0.0
        %6988 = vmatpush1.msra.mxu0 %v6959
        %6989 = vmatprep.subr.mxu0 0.0
        %6990 = vmatpush1.msra.mxu0 %v6960
        %6991 = vmatprep.subr.mxu0 0.0
        %6992 = vmatpush1.msra.mxu0 %v6961
        %6993 = vmatprep.subr.mxu0 0.0
        %6994 = vmatpush1.msra.mxu0 %v6962
        %6995 = vmatprep.subr.mxu0 0.0
        %6996 = vmatpush1.msra.mxu0 0.0
        %6997 = vmatprep.subr.mxu0 0.0
        %6998 = vmatpush1.msra.mxu0 0.0
        %6999 = vmatprep.subr.mxu0 0.0
        %7000 = vmatpush1.msra.mxu0 0.0
        %7001 = vmatprep.subr.mxu0 0.0
        %7002 = vmatpush1.msra.mxu0 0.0
        %7003 = vmatprep.subr.mxu0 0.0
        %7004 = vmatpush1.msra.mxu0 0.0
        %7005 = vmatprep.subr.mxu0 0.0
        %7006 = vmatpush1.msra.mxu0 0.0
        %7007 = vmatprep.subr.mxu0 0.0
        %7008 = vmatpush1.msra.mxu0 0.0
        %7009 = vmatprep.subr.mxu0 0.0
        %7010 = vmatpush1.msra.mxu0 0.0
        %7011 = vmatprep.subr.mxu0 0.0
        %7012 = vmatpush1.msra.mxu0 0.0
        %7013 = vmatprep.subr.mxu0 0.0
        %7014 = vmatpush1.msra.mxu0 0.0
        %7015 = vmatprep.subr.mxu0 0.0
        %7016 = vmatpush1.msra.mxu0 0.0
        %7017 = vmatprep.subr.mxu0 0.0
        %7018 = vmatpush1.msra.mxu0 0.0
        %7019 = vmatprep.subr.mxu0 0.0
        %7020 = vmatpush1.msra.mxu0 0.0
        %7021 = vmatprep.subr.mxu0 0.0
        %7022 = vmatpush1.msra.mxu0 0.0
        %7023 = vmatprep.subr.mxu0 0.0
        %7024 = vmatpush1.msra.mxu0 0.0
        %7025 = vmatprep.subr.mxu0 0.0
        %7026 = vmatpush1.msra.mxu0 0.0
        %7027 = vmatprep.subr.mxu0 0.0
        %7028 = vmatpush1.msra.mxu0 0.0
        %7029 = vmatprep.subr.mxu0 0.0
        %7030 = vmatpush1.msra.mxu0 0.0
        %7031 = vmatprep.subr.mxu0 0.0
        %7032 = vmatpush1.msra.mxu0 0.0
        %7033 = vmatprep.subr.mxu0 0.0
        %7034 = vmatpush1.msra.mxu0 0.0
        %7035 = vmatprep.subr.mxu0 0.0
        %7036 = vmatpush1.msra.mxu0 0.0
        %7037 = vmatprep.subr.mxu0 0.0
        %7038 = vmatpush1.msra.mxu0 0.0
        %7039 = vmatprep.subr.mxu0 0.0
        %7040 = vmatpush1.msra.mxu0 0.0
        %7041 = vmatprep.subr.mxu0 0.0
        %7042 = vmatpush1.msra.mxu0 0.0
        %7043 = vmatprep.subr.mxu0 0.0
        %7044 = vmatpush1.msra.mxu0 0.0
        %7045 = vmatprep.subr.mxu0 0.0
        %7046 = vmatpush1.msra.mxu0 0.0
        %7047 = vmatprep.subr.mxu0 0.0
        %7048 = vmatpush1.msra.mxu0 0.0
        %7049 = vmatprep.subr.mxu0 0.0
        %7050 = vmatpush1.msra.mxu0 0.0
        %7051 = vmatprep.mubr.f32.mxu0 0.0
        %7052 = vmatmul.mubr.f32.gmra.mrb[0].mxu0 %v6964
        %v7053 = vpop.f32.mrb[0].mxu0
        %v7054 = vadd.f32 0.0, %v7053
        %v7055 = vpop.f32.mrb[0].mxu0
        %7056 = vmatprep.mubr.f32.mxu0 0.0
        %7057 = vmatmul.mubr.f32.gmra.mrb[0].mxu0 %v6967
        %v7058 = vpop.f32.mrb[0].mxu0
        %v7059 = vadd.f32 0.0, %v7058
        %v7060 = vpop.f32.mrb[0].mxu0
        %7061 = vmatprep.mubr.f32.mxu0 0.0
        %7062 = vmatmul.mubr.f32.gmra.mrb[0].mxu0 %v6970
        %v7063 = vpop.f32.mrb[0].mxu0
        %v7064 = vadd.f32 0.0, %v7063
        %v7065 = vpop.f32.mrb[0].mxu0
        %7066 = vmatprep.mubr.f32.mxu0 0.0
        %7067 = vmatmul.mubr.f32.gmra.mrb[0].mxu0 %v6973
        %v7068 = vpop.f32.mrb[0].mxu0
        %v7069 = vadd.f32 0.0, %v7068
        %v7070 = vpop.f32.mrb[0].mxu0
        %7071 = vmatprep.mubr.f32.mxu0 0.0
        %7072 = vmatmul.mubr.f32.gmra.mrb[0].mxu0 %v6976
        %v7073 = vpop.f32.mrb[0].mxu0
        %v7074 = vadd.f32 0.0, %v7073
        %v7075 = vpop.f32.mrb[0].mxu0
        %7076 = vmatprep.mubr.f32.mxu0 0.0
        %7077 = vmatmul.mubr.f32.gmra.mrb[0].mxu0 %v6979
        %v7078 = vpop.f32.mrb[0].mxu0
        %v7079 = vadd.f32 0.0, %v7078
        %v7080 = vpop.f32.mrb[0].mxu0
        %7081 = vmatprep.mubr.f32.mxu0 0.0
        %7082 = vmatmul.mubr.f32.gmra.mrb[0].mxu0 %v6982
        %v7083 = vpop.f32.mrb[0].mxu0
        %v7084 = vadd.f32 0.0, %v7083
        %v7085 = vpop.f32.mrb[0].mxu0
        %7086 = vmatprep.mubr.f32.mxu0 0.0
        %7087 = vmatmul.mubr.f32.gmra.mrb[0].mxu0 %v6985
        %v7088 = vpop.f32.mrb[0].mxu0
        %v7089 = vadd.f32 0.0, %v7088
        %v7090 = vpop.f32.mrb[0].mxu0
        %7091 = vdwg.mxu0
        %v7092 = vlaneseq
        %v7093 = vshrl.u32 %v7092, 7
        %v7094 = vsub.s32 0, %v7093
        %v7095 = vrot.slane %v6957, %v7094
        %v7096 = vmul.f32 %v7054, %v7095
        %v7097 = vmul.f32 %v7059, %v7095
        %v7098 = vmul.f32 %v7064, %v7095
        %v7099 = vmul.f32 %v7069, %v7095
        %v7100 = vmul.f32 %v7074, %v7095
        %v7101 = vmul.f32 %v7079, %v7095
        %v7102 = vmul.f32 %v7084, %v7095
        %v7103 = vmul.f32 %v7089, %v7095
        %v7104 = vlaneseq
        %v7105 = vshrl.u32 %v7104, 7
        %v7106 = vsub.s32 1, %v7105
        %v7107 = vrot.slane %v6957, %v7106
        %v7108 = vadd.f32 %v7096, %v7107
        %v7109 = vadd.f32 %v7097, %v7107
        %v7110 = vadd.f32 %v7098, %v7107
        %v7111 = vadd.f32 %v7099, %v7107
        %v7112 = vadd.f32 %v7100, %v7107
        %v7113 = vadd.f32 %v7101, %v7107
        %v7114 = vadd.f32 %v7102, %v7107
        %v7115 = vadd.f32 %v7103, %v7107
        %v7116 = vmax.f32 %v7108, 0.0
        %v7117 = vmax.f32 %v7109, 0.0
        %v7118 = vmax.f32 %v7110, 0.0
        %v7119 = vmax.f32 %v7111, 0.0
        %v7120 = vmax.f32 %v7112, 0.0
        %v7121 = vmax.f32 %v7113, 0.0
        %v7122 = vmax.f32 %v7114, 0.0
        %v7123 = vmax.f32 %v7115, 0.0
        %s7124 = scalar_lea.vmem %s11, 128
        %v7125 = vld [vmem:[%s7124] sm:$0xff]
        %v7126 = vld [vmem:[%s7124 + $0x8] sm:$0xff]
        %v7127 = vld [vmem:[%s7124 + $0x10] sm:$0xff]
        %v7128 = vld [vmem:[%s7124 + $0x18] sm:$0xff]
        %v7129 = vld [vmem:[%s7124 + $0x20] sm:$0xff]
        %v7130 = vld [vmem:[%s7124 + $0x28] sm:$0xff]
        %v7131 = vld [vmem:[%s7124 + $0x30] sm:$0xff]
        %v7132 = vld [vmem:[%s7124 + $0x38] sm:$0xff]
        %v7133 = vld [vmem:[%s7124 + $0x40] sm:$0xff]
        %v7134 = vld [vmem:[%s7124 + $0x48] sm:$0xff]
        %v7135 = vld [vmem:[%s7124 + $0x50] sm:$0xff]
        %v7136 = vld [vmem:[%s7124 + $0x58] sm:$0xff]
        %v7137 = vld [vmem:[%s7124 + $0x60] sm:$0xff]
        %v7138 = vld [vmem:[%s7124 + $0x68] sm:$0xff]
        %v7139 = vld [vmem:[%s7124 + $0x70] sm:$0xff]
        %v7140 = vld [vmem:[%s7124 + $0x78] sm:$0xff]
        %7141 = vmatprep.subr.mxu0 0.0
        %7142 = vmatpush1.msra.mxu0 %v7125
        %7143 = vmatprep.subr.mxu0 0.0
        %7144 = vmatpush1.msra.mxu0 %v7126
        %7145 = vmatprep.subr.mxu0 0.0
        %7146 = vmatpush1.msra.mxu0 %v7127
        %7147 = vmatprep.subr.mxu0 0.0
        %7148 = vmatpush1.msra.mxu0 %v7128
        %7149 = vmatprep.subr.mxu0 0.0
        %7150 = vmatpush1.msra.mxu0 %v7129
        %7151 = vmatprep.subr.mxu0 0.0
        %7152 = vmatpush1.msra.mxu0 %v7130
        %7153 = vmatprep.subr.mxu0 0.0
        %7154 = vmatpush1.msra.mxu0 %v7131
        %7155 = vmatprep.subr.mxu0 0.0
        %7156 = vmatpush1.msra.mxu0 %v7132
        %7157 = vmatprep.subr.mxu0 0.0
        %7158 = vmatpush1.msra.mxu0 %v7133
        %7159 = vmatprep.subr.mxu0 0.0
        %7160 = vmatpush1.msra.mxu0 %v7134
        %7161 = vmatprep.subr.mxu0 0.0
        %7162 = vmatpush1.msra.mxu0 %v7135
        %7163 = vmatprep.subr.mxu0 0.0
        %7164 = vmatpush1.msra.mxu0 %v7136
        %7165 = vmatprep.subr.mxu0 0.0
        %7166 = vmatpush1.msra.mxu0 %v7137
        %7167 = vmatprep.subr.mxu0 0.0
        %7168 = vmatpush1.msra.mxu0 %v7138
        %7169 = vmatprep.subr.mxu0 0.0
        %7170 = vmatpush1.msra.mxu0 %v7139
        %7171 = vmatprep.subr.mxu0 0.0
        %7172 = vmatpush1.msra.mxu0 %v7140
        %7173 = vmatprep.subr.mxu0 0.0
        %7174 = vmatpush1.msra.mxu0 0.0
        %7175 = vmatprep.subr.mxu0 0.0
        %7176 = vmatpush1.msra.mxu0 0.0
        %7177 = vmatprep.subr.mxu0 0.0
        %7178 = vmatpush1.msra.mxu0 0.0
        %7179 = vmatprep.subr.mxu0 0.0
        %7180 = vmatpush1.msra.mxu0 0.0
        %7181 = vmatprep.subr.mxu0 0.0
        %7182 = vmatpush1.msra.mxu0 0.0
        %7183 = vmatprep.subr.mxu0 0.0
        %7184 = vmatpush1.msra.mxu0 0.0
        %7185 = vmatprep.subr.mxu0 0.0
        %7186 = vmatpush1.msra.mxu0 0.0
        %7187 = vmatprep.subr.mxu0 0.0
        %7188 = vmatpush1.msra.mxu0 0.0
        %7189 = vmatprep.subr.mxu0 0.0
        %7190 = vmatpush1.msra.mxu0 0.0
        %7191 = vmatprep.subr.mxu0 0.0
        %7192 = vmatpush1.msra.mxu0 0.0
        %7193 = vmatprep.subr.mxu0 0.0
        %7194 = vmatpush1.msra.mxu0 0.0
        %7195 = vmatprep.subr.mxu0 0.0
        %7196 = vmatpush1.msra.mxu0 0.0
        %7197 = vmatprep.subr.mxu0 0.0
        %7198 = vmatpush1.msra.mxu0 0.0
        %7199 = vmatprep.subr.mxu0 0.0
        %7200 = vmatpush1.msra.mxu0 0.0
        %7201 = vmatprep.subr.mxu0 0.0
        %7202 = vmatpush1.msra.mxu0 0.0
        %7203 = vmatprep.subr.mxu0 0.0
        %7204 = vmatpush1.msra.mxu0 0.0
        %7205 = vmatprep.mubr.f32.mxu0 0.0
        %7206 = vmatmul.mubr.f32.gmra.mrb[0].mxu0 %v7116
        %v7207 = vpop.f32.mrb[0].mxu0
        %v7208 = vadd.f32 0.0, %v7207
        %v7209 = vpop.f32.mrb[0].mxu0
        %7210 = vmatprep.mubr.f32.mxu0 0.0
        %7211 = vmatmul.mubr.f32.gmra.mrb[0].mxu0 %v7117
        %v7212 = vpop.f32.mrb[0].mxu0
        %v7213 = vadd.f32 0.0, %v7212
        %v7214 = vpop.f32.mrb[0].mxu0
        %7215 = vmatprep.mubr.f32.mxu0 0.0
        %7216 = vmatmul.mubr.f32.gmra.mrb[0].mxu0 %v7118
        %v7217 = vpop.f32.mrb[0].mxu0
        %v7218 = vadd.f32 0.0, %v7217
        %v7219 = vpop.f32.mrb[0].mxu0
        %7220 = vmatprep.mubr.f32.mxu0 0.0
        %7221 = vmatmul.mubr.f32.gmra.mrb[0].mxu0 %v7119
        %v7222 = vpop.f32.mrb[0].mxu0
        %v7223 = vadd.f32 0.0, %v7222
        %v7224 = vpop.f32.mrb[0].mxu0
        %7225 = vmatprep.mubr.f32.mxu0 0.0
        %7226 = vmatmul.mubr.f32.gmra.mrb[0].mxu0 %v7120
        %v7227 = vpop.f32.mrb[0].mxu0
        %v7228 = vadd.f32 0.0, %v7227
        %v7229 = vpop.f32.mrb[0].mxu0
        %7230 = vmatprep.mubr.f32.mxu0 0.0
        %7231 = vmatmul.mubr.f32.gmra.mrb[0].mxu0 %v7121
        %v7232 = vpop.f32.mrb[0].mxu0
        %v7233 = vadd.f32 0.0, %v7232
        %v7234 = vpop.f32.mrb[0].mxu0
        %7235 = vmatprep.mubr.f32.mxu0 0.0
        %7236 = vmatmul.mubr.f32.gmra.mrb[0].mxu0 %v7122
        %v7237 = vpop.f32.mrb[0].mxu0
        %v7238 = vadd.f32 0.0, %v7237
        %v7239 = vpop.f32.mrb[0].mxu0
        %7240 = vmatprep.mubr.f32.mxu0 0.0
        %7241 = vmatmul.mubr.f32.gmra.mrb[0].mxu0 %v7123
        %v7242 = vpop.f32.mrb[0].mxu0
        %v7243 = vadd.f32 0.0, %v7242
        %v7244 = vpop.f32.mrb[0].mxu0
        %7245 = vdwg.mxu0
        %v7246 = vlaneseq
        %v7247 = vshrl.u32 %v7246, 7
        %v7248 = vsub.s32 4, %v7247
        %v7249 = vrot.slane %v4061, %v7248
        %v7250 = vmul.f32 %v7208, %v7249
        %v7251 = vmul.f32 %v7213, %v7249
        %v7252 = vmul.f32 %v7218, %v7249
        %v7253 = vmul.f32 %v7223, %v7249
        %v7254 = vmul.f32 %v7228, %v7249
        %v7255 = vmul.f32 %v7233, %v7249
        %v7256 = vmul.f32 %v7238, %v7249
        %v7257 = vmul.f32 %v7243, %v7249
        %v7258 = vlaneseq
        %v7259 = vshrl.u32 %v7258, 7
        %v7260 = vsub.s32 5, %v7259
        %v7261 = vrot.slane %v4061, %v7260
        %v7262 = vadd.f32 %v7250, %v7261
        %v7263 = vadd.f32 %v7251, %v7261
        %v7264 = vadd.f32 %v7252, %v7261
        %v7265 = vadd.f32 %v7253, %v7261
        %v7266 = vadd.f32 %v7254, %v7261
        %v7267 = vadd.f32 %v7255, %v7261
        %v7268 = vadd.f32 %v7256, %v7261
        %v7269 = vadd.f32 %v7257, %v7261
        %v7270 = vlaneseq
        %v7271 = vshrl.u32 %v7270, 7
        %v7272 = vsub.s32 3, %v7271
        %v7273 = vrot.slane %v4689, %v7272
        %v7274 = vmul.f32 %v7273, %v6948
        %v7275 = vmul.f32 %v7273, %v6949
        %v7276 = vmul.f32 %v7273, %v6950
        %v7277 = vmul.f32 %v7273, %v6951
        %v7278 = vmul.f32 %v7273, %v6952
        %v7279 = vmul.f32 %v7273, %v6953
        %v7280 = vmul.f32 %v7273, %v6954
        %v7281 = vmul.f32 %v7273, %v6955
        %v7282 = vlaneseq
        %v7283 = vshrl.u32 %v7282, 7
        %v7284 = vsub.s32 3, %v7283
        %v7285 = vrot.slane %v4067, %v7284
        %v7286 = vmul.f32 %v7285, %v7262
        %v7287 = vmul.f32 %v7285, %v7263
        %v7288 = vmul.f32 %v7285, %v7264
        %v7289 = vmul.f32 %v7285, %v7265
        %v7290 = vmul.f32 %v7285, %v7266
        %v7291 = vmul.f32 %v7285, %v7267
        %v7292 = vmul.f32 %v7285, %v7268
        %v7293 = vmul.f32 %v7285, %v7269
        %v7294 = vadd.f32 %v7274, %v7286
        %v7295 = vadd.f32 %v7275, %v7287
        %v7296 = vadd.f32 %v7276, %v7288
        %v7297 = vadd.f32 %v7277, %v7289
        %v7298 = vadd.f32 %v7278, %v7290
        %v7299 = vadd.f32 %v7279, %v7291
        %v7300 = vadd.f32 %v7280, %v7292
        %v7301 = vadd.f32 %v7281, %v7293
        %7302 = vst.msk [vmem:[%s520] sm:$0xff] %vm1482, %v7294
        %7303 = vst.msk [vmem:[%s520 + $0x8] sm:$0xff] %vm1482, %v7295
        %7304 = vst.msk [vmem:[%s520 + $0x10] sm:$0xff] %vm1482, %v7296
        %7305 = vst.msk [vmem:[%s520 + $0x18] sm:$0xff] %vm1482, %v7297
        %7306 = vst.msk [vmem:[%s520 + $0x20] sm:$0xff] %vm1482, %v7298
        %7307 = vst.msk [vmem:[%s520 + $0x28] sm:$0xff] %vm1482, %v7299
        %7308 = vst.msk [vmem:[%s520 + $0x30] sm:$0xff] %vm1482, %v7300
        %7309 = vst.msk [vmem:[%s520 + $0x38] sm:$0xff] %vm1482, %v7301
        %7310 = vst.msk [vmem:[%s510] sm:$0xff] %vm1482, %v6126
        %7311 = vst.msk [vmem:[%s510 + $0x8] sm:$0xff] %vm1482, %v6131
        %p7312 = scmp.lt.s32.totalorder %s32, 1
        %s7313 = scalar_select %p7312, %s32, 1
        %s7314 = smul.addr %s7313, 8
        %s7315 = smul.addr %s7314, 8
        %s7316 = scalar_lea.vmem %s13, %s7315
        %s7317 = sand.u32 %s344, 1
        %s7318 = scalar_lea.sflag [#allocation4], %s7317
        %s7319 = sand.u32 %s344, 1
        %s7320 = smul.addr %s7319, 16
        %s7321 = scalar_lea.vmem [#allocation9], %s7320
        // Predicated region
        $region85: #{efficientvim_stage.1} parent=71 // pred_check
          %p7322 = pneg %p328
        $region86: #{efficientvim_stage.1} parent=71 // pred_check_branch
          %7324 = sbr.rel (%p7322) target = $region88
        $region87: #{efficientvim_stage.1} parent=71 // pred_region
          _
        $region88: #{efficientvim_stage.1} parent=71 // pred_fallthru
          _
        // Predicated region
        $region89: #{efficientvim_stage.1} parent=71 // pred_check
          %p7325 = pneg %p354
        $region90: #{efficientvim_stage.1} parent=71 // pred_check_branch
          %7327 = sbr.rel (%p7325) target = $region92
        $region91: #{efficientvim_stage.1} parent=71 // pred_region
          %s7329 = ssub.s32 256, 256
          %7330 = vsyncadd %s7318, %s7329
          %s7331 = smul.addr %s32, 2
          %s7332 = smul.addr %s7331, 128
          %s7333 = scalar_lea.hbm %s14, %s7332
          %s7334 = sshll.u32 %s7321, 4
          %s7335 = int_to_ptr.vmem [resolvable:$true] %s7334
          %7340 = dma.vmem_to_hbm [thread:$0]  %s7335, 256, %s7333, %s7318, 128, 128, 8
        $region92: #{efficientvim_stage.1} parent=71 // pred_fallthru
          _
      $region72: #{efficientvim_stage.1} parent=5 // pred_fallthru
        _
      %p7341 = scmp.le.s32.totalorder 2, %s27
      // Predicated region
      $region93: #{efficientvim_stage.1} parent=5 // pred_check
        %p7342 = pneg %p7341
      $region94: #{efficientvim_stage.1} parent=5 // pred_check_branch
        %7344 = sbr.rel (%p7342) target = $region96
      $region95: #{efficientvim_stage.1} parent=5 // pred_region
        %s7345 = ssub.s32 %s27, 2
        // Predicated region
        $region97: #{efficientvim_stage.1} parent=95 // pred_check
          %p7346 = pneg %p334
        $region98: #{efficientvim_stage.1} parent=95 // pred_check_branch
          %7348 = sbr.rel (%p7346) target = $region100
        $region99: #{efficientvim_stage.1} parent=95 // pred_region
          %p7349 = scmp.lt.s32.totalorder %s33, 1
          %s7350 = scalar_select %p7349, %s33, 1
          %s7351 = smul.addr %s7350, 8
          %s7352 = smul.addr %s7351, 8
          %s7353 = scalar_lea.vmem %s13, %s7352
        $region100: #{efficientvim_stage.1} parent=95 // pred_fallthru
          _
        // Predicated region
        $region101: #{efficientvim_stage.1} parent=95 // pred_check
          %p7354 = pneg %p360
        $region102: #{efficientvim_stage.1} parent=95 // pred_check_branch
          %7356 = sbr.rel (%p7354) target = $region104
        $region103: #{efficientvim_stage.1} parent=95 // pred_region
          %s7357 = sand.u32 %s345, 1
          %s7358 = scalar_lea.sflag [#allocation4], %s7357
          %s7359 = sand.u32 %s345, 1
          %s7360 = smul.addr %s7359, 16
          %s7361 = scalar_lea.vmem [#allocation9], %s7360
          %7362 = dma.done %s7358, 256
        $region104: #{efficientvim_stage.1} parent=95 // pred_fallthru
          _
      $region96: #{efficientvim_stage.1} parent=5 // pred_fallthru
        _
    $region6: #{efficientvim_stage.1} parent=1 // loop_footer
      %s31 = sadd.s32 1, %s27
    $region7: #{efficientvim_stage.1} parent=1 // loop_footer_branch
      %26 = sbr.rel target = $region3
    $region8: #{efficientvim_stage.1} parent=1 // loop_exit
      _
    %7363 = vsyncpa [#allocation3], 1
    %s7364 = scalar_lea.sflag [#allocation3], 1
    %7365 = vsyncpa %s7364, 1
    %7366 = vsyncpa [#allocation7], 1
    %7367 = vsyncpa [#allocation4], 1
    %s7368 = scalar_lea.sflag [#allocation4], 1
    %7369 = vsyncpa %s7368, 1
    %7370 = vsyncpa [#allocation5], 1
    %s7371 = scalar_lea.sflag [#allocation5], 1
    %7372 = vsyncpa %s7371, 1

</llo_original>
